<compile_context>
chip_gen: v6e
topology: v6e:2x2x1
jax: 0.10.0
libtpu: 0.0.40
codegen_flags: <defaults>
</compile_context>

<pallas_src>
import jax
import jax.numpy as jnp
import numpy as np
from jax import lax
from jax.experimental import pallas as pl
from jax.experimental.pallas import tpu as pltpu

EMB_DIM = 100
EMBP = 128            # embedding dim padded to 128 lanes
HIDDEN = 50
SEQ_LEN = 25          # nn.Linear(1250, 100) => 1250 / 50 = 25 timesteps
N_CLASS = 7
VOC_SIZE = 1000       # synthetic vocabulary size

GP = 128              # padded per-gate width   (HIDDEN=50  -> 128 lanes)
HEADP = 128           # padded head width       (100 -> 128, N_CLASS=7 -> 128)
SUBLANE = 8
MAX_BT = 64           # batch-tile cap (vreg pressure under unroll=True)


# ---------------------------------------------------------------------------
# Fused kernel: hoisted input projection + LSTM recurrence + classifier head.
# Gate order matches PyTorch (i, f, g, o); gate k lives in lanes [k*GP, k*GP+H).
# ---------------------------------------------------------------------------
def _fused_lstm_head_kernel(emb_ref, w_ih_ref, w_hh_ref, b_lstm_ref,
                            w_lin_ref, b_lin_ref, w_out_ref, b_out_ref,
                            out_ref, gates_ref, h_all_ref):
    Bt = out_ref.shape[0]
    T = gates_ref.shape[0] // Bt

    # ---- hoisted, time-invariant input projection: (T*Bt, 128) @ (128, 512) ----
    gates_ref[...] = (
        jnp.dot(emb_ref[...], w_ih_ref[...], preferred_element_type=jnp.float32)
        + b_lstm_ref[...]
    )

    h0 = jnp.zeros((Bt, GP), jnp.float32)
    c0 = jnp.zeros((Bt, GP), jnp.float32)

    def step(t, carry):
        h, c = carry
        row = pl.multiple_of(t * Bt, Bt)                      # sublane-aligned start
        g_in = gates_ref[pl.ds(row, Bt), :]                   # (Bt, 4*GP) f32
        # TODO(synk): if the Mosaic bundle dump shows the loop-invariant w_hh being
        # re-pushed each unrolled step, switch to pltpu.matmul_push_rhs /
        # matmul_acc_lhs / matmul_pop to keep it resident in the MXU staging regs.
        gates = g_in + jnp.dot(h.astype(jnp.bfloat16), w_hh_ref[...],
                               preferred_element_type=jnp.float32)
        # 128-lane-aligned gate slices (no cross-lane work), all f32 elementwise.
        i_g = jax.nn.sigmoid(gates[:, 0 * GP:1 * GP])
        f_g = jax.nn.sigmoid(gates[:, 1 * GP:2 * GP])
        g_g = jnp.tanh(gates[:, 2 * GP:3 * GP])
        o_g = jax.nn.sigmoid(gates[:, 3 * GP:4 * GP])
        c_new = f_g * c + i_g * g_g
        h_new = o_g * jnp.tanh(c_new)
        # Only a store on the critical path: head matmul is deferred to after the loop.
        col = pl.multiple_of(t * GP, GP)
        h_all_ref[:, pl.ds(col, GP)] = h_new.astype(jnp.bfloat16)
        return h_new, c_new

    lax.fori_loop(0, T, step, (h0, c0), unroll=True)

    # ---- classifier head: one (Bt, T*GP) @ (T*GP, HEADP) matmul, relu, out ----
    acc = jnp.dot(h_all_ref[...], w_lin_ref[...],
                  preferred_element_type=jnp.float32)
    hidden = jnp.maximum(acc + b_lin_ref[...], 0.0)           # pad cols stay 0
    out_ref[...] = (
        jnp.dot(hidden.astype(jnp.bfloat16), w_out_ref[...],
                preferred_element_type=jnp.float32)
        + b_out_ref[...]
    )


def fused_forward(emb_tm, kp, Bp, Bt):
    """emb_tm: (nb, T*Bt, EMBP) bf16, time-major within each batch tile."""
    nb = Bp // Bt
    T = SEQ_LEN

    def const_spec(arr):
        nd = arr.ndim
        return pl.BlockSpec(arr.shape, lambda b, nd=nd: (0,) * nd)

    # Advisory cost estimate for the XLA scheduler.
    flops = (2 * T * Bp * EMBP * 4 * GP           # hoisted input projection
             + 2 * T * Bp * GP * 4 * GP           # recurrence h @ w_hh
             + 2 * Bp * (T * GP) * HEADP          # fused head (flat @ w_lin)
             + 2 * Bp * HEADP * HEADP)            # output layer
    transcendentals = T * Bp * 5 * GP             # 3 sigmoid + 2 tanh per step
    bytes_accessed = (emb_tm.size * 2
                      + (kp["w_ih_p"].size + kp["w_hh_p"].size
                         + kp["w_lin_p"].size + kp["w_out_p"].size) * 2
                      + (kp["b_lstm_p"].size + kp["b_lin_p"].size
                         + kp["b_out_p"].size) * 4
                      + Bp * HEADP * 4)

    grid_spec = pltpu.PrefetchScalarGridSpec(
        num_scalar_prefetch=0,
        grid=(nb,),
        in_specs=[
            pl.BlockSpec((None, T * Bt, EMBP), lambda b: (b, 0, 0)),  # per-tile emb
            const_spec(kp["w_ih_p"]),
            const_spec(kp["w_hh_p"]),
            const_spec(kp["b_lstm_p"]),
            const_spec(kp["w_lin_p"]),
            const_spec(kp["b_lin_p"]),
            const_spec(kp["w_out_p"]),
            const_spec(kp["b_out_p"]),
        ],
        out_specs=pl.BlockSpec((Bt, HEADP), lambda b: (b, 0)),
        scratch_shapes=[
            pltpu.VMEM((T * Bt, 4 * GP), jnp.float32),    # hoisted gate activations
            pltpu.VMEM((Bt, T * GP), jnp.bfloat16),       # lane-concatenated h_t
        ],
    )
    return pl.pallas_call(
        _fused_lstm_head_kernel,
        out_shape=jax.ShapeDtypeStruct((Bp, HEADP), jnp.float32),
        grid_spec=grid_spec,
        compiler_params=pltpu.CompilerParams(
            dimension_semantics=("parallel",),
            vmem_limit_bytes=32 * 1024 * 1024),
        cost_estimate=pl.CostEstimate(flops=flops,
                                      transcendentals=transcendentals,
                                      bytes_accessed=bytes_accessed),
    )(emb_tm, kp["w_ih_p"], kp["w_hh_p"], kp["b_lstm_p"],
      kp["w_lin_p"], kp["b_lin_p"], kp["w_out_p"], kp["b_out_p"])


# ---------------------------------------------------------------------------
# Full model forward (glue + fused kernel)
# ---------------------------------------------------------------------------
@jax.jit
def model_forward(x_ids, kparams):
    B, T = x_ids.shape
    Bp8 = ((B + SUBLANE - 1) // SUBLANE) * SUBLANE
    Bt = min(Bp8, MAX_BT)                                  # batch tile (multiple of 8)
    Bp = ((Bp8 + Bt - 1) // Bt) * Bt
    nb = Bp // Bt
    # Embedding lookup is a pure gather -> done in JAX glue.  Only the tiny int32
    # id matrix is transposed/tiled; the gather directly produces the time-major
    # per-tile layout (no (B,T,E) activation transpose pass in HBM).
    ids_p = jnp.pad(x_ids, ((0, Bp - B), (0, 0)))          # pad batch rows with id 0
    ids_tm = jnp.transpose(ids_p.reshape(nb, Bt, T), (0, 2, 1)).reshape(nb, T * Bt)
    emb_tm = jnp.take(kparams["emb"], ids_tm, axis=0)      # (nb, T*Bt, EMBP) bf16
    out_pad = fused_forward(emb_tm, kparams, Bp, Bt)       # (Bp, HEADP) f32
    return out_pad[:B, :N_CLASS]


# ---------------------------------------------------------------------------
# Parameter init (PyTorch-style shapes, stored transposed for x @ W) + padding
# into the lane-aligned bf16 kernel layout.
# ---------------------------------------------------------------------------
def init_params(key):
    ks = jax.random.split(key, 8)
    s_lstm = 1.0 / np.sqrt(HIDDEN)
    s_lin = 1.0 / np.sqrt(SEQ_LEN * HIDDEN)
    s_out = 1.0 / np.sqrt(100)
    return {
        "emb": jax.random.normal(ks[0], (VOC_SIZE, EMB_DIM), jnp.float32),
        "w_ih_t": jax.random.uniform(ks[1], (EMB_DIM, 4 * HIDDEN), jnp.float32,
                                     -s_lstm, s_lstm),
        "w_hh_t": jax.random.uniform(ks[2], (HIDDEN, 4 * HIDDEN), jnp.float32,
                                     -s_lstm, s_lstm),
        "b_lstm": jax.random.uniform(ks[3], (1, 4 * HIDDEN), jnp.float32,
                                     -s_lstm, s_lstm),
        "w_lin_t": jax.random.uniform(ks[4], (SEQ_LEN * HIDDEN, 100), jnp.float32,
                                      -s_lin, s_lin),
        "b_lin": jax.random.uniform(ks[5], (1, 100), jnp.float32, -s_lin, s_lin),
        "w_out_t": jax.random.uniform(ks[6], (100, N_CLASS), jnp.float32,
                                      -s_out, s_out),
        "b_out": jax.random.uniform(ks[7], (1, N_CLASS), jnp.float32,
                                    -s_out, s_out),
    }


def pad_params(p):
    """Re-lay-out weights into 128-lane-aligned bf16 blocks for the kernel."""
    H = HIDDEN

    def pad_gate_cols(w):                     # (rows, 4H) -> (rows, 4*GP)
        rows = w.shape[0]
        out = jnp.zeros((rows, 4 * GP), jnp.float32)
        for k in range(4):
            out = out.at[:, k * GP:k * GP + H].set(w[:, k * H:(k + 1) * H])
        return out

    emb_p = (jnp.zeros((VOC_SIZE, EMBP), jnp.float32)
             .at[:, :EMB_DIM].set(p["emb"]).astype(jnp.bfloat16))
    w_ih_p = (jnp.zeros((EMBP, 4 * GP), jnp.float32)
              .at[:EMB_DIM, :].set(pad_gate_cols(p["w_ih_t"]))
              .astype(jnp.bfloat16))                                      # (128, 4GP)
    w_hh_p = (jnp.zeros((GP, 4 * GP), jnp.float32)
              .at[:H, :].set(pad_gate_cols(p["w_hh_t"]))
              .astype(jnp.bfloat16))                                      # (GP, 4GP)
    b_lstm_p = pad_gate_cols(p["b_lstm"])                                 # (1, 4GP) f32

    w_lin_blocks = p["w_lin_t"].reshape(SEQ_LEN, H, 100)
    w_lin_p = (jnp.zeros((SEQ_LEN, GP, HEADP), jnp.float32)
               .at[:, :H, :100].set(w_lin_blocks)
               .reshape(SEQ_LEN * GP, HEADP)
               .astype(jnp.bfloat16))                                     # (T*GP, 128)
    b_lin_p = jnp.zeros((1, HEADP), jnp.float32).at[:, :100].set(p["b_lin"])
    w_out_p = (jnp.zeros((HEADP, HEADP), jnp.float32)
               .at[:100, :N_CLASS].set(p["w_out_t"]).astype(jnp.bfloat16))
    b_out_p = jnp.zeros((1, HEADP), jnp.float32).at[:, :N_CLASS].set(p["b_out"])

    return {"emb": emb_p, "w_ih_p": w_ih_p, "w_hh_p": w_hh_p,
            "b_lstm_p": b_lstm_p, "w_lin_p": w_lin_p, "b_lin_p": b_lin_p,
            "w_out_p": w_out_p, "b_out_p": b_out_p}


# ---------------------------------------------------------------------------
# Pure-JAX reference (unpadded f32) for correctness checking
# ---------------------------------------------------------------------------
def reference_forward(x_ids, params):
    B = x_ids.shape[0]
    emb = params["emb"][x_ids]                                # (B, T, E)

    def step(carry, x_t):
        h, c = carry
        gates = x_t @ params["w_ih_t"] + h @ params["w_hh_t"] + params["b_lstm"]
        H = HIDDEN
        i = jax.nn.sigmoid(gates[:, :H])
        f = jax.nn.sigmoid(gates[:, H:2 * H])
        g = jnp.tanh(gates[:, 2 * H:3 * H])
        o = jax.nn.sigmoid(gates[:, 3 * H:])
        c_new = f * c + i * g
        h_new = o * jnp.tanh(c_new)
        return (h_new, c_new), h_new

    init = (jnp.zeros((B, HIDDEN), jnp.float32), jnp.zeros((B, HIDDEN), jnp.float32))
    _, hs = lax.scan(step, init, jnp.transpose(emb, (1, 0, 2)))
    flat = jnp.transpose(hs, (1, 0, 2)).reshape(B, -1)
    hidden = jnp.maximum(flat @ params["w_lin_t"] + params["b_lin"], 0.0)
    return hidden @ params["w_out_t"] + params["b_out"]


if __name__ == "__main__":
    key = jax.random.PRNGKey(0)
    k_x, k_p = jax.random.split(key)
    x_ids = jax.random.randint(k_x, (2, SEQ_LEN), 0, VOC_SIZE, dtype=jnp.int32)
    params = init_params(k_p)
    kparams = pad_params(params)

    logits = model_forward(x_ids, kparams)
    logits = jax.block_until_ready(logits)

    ref = reference_forward(x_ids, params)
    assert logits.shape == (2, N_CLASS), logits.shape
    # Tolerance widened slightly to account for bf16 weight/activation storage
    # (all accumulation and gate math stays in f32).
    np.testing.assert_allclose(np.asarray(logits), np.asarray(ref),
                               rtol=2e-2, atol=2e-2)
    print("KERNEL_OK")
</pallas_src>

<mosaic_0001>
module attributes {stable_mosaic.version = 11 : i64} {
  func.func @_fused_lstm_head_kernel(%arg0: i32, %arg1: memref<1x200x128xbf16, #tpu.memory_space<vmem>>, %arg2: memref<128x512xbf16, #tpu.memory_space<vmem>>, %arg3: memref<128x512xbf16, #tpu.memory_space<vmem>>, %arg4: memref<1x512xf32, #tpu.memory_space<vmem>>, %arg5: memref<3200x128xbf16, #tpu.memory_space<vmem>>, %arg6: memref<1x128xf32, #tpu.memory_space<vmem>>, %arg7: memref<128x128xbf16, #tpu.memory_space<vmem>>, %arg8: memref<1x128xf32, #tpu.memory_space<vmem>>, %arg9: memref<8x128xf32, #tpu.memory_space<vmem>>, %arg10: memref<200x512xf32, #tpu.memory_space<vmem>>, %arg11: memref<8x3200xbf16, #tpu.memory_space<vmem>>) attributes {dimension_semantics = [#tpu.dimension_semantics<parallel>], iteration_bounds = array<i64: 1>, scalar_prefetch = 0 : i64, scratch_operands = 2 : i64, tpu.core_type = #tpu.core_type<tc>, window_params = [{transform_indices = @transform_0, window_bounds = array<i64: 1, 200, 128>}, {pipeline_mode = #tpu.pipeline_mode<synchronous>, transform_indices = @transform_1, window_bounds = array<i64: 128, 512>}, {pipeline_mode = #tpu.pipeline_mode<synchronous>, transform_indices = @transform_2, window_bounds = array<i64: 128, 512>}, {pipeline_mode = #tpu.pipeline_mode<synchronous>, transform_indices = @transform_3, window_bounds = array<i64: 1, 512>}, {pipeline_mode = #tpu.pipeline_mode<synchronous>, transform_indices = @transform_4, window_bounds = array<i64: 3200, 128>}, {pipeline_mode = #tpu.pipeline_mode<synchronous>, transform_indices = @transform_5, window_bounds = array<i64: 1, 128>}, {pipeline_mode = #tpu.pipeline_mode<synchronous>, transform_indices = @transform_6, window_bounds = array<i64: 128, 128>}, {pipeline_mode = #tpu.pipeline_mode<synchronous>, transform_indices = @transform_7, window_bounds = array<i64: 1, 128>}, {transform_indices = @transform_8, window_bounds = array<i64: 8, 128>}]} {
    %c0 = arith.constant 0 : index
    %c0_0 = arith.constant 0 : index
    %c0_1 = arith.constant 0 : index
    %0 = vector.load %arg1[%c0, %c0_0, %c0_1] : memref<1x200x128xbf16, #tpu.memory_space<vmem>>, vector<1x200x128xbf16>
    %1 = vector.shape_cast %0 : vector<1x200x128xbf16> to vector<200x128xbf16>
    %c0_2 = arith.constant 0 : index
    %c0_3 = arith.constant 0 : index
    %2 = vector.load %arg2[%c0_2, %c0_3] : memref<128x512xbf16, #tpu.memory_space<vmem>>, vector<128x512xbf16>
    %cst = arith.constant dense<0.000000e+00> : vector<200x512xf32>
    %3 = tpu.matmul %1, %2, %cst {dimension_numbers = #tpu.dot_dimension_numbers<[1], [0], [0], [1], [0, 0, 1, 1], [], []>} : vector<200x128xbf16>, vector<128x512xbf16>, vector<200x512xf32> -> vector<200x512xf32>
    %c0_4 = arith.constant 0 : index
    %c0_5 = arith.constant 0 : index
    %4 = vector.load %arg4[%c0_4, %c0_5] : memref<1x512xf32, #tpu.memory_space<vmem>>, vector<1x512xf32>
    %5 = vector.broadcast %4 : vector<1x512xf32> to vector<200x512xf32>
    %6 = arith.addf %3, %5 : vector<200x512xf32>
    %c0_6 = arith.constant 0 : index
    %c0_7 = arith.constant 0 : index
    %7 = vector.load %arg10[%c0_6, %c0_7] : memref<200x512xf32, #tpu.memory_space<vmem>>, vector<200x512xf32>
    tpu.vector_store %arg10[%c0_6, %c0_7], %6 {strides = array<i32>} : memref<200x512xf32, #tpu.memory_space<vmem>>, vector<200x512xf32>,
    %cst_8 = arith.constant 0.000000e+00 : f32
    %8 = vector.broadcast %cst_8 : f32 to vector<8x128xf32>
    %cst_9 = arith.constant 0.000000e+00 : f32
    %9 = vector.broadcast %cst_9 : f32 to vector<8x128xf32>
    %c0_i32 = arith.constant 0 : i32
    %c8_i32 = arith.constant 8 : i32
    %10 = arith.muli %c0_i32, %c8_i32 : i32
    %11 = tpu.assume_multiple %10, 8 : i32
    %12 = arith.index_cast %11 : i32 to index
    %c0_10 = arith.constant 0 : index
    %13 = vector.load %arg10[%12, %c0_10] : memref<200x512xf32, #tpu.memory_space<vmem>>, vector<8x512xf32>
    %14 = arith.truncf %8 : vector<8x128xf32> to vector<8x128xbf16>
    %c0_11 = arith.constant 0 : index
    %c0_12 = arith.constant 0 : index
    %15 = vector.load %arg3[%c0_11, %c0_12] : memref<128x512xbf16, #tpu.memory_space<vmem>>, vector<128x512xbf16>
    %cst_13 = arith.constant dense<0.000000e+00> : vector<8x512xf32>
    %16 = tpu.matmul %14, %15, %cst_13 {dimension_numbers = #tpu.dot_dimension_numbers<[1], [0], [0], [1], [0, 0, 1, 1], [], []>} : vector<8x128xbf16>, vector<128x512xbf16>, vector<8x512xf32> -> vector<8x512xf32>
    %17 = arith.addf %13, %16 : vector<8x512xf32>
    %18 = vector.extract_strided_slice %17 {offsets = [0, 0], sizes = [8, 128], strides = [1, 1]} : vector<8x512xf32> to vector<8x128xf32>
    %19 = arith.negf %18 : vector<8x128xf32>
    %20 = math.exp %19 : vector<8x128xf32>
    %cst_14 = arith.constant 1.000000e+00 : f32
    %21 = vector.broadcast %cst_14 : f32 to vector<8x128xf32>
    %22 = arith.addf %21, %20 : vector<8x128xf32>
    %23 = arith.divf %21, %22 : vector<8x128xf32>
    %24 = vector.extract_strided_slice %17 {offsets = [0, 128], sizes = [8, 128], strides = [1, 1]} : vector<8x512xf32> to vector<8x128xf32>
    %25 = arith.negf %24 : vector<8x128xf32>
    %26 = math.exp %25 : vector<8x128xf32>
    %cst_15 = arith.constant 1.000000e+00 : f32
    %27 = vector.broadcast %cst_15 : f32 to vector<8x128xf32>
    %28 = arith.addf %27, %26 : vector<8x128xf32>
    %29 = arith.divf %27, %28 : vector<8x128xf32>
    %30 = vector.extract_strided_slice %17 {offsets = [0, 256], sizes = [8, 128], strides = [1, 1]} : vector<8x512xf32> to vector<8x128xf32>
    %31 = math.tanh %30 : vector<8x128xf32>
    %32 = vector.extract_strided_slice %17 {offsets = [0, 384], sizes = [8, 128], strides = [1, 1]} : vector<8x512xf32> to vector<8x128xf32>
    %33 = arith.negf %32 : vector<8x128xf32>
    %34 = math.exp %33 : vector<8x128xf32>
    %cst_16 = arith.constant 1.000000e+00 : f32
    %35 = vector.broadcast %cst_16 : f32 to vector<8x128xf32>
    %36 = arith.addf %35, %34 : vector<8x128xf32>
    %37 = arith.divf %35, %36 : vector<8x128xf32>
    %38 = arith.mulf %29, %9 : vector<8x128xf32>
    %39 = arith.mulf %23, %31 : vector<8x128xf32>
    %40 = arith.addf %38, %39 : vector<8x128xf32>
    %41 = math.tanh %40 : vector<8x128xf32>
    %42 = arith.mulf %37, %41 : vector<8x128xf32>
    %c128_i32 = arith.constant 128 : i32
    %43 = arith.muli %c0_i32, %c128_i32 : i32
    %44 = tpu.assume_multiple %43, 128 : i32
    %45 = arith.truncf %42 : vector<8x128xf32> to vector<8x128xbf16>
    %c0_17 = arith.constant 0 : index
    %46 = arith.index_cast %44 : i32 to index
    %47 = vector.load %arg11[%c0_17, %46] : memref<8x3200xbf16, #tpu.memory_space<vmem>>, vector<8x128xbf16>
    tpu.vector_store %arg11[%c0_17, %46], %45 {strides = array<i32>} : memref<8x3200xbf16, #tpu.memory_space<vmem>>, vector<8x128xbf16>,
    %c1_i32 = arith.constant 1 : i32
    %c8_i32_18 = arith.constant 8 : i32
    %48 = arith.muli %c1_i32, %c8_i32_18 : i32
    %49 = tpu.assume_multiple %48, 8 : i32
    %50 = arith.index_cast %49 : i32 to index
    %c0_19 = arith.constant 0 : index
    %51 = vector.load %arg10[%50, %c0_19] : memref<200x512xf32, #tpu.memory_space<vmem>>, vector<8x512xf32>
    %52 = arith.truncf %42 : vector<8x128xf32> to vector<8x128xbf16>
    %c0_20 = arith.constant 0 : index
    %c0_21 = arith.constant 0 : index
    %53 = vector.load %arg3[%c0_20, %c0_21] : memref<128x512xbf16, #tpu.memory_space<vmem>>, vector<128x512xbf16>
    %cst_22 = arith.constant dense<0.000000e+00> : vector<8x512xf32>
    %54 = tpu.matmul %52, %53, %cst_22 {dimension_numbers = #tpu.dot_dimension_numbers<[1], [0], [0], [1], [0, 0, 1, 1], [], []>} : vector<8x128xbf16>, vector<128x512xbf16>, vector<8x512xf32> -> vector<8x512xf32>
    %55 = arith.addf %51, %54 : vector<8x512xf32>
    %56 = vector.extract_strided_slice %55 {offsets = [0, 0], sizes = [8, 128], strides = [1, 1]} : vector<8x512xf32> to vector<8x128xf32>
    %57 = arith.negf %56 : vector<8x128xf32>
    %58 = math.exp %57 : vector<8x128xf32>
    %cst_23 = arith.constant 1.000000e+00 : f32
    %59 = vector.broadcast %cst_23 : f32 to vector<8x128xf32>
    %60 = arith.addf %59, %58 : vector<8x128xf32>
    %61 = arith.divf %59, %60 : vector<8x128xf32>
    %62 = vector.extract_strided_slice %55 {offsets = [0, 128], sizes = [8, 128], strides = [1, 1]} : vector<8x512xf32> to vector<8x128xf32>
    %63 = arith.negf %62 : vector<8x128xf32>
    %64 = math.exp %63 : vector<8x128xf32>
    %cst_24 = arith.constant 1.000000e+00 : f32
    %65 = vector.broadcast %cst_24 : f32 to vector<8x128xf32>
    %66 = arith.addf %65, %64 : vector<8x128xf32>
    %67 = arith.divf %65, %66 : vector<8x128xf32>
    %68 = vector.extract_strided_slice %55 {offsets = [0, 256], sizes = [8, 128], strides = [1, 1]} : vector<8x512xf32> to vector<8x128xf32>
    %69 = math.tanh %68 : vector<8x128xf32>
    %70 = vector.extract_strided_slice %55 {offsets = [0, 384], sizes = [8, 128], strides = [1, 1]} : vector<8x512xf32> to vector<8x128xf32>
    %71 = arith.negf %70 : vector<8x128xf32>
    %72 = math.exp %71 : vector<8x128xf32>
    %cst_25 = arith.constant 1.000000e+00 : f32
    %73 = vector.broadcast %cst_25 : f32 to vector<8x128xf32>
    %74 = arith.addf %73, %72 : vector<8x128xf32>
    %75 = arith.divf %73, %74 : vector<8x128xf32>
    %76 = arith.mulf %67, %40 : vector<8x128xf32>
    %77 = arith.mulf %61, %69 : vector<8x128xf32>
    %78 = arith.addf %76, %77 : vector<8x128xf32>
    %79 = math.tanh %78 : vector<8x128xf32>
    %80 = arith.mulf %75, %79 : vector<8x128xf32>
    %c128_i32_26 = arith.constant 128 : i32
    %81 = arith.muli %c1_i32, %c128_i32_26 : i32
    %82 = tpu.assume_multiple %81, 128 : i32
    %83 = arith.truncf %80 : vector<8x128xf32> to vector<8x128xbf16>
    %c0_27 = arith.constant 0 : index
    %84 = arith.index_cast %82 : i32 to index
    %85 = vector.load %arg11[%c0_27, %84] : memref<8x3200xbf16, #tpu.memory_space<vmem>>, vector<8x128xbf16>
    tpu.vector_store %arg11[%c0_27, %84], %83 {strides = array<i32>} : memref<8x3200xbf16, #tpu.memory_space<vmem>>, vector<8x128xbf16>,
    %c2_i32 = arith.constant 2 : i32
    %c8_i32_28 = arith.constant 8 : i32
    %86 = arith.muli %c2_i32, %c8_i32_28 : i32
    %87 = tpu.assume_multiple %86, 8 : i32
    %88 = arith.index_cast %87 : i32 to index
    %c0_29 = arith.constant 0 : index
    %89 = vector.load %arg10[%88, %c0_29] : memref<200x512xf32, #tpu.memory_space<vmem>>, vector<8x512xf32>
    %90 = arith.truncf %80 : vector<8x128xf32> to vector<8x128xbf16>
    %c0_30 = arith.constant 0 : index
    %c0_31 = arith.constant 0 : index
    %91 = vector.load %arg3[%c0_30, %c0_31] : memref<128x512xbf16, #tpu.memory_space<vmem>>, vector<128x512xbf16>
    %cst_32 = arith.constant dense<0.000000e+00> : vector<8x512xf32>
    %92 = tpu.matmul %90, %91, %cst_32 {dimension_numbers = #tpu.dot_dimension_numbers<[1], [0], [0], [1], [0, 0, 1, 1], [], []>} : vector<8x128xbf16>, vector<128x512xbf16>, vector<8x512xf32> -> vector<8x512xf32>
    %93 = arith.addf %89, %92 : vector<8x512xf32>
    %94 = vector.extract_strided_slice %93 {offsets = [0, 0], sizes = [8, 128], strides = [1, 1]} : vector<8x512xf32> to vector<8x128xf32>
    %95 = arith.negf %94 : vector<8x128xf32>
    %96 = math.exp %95 : vector<8x128xf32>
    %cst_33 = arith.constant 1.000000e+00 : f32
    %97 = vector.broadcast %cst_33 : f32 to vector<8x128xf32>
    %98 = arith.addf %97, %96 : vector<8x128xf32>
    %99 = arith.divf %97, %98 : vector<8x128xf32>
    %100 = vector.extract_strided_slice %93 {offsets = [0, 128], sizes = [8, 128], strides = [1, 1]} : vector<8x512xf32> to vector<8x128xf32>
    %101 = arith.negf %100 : vector<8x128xf32>
    %102 = math.exp %101 : vector<8x128xf32>
    %cst_34 = arith.constant 1.000000e+00 : f32
    %103 = vector.broadcast %cst_34 : f32 to vector<8x128xf32>
    %104 = arith.addf %103, %102 : vector<8x128xf32>
    %105 = arith.divf %103, %104 : vector<8x128xf32>
    %106 = vector.extract_strided_slice %93 {offsets = [0, 256], sizes = [8, 128], strides = [1, 1]} : vector<8x512xf32> to vector<8x128xf32>
    %107 = math.tanh %106 : vector<8x128xf32>
    %108 = vector.extract_strided_slice %93 {offsets = [0, 384], sizes = [8, 128], strides = [1, 1]} : vector<8x512xf32> to vector<8x128xf32>
    %109 = arith.negf %108 : vector<8x128xf32>
    %110 = math.exp %109 : vector<8x128xf32>
    %cst_35 = arith.constant 1.000000e+00 : f32
    %111 = vector.broadcast %cst_35 : f32 to vector<8x128xf32>
    %112 = arith.addf %111, %110 : vector<8x128xf32>
    %113 = arith.divf %111, %112 : vector<8x128xf32>
    %114 = arith.mulf %105, %78 : vector<8x128xf32>
    %115 = arith.mulf %99, %107 : vector<8x128xf32>
    %116 = arith.addf %114, %115 : vector<8x128xf32>
    %117 = math.tanh %116 : vector<8x128xf32>
    %118 = arith.mulf %113, %117 : vector<8x128xf32>
    %c128_i32_36 = arith.constant 128 : i32
    %119 = arith.muli %c2_i32, %c128_i32_36 : i32
    %120 = tpu.assume_multiple %119, 128 : i32
    %121 = arith.truncf %118 : vector<8x128xf32> to vector<8x128xbf16>
    %c0_37 = arith.constant 0 : index
    %122 = arith.index_cast %120 : i32 to index
    %123 = vector.load %arg11[%c0_37, %122] : memref<8x3200xbf16, #tpu.memory_space<vmem>>, vector<8x128xbf16>
    tpu.vector_store %arg11[%c0_37, %122], %121 {strides = array<i32>} : memref<8x3200xbf16, #tpu.memory_space<vmem>>, vector<8x128xbf16>,
    %c3_i32 = arith.constant 3 : i32
    %c8_i32_38 = arith.constant 8 : i32
    %124 = arith.muli %c3_i32, %c8_i32_38 : i32
    %125 = tpu.assume_multiple %124, 8 : i32
    %126 = arith.index_cast %125 : i32 to index
    %c0_39 = arith.constant 0 : index
    %127 = vector.load %arg10[%126, %c0_39] : memref<200x512xf32, #tpu.memory_space<vmem>>, vector<8x512xf32>
    %128 = arith.truncf %118 : vector<8x128xf32> to vector<8x128xbf16>
    %c0_40 = arith.constant 0 : index
    %c0_41 = arith.constant 0 : index
    %129 = vector.load %arg3[%c0_40, %c0_41] : memref<128x512xbf16, #tpu.memory_space<vmem>>, vector<128x512xbf16>
    %cst_42 = arith.constant dense<0.000000e+00> : vector<8x512xf32>
    %130 = tpu.matmul %128, %129, %cst_42 {dimension_numbers = #tpu.dot_dimension_numbers<[1], [0], [0], [1], [0, 0, 1, 1], [], []>} : vector<8x128xbf16>, vector<128x512xbf16>, vector<8x512xf32> -> vector<8x512xf32>
    %131 = arith.addf %127, %130 : vector<8x512xf32>
    %132 = vector.extract_strided_slice %131 {offsets = [0, 0], sizes = [8, 128], strides = [1, 1]} : vector<8x512xf32> to vector<8x128xf32>
    %133 = arith.negf %132 : vector<8x128xf32>
    %134 = math.exp %133 : vector<8x128xf32>
    %cst_43 = arith.constant 1.000000e+00 : f32
    %135 = vector.broadcast %cst_43 : f32 to vector<8x128xf32>
    %136 = arith.addf %135, %134 : vector<8x128xf32>
    %137 = arith.divf %135, %136 : vector<8x128xf32>
    %138 = vector.extract_strided_slice %131 {offsets = [0, 128], sizes = [8, 128], strides = [1, 1]} : vector<8x512xf32> to vector<8x128xf32>
    %139 = arith.negf %138 : vector<8x128xf32>
    %140 = math.exp %139 : vector<8x128xf32>
    %cst_44 = arith.constant 1.000000e+00 : f32
    %141 = vector.broadcast %cst_44 : f32 to vector<8x128xf32>
    %142 = arith.addf %141, %140 : vector<8x128xf32>
    %143 = arith.divf %141, %142 : vector<8x128xf32>
    %144 = vector.extract_strided_slice %131 {offsets = [0, 256], sizes = [8, 128], strides = [1, 1]} : vector<8x512xf32> to vector<8x128xf32>
    %145 = math.tanh %144 : vector<8x128xf32>
    %146 = vector.extract_strided_slice %131 {offsets = [0, 384], sizes = [8, 128], strides = [1, 1]} : vector<8x512xf32> to vector<8x128xf32>
    %147 = arith.negf %146 : vector<8x128xf32>
    %148 = math.exp %147 : vector<8x128xf32>
    %cst_45 = arith.constant 1.000000e+00 : f32
    %149 = vector.broadcast %cst_45 : f32 to vector<8x128xf32>
    %150 = arith.addf %149, %148 : vector<8x128xf32>
    %151 = arith.divf %149, %150 : vector<8x128xf32>
    %152 = arith.mulf %143, %116 : vector<8x128xf32>
    %153 = arith.mulf %137, %145 : vector<8x128xf32>
    %154 = arith.addf %152, %153 : vector<8x128xf32>
    %155 = math.tanh %154 : vector<8x128xf32>
    %156 = arith.mulf %151, %155 : vector<8x128xf32>
    %c128_i32_46 = arith.constant 128 : i32
    %157 = arith.muli %c3_i32, %c128_i32_46 : i32
    %158 = tpu.assume_multiple %157, 128 : i32
    %159 = arith.truncf %156 : vector<8x128xf32> to vector<8x128xbf16>
    %c0_47 = arith.constant 0 : index
    %160 = arith.index_cast %158 : i32 to index
    %161 = vector.load %arg11[%c0_47, %160] : memref<8x3200xbf16, #tpu.memory_space<vmem>>, vector<8x128xbf16>
    tpu.vector_store %arg11[%c0_47, %160], %159 {strides = array<i32>} : memref<8x3200xbf16, #tpu.memory_space<vmem>>, vector<8x128xbf16>,
    %c4_i32 = arith.constant 4 : i32
    %c8_i32_48 = arith.constant 8 : i32
    %162 = arith.muli %c4_i32, %c8_i32_48 : i32
    %163 = tpu.assume_multiple %162, 8 : i32
    %164 = arith.index_cast %163 : i32 to index
    %c0_49 = arith.constant 0 : index
    %165 = vector.load %arg10[%164, %c0_49] : memref<200x512xf32, #tpu.memory_space<vmem>>, vector<8x512xf32>
    %166 = arith.truncf %156 : vector<8x128xf32> to vector<8x128xbf16>
    %c0_50 = arith.constant 0 : index
    %c0_51 = arith.constant 0 : index
    %167 = vector.load %arg3[%c0_50, %c0_51] : memref<128x512xbf16, #tpu.memory_space<vmem>>, vector<128x512xbf16>
    %cst_52 = arith.constant dense<0.000000e+00> : vector<8x512xf32>
    %168 = tpu.matmul %166, %167, %cst_52 {dimension_numbers = #tpu.dot_dimension_numbers<[1], [0], [0], [1], [0, 0, 1, 1], [], []>} : vector<8x128xbf16>, vector<128x512xbf16>, vector<8x512xf32> -> vector<8x512xf32>
    %169 = arith.addf %165, %168 : vector<8x512xf32>
    %170 = vector.extract_strided_slice %169 {offsets = [0, 0], sizes = [8, 128], strides = [1, 1]} : vector<8x512xf32> to vector<8x128xf32>
    %171 = arith.negf %170 : vector<8x128xf32>
    %172 = math.exp %171 : vector<8x128xf32>
    %cst_53 = arith.constant 1.000000e+00 : f32
    %173 = vector.broadcast %cst_53 : f32 to vector<8x128xf32>
    %174 = arith.addf %173, %172 : vector<8x128xf32>
    %175 = arith.divf %173, %174 : vector<8x128xf32>
    %176 = vector.extract_strided_slice %169 {offsets = [0, 128], sizes = [8, 128], strides = [1, 1]} : vector<8x512xf32> to vector<8x128xf32>
    %177 = arith.negf %176 : vector<8x128xf32>
    %178 = math.exp %177 : vector<8x128xf32>
    %cst_54 = arith.constant 1.000000e+00 : f32
    %179 = vector.broadcast %cst_54 : f32 to vector<8x128xf32>
    %180 = arith.addf %179, %178 : vector<8x128xf32>
    %181 = arith.divf %179, %180 : vector<8x128xf32>
    %182 = vector.extract_strided_slice %169 {offsets = [0, 256], sizes = [8, 128], strides = [1, 1]} : vector<8x512xf32> to vector<8x128xf32>
    %183 = math.tanh %182 : vector<8x128xf32>
    %184 = vector.extract_strided_slice %169 {offsets = [0, 384], sizes = [8, 128], strides = [1, 1]} : vector<8x512xf32> to vector<8x128xf32>
    %185 = arith.negf %184 : vector<8x128xf32>
    %186 = math.exp %185 : vector<8x128xf32>
    %cst_55 = arith.constant 1.000000e+00 : f32
    %187 = vector.broadcast %cst_55 : f32 to vector<8x128xf32>
    %188 = arith.addf %187, %186 : vector<8x128xf32>
    %189 = arith.divf %187, %188 : vector<8x128xf32>
    %190 = arith.mulf %181, %154 : vector<8x128xf32>
    %191 = arith.mulf %175, %183 : vector<8x128xf32>
    %192 = arith.addf %190, %191 : vector<8x128xf32>
    %193 = math.tanh %192 : vector<8x128xf32>
    %194 = arith.mulf %189, %193 : vector<8x128xf32>
    %c128_i32_56 = arith.constant 128 : i32
    %195 = arith.muli %c4_i32, %c128_i32_56 : i32
    %196 = tpu.assume_multiple %195, 128 : i32
    %197 = arith.truncf %194 : vector<8x128xf32> to vector<8x128xbf16>
    %c0_57 = arith.constant 0 : index
    %198 = arith.index_cast %196 : i32 to index
    %199 = vector.load %arg11[%c0_57, %198] : memref<8x3200xbf16, #tpu.memory_space<vmem>>, vector<8x128xbf16>
    tpu.vector_store %arg11[%c0_57, %198], %197 {strides = array<i32>} : memref<8x3200xbf16, #tpu.memory_space<vmem>>, vector<8x128xbf16>,
    %c5_i32 = arith.constant 5 : i32
    %c8_i32_58 = arith.constant 8 : i32
    %200 = arith.muli %c5_i32, %c8_i32_58 : i32
    %201 = tpu.assume_multiple %200, 8 : i32
    %202 = arith.index_cast %201 : i32 to index
    %c0_59 = arith.constant 0 : index
    %203 = vector.load %arg10[%202, %c0_59] : memref<200x512xf32, #tpu.memory_space<vmem>>, vector<8x512xf32>
    %204 = arith.truncf %194 : vector<8x128xf32> to vector<8x128xbf16>
    %c0_60 = arith.constant 0 : index
    %c0_61 = arith.constant 0 : index
    %205 = vector.load %arg3[%c0_60, %c0_61] : memref<128x512xbf16, #tpu.memory_space<vmem>>, vector<128x512xbf16>
    %cst_62 = arith.constant dense<0.000000e+00> : vector<8x512xf32>
    %206 = tpu.matmul %204, %205, %cst_62 {dimension_numbers = #tpu.dot_dimension_numbers<[1], [0], [0], [1], [0, 0, 1, 1], [], []>} : vector<8x128xbf16>, vector<128x512xbf16>, vector<8x512xf32> -> vector<8x512xf32>
    %207 = arith.addf %203, %206 : vector<8x512xf32>
    %208 = vector.extract_strided_slice %207 {offsets = [0, 0], sizes = [8, 128], strides = [1, 1]} : vector<8x512xf32> to vector<8x128xf32>
    %209 = arith.negf %208 : vector<8x128xf32>
    %210 = math.exp %209 : vector<8x128xf32>
    %cst_63 = arith.constant 1.000000e+00 : f32
    %211 = vector.broadcast %cst_63 : f32 to vector<8x128xf32>
    %212 = arith.addf %211, %210 : vector<8x128xf32>
    %213 = arith.divf %211, %212 : vector<8x128xf32>
    %214 = vector.extract_strided_slice %207 {offsets = [0, 128], sizes = [8, 128], strides = [1, 1]} : vector<8x512xf32> to vector<8x128xf32>
    %215 = arith.negf %214 : vector<8x128xf32>
    %216 = math.exp %215 : vector<8x128xf32>
    %cst_64 = arith.constant 1.000000e+00 : f32
    %217 = vector.broadcast %cst_64 : f32 to vector<8x128xf32>
    %218 = arith.addf %217, %216 : vector<8x128xf32>
    %219 = arith.divf %217, %218 : vector<8x128xf32>
    %220 = vector.extract_strided_slice %207 {offsets = [0, 256], sizes = [8, 128], strides = [1, 1]} : vector<8x512xf32> to vector<8x128xf32>
    %221 = math.tanh %220 : vector<8x128xf32>
    %222 = vector.extract_strided_slice %207 {offsets = [0, 384], sizes = [8, 128], strides = [1, 1]} : vector<8x512xf32> to vector<8x128xf32>
    %223 = arith.negf %222 : vector<8x128xf32>
    %224 = math.exp %223 : vector<8x128xf32>
    %cst_65 = arith.constant 1.000000e+00 : f32
    %225 = vector.broadcast %cst_65 : f32 to vector<8x128xf32>
    %226 = arith.addf %225, %224 : vector<8x128xf32>
    %227 = arith.divf %225, %226 : vector<8x128xf32>
    %228 = arith.mulf %219, %192 : vector<8x128xf32>
    %229 = arith.mulf %213, %221 : vector<8x128xf32>
    %230 = arith.addf %228, %229 : vector<8x128xf32>
    %231 = math.tanh %230 : vector<8x128xf32>
    %232 = arith.mulf %227, %231 : vector<8x128xf32>
    %c128_i32_66 = arith.constant 128 : i32
    %233 = arith.muli %c5_i32, %c128_i32_66 : i32
    %234 = tpu.assume_multiple %233, 128 : i32
    %235 = arith.truncf %232 : vector<8x128xf32> to vector<8x128xbf16>
    %c0_67 = arith.constant 0 : index
    %236 = arith.index_cast %234 : i32 to index
    %237 = vector.load %arg11[%c0_67, %236] : memref<8x3200xbf16, #tpu.memory_space<vmem>>, vector<8x128xbf16>
    tpu.vector_store %arg11[%c0_67, %236], %235 {strides = array<i32>} : memref<8x3200xbf16, #tpu.memory_space<vmem>>, vector<8x128xbf16>,
    %c6_i32 = arith.constant 6 : i32
    %c8_i32_68 = arith.constant 8 : i32
    %238 = arith.muli %c6_i32, %c8_i32_68 : i32
    %239 = tpu.assume_multiple %238, 8 : i32
    %240 = arith.index_cast %239 : i32 to index
    %c0_69 = arith.constant 0 : index
    %241 = vector.load %arg10[%240, %c0_69] : memref<200x512xf32, #tpu.memory_space<vmem>>, vector<8x512xf32>
    %242 = arith.truncf %232 : vector<8x128xf32> to vector<8x128xbf16>
    %c0_70 = arith.constant 0 : index
    %c0_71 = arith.constant 0 : index
    %243 = vector.load %arg3[%c0_70, %c0_71] : memref<128x512xbf16, #tpu.memory_space<vmem>>, vector<128x512xbf16>
    %cst_72 = arith.constant dense<0.000000e+00> : vector<8x512xf32>
    %244 = tpu.matmul %242, %243, %cst_72 {dimension_numbers = #tpu.dot_dimension_numbers<[1], [0], [0], [1], [0, 0, 1, 1], [], []>} : vector<8x128xbf16>, vector<128x512xbf16>, vector<8x512xf32> -> vector<8x512xf32>
    %245 = arith.addf %241, %244 : vector<8x512xf32>
    %246 = vector.extract_strided_slice %245 {offsets = [0, 0], sizes = [8, 128], strides = [1, 1]} : vector<8x512xf32> to vector<8x128xf32>
    %247 = arith.negf %246 : vector<8x128xf32>
    %248 = math.exp %247 : vector<8x128xf32>
    %cst_73 = arith.constant 1.000000e+00 : f32
    %249 = vector.broadcast %cst_73 : f32 to vector<8x128xf32>
    %250 = arith.addf %249, %248 : vector<8x128xf32>
    %251 = arith.divf %249, %250 : vector<8x128xf32>
    %252 = vector.extract_strided_slice %245 {offsets = [0, 128], sizes = [8, 128], strides = [1, 1]} : vector<8x512xf32> to vector<8x128xf32>
    %253 = arith.negf %252 : vector<8x128xf32>
    %254 = math.exp %253 : vector<8x128xf32>
    %cst_74 = arith.constant 1.000000e+00 : f32
    %255 = vector.broadcast %cst_74 : f32 to vector<8x128xf32>
    %256 = arith.addf %255, %254 : vector<8x128xf32>
    %257 = arith.divf %255, %256 : vector<8x128xf32>
    %258 = vector.extract_strided_slice %245 {offsets = [0, 256], sizes = [8, 128], strides = [1, 1]} : vector<8x512xf32> to vector<8x128xf32>
    %259 = math.tanh %258 : vector<8x128xf32>
    %260 = vector.extract_strided_slice %245 {offsets = [0, 384], sizes = [8, 128], strides = [1, 1]} : vector<8x512xf32> to vector<8x128xf32>
    %261 = arith.negf %260 : vector<8x128xf32>
    %262 = math.exp %261 : vector<8x128xf32>
    %cst_75 = arith.constant 1.000000e+00 : f32
    %263 = vector.broadcast %cst_75 : f32 to vector<8x128xf32>
    %264 = arith.addf %263, %262 : vector<8x128xf32>
    %265 = arith.divf %263, %264 : vector<8x128xf32>
    %266 = arith.mulf %257, %230 : vector<8x128xf32>
    %267 = arith.mulf %251, %259 : vector<8x128xf32>
    %268 = arith.addf %266, %267 : vector<8x128xf32>
    %269 = math.tanh %268 : vector<8x128xf32>
    %270 = arith.mulf %265, %269 : vector<8x128xf32>
    %c128_i32_76 = arith.constant 128 : i32
    %271 = arith.muli %c6_i32, %c128_i32_76 : i32
    %272 = tpu.assume_multiple %271, 128 : i32
    %273 = arith.truncf %270 : vector<8x128xf32> to vector<8x128xbf16>
    %c0_77 = arith.constant 0 : index
    %274 = arith.index_cast %272 : i32 to index
    %275 = vector.load %arg11[%c0_77, %274] : memref<8x3200xbf16, #tpu.memory_space<vmem>>, vector<8x128xbf16>
    tpu.vector_store %arg11[%c0_77, %274], %273 {strides = array<i32>} : memref<8x3200xbf16, #tpu.memory_space<vmem>>, vector<8x128xbf16>,
    %c7_i32 = arith.constant 7 : i32
    %c8_i32_78 = arith.constant 8 : i32
    %276 = arith.muli %c7_i32, %c8_i32_78 : i32
    %277 = tpu.assume_multiple %276, 8 : i32
    %278 = arith.index_cast %277 : i32 to index
    %c0_79 = arith.constant 0 : index
    %279 = vector.load %arg10[%278, %c0_79] : memref<200x512xf32, #tpu.memory_space<vmem>>, vector<8x512xf32>
    %280 = arith.truncf %270 : vector<8x128xf32> to vector<8x128xbf16>
    %c0_80 = arith.constant 0 : index
    %c0_81 = arith.constant 0 : index
    %281 = vector.load %arg3[%c0_80, %c0_81] : memref<128x512xbf16, #tpu.memory_space<vmem>>, vector<128x512xbf16>
    %cst_82 = arith.constant dense<0.000000e+00> : vector<8x512xf32>
    %282 = tpu.matmul %280, %281, %cst_82 {dimension_numbers = #tpu.dot_dimension_numbers<[1], [0], [0], [1], [0, 0, 1, 1], [], []>} : vector<8x128xbf16>, vector<128x512xbf16>, vector<8x512xf32> -> vector<8x512xf32>
    %283 = arith.addf %279, %282 : vector<8x512xf32>
    %284 = vector.extract_strided_slice %283 {offsets = [0, 0], sizes = [8, 128], strides = [1, 1]} : vector<8x512xf32> to vector<8x128xf32>
    %285 = arith.negf %284 : vector<8x128xf32>
    %286 = math.exp %285 : vector<8x128xf32>
    %cst_83 = arith.constant 1.000000e+00 : f32
    %287 = vector.broadcast %cst_83 : f32 to vector<8x128xf32>
    %288 = arith.addf %287, %286 : vector<8x128xf32>
    %289 = arith.divf %287, %288 : vector<8x128xf32>
    %290 = vector.extract_strided_slice %283 {offsets = [0, 128], sizes = [8, 128], strides = [1, 1]} : vector<8x512xf32> to vector<8x128xf32>
    %291 = arith.negf %290 : vector<8x128xf32>
    %292 = math.exp %291 : vector<8x128xf32>
    %cst_84 = arith.constant 1.000000e+00 : f32
    %293 = vector.broadcast %cst_84 : f32 to vector<8x128xf32>
    %294 = arith.addf %293, %292 : vector<8x128xf32>
    %295 = arith.divf %293, %294 : vector<8x128xf32>
    %296 = vector.extract_strided_slice %283 {offsets = [0, 256], sizes = [8, 128], strides = [1, 1]} : vector<8x512xf32> to vector<8x128xf32>
    %297 = math.tanh %296 : vector<8x128xf32>
    %298 = vector.extract_strided_slice %283 {offsets = [0, 384], sizes = [8, 128], strides = [1, 1]} : vector<8x512xf32> to vector<8x128xf32>
    %299 = arith.negf %298 : vector<8x128xf32>
    %300 = math.exp %299 : vector<8x128xf32>
    %cst_85 = arith.constant 1.000000e+00 : f32
    %301 = vector.broadcast %cst_85 : f32 to vector<8x128xf32>
    %302 = arith.addf %301, %300 : vector<8x128xf32>
    %303 = arith.divf %301, %302 : vector<8x128xf32>
    %304 = arith.mulf %295, %268 : vector<8x128xf32>
    %305 = arith.mulf %289, %297 : vector<8x128xf32>
    %306 = arith.addf %304, %305 : vector<8x128xf32>
    %307 = math.tanh %306 : vector<8x128xf32>
    %308 = arith.mulf %303, %307 : vector<8x128xf32>
    %c128_i32_86 = arith.constant 128 : i32
    %309 = arith.muli %c7_i32, %c128_i32_86 : i32
    %310 = tpu.assume_multiple %309, 128 : i32
    %311 = arith.truncf %308 : vector<8x128xf32> to vector<8x128xbf16>
    %c0_87 = arith.constant 0 : index
    %312 = arith.index_cast %310 : i32 to index
    %313 = vector.load %arg11[%c0_87, %312] : memref<8x3200xbf16, #tpu.memory_space<vmem>>, vector<8x128xbf16>
    tpu.vector_store %arg11[%c0_87, %312], %311 {strides = array<i32>} : memref<8x3200xbf16, #tpu.memory_space<vmem>>, vector<8x128xbf16>,
    %c8_i32_88 = arith.constant 8 : i32
    %c8_i32_89 = arith.constant 8 : i32
    %314 = arith.muli %c8_i32_88, %c8_i32_89 : i32
    %315 = tpu.assume_multiple %314, 8 : i32
    %316 = arith.index_cast %315 : i32 to index
    %c0_90 = arith.constant 0 : index
    %317 = vector.load %arg10[%316, %c0_90] : memref<200x512xf32, #tpu.memory_space<vmem>>, vector<8x512xf32>
    %318 = arith.truncf %308 : vector<8x128xf32> to vector<8x128xbf16>
    %c0_91 = arith.constant 0 : index
    %c0_92 = arith.constant 0 : index
    %319 = vector.load %arg3[%c0_91, %c0_92] : memref<128x512xbf16, #tpu.memory_space<vmem>>, vector<128x512xbf16>
    %cst_93 = arith.constant dense<0.000000e+00> : vector<8x512xf32>
    %320 = tpu.matmul %318, %319, %cst_93 {dimension_numbers = #tpu.dot_dimension_numbers<[1], [0], [0], [1], [0, 0, 1, 1], [], []>} : vector<8x128xbf16>, vector<128x512xbf16>, vector<8x512xf32> -> vector<8x512xf32>
    %321 = arith.addf %317, %320 : vector<8x512xf32>
    %322 = vector.extract_strided_slice %321 {offsets = [0, 0], sizes = [8, 128], strides = [1, 1]} : vector<8x512xf32> to vector<8x128xf32>
    %323 = arith.negf %322 : vector<8x128xf32>
    %324 = math.exp %323 : vector<8x128xf32>
    %cst_94 = arith.constant 1.000000e+00 : f32
    %325 = vector.broadcast %cst_94 : f32 to vector<8x128xf32>
    %326 = arith.addf %325, %324 : vector<8x128xf32>
    %327 = arith.divf %325, %326 : vector<8x128xf32>
    %328 = vector.extract_strided_slice %321 {offsets = [0, 128], sizes = [8, 128], strides = [1, 1]} : vector<8x512xf32> to vector<8x128xf32>
    %329 = arith.negf %328 : vector<8x128xf32>
    %330 = math.exp %329 : vector<8x128xf32>
    %cst_95 = arith.constant 1.000000e+00 : f32
    %331 = vector.broadcast %cst_95 : f32 to vector<8x128xf32>
    %332 = arith.addf %331, %330 : vector<8x128xf32>
    %333 = arith.divf %331, %332 : vector<8x128xf32>
    %334 = vector.extract_strided_slice %321 {offsets = [0, 256], sizes = [8, 128], strides = [1, 1]} : vector<8x512xf32> to vector<8x128xf32>
    %335 = math.tanh %334 : vector<8x128xf32>
    %336 = vector.extract_strided_slice %321 {offsets = [0, 384], sizes = [8, 128], strides = [1, 1]} : vector<8x512xf32> to vector<8x128xf32>
    %337 = arith.negf %336 : vector<8x128xf32>
    %338 = math.exp %337 : vector<8x128xf32>
    %cst_96 = arith.constant 1.000000e+00 : f32
    %339 = vector.broadcast %cst_96 : f32 to vector<8x128xf32>
    %340 = arith.addf %339, %338 : vector<8x128xf32>
    %341 = arith.divf %339, %340 : vector<8x128xf32>
    %342 = arith.mulf %333, %306 : vector<8x128xf32>
    %343 = arith.mulf %327, %335 : vector<8x128xf32>
    %344 = arith.addf %342, %343 : vector<8x128xf32>
    %345 = math.tanh %344 : vector<8x128xf32>
    %346 = arith.mulf %341, %345 : vector<8x128xf32>
    %c128_i32_97 = arith.constant 128 : i32
    %347 = arith.muli %c8_i32_88, %c128_i32_97 : i32
    %348 = tpu.assume_multiple %347, 128 : i32
    %349 = arith.truncf %346 : vector<8x128xf32> to vector<8x128xbf16>
    %c0_98 = arith.constant 0 : index
    %350 = arith.index_cast %348 : i32 to index
    %351 = vector.load %arg11[%c0_98, %350] : memref<8x3200xbf16, #tpu.memory_space<vmem>>, vector<8x128xbf16>
    tpu.vector_store %arg11[%c0_98, %350], %349 {strides = array<i32>} : memref<8x3200xbf16, #tpu.memory_space<vmem>>, vector<8x128xbf16>,
    %c9_i32 = arith.constant 9 : i32
    %c8_i32_99 = arith.constant 8 : i32
    %352 = arith.muli %c9_i32, %c8_i32_99 : i32
    %353 = tpu.assume_multiple %352, 8 : i32
    %354 = arith.index_cast %353 : i32 to index
    %c0_100 = arith.constant 0 : index
    %355 = vector.load %arg10[%354, %c0_100] : memref<200x512xf32, #tpu.memory_space<vmem>>, vector<8x512xf32>
    %356 = arith.truncf %346 : vector<8x128xf32> to vector<8x128xbf16>
    %c0_101 = arith.constant 0 : index
    %c0_102 = arith.constant 0 : index
    %357 = vector.load %arg3[%c0_101, %c0_102] : memref<128x512xbf16, #tpu.memory_space<vmem>>, vector<128x512xbf16>
    %cst_103 = arith.constant dense<0.000000e+00> : vector<8x512xf32>
    %358 = tpu.matmul %356, %357, %cst_103 {dimension_numbers = #tpu.dot_dimension_numbers<[1], [0], [0], [1], [0, 0, 1, 1], [], []>} : vector<8x128xbf16>, vector<128x512xbf16>, vector<8x512xf32> -> vector<8x512xf32>
    %359 = arith.addf %355, %358 : vector<8x512xf32>
    %360 = vector.extract_strided_slice %359 {offsets = [0, 0], sizes = [8, 128], strides = [1, 1]} : vector<8x512xf32> to vector<8x128xf32>
    %361 = arith.negf %360 : vector<8x128xf32>
    %362 = math.exp %361 : vector<8x128xf32>
    %cst_104 = arith.constant 1.000000e+00 : f32
    %363 = vector.broadcast %cst_104 : f32 to vector<8x128xf32>
    %364 = arith.addf %363, %362 : vector<8x128xf32>
    %365 = arith.divf %363, %364 : vector<8x128xf32>
    %366 = vector.extract_strided_slice %359 {offsets = [0, 128], sizes = [8, 128], strides = [1, 1]} : vector<8x512xf32> to vector<8x128xf32>
    %367 = arith.negf %366 : vector<8x128xf32>
    %368 = math.exp %367 : vector<8x128xf32>
    %cst_105 = arith.constant 1.000000e+00 : f32
    %369 = vector.broadcast %cst_105 : f32 to vector<8x128xf32>
    %370 = arith.addf %369, %368 : vector<8x128xf32>
    %371 = arith.divf %369, %370 : vector<8x128xf32>
    %372 = vector.extract_strided_slice %359 {offsets = [0, 256], sizes = [8, 128], strides = [1, 1]} : vector<8x512xf32> to vector<8x128xf32>
    %373 = math.tanh %372 : vector<8x128xf32>
    %374 = vector.extract_strided_slice %359 {offsets = [0, 384], sizes = [8, 128], strides = [1, 1]} : vector<8x512xf32> to vector<8x128xf32>
    %375 = arith.negf %374 : vector<8x128xf32>
    %376 = math.exp %375 : vector<8x128xf32>
    %cst_106 = arith.constant 1.000000e+00 : f32
    %377 = vector.broadcast %cst_106 : f32 to vector<8x128xf32>
    %378 = arith.addf %377, %376 : vector<8x128xf32>
    %379 = arith.divf %377, %378 : vector<8x128xf32>
    %380 = arith.mulf %371, %344 : vector<8x128xf32>
    %381 = arith.mulf %365, %373 : vector<8x128xf32>
    %382 = arith.addf %380, %381 : vector<8x128xf32>
    %383 = math.tanh %382 : vector<8x128xf32>
    %384 = arith.mulf %379, %383 : vector<8x128xf32>
    %c128_i32_107 = arith.constant 128 : i32
    %385 = arith.muli %c9_i32, %c128_i32_107 : i32
    %386 = tpu.assume_multiple %385, 128 : i32
    %387 = arith.truncf %384 : vector<8x128xf32> to vector<8x128xbf16>
    %c0_108 = arith.constant 0 : index
    %388 = arith.index_cast %386 : i32 to index
    %389 = vector.load %arg11[%c0_108, %388] : memref<8x3200xbf16, #tpu.memory_space<vmem>>, vector<8x128xbf16>
    tpu.vector_store %arg11[%c0_108, %388], %387 {strides = array<i32>} : memref<8x3200xbf16, #tpu.memory_space<vmem>>, vector<8x128xbf16>,
    %c10_i32 = arith.constant 10 : i32
    %c8_i32_109 = arith.constant 8 : i32
    %390 = arith.muli %c10_i32, %c8_i32_109 : i32
    %391 = tpu.assume_multiple %390, 8 : i32
    %392 = arith.index_cast %391 : i32 to index
    %c0_110 = arith.constant 0 : index
    %393 = vector.load %arg10[%392, %c0_110] : memref<200x512xf32, #tpu.memory_space<vmem>>, vector<8x512xf32>
    %394 = arith.truncf %384 : vector<8x128xf32> to vector<8x128xbf16>
    %c0_111 = arith.constant 0 : index
    %c0_112 = arith.constant 0 : index
    %395 = vector.load %arg3[%c0_111, %c0_112] : memref<128x512xbf16, #tpu.memory_space<vmem>>, vector<128x512xbf16>
    %cst_113 = arith.constant dense<0.000000e+00> : vector<8x512xf32>
    %396 = tpu.matmul %394, %395, %cst_113 {dimension_numbers = #tpu.dot_dimension_numbers<[1], [0], [0], [1], [0, 0, 1, 1], [], []>} : vector<8x128xbf16>, vector<128x512xbf16>, vector<8x512xf32> -> vector<8x512xf32>
    %397 = arith.addf %393, %396 : vector<8x512xf32>
    %398 = vector.extract_strided_slice %397 {offsets = [0, 0], sizes = [8, 128], strides = [1, 1]} : vector<8x512xf32> to vector<8x128xf32>
    %399 = arith.negf %398 : vector<8x128xf32>
    %400 = math.exp %399 : vector<8x128xf32>
    %cst_114 = arith.constant 1.000000e+00 : f32
    %401 = vector.broadcast %cst_114 : f32 to vector<8x128xf32>
    %402 = arith.addf %401, %400 : vector<8x128xf32>
    %403 = arith.divf %401, %402 : vector<8x128xf32>
    %404 = vector.extract_strided_slice %397 {offsets = [0, 128], sizes = [8, 128], strides = [1, 1]} : vector<8x512xf32> to vector<8x128xf32>
    %405 = arith.negf %404 : vector<8x128xf32>
    %406 = math.exp %405 : vector<8x128xf32>
    %cst_115 = arith.constant 1.000000e+00 : f32
    %407 = vector.broadcast %cst_115 : f32 to vector<8x128xf32>
    %408 = arith.addf %407, %406 : vector<8x128xf32>
    %409 = arith.divf %407, %408 : vector<8x128xf32>
    %410 = vector.extract_strided_slice %397 {offsets = [0, 256], sizes = [8, 128], strides = [1, 1]} : vector<8x512xf32> to vector<8x128xf32>
    %411 = math.tanh %410 : vector<8x128xf32>
    %412 = vector.extract_strided_slice %397 {offsets = [0, 384], sizes = [8, 128], strides = [1, 1]} : vector<8x512xf32> to vector<8x128xf32>
    %413 = arith.negf %412 : vector<8x128xf32>
    %414 = math.exp %413 : vector<8x128xf32>
    %cst_116 = arith.constant 1.000000e+00 : f32
    %415 = vector.broadcast %cst_116 : f32 to vector<8x128xf32>
    %416 = arith.addf %415, %414 : vector<8x128xf32>
    %417 = arith.divf %415, %416 : vector<8x128xf32>
    %418 = arith.mulf %409, %382 : vector<8x128xf32>
    %419 = arith.mulf %403, %411 : vector<8x128xf32>
    %420 = arith.addf %418, %419 : vector<8x128xf32>
    %421 = math.tanh %420 : vector<8x128xf32>
    %422 = arith.mulf %417, %421 : vector<8x128xf32>
    %c128_i32_117 = arith.constant 128 : i32
    %423 = arith.muli %c10_i32, %c128_i32_117 : i32
    %424 = tpu.assume_multiple %423, 128 : i32
    %425 = arith.truncf %422 : vector<8x128xf32> to vector<8x128xbf16>
    %c0_118 = arith.constant 0 : index
    %426 = arith.index_cast %424 : i32 to index
    %427 = vector.load %arg11[%c0_118, %426] : memref<8x3200xbf16, #tpu.memory_space<vmem>>, vector<8x128xbf16>
    tpu.vector_store %arg11[%c0_118, %426], %425 {strides = array<i32>} : memref<8x3200xbf16, #tpu.memory_space<vmem>>, vector<8x128xbf16>,
    %c11_i32 = arith.constant 11 : i32
    %c8_i32_119 = arith.constant 8 : i32
    %428 = arith.muli %c11_i32, %c8_i32_119 : i32
    %429 = tpu.assume_multiple %428, 8 : i32
    %430 = arith.index_cast %429 : i32 to index
    %c0_120 = arith.constant 0 : index
    %431 = vector.load %arg10[%430, %c0_120] : memref<200x512xf32, #tpu.memory_space<vmem>>, vector<8x512xf32>
    %432 = arith.truncf %422 : vector<8x128xf32> to vector<8x128xbf16>
    %c0_121 = arith.constant 0 : index
    %c0_122 = arith.constant 0 : index
    %433 = vector.load %arg3[%c0_121, %c0_122] : memref<128x512xbf16, #tpu.memory_space<vmem>>, vector<128x512xbf16>
    %cst_123 = arith.constant dense<0.000000e+00> : vector<8x512xf32>
    %434 = tpu.matmul %432, %433, %cst_123 {dimension_numbers = #tpu.dot_dimension_numbers<[1], [0], [0], [1], [0, 0, 1, 1], [], []>} : vector<8x128xbf16>, vector<128x512xbf16>, vector<8x512xf32> -> vector<8x512xf32>
    %435 = arith.addf %431, %434 : vector<8x512xf32>
    %436 = vector.extract_strided_slice %435 {offsets = [0, 0], sizes = [8, 128], strides = [1, 1]} : vector<8x512xf32> to vector<8x128xf32>
    %437 = arith.negf %436 : vector<8x128xf32>
    %438 = math.exp %437 : vector<8x128xf32>
    %cst_124 = arith.constant 1.000000e+00 : f32
    %439 = vector.broadcast %cst_124 : f32 to vector<8x128xf32>
    %440 = arith.addf %439, %438 : vector<8x128xf32>
    %441 = arith.divf %439, %440 : vector<8x128xf32>
    %442 = vector.extract_strided_slice %435 {offsets = [0, 128], sizes = [8, 128], strides = [1, 1]} : vector<8x512xf32> to vector<8x128xf32>
    %443 = arith.negf %442 : vector<8x128xf32>
    %444 = math.exp %443 : vector<8x128xf32>
    %cst_125 = arith.constant 1.000000e+00 : f32
    %445 = vector.broadcast %cst_125 : f32 to vector<8x128xf32>
    %446 = arith.addf %445, %444 : vector<8x128xf32>
    %447 = arith.divf %445, %446 : vector<8x128xf32>
    %448 = vector.extract_strided_slice %435 {offsets = [0, 256], sizes = [8, 128], strides = [1, 1]} : vector<8x512xf32> to vector<8x128xf32>
    %449 = math.tanh %448 : vector<8x128xf32>
    %450 = vector.extract_strided_slice %435 {offsets = [0, 384], sizes = [8, 128], strides = [1, 1]} : vector<8x512xf32> to vector<8x128xf32>
    %451 = arith.negf %450 : vector<8x128xf32>
    %452 = math.exp %451 : vector<8x128xf32>
    %cst_126 = arith.constant 1.000000e+00 : f32
    %453 = vector.broadcast %cst_126 : f32 to vector<8x128xf32>
    %454 = arith.addf %453, %452 : vector<8x128xf32>
    %455 = arith.divf %453, %454 : vector<8x128xf32>
    %456 = arith.mulf %447, %420 : vector<8x128xf32>
    %457 = arith.mulf %441, %449 : vector<8x128xf32>
    %458 = arith.addf %456, %457 : vector<8x128xf32>
    %459 = math.tanh %458 : vector<8x128xf32>
    %460 = arith.mulf %455, %459 : vector<8x128xf32>
    %c128_i32_127 = arith.constant 128 : i32
    %461 = arith.muli %c11_i32, %c128_i32_127 : i32
    %462 = tpu.assume_multiple %461, 128 : i32
    %463 = arith.truncf %460 : vector<8x128xf32> to vector<8x128xbf16>
    %c0_128 = arith.constant 0 : index
    %464 = arith.index_cast %462 : i32 to index
    %465 = vector.load %arg11[%c0_128, %464] : memref<8x3200xbf16, #tpu.memory_space<vmem>>, vector<8x128xbf16>
    tpu.vector_store %arg11[%c0_128, %464], %463 {strides = array<i32>} : memref<8x3200xbf16, #tpu.memory_space<vmem>>, vector<8x128xbf16>,
    %c12_i32 = arith.constant 12 : i32
    %c8_i32_129 = arith.constant 8 : i32
    %466 = arith.muli %c12_i32, %c8_i32_129 : i32
    %467 = tpu.assume_multiple %466, 8 : i32
    %468 = arith.index_cast %467 : i32 to index
    %c0_130 = arith.constant 0 : index
    %469 = vector.load %arg10[%468, %c0_130] : memref<200x512xf32, #tpu.memory_space<vmem>>, vector<8x512xf32>
    %470 = arith.truncf %460 : vector<8x128xf32> to vector<8x128xbf16>
    %c0_131 = arith.constant 0 : index
    %c0_132 = arith.constant 0 : index
    %471 = vector.load %arg3[%c0_131, %c0_132] : memref<128x512xbf16, #tpu.memory_space<vmem>>, vector<128x512xbf16>
    %cst_133 = arith.constant dense<0.000000e+00> : vector<8x512xf32>
    %472 = tpu.matmul %470, %471, %cst_133 {dimension_numbers = #tpu.dot_dimension_numbers<[1], [0], [0], [1], [0, 0, 1, 1], [], []>} : vector<8x128xbf16>, vector<128x512xbf16>, vector<8x512xf32> -> vector<8x512xf32>
    %473 = arith.addf %469, %472 : vector<8x512xf32>
    %474 = vector.extract_strided_slice %473 {offsets = [0, 0], sizes = [8, 128], strides = [1, 1]} : vector<8x512xf32> to vector<8x128xf32>
    %475 = arith.negf %474 : vector<8x128xf32>
    %476 = math.exp %475 : vector<8x128xf32>
    %cst_134 = arith.constant 1.000000e+00 : f32
    %477 = vector.broadcast %cst_134 : f32 to vector<8x128xf32>
    %478 = arith.addf %477, %476 : vector<8x128xf32>
    %479 = arith.divf %477, %478 : vector<8x128xf32>
    %480 = vector.extract_strided_slice %473 {offsets = [0, 128], sizes = [8, 128], strides = [1, 1]} : vector<8x512xf32> to vector<8x128xf32>
    %481 = arith.negf %480 : vector<8x128xf32>
    %482 = math.exp %481 : vector<8x128xf32>
    %cst_135 = arith.constant 1.000000e+00 : f32
    %483 = vector.broadcast %cst_135 : f32 to vector<8x128xf32>
    %484 = arith.addf %483, %482 : vector<8x128xf32>
    %485 = arith.divf %483, %484 : vector<8x128xf32>
    %486 = vector.extract_strided_slice %473 {offsets = [0, 256], sizes = [8, 128], strides = [1, 1]} : vector<8x512xf32> to vector<8x128xf32>
    %487 = math.tanh %486 : vector<8x128xf32>
    %488 = vector.extract_strided_slice %473 {offsets = [0, 384], sizes = [8, 128], strides = [1, 1]} : vector<8x512xf32> to vector<8x128xf32>
    %489 = arith.negf %488 : vector<8x128xf32>
    %490 = math.exp %489 : vector<8x128xf32>
    %cst_136 = arith.constant 1.000000e+00 : f32
    %491 = vector.broadcast %cst_136 : f32 to vector<8x128xf32>
    %492 = arith.addf %491, %490 : vector<8x128xf32>
    %493 = arith.divf %491, %492 : vector<8x128xf32>
    %494 = arith.mulf %485, %458 : vector<8x128xf32>
    %495 = arith.mulf %479, %487 : vector<8x128xf32>
    %496 = arith.addf %494, %495 : vector<8x128xf32>
    %497 = math.tanh %496 : vector<8x128xf32>
    %498 = arith.mulf %493, %497 : vector<8x128xf32>
    %c128_i32_137 = arith.constant 128 : i32
    %499 = arith.muli %c12_i32, %c128_i32_137 : i32
    %500 = tpu.assume_multiple %499, 128 : i32
    %501 = arith.truncf %498 : vector<8x128xf32> to vector<8x128xbf16>
    %c0_138 = arith.constant 0 : index
    %502 = arith.index_cast %500 : i32 to index
    %503 = vector.load %arg11[%c0_138, %502] : memref<8x3200xbf16, #tpu.memory_space<vmem>>, vector<8x128xbf16>
    tpu.vector_store %arg11[%c0_138, %502], %501 {strides = array<i32>} : memref<8x3200xbf16, #tpu.memory_space<vmem>>, vector<8x128xbf16>,
    %c13_i32 = arith.constant 13 : i32
    %c8_i32_139 = arith.constant 8 : i32
    %504 = arith.muli %c13_i32, %c8_i32_139 : i32
    %505 = tpu.assume_multiple %504, 8 : i32
    %506 = arith.index_cast %505 : i32 to index
    %c0_140 = arith.constant 0 : index
    %507 = vector.load %arg10[%506, %c0_140] : memref<200x512xf32, #tpu.memory_space<vmem>>, vector<8x512xf32>
    %508 = arith.truncf %498 : vector<8x128xf32> to vector<8x128xbf16>
    %c0_141 = arith.constant 0 : index
    %c0_142 = arith.constant 0 : index
    %509 = vector.load %arg3[%c0_141, %c0_142] : memref<128x512xbf16, #tpu.memory_space<vmem>>, vector<128x512xbf16>
    %cst_143 = arith.constant dense<0.000000e+00> : vector<8x512xf32>
    %510 = tpu.matmul %508, %509, %cst_143 {dimension_numbers = #tpu.dot_dimension_numbers<[1], [0], [0], [1], [0, 0, 1, 1], [], []>} : vector<8x128xbf16>, vector<128x512xbf16>, vector<8x512xf32> -> vector<8x512xf32>
    %511 = arith.addf %507, %510 : vector<8x512xf32>
    %512 = vector.extract_strided_slice %511 {offsets = [0, 0], sizes = [8, 128], strides = [1, 1]} : vector<8x512xf32> to vector<8x128xf32>
    %513 = arith.negf %512 : vector<8x128xf32>
    %514 = math.exp %513 : vector<8x128xf32>
    %cst_144 = arith.constant 1.000000e+00 : f32
    %515 = vector.broadcast %cst_144 : f32 to vector<8x128xf32>
    %516 = arith.addf %515, %514 : vector<8x128xf32>
    %517 = arith.divf %515, %516 : vector<8x128xf32>
    %518 = vector.extract_strided_slice %511 {offsets = [0, 128], sizes = [8, 128], strides = [1, 1]} : vector<8x512xf32> to vector<8x128xf32>
    %519 = arith.negf %518 : vector<8x128xf32>
    %520 = math.exp %519 : vector<8x128xf32>
    %cst_145 = arith.constant 1.000000e+00 : f32
    %521 = vector.broadcast %cst_145 : f32 to vector<8x128xf32>
    %522 = arith.addf %521, %520 : vector<8x128xf32>
    %523 = arith.divf %521, %522 : vector<8x128xf32>
    %524 = vector.extract_strided_slice %511 {offsets = [0, 256], sizes = [8, 128], strides = [1, 1]} : vector<8x512xf32> to vector<8x128xf32>
    %525 = math.tanh %524 : vector<8x128xf32>
    %526 = vector.extract_strided_slice %511 {offsets = [0, 384], sizes = [8, 128], strides = [1, 1]} : vector<8x512xf32> to vector<8x128xf32>
    %527 = arith.negf %526 : vector<8x128xf32>
    %528 = math.exp %527 : vector<8x128xf32>
    %cst_146 = arith.constant 1.000000e+00 : f32
    %529 = vector.broadcast %cst_146 : f32 to vector<8x128xf32>
    %530 = arith.addf %529, %528 : vector<8x128xf32>
    %531 = arith.divf %529, %530 : vector<8x128xf32>
    %532 = arith.mulf %523, %496 : vector<8x128xf32>
    %533 = arith.mulf %517, %525 : vector<8x128xf32>
    %534 = arith.addf %532, %533 : vector<8x128xf32>
    %535 = math.tanh %534 : vector<8x128xf32>
    %536 = arith.mulf %531, %535 : vector<8x128xf32>
    %c128_i32_147 = arith.constant 128 : i32
    %537 = arith.muli %c13_i32, %c128_i32_147 : i32
    %538 = tpu.assume_multiple %537, 128 : i32
    %539 = arith.truncf %536 : vector<8x128xf32> to vector<8x128xbf16>
    %c0_148 = arith.constant 0 : index
    %540 = arith.index_cast %538 : i32 to index
    %541 = vector.load %arg11[%c0_148, %540] : memref<8x3200xbf16, #tpu.memory_space<vmem>>, vector<8x128xbf16>
    tpu.vector_store %arg11[%c0_148, %540], %539 {strides = array<i32>} : memref<8x3200xbf16, #tpu.memory_space<vmem>>, vector<8x128xbf16>,
    %c14_i32 = arith.constant 14 : i32
    %c8_i32_149 = arith.constant 8 : i32
    %542 = arith.muli %c14_i32, %c8_i32_149 : i32
    %543 = tpu.assume_multiple %542, 8 : i32
    %544 = arith.index_cast %543 : i32 to index
    %c0_150 = arith.constant 0 : index
    %545 = vector.load %arg10[%544, %c0_150] : memref<200x512xf32, #tpu.memory_space<vmem>>, vector<8x512xf32>
    %546 = arith.truncf %536 : vector<8x128xf32> to vector<8x128xbf16>
    %c0_151 = arith.constant 0 : index
    %c0_152 = arith.constant 0 : index
    %547 = vector.load %arg3[%c0_151, %c0_152] : memref<128x512xbf16, #tpu.memory_space<vmem>>, vector<128x512xbf16>
    %cst_153 = arith.constant dense<0.000000e+00> : vector<8x512xf32>
    %548 = tpu.matmul %546, %547, %cst_153 {dimension_numbers = #tpu.dot_dimension_numbers<[1], [0], [0], [1], [0, 0, 1, 1], [], []>} : vector<8x128xbf16>, vector<128x512xbf16>, vector<8x512xf32> -> vector<8x512xf32>
    %549 = arith.addf %545, %548 : vector<8x512xf32>
    %550 = vector.extract_strided_slice %549 {offsets = [0, 0], sizes = [8, 128], strides = [1, 1]} : vector<8x512xf32> to vector<8x128xf32>
    %551 = arith.negf %550 : vector<8x128xf32>
    %552 = math.exp %551 : vector<8x128xf32>
    %cst_154 = arith.constant 1.000000e+00 : f32
    %553 = vector.broadcast %cst_154 : f32 to vector<8x128xf32>
    %554 = arith.addf %553, %552 : vector<8x128xf32>
    %555 = arith.divf %553, %554 : vector<8x128xf32>
    %556 = vector.extract_strided_slice %549 {offsets = [0, 128], sizes = [8, 128], strides = [1, 1]} : vector<8x512xf32> to vector<8x128xf32>
    %557 = arith.negf %556 : vector<8x128xf32>
    %558 = math.exp %557 : vector<8x128xf32>
    %cst_155 = arith.constant 1.000000e+00 : f32
    %559 = vector.broadcast %cst_155 : f32 to vector<8x128xf32>
    %560 = arith.addf %559, %558 : vector<8x128xf32>
    %561 = arith.divf %559, %560 : vector<8x128xf32>
    %562 = vector.extract_strided_slice %549 {offsets = [0, 256], sizes = [8, 128], strides = [1, 1]} : vector<8x512xf32> to vector<8x128xf32>
    %563 = math.tanh %562 : vector<8x128xf32>
    %564 = vector.extract_strided_slice %549 {offsets = [0, 384], sizes = [8, 128], strides = [1, 1]} : vector<8x512xf32> to vector<8x128xf32>
    %565 = arith.negf %564 : vector<8x128xf32>
    %566 = math.exp %565 : vector<8x128xf32>
    %cst_156 = arith.constant 1.000000e+00 : f32
    %567 = vector.broadcast %cst_156 : f32 to vector<8x128xf32>
    %568 = arith.addf %567, %566 : vector<8x128xf32>
    %569 = arith.divf %567, %568 : vector<8x128xf32>
    %570 = arith.mulf %561, %534 : vector<8x128xf32>
    %571 = arith.mulf %555, %563 : vector<8x128xf32>
    %572 = arith.addf %570, %571 : vector<8x128xf32>
    %573 = math.tanh %572 : vector<8x128xf32>
    %574 = arith.mulf %569, %573 : vector<8x128xf32>
    %c128_i32_157 = arith.constant 128 : i32
    %575 = arith.muli %c14_i32, %c128_i32_157 : i32
    %576 = tpu.assume_multiple %575, 128 : i32
    %577 = arith.truncf %574 : vector<8x128xf32> to vector<8x128xbf16>
    %c0_158 = arith.constant 0 : index
    %578 = arith.index_cast %576 : i32 to index
    %579 = vector.load %arg11[%c0_158, %578] : memref<8x3200xbf16, #tpu.memory_space<vmem>>, vector<8x128xbf16>
    tpu.vector_store %arg11[%c0_158, %578], %577 {strides = array<i32>} : memref<8x3200xbf16, #tpu.memory_space<vmem>>, vector<8x128xbf16>,
    %c15_i32 = arith.constant 15 : i32
    %c8_i32_159 = arith.constant 8 : i32
    %580 = arith.muli %c15_i32, %c8_i32_159 : i32
    %581 = tpu.assume_multiple %580, 8 : i32
    %582 = arith.index_cast %581 : i32 to index
    %c0_160 = arith.constant 0 : index
    %583 = vector.load %arg10[%582, %c0_160] : memref<200x512xf32, #tpu.memory_space<vmem>>, vector<8x512xf32>
    %584 = arith.truncf %574 : vector<8x128xf32> to vector<8x128xbf16>
    %c0_161 = arith.constant 0 : index
    %c0_162 = arith.constant 0 : index
    %585 = vector.load %arg3[%c0_161, %c0_162] : memref<128x512xbf16, #tpu.memory_space<vmem>>, vector<128x512xbf16>
    %cst_163 = arith.constant dense<0.000000e+00> : vector<8x512xf32>
    %586 = tpu.matmul %584, %585, %cst_163 {dimension_numbers = #tpu.dot_dimension_numbers<[1], [0], [0], [1], [0, 0, 1, 1], [], []>} : vector<8x128xbf16>, vector<128x512xbf16>, vector<8x512xf32> -> vector<8x512xf32>
    %587 = arith.addf %583, %586 : vector<8x512xf32>
    %588 = vector.extract_strided_slice %587 {offsets = [0, 0], sizes = [8, 128], strides = [1, 1]} : vector<8x512xf32> to vector<8x128xf32>
    %589 = arith.negf %588 : vector<8x128xf32>
    %590 = math.exp %589 : vector<8x128xf32>
    %cst_164 = arith.constant 1.000000e+00 : f32
    %591 = vector.broadcast %cst_164 : f32 to vector<8x128xf32>
    %592 = arith.addf %591, %590 : vector<8x128xf32>
    %593 = arith.divf %591, %592 : vector<8x128xf32>
    %594 = vector.extract_strided_slice %587 {offsets = [0, 128], sizes = [8, 128], strides = [1, 1]} : vector<8x512xf32> to vector<8x128xf32>
    %595 = arith.negf %594 : vector<8x128xf32>
    %596 = math.exp %595 : vector<8x128xf32>
    %cst_165 = arith.constant 1.000000e+00 : f32
    %597 = vector.broadcast %cst_165 : f32 to vector<8x128xf32>
    %598 = arith.addf %597, %596 : vector<8x128xf32>
    %599 = arith.divf %597, %598 : vector<8x128xf32>
    %600 = vector.extract_strided_slice %587 {offsets = [0, 256], sizes = [8, 128], strides = [1, 1]} : vector<8x512xf32> to vector<8x128xf32>
    %601 = math.tanh %600 : vector<8x128xf32>
    %602 = vector.extract_strided_slice %587 {offsets = [0, 384], sizes = [8, 128], strides = [1, 1]} : vector<8x512xf32> to vector<8x128xf32>
    %603 = arith.negf %602 : vector<8x128xf32>
    %604 = math.exp %603 : vector<8x128xf32>
    %cst_166 = arith.constant 1.000000e+00 : f32
    %605 = vector.broadcast %cst_166 : f32 to vector<8x128xf32>
    %606 = arith.addf %605, %604 : vector<8x128xf32>
    %607 = arith.divf %605, %606 : vector<8x128xf32>
    %608 = arith.mulf %599, %572 : vector<8x128xf32>
    %609 = arith.mulf %593, %601 : vector<8x128xf32>
    %610 = arith.addf %608, %609 : vector<8x128xf32>
    %611 = math.tanh %610 : vector<8x128xf32>
    %612 = arith.mulf %607, %611 : vector<8x128xf32>
    %c128_i32_167 = arith.constant 128 : i32
    %613 = arith.muli %c15_i32, %c128_i32_167 : i32
    %614 = tpu.assume_multiple %613, 128 : i32
    %615 = arith.truncf %612 : vector<8x128xf32> to vector<8x128xbf16>
    %c0_168 = arith.constant 0 : index
    %616 = arith.index_cast %614 : i32 to index
    %617 = vector.load %arg11[%c0_168, %616] : memref<8x3200xbf16, #tpu.memory_space<vmem>>, vector<8x128xbf16>
    tpu.vector_store %arg11[%c0_168, %616], %615 {strides = array<i32>} : memref<8x3200xbf16, #tpu.memory_space<vmem>>, vector<8x128xbf16>,
    %c16_i32 = arith.constant 16 : i32
    %c8_i32_169 = arith.constant 8 : i32
    %618 = arith.muli %c16_i32, %c8_i32_169 : i32
    %619 = tpu.assume_multiple %618, 8 : i32
    %620 = arith.index_cast %619 : i32 to index
    %c0_170 = arith.constant 0 : index
    %621 = vector.load %arg10[%620, %c0_170] : memref<200x512xf32, #tpu.memory_space<vmem>>, vector<8x512xf32>
    %622 = arith.truncf %612 : vector<8x128xf32> to vector<8x128xbf16>
    %c0_171 = arith.constant 0 : index
    %c0_172 = arith.constant 0 : index
    %623 = vector.load %arg3[%c0_171, %c0_172] : memref<128x512xbf16, #tpu.memory_space<vmem>>, vector<128x512xbf16>
    %cst_173 = arith.constant dense<0.000000e+00> : vector<8x512xf32>
    %624 = tpu.matmul %622, %623, %cst_173 {dimension_numbers = #tpu.dot_dimension_numbers<[1], [0], [0], [1], [0, 0, 1, 1], [], []>} : vector<8x128xbf16>, vector<128x512xbf16>, vector<8x512xf32> -> vector<8x512xf32>
    %625 = arith.addf %621, %624 : vector<8x512xf32>
    %626 = vector.extract_strided_slice %625 {offsets = [0, 0], sizes = [8, 128], strides = [1, 1]} : vector<8x512xf32> to vector<8x128xf32>
    %627 = arith.negf %626 : vector<8x128xf32>
    %628 = math.exp %627 : vector<8x128xf32>
    %cst_174 = arith.constant 1.000000e+00 : f32
    %629 = vector.broadcast %cst_174 : f32 to vector<8x128xf32>
    %630 = arith.addf %629, %628 : vector<8x128xf32>
    %631 = arith.divf %629, %630 : vector<8x128xf32>
    %632 = vector.extract_strided_slice %625 {offsets = [0, 128], sizes = [8, 128], strides = [1, 1]} : vector<8x512xf32> to vector<8x128xf32>
    %633 = arith.negf %632 : vector<8x128xf32>
    %634 = math.exp %633 : vector<8x128xf32>
    %cst_175 = arith.constant 1.000000e+00 : f32
    %635 = vector.broadcast %cst_175 : f32 to vector<8x128xf32>
    %636 = arith.addf %635, %634 : vector<8x128xf32>
    %637 = arith.divf %635, %636 : vector<8x128xf32>
    %638 = vector.extract_strided_slice %625 {offsets = [0, 256], sizes = [8, 128], strides = [1, 1]} : vector<8x512xf32> to vector<8x128xf32>
    %639 = math.tanh %638 : vector<8x128xf32>
    %640 = vector.extract_strided_slice %625 {offsets = [0, 384], sizes = [8, 128], strides = [1, 1]} : vector<8x512xf32> to vector<8x128xf32>
    %641 = arith.negf %640 : vector<8x128xf32>
    %642 = math.exp %641 : vector<8x128xf32>
    %cst_176 = arith.constant 1.000000e+00 : f32
    %643 = vector.broadcast %cst_176 : f32 to vector<8x128xf32>
    %644 = arith.addf %643, %642 : vector<8x128xf32>
    %645 = arith.divf %643, %644 : vector<8x128xf32>
    %646 = arith.mulf %637, %610 : vector<8x128xf32>
    %647 = arith.mulf %631, %639 : vector<8x128xf32>
    %648 = arith.addf %646, %647 : vector<8x128xf32>
    %649 = math.tanh %648 : vector<8x128xf32>
    %650 = arith.mulf %645, %649 : vector<8x128xf32>
    %c128_i32_177 = arith.constant 128 : i32
    %651 = arith.muli %c16_i32, %c128_i32_177 : i32
    %652 = tpu.assume_multiple %651, 128 : i32
    %653 = arith.truncf %650 : vector<8x128xf32> to vector<8x128xbf16>
    %c0_178 = arith.constant 0 : index
    %654 = arith.index_cast %652 : i32 to index
    %655 = vector.load %arg11[%c0_178, %654] : memref<8x3200xbf16, #tpu.memory_space<vmem>>, vector<8x128xbf16>
    tpu.vector_store %arg11[%c0_178, %654], %653 {strides = array<i32>} : memref<8x3200xbf16, #tpu.memory_space<vmem>>, vector<8x128xbf16>,
    %c17_i32 = arith.constant 17 : i32
    %c8_i32_179 = arith.constant 8 : i32
    %656 = arith.muli %c17_i32, %c8_i32_179 : i32
    %657 = tpu.assume_multiple %656, 8 : i32
    %658 = arith.index_cast %657 : i32 to index
    %c0_180 = arith.constant 0 : index
    %659 = vector.load %arg10[%658, %c0_180] : memref<200x512xf32, #tpu.memory_space<vmem>>, vector<8x512xf32>
    %660 = arith.truncf %650 : vector<8x128xf32> to vector<8x128xbf16>
    %c0_181 = arith.constant 0 : index
    %c0_182 = arith.constant 0 : index
    %661 = vector.load %arg3[%c0_181, %c0_182] : memref<128x512xbf16, #tpu.memory_space<vmem>>, vector<128x512xbf16>
    %cst_183 = arith.constant dense<0.000000e+00> : vector<8x512xf32>
    %662 = tpu.matmul %660, %661, %cst_183 {dimension_numbers = #tpu.dot_dimension_numbers<[1], [0], [0], [1], [0, 0, 1, 1], [], []>} : vector<8x128xbf16>, vector<128x512xbf16>, vector<8x512xf32> -> vector<8x512xf32>
    %663 = arith.addf %659, %662 : vector<8x512xf32>
    %664 = vector.extract_strided_slice %663 {offsets = [0, 0], sizes = [8, 128], strides = [1, 1]} : vector<8x512xf32> to vector<8x128xf32>
    %665 = arith.negf %664 : vector<8x128xf32>
    %666 = math.exp %665 : vector<8x128xf32>
    %cst_184 = arith.constant 1.000000e+00 : f32
    %667 = vector.broadcast %cst_184 : f32 to vector<8x128xf32>
    %668 = arith.addf %667, %666 : vector<8x128xf32>
    %669 = arith.divf %667, %668 : vector<8x128xf32>
    %670 = vector.extract_strided_slice %663 {offsets = [0, 128], sizes = [8, 128], strides = [1, 1]} : vector<8x512xf32> to vector<8x128xf32>
    %671 = arith.negf %670 : vector<8x128xf32>
    %672 = math.exp %671 : vector<8x128xf32>
    %cst_185 = arith.constant 1.000000e+00 : f32
    %673 = vector.broadcast %cst_185 : f32 to vector<8x128xf32>
    %674 = arith.addf %673, %672 : vector<8x128xf32>
    %675 = arith.divf %673, %674 : vector<8x128xf32>
    %676 = vector.extract_strided_slice %663 {offsets = [0, 256], sizes = [8, 128], strides = [1, 1]} : vector<8x512xf32> to vector<8x128xf32>
    %677 = math.tanh %676 : vector<8x128xf32>
    %678 = vector.extract_strided_slice %663 {offsets = [0, 384], sizes = [8, 128], strides = [1, 1]} : vector<8x512xf32> to vector<8x128xf32>
    %679 = arith.negf %678 : vector<8x128xf32>
    %680 = math.exp %679 : vector<8x128xf32>
    %cst_186 = arith.constant 1.000000e+00 : f32
    %681 = vector.broadcast %cst_186 : f32 to vector<8x128xf32>
    %682 = arith.addf %681, %680 : vector<8x128xf32>
    %683 = arith.divf %681, %682 : vector<8x128xf32>
    %684 = arith.mulf %675, %648 : vector<8x128xf32>
    %685 = arith.mulf %669, %677 : vector<8x128xf32>
    %686 = arith.addf %684, %685 : vector<8x128xf32>
    %687 = math.tanh %686 : vector<8x128xf32>
    %688 = arith.mulf %683, %687 : vector<8x128xf32>
    %c128_i32_187 = arith.constant 128 : i32
    %689 = arith.muli %c17_i32, %c128_i32_187 : i32
    %690 = tpu.assume_multiple %689, 128 : i32
    %691 = arith.truncf %688 : vector<8x128xf32> to vector<8x128xbf16>
    %c0_188 = arith.constant 0 : index
    %692 = arith.index_cast %690 : i32 to index
    %693 = vector.load %arg11[%c0_188, %692] : memref<8x3200xbf16, #tpu.memory_space<vmem>>, vector<8x128xbf16>
    tpu.vector_store %arg11[%c0_188, %692], %691 {strides = array<i32>} : memref<8x3200xbf16, #tpu.memory_space<vmem>>, vector<8x128xbf16>,
    %c18_i32 = arith.constant 18 : i32
    %c8_i32_189 = arith.constant 8 : i32
    %694 = arith.muli %c18_i32, %c8_i32_189 : i32
    %695 = tpu.assume_multiple %694, 8 : i32
    %696 = arith.index_cast %695 : i32 to index
    %c0_190 = arith.constant 0 : index
    %697 = vector.load %arg10[%696, %c0_190] : memref<200x512xf32, #tpu.memory_space<vmem>>, vector<8x512xf32>
    %698 = arith.truncf %688 : vector<8x128xf32> to vector<8x128xbf16>
    %c0_191 = arith.constant 0 : index
    %c0_192 = arith.constant 0 : index
    %699 = vector.load %arg3[%c0_191, %c0_192] : memref<128x512xbf16, #tpu.memory_space<vmem>>, vector<128x512xbf16>
    %cst_193 = arith.constant dense<0.000000e+00> : vector<8x512xf32>
    %700 = tpu.matmul %698, %699, %cst_193 {dimension_numbers = #tpu.dot_dimension_numbers<[1], [0], [0], [1], [0, 0, 1, 1], [], []>} : vector<8x128xbf16>, vector<128x512xbf16>, vector<8x512xf32> -> vector<8x512xf32>
    %701 = arith.addf %697, %700 : vector<8x512xf32>
    %702 = vector.extract_strided_slice %701 {offsets = [0, 0], sizes = [8, 128], strides = [1, 1]} : vector<8x512xf32> to vector<8x128xf32>
    %703 = arith.negf %702 : vector<8x128xf32>
    %704 = math.exp %703 : vector<8x128xf32>
    %cst_194 = arith.constant 1.000000e+00 : f32
    %705 = vector.broadcast %cst_194 : f32 to vector<8x128xf32>
    %706 = arith.addf %705, %704 : vector<8x128xf32>
    %707 = arith.divf %705, %706 : vector<8x128xf32>
    %708 = vector.extract_strided_slice %701 {offsets = [0, 128], sizes = [8, 128], strides = [1, 1]} : vector<8x512xf32> to vector<8x128xf32>
    %709 = arith.negf %708 : vector<8x128xf32>
    %710 = math.exp %709 : vector<8x128xf32>
    %cst_195 = arith.constant 1.000000e+00 : f32
    %711 = vector.broadcast %cst_195 : f32 to vector<8x128xf32>
    %712 = arith.addf %711, %710 : vector<8x128xf32>
    %713 = arith.divf %711, %712 : vector<8x128xf32>
    %714 = vector.extract_strided_slice %701 {offsets = [0, 256], sizes = [8, 128], strides = [1, 1]} : vector<8x512xf32> to vector<8x128xf32>
    %715 = math.tanh %714 : vector<8x128xf32>
    %716 = vector.extract_strided_slice %701 {offsets = [0, 384], sizes = [8, 128], strides = [1, 1]} : vector<8x512xf32> to vector<8x128xf32>
    %717 = arith.negf %716 : vector<8x128xf32>
    %718 = math.exp %717 : vector<8x128xf32>
    %cst_196 = arith.constant 1.000000e+00 : f32
    %719 = vector.broadcast %cst_196 : f32 to vector<8x128xf32>
    %720 = arith.addf %719, %718 : vector<8x128xf32>
    %721 = arith.divf %719, %720 : vector<8x128xf32>
    %722 = arith.mulf %713, %686 : vector<8x128xf32>
    %723 = arith.mulf %707, %715 : vector<8x128xf32>
    %724 = arith.addf %722, %723 : vector<8x128xf32>
    %725 = math.tanh %724 : vector<8x128xf32>
    %726 = arith.mulf %721, %725 : vector<8x128xf32>
    %c128_i32_197 = arith.constant 128 : i32
    %727 = arith.muli %c18_i32, %c128_i32_197 : i32
    %728 = tpu.assume_multiple %727, 128 : i32
    %729 = arith.truncf %726 : vector<8x128xf32> to vector<8x128xbf16>
    %c0_198 = arith.constant 0 : index
    %730 = arith.index_cast %728 : i32 to index
    %731 = vector.load %arg11[%c0_198, %730] : memref<8x3200xbf16, #tpu.memory_space<vmem>>, vector<8x128xbf16>
    tpu.vector_store %arg11[%c0_198, %730], %729 {strides = array<i32>} : memref<8x3200xbf16, #tpu.memory_space<vmem>>, vector<8x128xbf16>,
    %c19_i32 = arith.constant 19 : i32
    %c8_i32_199 = arith.constant 8 : i32
    %732 = arith.muli %c19_i32, %c8_i32_199 : i32
    %733 = tpu.assume_multiple %732, 8 : i32
    %734 = arith.index_cast %733 : i32 to index
    %c0_200 = arith.constant 0 : index
    %735 = vector.load %arg10[%734, %c0_200] : memref<200x512xf32, #tpu.memory_space<vmem>>, vector<8x512xf32>
    %736 = arith.truncf %726 : vector<8x128xf32> to vector<8x128xbf16>
    %c0_201 = arith.constant 0 : index
    %c0_202 = arith.constant 0 : index
    %737 = vector.load %arg3[%c0_201, %c0_202] : memref<128x512xbf16, #tpu.memory_space<vmem>>, vector<128x512xbf16>
    %cst_203 = arith.constant dense<0.000000e+00> : vector<8x512xf32>
    %738 = tpu.matmul %736, %737, %cst_203 {dimension_numbers = #tpu.dot_dimension_numbers<[1], [0], [0], [1], [0, 0, 1, 1], [], []>} : vector<8x128xbf16>, vector<128x512xbf16>, vector<8x512xf32> -> vector<8x512xf32>
    %739 = arith.addf %735, %738 : vector<8x512xf32>
    %740 = vector.extract_strided_slice %739 {offsets = [0, 0], sizes = [8, 128], strides = [1, 1]} : vector<8x512xf32> to vector<8x128xf32>
    %741 = arith.negf %740 : vector<8x128xf32>
    %742 = math.exp %741 : vector<8x128xf32>
    %cst_204 = arith.constant 1.000000e+00 : f32
    %743 = vector.broadcast %cst_204 : f32 to vector<8x128xf32>
    %744 = arith.addf %743, %742 : vector<8x128xf32>
    %745 = arith.divf %743, %744 : vector<8x128xf32>
    %746 = vector.extract_strided_slice %739 {offsets = [0, 128], sizes = [8, 128], strides = [1, 1]} : vector<8x512xf32> to vector<8x128xf32>
    %747 = arith.negf %746 : vector<8x128xf32>
    %748 = math.exp %747 : vector<8x128xf32>
    %cst_205 = arith.constant 1.000000e+00 : f32
    %749 = vector.broadcast %cst_205 : f32 to vector<8x128xf32>
    %750 = arith.addf %749, %748 : vector<8x128xf32>
    %751 = arith.divf %749, %750 : vector<8x128xf32>
    %752 = vector.extract_strided_slice %739 {offsets = [0, 256], sizes = [8, 128], strides = [1, 1]} : vector<8x512xf32> to vector<8x128xf32>
    %753 = math.tanh %752 : vector<8x128xf32>
    %754 = vector.extract_strided_slice %739 {offsets = [0, 384], sizes = [8, 128], strides = [1, 1]} : vector<8x512xf32> to vector<8x128xf32>
    %755 = arith.negf %754 : vector<8x128xf32>
    %756 = math.exp %755 : vector<8x128xf32>
    %cst_206 = arith.constant 1.000000e+00 : f32
    %757 = vector.broadcast %cst_206 : f32 to vector<8x128xf32>
    %758 = arith.addf %757, %756 : vector<8x128xf32>
    %759 = arith.divf %757, %758 : vector<8x128xf32>
    %760 = arith.mulf %751, %724 : vector<8x128xf32>
    %761 = arith.mulf %745, %753 : vector<8x128xf32>
    %762 = arith.addf %760, %761 : vector<8x128xf32>
    %763 = math.tanh %762 : vector<8x128xf32>
    %764 = arith.mulf %759, %763 : vector<8x128xf32>
    %c128_i32_207 = arith.constant 128 : i32
    %765 = arith.muli %c19_i32, %c128_i32_207 : i32
    %766 = tpu.assume_multiple %765, 128 : i32
    %767 = arith.truncf %764 : vector<8x128xf32> to vector<8x128xbf16>
    %c0_208 = arith.constant 0 : index
    %768 = arith.index_cast %766 : i32 to index
    %769 = vector.load %arg11[%c0_208, %768] : memref<8x3200xbf16, #tpu.memory_space<vmem>>, vector<8x128xbf16>
    tpu.vector_store %arg11[%c0_208, %768], %767 {strides = array<i32>} : memref<8x3200xbf16, #tpu.memory_space<vmem>>, vector<8x128xbf16>,
    %c20_i32 = arith.constant 20 : i32
    %c8_i32_209 = arith.constant 8 : i32
    %770 = arith.muli %c20_i32, %c8_i32_209 : i32
    %771 = tpu.assume_multiple %770, 8 : i32
    %772 = arith.index_cast %771 : i32 to index
    %c0_210 = arith.constant 0 : index
    %773 = vector.load %arg10[%772, %c0_210] : memref<200x512xf32, #tpu.memory_space<vmem>>, vector<8x512xf32>
    %774 = arith.truncf %764 : vector<8x128xf32> to vector<8x128xbf16>
    %c0_211 = arith.constant 0 : index
    %c0_212 = arith.constant 0 : index
    %775 = vector.load %arg3[%c0_211, %c0_212] : memref<128x512xbf16, #tpu.memory_space<vmem>>, vector<128x512xbf16>
    %cst_213 = arith.constant dense<0.000000e+00> : vector<8x512xf32>
    %776 = tpu.matmul %774, %775, %cst_213 {dimension_numbers = #tpu.dot_dimension_numbers<[1], [0], [0], [1], [0, 0, 1, 1], [], []>} : vector<8x128xbf16>, vector<128x512xbf16>, vector<8x512xf32> -> vector<8x512xf32>
    %777 = arith.addf %773, %776 : vector<8x512xf32>
    %778 = vector.extract_strided_slice %777 {offsets = [0, 0], sizes = [8, 128], strides = [1, 1]} : vector<8x512xf32> to vector<8x128xf32>
    %779 = arith.negf %778 : vector<8x128xf32>
    %780 = math.exp %779 : vector<8x128xf32>
    %cst_214 = arith.constant 1.000000e+00 : f32
    %781 = vector.broadcast %cst_214 : f32 to vector<8x128xf32>
    %782 = arith.addf %781, %780 : vector<8x128xf32>
    %783 = arith.divf %781, %782 : vector<8x128xf32>
    %784 = vector.extract_strided_slice %777 {offsets = [0, 128], sizes = [8, 128], strides = [1, 1]} : vector<8x512xf32> to vector<8x128xf32>
    %785 = arith.negf %784 : vector<8x128xf32>
    %786 = math.exp %785 : vector<8x128xf32>
    %cst_215 = arith.constant 1.000000e+00 : f32
    %787 = vector.broadcast %cst_215 : f32 to vector<8x128xf32>
    %788 = arith.addf %787, %786 : vector<8x128xf32>
    %789 = arith.divf %787, %788 : vector<8x128xf32>
    %790 = vector.extract_strided_slice %777 {offsets = [0, 256], sizes = [8, 128], strides = [1, 1]} : vector<8x512xf32> to vector<8x128xf32>
    %791 = math.tanh %790 : vector<8x128xf32>
    %792 = vector.extract_strided_slice %777 {offsets = [0, 384], sizes = [8, 128], strides = [1, 1]} : vector<8x512xf32> to vector<8x128xf32>
    %793 = arith.negf %792 : vector<8x128xf32>
    %794 = math.exp %793 : vector<8x128xf32>
    %cst_216 = arith.constant 1.000000e+00 : f32
    %795 = vector.broadcast %cst_216 : f32 to vector<8x128xf32>
    %796 = arith.addf %795, %794 : vector<8x128xf32>
    %797 = arith.divf %795, %796 : vector<8x128xf32>
    %798 = arith.mulf %789, %762 : vector<8x128xf32>
    %799 = arith.mulf %783, %791 : vector<8x128xf32>
    %800 = arith.addf %798, %799 : vector<8x128xf32>
    %801 = math.tanh %800 : vector<8x128xf32>
    %802 = arith.mulf %797, %801 : vector<8x128xf32>
    %c128_i32_217 = arith.constant 128 : i32
    %803 = arith.muli %c20_i32, %c128_i32_217 : i32
    %804 = tpu.assume_multiple %803, 128 : i32
    %805 = arith.truncf %802 : vector<8x128xf32> to vector<8x128xbf16>
    %c0_218 = arith.constant 0 : index
    %806 = arith.index_cast %804 : i32 to index
    %807 = vector.load %arg11[%c0_218, %806] : memref<8x3200xbf16, #tpu.memory_space<vmem>>, vector<8x128xbf16>
    tpu.vector_store %arg11[%c0_218, %806], %805 {strides = array<i32>} : memref<8x3200xbf16, #tpu.memory_space<vmem>>, vector<8x128xbf16>,
    %c21_i32 = arith.constant 21 : i32
    %c8_i32_219 = arith.constant 8 : i32
    %808 = arith.muli %c21_i32, %c8_i32_219 : i32
    %809 = tpu.assume_multiple %808, 8 : i32
    %810 = arith.index_cast %809 : i32 to index
    %c0_220 = arith.constant 0 : index
    %811 = vector.load %arg10[%810, %c0_220] : memref<200x512xf32, #tpu.memory_space<vmem>>, vector<8x512xf32>
    %812 = arith.truncf %802 : vector<8x128xf32> to vector<8x128xbf16>
    %c0_221 = arith.constant 0 : index
    %c0_222 = arith.constant 0 : index
    %813 = vector.load %arg3[%c0_221, %c0_222] : memref<128x512xbf16, #tpu.memory_space<vmem>>, vector<128x512xbf16>
    %cst_223 = arith.constant dense<0.000000e+00> : vector<8x512xf32>
    %814 = tpu.matmul %812, %813, %cst_223 {dimension_numbers = #tpu.dot_dimension_numbers<[1], [0], [0], [1], [0, 0, 1, 1], [], []>} : vector<8x128xbf16>, vector<128x512xbf16>, vector<8x512xf32> -> vector<8x512xf32>
    %815 = arith.addf %811, %814 : vector<8x512xf32>
    %816 = vector.extract_strided_slice %815 {offsets = [0, 0], sizes = [8, 128], strides = [1, 1]} : vector<8x512xf32> to vector<8x128xf32>
    %817 = arith.negf %816 : vector<8x128xf32>
    %818 = math.exp %817 : vector<8x128xf32>
    %cst_224 = arith.constant 1.000000e+00 : f32
    %819 = vector.broadcast %cst_224 : f32 to vector<8x128xf32>
    %820 = arith.addf %819, %818 : vector<8x128xf32>
    %821 = arith.divf %819, %820 : vector<8x128xf32>
    %822 = vector.extract_strided_slice %815 {offsets = [0, 128], sizes = [8, 128], strides = [1, 1]} : vector<8x512xf32> to vector<8x128xf32>
    %823 = arith.negf %822 : vector<8x128xf32>
    %824 = math.exp %823 : vector<8x128xf32>
    %cst_225 = arith.constant 1.000000e+00 : f32
    %825 = vector.broadcast %cst_225 : f32 to vector<8x128xf32>
    %826 = arith.addf %825, %824 : vector<8x128xf32>
    %827 = arith.divf %825, %826 : vector<8x128xf32>
    %828 = vector.extract_strided_slice %815 {offsets = [0, 256], sizes = [8, 128], strides = [1, 1]} : vector<8x512xf32> to vector<8x128xf32>
    %829 = math.tanh %828 : vector<8x128xf32>
    %830 = vector.extract_strided_slice %815 {offsets = [0, 384], sizes = [8, 128], strides = [1, 1]} : vector<8x512xf32> to vector<8x128xf32>
    %831 = arith.negf %830 : vector<8x128xf32>
    %832 = math.exp %831 : vector<8x128xf32>
    %cst_226 = arith.constant 1.000000e+00 : f32
    %833 = vector.broadcast %cst_226 : f32 to vector<8x128xf32>
    %834 = arith.addf %833, %832 : vector<8x128xf32>
    %835 = arith.divf %833, %834 : vector<8x128xf32>
    %836 = arith.mulf %827, %800 : vector<8x128xf32>
    %837 = arith.mulf %821, %829 : vector<8x128xf32>
    %838 = arith.addf %836, %837 : vector<8x128xf32>
    %839 = math.tanh %838 : vector<8x128xf32>
    %840 = arith.mulf %835, %839 : vector<8x128xf32>
    %c128_i32_227 = arith.constant 128 : i32
    %841 = arith.muli %c21_i32, %c128_i32_227 : i32
    %842 = tpu.assume_multiple %841, 128 : i32
    %843 = arith.truncf %840 : vector<8x128xf32> to vector<8x128xbf16>
    %c0_228 = arith.constant 0 : index
    %844 = arith.index_cast %842 : i32 to index
    %845 = vector.load %arg11[%c0_228, %844] : memref<8x3200xbf16, #tpu.memory_space<vmem>>, vector<8x128xbf16>
    tpu.vector_store %arg11[%c0_228, %844], %843 {strides = array<i32>} : memref<8x3200xbf16, #tpu.memory_space<vmem>>, vector<8x128xbf16>,
    %c22_i32 = arith.constant 22 : i32
    %c8_i32_229 = arith.constant 8 : i32
    %846 = arith.muli %c22_i32, %c8_i32_229 : i32
    %847 = tpu.assume_multiple %846, 8 : i32
    %848 = arith.index_cast %847 : i32 to index
    %c0_230 = arith.constant 0 : index
    %849 = vector.load %arg10[%848, %c0_230] : memref<200x512xf32, #tpu.memory_space<vmem>>, vector<8x512xf32>
    %850 = arith.truncf %840 : vector<8x128xf32> to vector<8x128xbf16>
    %c0_231 = arith.constant 0 : index
    %c0_232 = arith.constant 0 : index
    %851 = vector.load %arg3[%c0_231, %c0_232] : memref<128x512xbf16, #tpu.memory_space<vmem>>, vector<128x512xbf16>
    %cst_233 = arith.constant dense<0.000000e+00> : vector<8x512xf32>
    %852 = tpu.matmul %850, %851, %cst_233 {dimension_numbers = #tpu.dot_dimension_numbers<[1], [0], [0], [1], [0, 0, 1, 1], [], []>} : vector<8x128xbf16>, vector<128x512xbf16>, vector<8x512xf32> -> vector<8x512xf32>
    %853 = arith.addf %849, %852 : vector<8x512xf32>
    %854 = vector.extract_strided_slice %853 {offsets = [0, 0], sizes = [8, 128], strides = [1, 1]} : vector<8x512xf32> to vector<8x128xf32>
    %855 = arith.negf %854 : vector<8x128xf32>
    %856 = math.exp %855 : vector<8x128xf32>
    %cst_234 = arith.constant 1.000000e+00 : f32
    %857 = vector.broadcast %cst_234 : f32 to vector<8x128xf32>
    %858 = arith.addf %857, %856 : vector<8x128xf32>
    %859 = arith.divf %857, %858 : vector<8x128xf32>
    %860 = vector.extract_strided_slice %853 {offsets = [0, 128], sizes = [8, 128], strides = [1, 1]} : vector<8x512xf32> to vector<8x128xf32>
    %861 = arith.negf %860 : vector<8x128xf32>
    %862 = math.exp %861 : vector<8x128xf32>
    %cst_235 = arith.constant 1.000000e+00 : f32
    %863 = vector.broadcast %cst_235 : f32 to vector<8x128xf32>
    %864 = arith.addf %863, %862 : vector<8x128xf32>
    %865 = arith.divf %863, %864 : vector<8x128xf32>
    %866 = vector.extract_strided_slice %853 {offsets = [0, 256], sizes = [8, 128], strides = [1, 1]} : vector<8x512xf32> to vector<8x128xf32>
    %867 = math.tanh %866 : vector<8x128xf32>
    %868 = vector.extract_strided_slice %853 {offsets = [0, 384], sizes = [8, 128], strides = [1, 1]} : vector<8x512xf32> to vector<8x128xf32>
    %869 = arith.negf %868 : vector<8x128xf32>
    %870 = math.exp %869 : vector<8x128xf32>
    %cst_236 = arith.constant 1.000000e+00 : f32
    %871 = vector.broadcast %cst_236 : f32 to vector<8x128xf32>
    %872 = arith.addf %871, %870 : vector<8x128xf32>
    %873 = arith.divf %871, %872 : vector<8x128xf32>
    %874 = arith.mulf %865, %838 : vector<8x128xf32>
    %875 = arith.mulf %859, %867 : vector<8x128xf32>
    %876 = arith.addf %874, %875 : vector<8x128xf32>
    %877 = math.tanh %876 : vector<8x128xf32>
    %878 = arith.mulf %873, %877 : vector<8x128xf32>
    %c128_i32_237 = arith.constant 128 : i32
    %879 = arith.muli %c22_i32, %c128_i32_237 : i32
    %880 = tpu.assume_multiple %879, 128 : i32
    %881 = arith.truncf %878 : vector<8x128xf32> to vector<8x128xbf16>
    %c0_238 = arith.constant 0 : index
    %882 = arith.index_cast %880 : i32 to index
    %883 = vector.load %arg11[%c0_238, %882] : memref<8x3200xbf16, #tpu.memory_space<vmem>>, vector<8x128xbf16>
    tpu.vector_store %arg11[%c0_238, %882], %881 {strides = array<i32>} : memref<8x3200xbf16, #tpu.memory_space<vmem>>, vector<8x128xbf16>,
    %c23_i32 = arith.constant 23 : i32
    %c8_i32_239 = arith.constant 8 : i32
    %884 = arith.muli %c23_i32, %c8_i32_239 : i32
    %885 = tpu.assume_multiple %884, 8 : i32
    %886 = arith.index_cast %885 : i32 to index
    %c0_240 = arith.constant 0 : index
    %887 = vector.load %arg10[%886, %c0_240] : memref<200x512xf32, #tpu.memory_space<vmem>>, vector<8x512xf32>
    %888 = arith.truncf %878 : vector<8x128xf32> to vector<8x128xbf16>
    %c0_241 = arith.constant 0 : index
    %c0_242 = arith.constant 0 : index
    %889 = vector.load %arg3[%c0_241, %c0_242] : memref<128x512xbf16, #tpu.memory_space<vmem>>, vector<128x512xbf16>
    %cst_243 = arith.constant dense<0.000000e+00> : vector<8x512xf32>
    %890 = tpu.matmul %888, %889, %cst_243 {dimension_numbers = #tpu.dot_dimension_numbers<[1], [0], [0], [1], [0, 0, 1, 1], [], []>} : vector<8x128xbf16>, vector<128x512xbf16>, vector<8x512xf32> -> vector<8x512xf32>
    %891 = arith.addf %887, %890 : vector<8x512xf32>
    %892 = vector.extract_strided_slice %891 {offsets = [0, 0], sizes = [8, 128], strides = [1, 1]} : vector<8x512xf32> to vector<8x128xf32>
    %893 = arith.negf %892 : vector<8x128xf32>
    %894 = math.exp %893 : vector<8x128xf32>
    %cst_244 = arith.constant 1.000000e+00 : f32
    %895 = vector.broadcast %cst_244 : f32 to vector<8x128xf32>
    %896 = arith.addf %895, %894 : vector<8x128xf32>
    %897 = arith.divf %895, %896 : vector<8x128xf32>
    %898 = vector.extract_strided_slice %891 {offsets = [0, 128], sizes = [8, 128], strides = [1, 1]} : vector<8x512xf32> to vector<8x128xf32>
    %899 = arith.negf %898 : vector<8x128xf32>
    %900 = math.exp %899 : vector<8x128xf32>
    %cst_245 = arith.constant 1.000000e+00 : f32
    %901 = vector.broadcast %cst_245 : f32 to vector<8x128xf32>
    %902 = arith.addf %901, %900 : vector<8x128xf32>
    %903 = arith.divf %901, %902 : vector<8x128xf32>
    %904 = vector.extract_strided_slice %891 {offsets = [0, 256], sizes = [8, 128], strides = [1, 1]} : vector<8x512xf32> to vector<8x128xf32>
    %905 = math.tanh %904 : vector<8x128xf32>
    %906 = vector.extract_strided_slice %891 {offsets = [0, 384], sizes = [8, 128], strides = [1, 1]} : vector<8x512xf32> to vector<8x128xf32>
    %907 = arith.negf %906 : vector<8x128xf32>
    %908 = math.exp %907 : vector<8x128xf32>
    %cst_246 = arith.constant 1.000000e+00 : f32
    %909 = vector.broadcast %cst_246 : f32 to vector<8x128xf32>
    %910 = arith.addf %909, %908 : vector<8x128xf32>
    %911 = arith.divf %909, %910 : vector<8x128xf32>
    %912 = arith.mulf %903, %876 : vector<8x128xf32>
    %913 = arith.mulf %897, %905 : vector<8x128xf32>
    %914 = arith.addf %912, %913 : vector<8x128xf32>
    %915 = math.tanh %914 : vector<8x128xf32>
    %916 = arith.mulf %911, %915 : vector<8x128xf32>
    %c128_i32_247 = arith.constant 128 : i32
    %917 = arith.muli %c23_i32, %c128_i32_247 : i32
    %918 = tpu.assume_multiple %917, 128 : i32
    %919 = arith.truncf %916 : vector<8x128xf32> to vector<8x128xbf16>
    %c0_248 = arith.constant 0 : index
    %920 = arith.index_cast %918 : i32 to index
    %921 = vector.load %arg11[%c0_248, %920] : memref<8x3200xbf16, #tpu.memory_space<vmem>>, vector<8x128xbf16>
    tpu.vector_store %arg11[%c0_248, %920], %919 {strides = array<i32>} : memref<8x3200xbf16, #tpu.memory_space<vmem>>, vector<8x128xbf16>,
    %c24_i32 = arith.constant 24 : i32
    %c8_i32_249 = arith.constant 8 : i32
    %922 = arith.muli %c24_i32, %c8_i32_249 : i32
    %923 = tpu.assume_multiple %922, 8 : i32
    %924 = arith.index_cast %923 : i32 to index
    %c0_250 = arith.constant 0 : index
    %925 = vector.load %arg10[%924, %c0_250] : memref<200x512xf32, #tpu.memory_space<vmem>>, vector<8x512xf32>
    %926 = arith.truncf %916 : vector<8x128xf32> to vector<8x128xbf16>
    %c0_251 = arith.constant 0 : index
    %c0_252 = arith.constant 0 : index
    %927 = vector.load %arg3[%c0_251, %c0_252] : memref<128x512xbf16, #tpu.memory_space<vmem>>, vector<128x512xbf16>
    %cst_253 = arith.constant dense<0.000000e+00> : vector<8x512xf32>
    %928 = tpu.matmul %926, %927, %cst_253 {dimension_numbers = #tpu.dot_dimension_numbers<[1], [0], [0], [1], [0, 0, 1, 1], [], []>} : vector<8x128xbf16>, vector<128x512xbf16>, vector<8x512xf32> -> vector<8x512xf32>
    %929 = arith.addf %925, %928 : vector<8x512xf32>
    %930 = vector.extract_strided_slice %929 {offsets = [0, 0], sizes = [8, 128], strides = [1, 1]} : vector<8x512xf32> to vector<8x128xf32>
    %931 = arith.negf %930 : vector<8x128xf32>
    %932 = math.exp %931 : vector<8x128xf32>
    %cst_254 = arith.constant 1.000000e+00 : f32
    %933 = vector.broadcast %cst_254 : f32 to vector<8x128xf32>
    %934 = arith.addf %933, %932 : vector<8x128xf32>
    %935 = arith.divf %933, %934 : vector<8x128xf32>
    %936 = vector.extract_strided_slice %929 {offsets = [0, 128], sizes = [8, 128], strides = [1, 1]} : vector<8x512xf32> to vector<8x128xf32>
    %937 = arith.negf %936 : vector<8x128xf32>
    %938 = math.exp %937 : vector<8x128xf32>
    %cst_255 = arith.constant 1.000000e+00 : f32
    %939 = vector.broadcast %cst_255 : f32 to vector<8x128xf32>
    %940 = arith.addf %939, %938 : vector<8x128xf32>
    %941 = arith.divf %939, %940 : vector<8x128xf32>
    %942 = vector.extract_strided_slice %929 {offsets = [0, 256], sizes = [8, 128], strides = [1, 1]} : vector<8x512xf32> to vector<8x128xf32>
    %943 = math.tanh %942 : vector<8x128xf32>
    %944 = vector.extract_strided_slice %929 {offsets = [0, 384], sizes = [8, 128], strides = [1, 1]} : vector<8x512xf32> to vector<8x128xf32>
    %945 = arith.negf %944 : vector<8x128xf32>
    %946 = math.exp %945 : vector<8x128xf32>
    %cst_256 = arith.constant 1.000000e+00 : f32
    %947 = vector.broadcast %cst_256 : f32 to vector<8x128xf32>
    %948 = arith.addf %947, %946 : vector<8x128xf32>
    %949 = arith.divf %947, %948 : vector<8x128xf32>
    %950 = arith.mulf %941, %914 : vector<8x128xf32>
    %951 = arith.mulf %935, %943 : vector<8x128xf32>
    %952 = arith.addf %950, %951 : vector<8x128xf32>
    %953 = math.tanh %952 : vector<8x128xf32>
    %954 = arith.mulf %949, %953 : vector<8x128xf32>
    %c128_i32_257 = arith.constant 128 : i32
    %955 = arith.muli %c24_i32, %c128_i32_257 : i32
    %956 = tpu.assume_multiple %955, 128 : i32
    %957 = arith.truncf %954 : vector<8x128xf32> to vector<8x128xbf16>
    %c0_258 = arith.constant 0 : index
    %958 = arith.index_cast %956 : i32 to index
    %959 = vector.load %arg11[%c0_258, %958] : memref<8x3200xbf16, #tpu.memory_space<vmem>>, vector<8x128xbf16>
    tpu.vector_store %arg11[%c0_258, %958], %957 {strides = array<i32>} : memref<8x3200xbf16, #tpu.memory_space<vmem>>, vector<8x128xbf16>,
    %c25_i32 = arith.constant 25 : i32
    %c0_259 = arith.constant 0 : index
    %c0_260 = arith.constant 0 : index
    %960 = vector.load %arg11[%c0_259, %c0_260] : memref<8x3200xbf16, #tpu.memory_space<vmem>>, vector<8x3200xbf16>
    %c0_261 = arith.constant 0 : index
    %c0_262 = arith.constant 0 : index
    %961 = vector.load %arg5[%c0_261, %c0_262] : memref<3200x128xbf16, #tpu.memory_space<vmem>>, vector<3200x128xbf16>
    %cst_263 = arith.constant dense<0.000000e+00> : vector<8x128xf32>
    %962 = tpu.matmul %960, %961, %cst_263 {dimension_numbers = #tpu.dot_dimension_numbers<[1], [0], [0], [1], [0, 0, 1, 1], [], []>} : vector<8x3200xbf16>, vector<3200x128xbf16>, vector<8x128xf32> -> vector<8x128xf32>
    %c0_264 = arith.constant 0 : index
    %c0_265 = arith.constant 0 : index
    %963 = vector.load %arg6[%c0_264, %c0_265] : memref<1x128xf32, #tpu.memory_space<vmem>>, vector<1x128xf32>
    %964 = vector.broadcast %963 : vector<1x128xf32> to vector<8x128xf32>
    %965 = arith.addf %962, %964 : vector<8x128xf32>
    %cst_266 = arith.constant 0.000000e+00 : f32
    %966 = vector.broadcast %cst_266 : f32 to vector<8x128xf32>
    %967 = arith.maximumf %965, %966 : vector<8x128xf32>
    %968 = arith.truncf %967 : vector<8x128xf32> to vector<8x128xbf16>
    %c0_267 = arith.constant 0 : index
    %c0_268 = arith.constant 0 : index
    %969 = vector.load %arg7[%c0_267, %c0_268] : memref<128x128xbf16, #tpu.memory_space<vmem>>, vector<128x128xbf16>
    %cst_269 = arith.constant dense<0.000000e+00> : vector<8x128xf32>
    %970 = tpu.matmul %968, %969, %cst_269 {dimension_numbers = #tpu.dot_dimension_numbers<[1], [0], [0], [1], [0, 0, 1, 1], [], []>} : vector<8x128xbf16>, vector<128x128xbf16>, vector<8x128xf32> -> vector<8x128xf32>
    %c0_270 = arith.constant 0 : index
    %c0_271 = arith.constant 0 : index
    %971 = vector.load %arg8[%c0_270, %c0_271] : memref<1x128xf32, #tpu.memory_space<vmem>>, vector<1x128xf32>
    %972 = vector.broadcast %971 : vector<1x128xf32> to vector<8x128xf32>
    %973 = arith.addf %970, %972 : vector<8x128xf32>
    %c0_272 = arith.constant 0 : index
    %c0_273 = arith.constant 0 : index
    %974 = vector.load %arg9[%c0_272, %c0_273] : memref<8x128xf32, #tpu.memory_space<vmem>>, vector<8x128xf32>
    tpu.vector_store %arg9[%c0_272, %c0_273], %973 {strides = array<i32>} : memref<8x128xf32, #tpu.memory_space<vmem>>, vector<8x128xf32>,
    return
  }
  func.func @transform_0(%arg0: i32) -> (i32, i32, i32) {
    %c0_i32 = arith.constant 0 : i32
    %c0_i32_0 = arith.constant 0 : i32
    %c0_i32_1 = arith.constant 0 : i32
    return %arg0, %c0_i32, %c0_i32_0 : i32, i32, i32
  }
  func.func @transform_1(%arg0: i32) -> (i32, i32) {
    %c0_i32 = arith.constant 0 : i32
    %c0_i32_0 = arith.constant 0 : i32
    %c0_i32_1 = arith.constant 0 : i32
    return %c0_i32, %c0_i32_0 : i32, i32
  }
  func.func @transform_2(%arg0: i32) -> (i32, i32) {
    %c0_i32 = arith.constant 0 : i32
    %c0_i32_0 = arith.constant 0 : i32
    %c0_i32_1 = arith.constant 0 : i32
    return %c0_i32, %c0_i32_0 : i32, i32
  }
  func.func @transform_3(%arg0: i32) -> (i32, i32) {
    %c0_i32 = arith.constant 0 : i32
    %c0_i32_0 = arith.constant 0 : i32
    %c0_i32_1 = arith.constant 0 : i32
    return %c0_i32, %c0_i32_0 : i32, i32
  }
  func.func @transform_4(%arg0: i32) -> (i32, i32) {
    %c0_i32 = arith.constant 0 : i32
    %c0_i32_0 = arith.constant 0 : i32
    %c0_i32_1 = arith.constant 0 : i32
    return %c0_i32, %c0_i32_0 : i32, i32
  }
  func.func @transform_5(%arg0: i32) -> (i32, i32) {
    %c0_i32 = arith.constant 0 : i32
    %c0_i32_0 = arith.constant 0 : i32
    %c0_i32_1 = arith.constant 0 : i32
    return %c0_i32, %c0_i32_0 : i32, i32
  }
  func.func @transform_6(%arg0: i32) -> (i32, i32) {
    %c0_i32 = arith.constant 0 : i32
    %c0_i32_0 = arith.constant 0 : i32
    %c0_i32_1 = arith.constant 0 : i32
    return %c0_i32, %c0_i32_0 : i32, i32
  }
  func.func @transform_7(%arg0: i32) -> (i32, i32) {
    %c0_i32 = arith.constant 0 : i32
    %c0_i32_0 = arith.constant 0 : i32
    %c0_i32_1 = arith.constant 0 : i32
    return %c0_i32, %c0_i32_0 : i32, i32
  }
  func.func @transform_8(%arg0: i32) -> (i32, i32) {
    %c0_i32 = arith.constant 0 : i32
    %c0_i32_0 = arith.constant 0 : i32
    return %arg0, %c0_i32 : i32, i32
  }
}

</mosaic_0001>

<llo_original>
// kernel: model_forward.1
$region0: #{model_forward.1}
  #allocation0 [shape = 'u32[]', space=smem, size = 0x4, offset = 0x4, fixed_abs, tag = 'smem constant byte address 0x4 - core index']
  #allocation1 [shape = 'u32[144,128]{1,0:T(1,128)}', space=vmem, size = 0x12000, scoped, tag = 'internal scratch']
  #allocation2 [shape = 'f32[200,512]{1,0:T(8,128)}', space=vmem, size = 0x64000, scoped, tag = 'scratch operand']
  #allocation3 [shape = 'bf16[8,3200]{1,0:T(8,128)(2,1)}', space=vmem, size = 0xc800, scoped, tag = 'scratch operand']
  %s0 = inlined_call_operand.vmem [shape: bf16[1,200,128], index: 0, kind: input, shape index: {}]
  %s1 = inlined_call_operand.vmem [shape: bf16[128,512], index: 1, kind: input, shape index: {}]
  %s2 = inlined_call_operand.vmem [shape: bf16[128,512], index: 2, kind: input, shape index: {}]
  %s3 = inlined_call_operand.vmem [shape: f32[1,512], index: 3, kind: input, shape index: {}]
  %s4 = inlined_call_operand.hbm [shape: bf16[3200,128], index: 4, kind: input, shape index: {}]
  %s5 = inlined_call_operand.vmem [shape: f32[1,128], index: 5, kind: input, shape index: {}]
  %s6 = inlined_call_operand.vmem [shape: bf16[128,128], index: 6, kind: input, shape index: {}]
  %s7 = inlined_call_operand.vmem [shape: f32[1,128], index: 7, kind: input, shape index: {}]
  %s8 = inlined_call_operand.vmem [shape: f32[8,128], index: 8, kind: output, shape index: {}]
  %s9 = sld [smem:[#allocation0]]
  $region46: #{model_forward.1} parent=0
    _
  %s11 = ssub.s32 1, %s9
  %s12 = scalar_select 0, %s11, %s9
  $region1: #{model_forward.1} parent=0
    #allocation4 [shape = 'u8[819200]{0}', space=vmem, size = 0xc8000, scoped, tag = 'input window, operand 4, single buffered']
    #allocation5 [shape = 's32[1]{0}', space=sflag, size = 0x4, scoped, tag = 'scoped memory for model_forward.1']
    %13 = vsyncpa [#allocation5], 0
    // Predicated region
    $region2: #{model_forward.1} parent=1 // pred_check
      _
    $region3: #{model_forward.1} parent=1 // pred_check_branch
      %15 = sbr.rel (0) target = $region5
    $region4: #{model_forward.1} parent=1 // pred_region
      _
    $region5: #{model_forward.1} parent=1 // pred_fallthru
      _
    // Predicated region
    $region6: #{model_forward.1} parent=1 // pred_check
      _
    $region7: #{model_forward.1} parent=1 // pred_check_branch
      %17 = sbr.rel (0) target = $region9
    $region8: #{model_forward.1} parent=1 // pred_region
      _
    $region9: #{model_forward.1} parent=1 // pred_fallthru
      _
    // Predicated region
    $region10: #{model_forward.1} parent=1 // pred_check
      _
    $region11: #{model_forward.1} parent=1 // pred_check_branch
      %19 = sbr.rel (0) target = $region13
    $region12: #{model_forward.1} parent=1 // pred_region
      _
    $region13: #{model_forward.1} parent=1 // pred_fallthru
      _
    // Predicated region
    $region14: #{model_forward.1} parent=1 // pred_check
      _
    $region15: #{model_forward.1} parent=1 // pred_check_branch
      %21 = sbr.rel (0) target = $region17
    $region16: #{model_forward.1} parent=1 // pred_region
      _
    $region17: #{model_forward.1} parent=1 // pred_fallthru
      _
    // Predicated region
    $region18: #{model_forward.1} parent=1 // pred_check
      _
    $region19: #{model_forward.1} parent=1 // pred_check_branch
      %23 = sbr.rel (0) target = $region21
    $region20: #{model_forward.1} parent=1 // pred_region
      %s25 = ssub.s32 25600, 25600
      %26 = vsyncadd [#allocation5], %s25
      %s27 = sshll.u32 [#allocation4], 4
      %s28 = int_to_ptr.vmem [resolvable:$true] %s27
      %33 = dma.hbm_to_vmem [thread:$0]  %s4, 25600, %s28, [#allocation5], 64, 64, 4
    $region21: #{model_forward.1} parent=1 // pred_fallthru
      _
    // Predicated region
    $region22: #{model_forward.1} parent=1 // pred_check
      _
    $region23: #{model_forward.1} parent=1 // pred_check_branch
      %35 = sbr.rel (0) target = $region25
    $region24: #{model_forward.1} parent=1 // pred_region
      _
    $region25: #{model_forward.1} parent=1 // pred_fallthru
      _
    // Predicated region
    $region26: #{model_forward.1} parent=1 // pred_check
      _
    $region27: #{model_forward.1} parent=1 // pred_check_branch
      %37 = sbr.rel (0) target = $region29
    $region28: #{model_forward.1} parent=1 // pred_region
      _
    $region29: #{model_forward.1} parent=1 // pred_fallthru
      _
    // Predicated region
    $region30: #{model_forward.1} parent=1 // pred_check
      _
    $region31: #{model_forward.1} parent=1 // pred_check_branch
      %39 = sbr.rel (0) target = $region33
    $region32: #{model_forward.1} parent=1 // pred_region
      _
    $region33: #{model_forward.1} parent=1 // pred_fallthru
      _
    // Predicated region
    $region34: #{model_forward.1} parent=1 // pred_check
      _
    $region35: #{model_forward.1} parent=1 // pred_check_branch
      %41 = sbr.rel (0) target = $region37
    $region36: #{model_forward.1} parent=1 // pred_region
      %42 = dma.done [#allocation5], 25600
    $region37: #{model_forward.1} parent=1 // pred_fallthru
      _
    %v44 = vld [vmem:[%s0] sm:$0xf]
    %v45 = vld [vmem:[%s0 + $0x4] sm:$0xf]
    %v46 = vld [vmem:[%s0 + $0x8] sm:$0xf]
    %v47 = vld [vmem:[%s0 + $0xc] sm:$0xf]
    %v48 = vld [vmem:[%s0 + $0x10] sm:$0xf]
    %v49 = vld [vmem:[%s0 + $0x14] sm:$0xf]
    %v50 = vld [vmem:[%s0 + $0x18] sm:$0xf]
    %v51 = vld [vmem:[%s0 + $0x1c] sm:$0xf]
    %v52 = vld [vmem:[%s0 + $0x20] sm:$0xf]
    %v53 = vld [vmem:[%s0 + $0x24] sm:$0xf]
    %v54 = vld [vmem:[%s0 + $0x28] sm:$0xf]
    %v55 = vld [vmem:[%s0 + $0x2c] sm:$0xf]
    %v56 = vld [vmem:[%s0 + $0x30] sm:$0xf]
    %v57 = vld [vmem:[%s0 + $0x34] sm:$0xf]
    %v58 = vld [vmem:[%s0 + $0x38] sm:$0xf]
    %v59 = vld [vmem:[%s0 + $0x3c] sm:$0xf]
    %v60 = vld [vmem:[%s0 + $0x40] sm:$0xf]
    %v61 = vld [vmem:[%s0 + $0x44] sm:$0xf]
    %v62 = vld [vmem:[%s0 + $0x48] sm:$0xf]
    %v63 = vld [vmem:[%s0 + $0x4c] sm:$0xf]
    %v64 = vld [vmem:[%s0 + $0x50] sm:$0xf]
    %v65 = vld [vmem:[%s0 + $0x54] sm:$0xf]
    %v66 = vld [vmem:[%s0 + $0x58] sm:$0xf]
    %v67 = vld [vmem:[%s0 + $0x5c] sm:$0xf]
    %v68 = vld [vmem:[%s0 + $0x60] sm:$0xf]
    %v69 = vld [vmem:[%s1] sm:$0xff]
    %v70 = vld [vmem:[%s1 + $0x8] sm:$0xff]
    %v71 = vld [vmem:[%s1 + $0x10] sm:$0xff]
    %v72 = vld [vmem:[%s1 + $0x18] sm:$0xff]
    %v73 = vld [vmem:[%s1 + $0x20] sm:$0xff]
    %v74 = vld [vmem:[%s1 + $0x28] sm:$0xff]
    %v75 = vld [vmem:[%s1 + $0x30] sm:$0xff]
    %v76 = vld [vmem:[%s1 + $0x38] sm:$0xff]
    %v77 = vld [vmem:[%s1 + $0x40] sm:$0xff]
    %v78 = vld [vmem:[%s1 + $0x48] sm:$0xff]
    %v79 = vld [vmem:[%s1 + $0x50] sm:$0xff]
    %v80 = vld [vmem:[%s1 + $0x58] sm:$0xff]
    %v81 = vld [vmem:[%s1 + $0x60] sm:$0xff]
    %v82 = vld [vmem:[%s1 + $0x68] sm:$0xff]
    %v83 = vld [vmem:[%s1 + $0x70] sm:$0xff]
    %v84 = vld [vmem:[%s1 + $0x78] sm:$0xff]
    %v85 = vld [vmem:[%s1 + $0x80] sm:$0xff]
    %v86 = vld [vmem:[%s1 + $0x88] sm:$0xff]
    %v87 = vld [vmem:[%s1 + $0x90] sm:$0xff]
    %v88 = vld [vmem:[%s1 + $0x98] sm:$0xff]
    %v89 = vld [vmem:[%s1 + $0xa0] sm:$0xff]
    %v90 = vld [vmem:[%s1 + $0xa8] sm:$0xff]
    %v91 = vld [vmem:[%s1 + $0xb0] sm:$0xff]
    %v92 = vld [vmem:[%s1 + $0xb8] sm:$0xff]
    %v93 = vld [vmem:[%s1 + $0xc0] sm:$0xff]
    %v94 = vld [vmem:[%s1 + $0xc8] sm:$0xff]
    %v95 = vld [vmem:[%s1 + $0xd0] sm:$0xff]
    %v96 = vld [vmem:[%s1 + $0xd8] sm:$0xff]
    %v97 = vld [vmem:[%s1 + $0xe0] sm:$0xff]
    %v98 = vld [vmem:[%s1 + $0xe8] sm:$0xff]
    %v99 = vld [vmem:[%s1 + $0xf0] sm:$0xff]
    %v100 = vld [vmem:[%s1 + $0xf8] sm:$0xff]
    %v101 = vld [vmem:[%s3] sm:$0xf]
    %v103 = vlaneseq
    %v104 = vshrl.u32 %v103, 7
    %v105 = vsub.s32 0, %v104
    %v106 = vrot.slane %v101, %v105
    %v107 = vlaneseq
    %v108 = vshrl.u32 %v107, 7
    %v109 = vsub.s32 1, %v108
    %v110 = vrot.slane %v101, %v109
    %v111 = vlaneseq
    %v112 = vshrl.u32 %v111, 7
    %v113 = vsub.s32 2, %v112
    %v114 = vrot.slane %v101, %v113
    %v115 = vlaneseq
    %v116 = vshrl.u32 %v115, 7
    %v117 = vsub.s32 3, %v116
    %v118 = vrot.slane %v101, %v117
    %v148 = vunpack.c.l.b16 %v44
    %v149 = vunpack.c.l.b16 %v45
    %v150 = vunpack.c.l.b16 %v46
    %v151 = vunpack.c.l.b16 %v47
    %v152 = vunpack.c.l.b16 %v48
    %v153 = vunpack.c.l.b16 %v49
    %v154 = vunpack.c.l.b16 %v50
    %v155 = vunpack.c.l.b16 %v51
    %v156 = vunpack.c.l.b16 %v52
    %v157 = vunpack.c.l.b16 %v53
    %v158 = vunpack.c.l.b16 %v54
    %v159 = vunpack.c.l.b16 %v55
    %v160 = vunpack.c.l.b16 %v56
    %v161 = vunpack.c.l.b16 %v57
    %v162 = vunpack.c.l.b16 %v58
    %v163 = vunpack.c.l.b16 %v59
    %v164 = vunpack.c.l.b16 %v60
    %v165 = vunpack.c.l.b16 %v61
    %v166 = vunpack.c.l.b16 %v62
    %v167 = vunpack.c.l.b16 %v63
    %v168 = vunpack.c.l.b16 %v64
    %v169 = vunpack.c.l.b16 %v65
    %v170 = vunpack.c.l.b16 %v66
    %v171 = vunpack.c.l.b16 %v67
    %v172 = vunpack.c.l.b16 %v68
    %v173 = vpack.c.b16 %v149, %v148
    %v174 = vpack.c.b16 %v151, %v150
    %v175 = vpack.c.b16 %v153, %v152
    %v176 = vpack.c.b16 %v155, %v154
    %v177 = vpack.c.b16 %v157, %v156
    %v178 = vpack.c.b16 %v159, %v158
    %v179 = vpack.c.b16 %v161, %v160
    %v180 = vpack.c.b16 %v163, %v162
    %v181 = vpack.c.b16 %v165, %v164
    %v182 = vpack.c.b16 %v167, %v166
    %v183 = vpack.c.b16 %v169, %v168
    %v184 = vpack.c.b16 %v171, %v170
    %v185 = vpack.c.b16 %v172, %v172
    %v231 = vunpack.c.l.b16 %v69
    %v232 = vunpack.c.h.b16 %v69
    %v233 = vunpack.c.l.b16 %v70
    %v234 = vunpack.c.h.b16 %v70
    %v235 = vunpack.c.l.b16 %v71
    %v236 = vunpack.c.h.b16 %v71
    %v237 = vunpack.c.l.b16 %v72
    %v238 = vunpack.c.h.b16 %v72
    %v239 = vunpack.c.l.b16 %v73
    %v240 = vunpack.c.h.b16 %v73
    %v241 = vunpack.c.l.b16 %v74
    %v242 = vunpack.c.h.b16 %v74
    %v243 = vunpack.c.l.b16 %v75
    %v244 = vunpack.c.h.b16 %v75
    %v245 = vunpack.c.l.b16 %v76
    %v246 = vunpack.c.h.b16 %v76
    %v247 = vunpack.c.l.b16 %v77
    %v248 = vunpack.c.h.b16 %v77
    %v249 = vunpack.c.l.b16 %v78
    %v250 = vunpack.c.h.b16 %v78
    %v251 = vunpack.c.l.b16 %v79
    %v252 = vunpack.c.h.b16 %v79
    %v253 = vunpack.c.l.b16 %v80
    %v254 = vunpack.c.h.b16 %v80
    %v255 = vunpack.c.l.b16 %v81
    %v256 = vunpack.c.h.b16 %v81
    %v257 = vunpack.c.l.b16 %v82
    %v258 = vunpack.c.h.b16 %v82
    %v259 = vunpack.c.l.b16 %v83
    %v260 = vunpack.c.h.b16 %v83
    %v261 = vunpack.c.l.b16 %v84
    %v262 = vunpack.c.h.b16 %v84
    %v263 = vunpack.c.l.b16 %v85
    %v264 = vunpack.c.h.b16 %v85
    %v265 = vunpack.c.l.b16 %v86
    %v266 = vunpack.c.h.b16 %v86
    %v267 = vunpack.c.l.b16 %v87
    %v268 = vunpack.c.h.b16 %v87
    %v269 = vunpack.c.l.b16 %v88
    %v270 = vunpack.c.h.b16 %v88
    %v271 = vunpack.c.l.b16 %v89
    %v272 = vunpack.c.h.b16 %v89
    %v273 = vunpack.c.l.b16 %v90
    %v274 = vunpack.c.h.b16 %v90
    %v275 = vunpack.c.l.b16 %v91
    %v276 = vunpack.c.h.b16 %v91
    %v277 = vunpack.c.l.b16 %v92
    %v278 = vunpack.c.h.b16 %v92
    %v279 = vunpack.c.l.b16 %v93
    %v280 = vunpack.c.h.b16 %v93
    %v281 = vunpack.c.l.b16 %v94
    %v282 = vunpack.c.h.b16 %v94
    %v283 = vunpack.c.l.b16 %v95
    %v284 = vunpack.c.h.b16 %v95
    %v285 = vunpack.c.l.b16 %v96
    %v286 = vunpack.c.h.b16 %v96
    %v287 = vunpack.c.l.b16 %v97
    %v288 = vunpack.c.h.b16 %v97
    %v289 = vunpack.c.l.b16 %v98
    %v290 = vunpack.c.h.b16 %v98
    %v291 = vunpack.c.l.b16 %v99
    %v292 = vunpack.c.h.b16 %v99
    %v293 = vunpack.c.l.b16 %v100
    %v294 = vunpack.c.h.b16 %v100
    %v295 = vpack.c.b16 %v235, %v231
    %v296 = vpack.c.b16 %v236, %v232
    %v297 = vpack.c.b16 %v237, %v233
    %v298 = vpack.c.b16 %v238, %v234
    %v299 = vpack.c.b16 %v243, %v239
    %v300 = vpack.c.b16 %v244, %v240
    %v301 = vpack.c.b16 %v245, %v241
    %v302 = vpack.c.b16 %v246, %v242
    %v303 = vpack.c.b16 %v251, %v247
    %v304 = vpack.c.b16 %v252, %v248
    %v305 = vpack.c.b16 %v253, %v249
    %v306 = vpack.c.b16 %v254, %v250
    %v307 = vpack.c.b16 %v259, %v255
    %v308 = vpack.c.b16 %v260, %v256
    %v309 = vpack.c.b16 %v261, %v257
    %v310 = vpack.c.b16 %v262, %v258
    %v311 = vpack.c.b16 %v267, %v263
    %v312 = vpack.c.b16 %v268, %v264
    %v313 = vpack.c.b16 %v269, %v265
    %v314 = vpack.c.b16 %v270, %v266
    %v315 = vpack.c.b16 %v275, %v271
    %v316 = vpack.c.b16 %v276, %v272
    %v317 = vpack.c.b16 %v277, %v273
    %v318 = vpack.c.b16 %v278, %v274
    %v319 = vpack.c.b16 %v283, %v279
    %v320 = vpack.c.b16 %v284, %v280
    %v321 = vpack.c.b16 %v285, %v281
    %v322 = vpack.c.b16 %v286, %v282
    %v323 = vpack.c.b16 %v291, %v287
    %v324 = vpack.c.b16 %v292, %v288
    %v325 = vpack.c.b16 %v293, %v289
    %v326 = vpack.c.b16 %v294, %v290
    %359 = vmatprep.subr.bf16.mxu0 %v324
    %360 = vmatpush1.bf16.msra.mxu0 %v323
    %361 = vmatprep.subr.bf16.mxu0 %v320
    %362 = vmatpush1.bf16.msra.mxu0 %v319
    %363 = vmatprep.subr.bf16.mxu0 %v316
    %364 = vmatpush1.bf16.msra.mxu0 %v315
    %365 = vmatprep.subr.bf16.mxu0 %v312
    %366 = vmatpush1.bf16.msra.mxu0 %v311
    %367 = vmatprep.subr.bf16.mxu0 %v308
    %368 = vmatpush1.bf16.msra.mxu0 %v307
    %369 = vmatprep.subr.bf16.mxu0 %v304
    %370 = vmatpush1.bf16.msra.mxu0 %v303
    %371 = vmatprep.subr.bf16.mxu0 %v300
    %372 = vmatpush1.bf16.msra.mxu0 %v299
    %373 = vmatprep.subr.bf16.mxu0 %v296
    %374 = vmatpush1.bf16.msra.mxu0 %v295
    %375 = vmatprep.subr.bf16.mxu0 0
    %376 = vmatpush2.bf16.msra.mxu0 0
    %377 = vmatprep.subr.bf16.mxu0 0
    %378 = vmatpush2.bf16.msra.mxu0 0
    %379 = vmatprep.subr.bf16.mxu0 0
    %380 = vmatpush2.bf16.msra.mxu0 0
    %381 = vmatprep.subr.bf16.mxu0 0
    %382 = vmatpush2.bf16.msra.mxu0 0
    %383 = vmatprep.subr.bf16.mxu0 0
    %384 = vmatpush2.bf16.msra.mxu0 0
    %385 = vmatprep.subr.bf16.mxu0 0
    %386 = vmatpush2.bf16.msra.mxu0 0
    %387 = vmatprep.subr.bf16.mxu0 0
    %388 = vmatpush2.bf16.msra.mxu0 0
    %389 = vmatprep.subr.bf16.mxu0 0
    %390 = vmatpush2.bf16.msra.mxu0 0
    %391 = vmatprep.mubr.bf16.mxu0 0
    %392 = vmatmul.mubr.bf16.gmra.mxu0 %v173
    %v393 = vpop.f32.mrf.mxu0
    %v394 = vadd.f32 %v106, %v393
    %v395 = vpop.f32.mrf.mxu0
    %v396 = vadd.f32 %v110, %v395
    %v397 = vpop.f32.mrf.mxu0
    %v398 = vadd.f32 %v106, %v397
    %v399 = vpop.f32.mrf.mxu0
    %v400 = vadd.f32 %v110, %v399
    %401 = vmatprep.mubr.bf16.mxu0 0
    %402 = vmatmul.mubr.bf16.gmra.mxu0 %v174
    %v403 = vpop.f32.mrf.mxu0
    %v404 = vadd.f32 %v106, %v403
    %v405 = vpop.f32.mrf.mxu0
    %v406 = vadd.f32 %v110, %v405
    %v407 = vpop.f32.mrf.mxu0
    %v408 = vadd.f32 %v106, %v407
    %v409 = vpop.f32.mrf.mxu0
    %v410 = vadd.f32 %v110, %v409
    %411 = vmatprep.mubr.bf16.mxu0 0
    %412 = vmatmul.mubr.bf16.gmra.mxu0 %v175
    %v413 = vpop.f32.mrf.mxu0
    %v414 = vadd.f32 %v106, %v413
    %v415 = vpop.f32.mrf.mxu0
    %v416 = vadd.f32 %v110, %v415
    %v417 = vpop.f32.mrf.mxu0
    %v418 = vadd.f32 %v106, %v417
    %v419 = vpop.f32.mrf.mxu0
    %v420 = vadd.f32 %v110, %v419
    %421 = vmatprep.mubr.bf16.mxu0 0
    %422 = vmatmul.mubr.bf16.gmra.mxu0 %v176
    %v423 = vpop.f32.mrf.mxu0
    %v424 = vadd.f32 %v106, %v423
    %v425 = vpop.f32.mrf.mxu0
    %v426 = vadd.f32 %v110, %v425
    %v427 = vpop.f32.mrf.mxu0
    %v428 = vadd.f32 %v106, %v427
    %v429 = vpop.f32.mrf.mxu0
    %v430 = vadd.f32 %v110, %v429
    %431 = vmatprep.mubr.bf16.mxu0 0
    %432 = vmatmul.mubr.bf16.gmra.mxu0 %v177
    %v433 = vpop.f32.mrf.mxu0
    %v434 = vadd.f32 %v106, %v433
    %v435 = vpop.f32.mrf.mxu0
    %v436 = vadd.f32 %v110, %v435
    %v437 = vpop.f32.mrf.mxu0
    %v438 = vadd.f32 %v106, %v437
    %v439 = vpop.f32.mrf.mxu0
    %v440 = vadd.f32 %v110, %v439
    %441 = vmatprep.mubr.bf16.mxu0 0
    %442 = vmatmul.mubr.bf16.gmra.mxu0 %v178
    %v443 = vpop.f32.mrf.mxu0
    %v444 = vadd.f32 %v106, %v443
    %v445 = vpop.f32.mrf.mxu0
    %v446 = vadd.f32 %v110, %v445
    %v447 = vpop.f32.mrf.mxu0
    %v448 = vadd.f32 %v106, %v447
    %v449 = vpop.f32.mrf.mxu0
    %v450 = vadd.f32 %v110, %v449
    %451 = vmatprep.mubr.bf16.mxu0 0
    %452 = vmatmul.mubr.bf16.gmra.mxu0 %v179
    %v453 = vpop.f32.mrf.mxu0
    %v454 = vadd.f32 %v106, %v453
    %v455 = vpop.f32.mrf.mxu0
    %v456 = vadd.f32 %v110, %v455
    %v457 = vpop.f32.mrf.mxu0
    %v458 = vadd.f32 %v106, %v457
    %v459 = vpop.f32.mrf.mxu0
    %v460 = vadd.f32 %v110, %v459
    %461 = vmatprep.mubr.bf16.mxu0 0
    %462 = vmatmul.mubr.bf16.gmra.mxu0 %v180
    %v463 = vpop.f32.mrf.mxu0
    %v464 = vadd.f32 %v106, %v463
    %v465 = vpop.f32.mrf.mxu0
    %v466 = vadd.f32 %v110, %v465
    %v467 = vpop.f32.mrf.mxu0
    %v468 = vadd.f32 %v106, %v467
    %v469 = vpop.f32.mrf.mxu0
    %v470 = vadd.f32 %v110, %v469
    %471 = vmatprep.mubr.bf16.mxu0 0
    %472 = vmatmul.mubr.bf16.gmra.mxu0 %v181
    %v473 = vpop.f32.mrf.mxu0
    %v474 = vadd.f32 %v106, %v473
    %v475 = vpop.f32.mrf.mxu0
    %v476 = vadd.f32 %v110, %v475
    %v477 = vpop.f32.mrf.mxu0
    %v478 = vadd.f32 %v106, %v477
    %v479 = vpop.f32.mrf.mxu0
    %v480 = vadd.f32 %v110, %v479
    %481 = vmatprep.mubr.bf16.mxu0 0
    %482 = vmatmul.mubr.bf16.gmra.mxu0 %v182
    %v483 = vpop.f32.mrf.mxu0
    %v484 = vadd.f32 %v106, %v483
    %v485 = vpop.f32.mrf.mxu0
    %v486 = vadd.f32 %v110, %v485
    %v487 = vpop.f32.mrf.mxu0
    %v488 = vadd.f32 %v106, %v487
    %v489 = vpop.f32.mrf.mxu0
    %v490 = vadd.f32 %v110, %v489
    %491 = vmatprep.mubr.bf16.mxu0 0
    %492 = vmatmul.mubr.bf16.gmra.mxu0 %v183
    %v493 = vpop.f32.mrf.mxu0
    %v494 = vadd.f32 %v106, %v493
    %v495 = vpop.f32.mrf.mxu0
    %v496 = vadd.f32 %v110, %v495
    %v497 = vpop.f32.mrf.mxu0
    %v498 = vadd.f32 %v106, %v497
    %v499 = vpop.f32.mrf.mxu0
    %v500 = vadd.f32 %v110, %v499
    %501 = vmatprep.mubr.bf16.mxu0 0
    %502 = vmatmul.mubr.bf16.gmra.mxu0 %v184
    %v503 = vpop.f32.mrf.mxu0
    %v504 = vadd.f32 %v106, %v503
    %v505 = vpop.f32.mrf.mxu0
    %v506 = vadd.f32 %v110, %v505
    %v507 = vpop.f32.mrf.mxu0
    %v508 = vadd.f32 %v106, %v507
    %v509 = vpop.f32.mrf.mxu0
    %v510 = vadd.f32 %v110, %v509
    %511 = vmatprep.mubr.bf16.mxu0 0
    %512 = vmatmul.mubr.bf16.gmra.mxu0 %v185
    %v513 = vpop.f32.mrf.mxu0
    %v514 = vadd.f32 %v106, %v513
    %v515 = vpop.f32.mrf.mxu0
    %v516 = vadd.f32 %v110, %v515
    %v517 = vpop.f32.mrf.mxu0
    %v518 = vpop.f32.mrf.mxu0
    %519 = vdwg.mxu0
    %520 = vmatprep.subr.bf16.mxu0 %v326
    %521 = vmatpush1.bf16.msra.mxu0 %v325
    %522 = vmatprep.subr.bf16.mxu0 %v322
    %523 = vmatpush1.bf16.msra.mxu0 %v321
    %524 = vmatprep.subr.bf16.mxu0 %v318
    %525 = vmatpush1.bf16.msra.mxu0 %v317
    %526 = vmatprep.subr.bf16.mxu0 %v314
    %527 = vmatpush1.bf16.msra.mxu0 %v313
    %528 = vmatprep.subr.bf16.mxu0 %v310
    %529 = vmatpush1.bf16.msra.mxu0 %v309
    %530 = vmatprep.subr.bf16.mxu0 %v306
    %531 = vmatpush1.bf16.msra.mxu0 %v305
    %532 = vmatprep.subr.bf16.mxu0 %v302
    %533 = vmatpush1.bf16.msra.mxu0 %v301
    %534 = vmatprep.subr.bf16.mxu0 %v298
    %535 = vmatpush1.bf16.msra.mxu0 %v297
    %536 = vmatprep.subr.bf16.mxu0 0
    %537 = vmatpush2.bf16.msra.mxu0 0
    %538 = vmatprep.subr.bf16.mxu0 0
    %539 = vmatpush2.bf16.msra.mxu0 0
    %540 = vmatprep.subr.bf16.mxu0 0
    %541 = vmatpush2.bf16.msra.mxu0 0
    %542 = vmatprep.subr.bf16.mxu0 0
    %543 = vmatpush2.bf16.msra.mxu0 0
    %544 = vmatprep.subr.bf16.mxu0 0
    %545 = vmatpush2.bf16.msra.mxu0 0
    %546 = vmatprep.subr.bf16.mxu0 0
    %547 = vmatpush2.bf16.msra.mxu0 0
    %548 = vmatprep.subr.bf16.mxu0 0
    %549 = vmatpush2.bf16.msra.mxu0 0
    %550 = vmatprep.subr.bf16.mxu0 0
    %551 = vmatpush2.bf16.msra.mxu0 0
    %552 = vmatprep.mubr.bf16.mxu0 0
    %553 = vmatmul.mubr.bf16.gmra.mxu0 %v173
    %v554 = vpop.f32.mrf.mxu0
    %v555 = vadd.f32 %v114, %v554
    %v556 = vpop.f32.mrf.mxu0
    %v557 = vadd.f32 %v118, %v556
    %v558 = vpop.f32.mrf.mxu0
    %v559 = vadd.f32 %v114, %v558
    %v560 = vpop.f32.mrf.mxu0
    %v561 = vadd.f32 %v118, %v560
    %562 = vmatprep.mubr.bf16.mxu0 0
    %563 = vmatmul.mubr.bf16.gmra.mxu0 %v174
    %v564 = vpop.f32.mrf.mxu0
    %v565 = vadd.f32 %v114, %v564
    %v566 = vpop.f32.mrf.mxu0
    %v567 = vadd.f32 %v118, %v566
    %v568 = vpop.f32.mrf.mxu0
    %v569 = vadd.f32 %v114, %v568
    %v570 = vpop.f32.mrf.mxu0
    %v571 = vadd.f32 %v118, %v570
    %572 = vmatprep.mubr.bf16.mxu0 0
    %573 = vmatmul.mubr.bf16.gmra.mxu0 %v175
    %v574 = vpop.f32.mrf.mxu0
    %v575 = vadd.f32 %v114, %v574
    %v576 = vpop.f32.mrf.mxu0
    %v577 = vadd.f32 %v118, %v576
    %v578 = vpop.f32.mrf.mxu0
    %v579 = vadd.f32 %v114, %v578
    %v580 = vpop.f32.mrf.mxu0
    %v581 = vadd.f32 %v118, %v580
    %582 = vmatprep.mubr.bf16.mxu0 0
    %583 = vmatmul.mubr.bf16.gmra.mxu0 %v176
    %v584 = vpop.f32.mrf.mxu0
    %v585 = vadd.f32 %v114, %v584
    %v586 = vpop.f32.mrf.mxu0
    %v587 = vadd.f32 %v118, %v586
    %v588 = vpop.f32.mrf.mxu0
    %v589 = vadd.f32 %v114, %v588
    %v590 = vpop.f32.mrf.mxu0
    %v591 = vadd.f32 %v118, %v590
    %592 = vmatprep.mubr.bf16.mxu0 0
    %593 = vmatmul.mubr.bf16.gmra.mxu0 %v177
    %v594 = vpop.f32.mrf.mxu0
    %v595 = vadd.f32 %v114, %v594
    %v596 = vpop.f32.mrf.mxu0
    %v597 = vadd.f32 %v118, %v596
    %v598 = vpop.f32.mrf.mxu0
    %v599 = vadd.f32 %v114, %v598
    %v600 = vpop.f32.mrf.mxu0
    %v601 = vadd.f32 %v118, %v600
    %602 = vmatprep.mubr.bf16.mxu0 0
    %603 = vmatmul.mubr.bf16.gmra.mxu0 %v178
    %v604 = vpop.f32.mrf.mxu0
    %v605 = vadd.f32 %v114, %v604
    %v606 = vpop.f32.mrf.mxu0
    %v607 = vadd.f32 %v118, %v606
    %v608 = vpop.f32.mrf.mxu0
    %v609 = vadd.f32 %v114, %v608
    %v610 = vpop.f32.mrf.mxu0
    %v611 = vadd.f32 %v118, %v610
    %612 = vmatprep.mubr.bf16.mxu0 0
    %613 = vmatmul.mubr.bf16.gmra.mxu0 %v179
    %v614 = vpop.f32.mrf.mxu0
    %v615 = vadd.f32 %v114, %v614
    %v616 = vpop.f32.mrf.mxu0
    %v617 = vadd.f32 %v118, %v616
    %v618 = vpop.f32.mrf.mxu0
    %v619 = vadd.f32 %v114, %v618
    %v620 = vpop.f32.mrf.mxu0
    %v621 = vadd.f32 %v118, %v620
    %622 = vmatprep.mubr.bf16.mxu0 0
    %623 = vmatmul.mubr.bf16.gmra.mxu0 %v180
    %v624 = vpop.f32.mrf.mxu0
    %v625 = vadd.f32 %v114, %v624
    %v626 = vpop.f32.mrf.mxu0
    %v627 = vadd.f32 %v118, %v626
    %v628 = vpop.f32.mrf.mxu0
    %v629 = vadd.f32 %v114, %v628
    %v630 = vpop.f32.mrf.mxu0
    %v631 = vadd.f32 %v118, %v630
    %632 = vmatprep.mubr.bf16.mxu0 0
    %633 = vmatmul.mubr.bf16.gmra.mxu0 %v181
    %v634 = vpop.f32.mrf.mxu0
    %v635 = vadd.f32 %v114, %v634
    %v636 = vpop.f32.mrf.mxu0
    %v637 = vadd.f32 %v118, %v636
    %v638 = vpop.f32.mrf.mxu0
    %v639 = vadd.f32 %v114, %v638
    %v640 = vpop.f32.mrf.mxu0
    %v641 = vadd.f32 %v118, %v640
    %642 = vmatprep.mubr.bf16.mxu0 0
    %643 = vmatmul.mubr.bf16.gmra.mxu0 %v182
    %v644 = vpop.f32.mrf.mxu0
    %v645 = vadd.f32 %v114, %v644
    %v646 = vpop.f32.mrf.mxu0
    %v647 = vadd.f32 %v118, %v646
    %v648 = vpop.f32.mrf.mxu0
    %v649 = vadd.f32 %v114, %v648
    %v650 = vpop.f32.mrf.mxu0
    %v651 = vadd.f32 %v118, %v650
    %652 = vmatprep.mubr.bf16.mxu0 0
    %653 = vmatmul.mubr.bf16.gmra.mxu0 %v183
    %v654 = vpop.f32.mrf.mxu0
    %v655 = vadd.f32 %v114, %v654
    %v656 = vpop.f32.mrf.mxu0
    %v657 = vadd.f32 %v118, %v656
    %v658 = vpop.f32.mrf.mxu0
    %v659 = vadd.f32 %v114, %v658
    %v660 = vpop.f32.mrf.mxu0
    %v661 = vadd.f32 %v118, %v660
    %662 = vmatprep.mubr.bf16.mxu0 0
    %663 = vmatmul.mubr.bf16.gmra.mxu0 %v184
    %v664 = vpop.f32.mrf.mxu0
    %v665 = vadd.f32 %v114, %v664
    %v666 = vpop.f32.mrf.mxu0
    %v667 = vadd.f32 %v118, %v666
    %v668 = vpop.f32.mrf.mxu0
    %v669 = vadd.f32 %v114, %v668
    %v670 = vpop.f32.mrf.mxu0
    %v671 = vadd.f32 %v118, %v670
    %672 = vmatprep.mubr.bf16.mxu0 0
    %673 = vmatmul.mubr.bf16.gmra.mxu0 %v185
    %v674 = vpop.f32.mrf.mxu0
    %v675 = vadd.f32 %v114, %v674
    %v676 = vpop.f32.mrf.mxu0
    %v677 = vadd.f32 %v118, %v676
    %v678 = vpop.f32.mrf.mxu0
    %v679 = vpop.f32.mrf.mxu0
    %680 = vdwg.mxu0
    %681 = vst [vmem:[#allocation2] sm:$0xff] %v394
    %682 = vst [vmem:[#allocation2 + $0x8] sm:$0xff] %v396
    %683 = vst [vmem:[#allocation2 + $0x10] sm:$0xff] %v555
    %684 = vst [vmem:[#allocation2 + $0x18] sm:$0xff] %v557
    %685 = vst [vmem:[#allocation2 + $0x20] sm:$0xff] %v398
    %686 = vst [vmem:[#allocation2 + $0x28] sm:$0xff] %v400
    %687 = vst [vmem:[#allocation2 + $0x30] sm:$0xff] %v559
    %688 = vst [vmem:[#allocation2 + $0x38] sm:$0xff] %v561
    %689 = vst [vmem:[#allocation2 + $0x40] sm:$0xff] %v404
    %690 = vst [vmem:[#allocation2 + $0x48] sm:$0xff] %v406
    %691 = vst [vmem:[#allocation2 + $0x50] sm:$0xff] %v565
    %692 = vst [vmem:[#allocation2 + $0x58] sm:$0xff] %v567
    %693 = vst [vmem:[#allocation2 + $0x60] sm:$0xff] %v408
    %694 = vst [vmem:[#allocation2 + $0x68] sm:$0xff] %v410
    %695 = vst [vmem:[#allocation2 + $0x70] sm:$0xff] %v569
    %696 = vst [vmem:[#allocation2 + $0x78] sm:$0xff] %v571
    %697 = vst [vmem:[#allocation2 + $0x80] sm:$0xff] %v414
    %698 = vst [vmem:[#allocation2 + $0x88] sm:$0xff] %v416
    %699 = vst [vmem:[#allocation2 + $0x90] sm:$0xff] %v575
    %700 = vst [vmem:[#allocation2 + $0x98] sm:$0xff] %v577
    %701 = vst [vmem:[#allocation2 + $0xa0] sm:$0xff] %v418
    %702 = vst [vmem:[#allocation2 + $0xa8] sm:$0xff] %v420
    %703 = vst [vmem:[#allocation2 + $0xb0] sm:$0xff] %v579
    %704 = vst [vmem:[#allocation2 + $0xb8] sm:$0xff] %v581
    %705 = vst [vmem:[#allocation2 + $0xc0] sm:$0xff] %v424
    %706 = vst [vmem:[#allocation2 + $0xc8] sm:$0xff] %v426
    %707 = vst [vmem:[#allocation2 + $0xd0] sm:$0xff] %v585
    %708 = vst [vmem:[#allocation2 + $0xd8] sm:$0xff] %v587
    %709 = vst [vmem:[#allocation2 + $0xe0] sm:$0xff] %v428
    %710 = vst [vmem:[#allocation2 + $0xe8] sm:$0xff] %v430
    %711 = vst [vmem:[#allocation2 + $0xf0] sm:$0xff] %v589
    %712 = vst [vmem:[#allocation2 + $0xf8] sm:$0xff] %v591
    %713 = vst [vmem:[#allocation2 + $0x100] sm:$0xff] %v434
    %714 = vst [vmem:[#allocation2 + $0x108] sm:$0xff] %v436
    %715 = vst [vmem:[#allocation2 + $0x110] sm:$0xff] %v595
    %716 = vst [vmem:[#allocation2 + $0x118] sm:$0xff] %v597
    %717 = vst [vmem:[#allocation2 + $0x120] sm:$0xff] %v438
    %718 = vst [vmem:[#allocation2 + $0x128] sm:$0xff] %v440
    %719 = vst [vmem:[#allocation2 + $0x130] sm:$0xff] %v599
    %720 = vst [vmem:[#allocation2 + $0x138] sm:$0xff] %v601
    %721 = vst [vmem:[#allocation2 + $0x140] sm:$0xff] %v444
    %722 = vst [vmem:[#allocation2 + $0x148] sm:$0xff] %v446
    %723 = vst [vmem:[#allocation2 + $0x150] sm:$0xff] %v605
    %724 = vst [vmem:[#allocation2 + $0x158] sm:$0xff] %v607
    %725 = vst [vmem:[#allocation2 + $0x160] sm:$0xff] %v448
    %726 = vst [vmem:[#allocation2 + $0x168] sm:$0xff] %v450
    %727 = vst [vmem:[#allocation2 + $0x170] sm:$0xff] %v609
    %728 = vst [vmem:[#allocation2 + $0x178] sm:$0xff] %v611
    %729 = vst [vmem:[#allocation2 + $0x180] sm:$0xff] %v454
    %730 = vst [vmem:[#allocation2 + $0x188] sm:$0xff] %v456
    %731 = vst [vmem:[#allocation2 + $0x190] sm:$0xff] %v615
    %732 = vst [vmem:[#allocation2 + $0x198] sm:$0xff] %v617
    %733 = vst [vmem:[#allocation2 + $0x1a0] sm:$0xff] %v458
    %734 = vst [vmem:[#allocation2 + $0x1a8] sm:$0xff] %v460
    %735 = vst [vmem:[#allocation2 + $0x1b0] sm:$0xff] %v619
    %736 = vst [vmem:[#allocation2 + $0x1b8] sm:$0xff] %v621
    %737 = vst [vmem:[#allocation2 + $0x1c0] sm:$0xff] %v464
    %738 = vst [vmem:[#allocation2 + $0x1c8] sm:$0xff] %v466
    %739 = vst [vmem:[#allocation2 + $0x1d0] sm:$0xff] %v625
    %740 = vst [vmem:[#allocation2 + $0x1d8] sm:$0xff] %v627
    %741 = vst [vmem:[#allocation2 + $0x1e0] sm:$0xff] %v468
    %742 = vst [vmem:[#allocation2 + $0x1e8] sm:$0xff] %v470
    %743 = vst [vmem:[#allocation2 + $0x1f0] sm:$0xff] %v629
    %744 = vst [vmem:[#allocation2 + $0x1f8] sm:$0xff] %v631
    %745 = vst [vmem:[#allocation2 + $0x200] sm:$0xff] %v474
    %746 = vst [vmem:[#allocation2 + $0x208] sm:$0xff] %v476
    %747 = vst [vmem:[#allocation2 + $0x210] sm:$0xff] %v635
    %748 = vst [vmem:[#allocation2 + $0x218] sm:$0xff] %v637
    %749 = vst [vmem:[#allocation2 + $0x220] sm:$0xff] %v478
    %750 = vst [vmem:[#allocation2 + $0x228] sm:$0xff] %v480
    %751 = vst [vmem:[#allocation2 + $0x230] sm:$0xff] %v639
    %752 = vst [vmem:[#allocation2 + $0x238] sm:$0xff] %v641
    %753 = vst [vmem:[#allocation2 + $0x240] sm:$0xff] %v484
    %754 = vst [vmem:[#allocation2 + $0x248] sm:$0xff] %v486
    %755 = vst [vmem:[#allocation2 + $0x250] sm:$0xff] %v645
    %756 = vst [vmem:[#allocation2 + $0x258] sm:$0xff] %v647
    %757 = vst [vmem:[#allocation2 + $0x260] sm:$0xff] %v488
    %758 = vst [vmem:[#allocation2 + $0x268] sm:$0xff] %v490
    %759 = vst [vmem:[#allocation2 + $0x270] sm:$0xff] %v649
    %760 = vst [vmem:[#allocation2 + $0x278] sm:$0xff] %v651
    %761 = vst [vmem:[#allocation2 + $0x280] sm:$0xff] %v494
    %762 = vst [vmem:[#allocation2 + $0x288] sm:$0xff] %v496
    %763 = vst [vmem:[#allocation2 + $0x290] sm:$0xff] %v655
    %764 = vst [vmem:[#allocation2 + $0x298] sm:$0xff] %v657
    %765 = vst [vmem:[#allocation2 + $0x2a0] sm:$0xff] %v498
    %766 = vst [vmem:[#allocation2 + $0x2a8] sm:$0xff] %v500
    %767 = vst [vmem:[#allocation2 + $0x2b0] sm:$0xff] %v659
    %768 = vst [vmem:[#allocation2 + $0x2b8] sm:$0xff] %v661
    %769 = vst [vmem:[#allocation2 + $0x2c0] sm:$0xff] %v504
    %770 = vst [vmem:[#allocation2 + $0x2c8] sm:$0xff] %v506
    %771 = vst [vmem:[#allocation2 + $0x2d0] sm:$0xff] %v665
    %772 = vst [vmem:[#allocation2 + $0x2d8] sm:$0xff] %v667
    %773 = vst [vmem:[#allocation2 + $0x2e0] sm:$0xff] %v508
    %774 = vst [vmem:[#allocation2 + $0x2e8] sm:$0xff] %v510
    %775 = vst [vmem:[#allocation2 + $0x2f0] sm:$0xff] %v669
    %776 = vst [vmem:[#allocation2 + $0x2f8] sm:$0xff] %v671
    %777 = vst [vmem:[#allocation2 + $0x300] sm:$0xff] %v514
    %778 = vst [vmem:[#allocation2 + $0x308] sm:$0xff] %v516
    %779 = vst [vmem:[#allocation2 + $0x310] sm:$0xff] %v675
    %780 = vst [vmem:[#allocation2 + $0x318] sm:$0xff] %v677
    %s781 = smul.u32 0, 4
    %s782 = smul.addr %s781, 8
    %s783 = scalar_lea.vmem [#allocation2], %s782
    %v784 = vld [vmem:[%s783] sm:$0xff]
    %v785 = vld [vmem:[%s783 + $0x8] sm:$0xff]
    %v786 = vld [vmem:[%s783 + $0x10] sm:$0xff]
    %v787 = vld [vmem:[%s783 + $0x18] sm:$0xff]
    %v788 = vld [vmem:[%s2] sm:$0xff]
    %v789 = vld [vmem:[%s2 + $0x8] sm:$0xff]
    %v790 = vld [vmem:[%s2 + $0x10] sm:$0xff]
    %v791 = vld [vmem:[%s2 + $0x18] sm:$0xff]
    %v792 = vld [vmem:[%s2 + $0x20] sm:$0xff]
    %v793 = vld [vmem:[%s2 + $0x28] sm:$0xff]
    %v794 = vld [vmem:[%s2 + $0x30] sm:$0xff]
    %v795 = vld [vmem:[%s2 + $0x38] sm:$0xff]
    %v796 = vld [vmem:[%s2 + $0x40] sm:$0xff]
    %v797 = vld [vmem:[%s2 + $0x48] sm:$0xff]
    %v798 = vld [vmem:[%s2 + $0x50] sm:$0xff]
    %v799 = vld [vmem:[%s2 + $0x58] sm:$0xff]
    %v800 = vld [vmem:[%s2 + $0x60] sm:$0xff]
    %v801 = vld [vmem:[%s2 + $0x68] sm:$0xff]
    %v802 = vld [vmem:[%s2 + $0x70] sm:$0xff]
    %v803 = vld [vmem:[%s2 + $0x78] sm:$0xff]
    %v804 = vld [vmem:[%s2 + $0x80] sm:$0xff]
    %v805 = vld [vmem:[%s2 + $0x88] sm:$0xff]
    %v806 = vld [vmem:[%s2 + $0x90] sm:$0xff]
    %v807 = vld [vmem:[%s2 + $0x98] sm:$0xff]
    %v808 = vld [vmem:[%s2 + $0xa0] sm:$0xff]
    %v809 = vld [vmem:[%s2 + $0xa8] sm:$0xff]
    %v810 = vld [vmem:[%s2 + $0xb0] sm:$0xff]
    %v811 = vld [vmem:[%s2 + $0xb8] sm:$0xff]
    %v812 = vld [vmem:[%s2 + $0xc0] sm:$0xff]
    %v813 = vld [vmem:[%s2 + $0xc8] sm:$0xff]
    %v814 = vld [vmem:[%s2 + $0xd0] sm:$0xff]
    %v815 = vld [vmem:[%s2 + $0xd8] sm:$0xff]
    %v816 = vld [vmem:[%s2 + $0xe0] sm:$0xff]
    %v817 = vld [vmem:[%s2 + $0xe8] sm:$0xff]
    %v818 = vld [vmem:[%s2 + $0xf0] sm:$0xff]
    %v819 = vld [vmem:[%s2 + $0xf8] sm:$0xff]
    %v852 = vunpack.c.l.b16 %v788
    %v853 = vunpack.c.h.b16 %v788
    %v854 = vunpack.c.l.b16 %v789
    %v855 = vunpack.c.h.b16 %v789
    %v856 = vunpack.c.l.b16 %v790
    %v857 = vunpack.c.h.b16 %v790
    %v858 = vunpack.c.l.b16 %v791
    %v859 = vunpack.c.h.b16 %v791
    %v860 = vunpack.c.l.b16 %v792
    %v861 = vunpack.c.h.b16 %v792
    %v862 = vunpack.c.l.b16 %v793
    %v863 = vunpack.c.h.b16 %v793
    %v864 = vunpack.c.l.b16 %v794
    %v865 = vunpack.c.h.b16 %v794
    %v866 = vunpack.c.l.b16 %v795
    %v867 = vunpack.c.h.b16 %v795
    %v868 = vunpack.c.l.b16 %v796
    %v869 = vunpack.c.h.b16 %v796
    %v870 = vunpack.c.l.b16 %v797
    %v871 = vunpack.c.h.b16 %v797
    %v872 = vunpack.c.l.b16 %v798
    %v873 = vunpack.c.h.b16 %v798
    %v874 = vunpack.c.l.b16 %v799
    %v875 = vunpack.c.h.b16 %v799
    %v876 = vunpack.c.l.b16 %v800
    %v877 = vunpack.c.h.b16 %v800
    %v878 = vunpack.c.l.b16 %v801
    %v879 = vunpack.c.h.b16 %v801
    %v880 = vunpack.c.l.b16 %v802
    %v881 = vunpack.c.h.b16 %v802
    %v882 = vunpack.c.l.b16 %v803
    %v883 = vunpack.c.h.b16 %v803
    %v884 = vunpack.c.l.b16 %v804
    %v885 = vunpack.c.h.b16 %v804
    %v886 = vunpack.c.l.b16 %v805
    %v887 = vunpack.c.h.b16 %v805
    %v888 = vunpack.c.l.b16 %v806
    %v889 = vunpack.c.h.b16 %v806
    %v890 = vunpack.c.l.b16 %v807
    %v891 = vunpack.c.h.b16 %v807
    %v892 = vunpack.c.l.b16 %v808
    %v893 = vunpack.c.h.b16 %v808
    %v894 = vunpack.c.l.b16 %v809
    %v895 = vunpack.c.h.b16 %v809
    %v896 = vunpack.c.l.b16 %v810
    %v897 = vunpack.c.h.b16 %v810
    %v898 = vunpack.c.l.b16 %v811
    %v899 = vunpack.c.h.b16 %v811
    %v900 = vunpack.c.l.b16 %v812
    %v901 = vunpack.c.h.b16 %v812
    %v902 = vunpack.c.l.b16 %v813
    %v903 = vunpack.c.h.b16 %v813
    %v904 = vunpack.c.l.b16 %v814
    %v905 = vunpack.c.h.b16 %v814
    %v906 = vunpack.c.l.b16 %v815
    %v907 = vunpack.c.h.b16 %v815
    %v908 = vunpack.c.l.b16 %v816
    %v909 = vunpack.c.h.b16 %v816
    %v910 = vunpack.c.l.b16 %v817
    %v911 = vunpack.c.h.b16 %v817
    %v912 = vunpack.c.l.b16 %v818
    %v913 = vunpack.c.h.b16 %v818
    %v914 = vunpack.c.l.b16 %v819
    %v915 = vunpack.c.h.b16 %v819
    %v916 = vpack.c.b16 %v856, %v852
    %v917 = vpack.c.b16 %v857, %v853
    %v918 = vpack.c.b16 %v858, %v854
    %v919 = vpack.c.b16 %v859, %v855
    %v920 = vpack.c.b16 %v864, %v860
    %v921 = vpack.c.b16 %v865, %v861
    %v922 = vpack.c.b16 %v866, %v862
    %v923 = vpack.c.b16 %v867, %v863
    %v924 = vpack.c.b16 %v872, %v868
    %v925 = vpack.c.b16 %v873, %v869
    %v926 = vpack.c.b16 %v874, %v870
    %v927 = vpack.c.b16 %v875, %v871
    %v928 = vpack.c.b16 %v880, %v876
    %v929 = vpack.c.b16 %v881, %v877
    %v930 = vpack.c.b16 %v882, %v878
    %v931 = vpack.c.b16 %v883, %v879
    %v932 = vpack.c.b16 %v888, %v884
    %v933 = vpack.c.b16 %v889, %v885
    %v934 = vpack.c.b16 %v890, %v886
    %v935 = vpack.c.b16 %v891, %v887
    %v936 = vpack.c.b16 %v896, %v892
    %v937 = vpack.c.b16 %v897, %v893
    %v938 = vpack.c.b16 %v898, %v894
    %v939 = vpack.c.b16 %v899, %v895
    %v940 = vpack.c.b16 %v904, %v900
    %v941 = vpack.c.b16 %v905, %v901
    %v942 = vpack.c.b16 %v906, %v902
    %v943 = vpack.c.b16 %v907, %v903
    %v944 = vpack.c.b16 %v912, %v908
    %v945 = vpack.c.b16 %v913, %v909
    %v946 = vpack.c.b16 %v914, %v910
    %v947 = vpack.c.b16 %v915, %v911
    %980 = vmatprep.subr.bf16.mxu0 %v945
    %981 = vmatpush1.bf16.msra.mxu0 %v944
    %982 = vmatprep.subr.bf16.mxu0 %v941
    %983 = vmatpush1.bf16.msra.mxu0 %v940
    %984 = vmatprep.subr.bf16.mxu0 %v937
    %985 = vmatpush1.bf16.msra.mxu0 %v936
    %986 = vmatprep.subr.bf16.mxu0 %v933
    %987 = vmatpush1.bf16.msra.mxu0 %v932
    %988 = vmatprep.subr.bf16.mxu0 %v929
    %989 = vmatpush1.bf16.msra.mxu0 %v928
    %990 = vmatprep.subr.bf16.mxu0 %v925
    %991 = vmatpush1.bf16.msra.mxu0 %v924
    %992 = vmatprep.subr.bf16.mxu0 %v921
    %993 = vmatpush1.bf16.msra.mxu0 %v920
    %994 = vmatprep.subr.bf16.mxu0 %v917
    %995 = vmatpush1.bf16.msra.mxu0 %v916
    %996 = vmatprep.subr.bf16.mxu0 0
    %997 = vmatpush2.bf16.msra.mxu0 0
    %998 = vmatprep.subr.bf16.mxu0 0
    %999 = vmatpush2.bf16.msra.mxu0 0
    %1000 = vmatprep.subr.bf16.mxu0 0
    %1001 = vmatpush2.bf16.msra.mxu0 0
    %1002 = vmatprep.subr.bf16.mxu0 0
    %1003 = vmatpush2.bf16.msra.mxu0 0
    %1004 = vmatprep.subr.bf16.mxu0 0
    %1005 = vmatpush2.bf16.msra.mxu0 0
    %1006 = vmatprep.subr.bf16.mxu0 0
    %1007 = vmatpush2.bf16.msra.mxu0 0
    %1008 = vmatprep.subr.bf16.mxu0 0
    %1009 = vmatpush2.bf16.msra.mxu0 0
    %1010 = vmatprep.subr.bf16.mxu0 0
    %1011 = vmatpush2.bf16.msra.mxu0 0
    %1012 = vmatprep.mubr.bf16.mxu0 0
    %1013 = vmatmul.mubr.bf16.gmra.mxu0 0
    %v1014 = vpop.f32.mrf.mxu0
    %v1015 = vadd.f32 0.0, %v1014
    %v1016 = vpop.f32.mrf.mxu0
    %v1017 = vadd.f32 0.0, %v1016
    %v1018 = vpop.f32.mrf.mxu0
    %v1019 = vpop.f32.mrf.mxu0
    %1020 = vdwg.mxu0
    %1021 = vmatprep.subr.bf16.mxu0 %v947
    %1022 = vmatpush1.bf16.msra.mxu0 %v946
    %1023 = vmatprep.subr.bf16.mxu0 %v943
    %1024 = vmatpush1.bf16.msra.mxu0 %v942
    %1025 = vmatprep.subr.bf16.mxu0 %v939
    %1026 = vmatpush1.bf16.msra.mxu0 %v938
    %1027 = vmatprep.subr.bf16.mxu0 %v935
    %1028 = vmatpush1.bf16.msra.mxu0 %v934
    %1029 = vmatprep.subr.bf16.mxu0 %v931
    %1030 = vmatpush1.bf16.msra.mxu0 %v930
    %1031 = vmatprep.subr.bf16.mxu0 %v927
    %1032 = vmatpush1.bf16.msra.mxu0 %v926
    %1033 = vmatprep.subr.bf16.mxu0 %v923
    %1034 = vmatpush1.bf16.msra.mxu0 %v922
    %1035 = vmatprep.subr.bf16.mxu0 %v919
    %1036 = vmatpush1.bf16.msra.mxu0 %v918
    %1037 = vmatprep.subr.bf16.mxu0 0
    %1038 = vmatpush2.bf16.msra.mxu0 0
    %1039 = vmatprep.subr.bf16.mxu0 0
    %1040 = vmatpush2.bf16.msra.mxu0 0
    %1041 = vmatprep.subr.bf16.mxu0 0
    %1042 = vmatpush2.bf16.msra.mxu0 0
    %1043 = vmatprep.subr.bf16.mxu0 0
    %1044 = vmatpush2.bf16.msra.mxu0 0
    %1045 = vmatprep.subr.bf16.mxu0 0
    %1046 = vmatpush2.bf16.msra.mxu0 0
    %1047 = vmatprep.subr.bf16.mxu0 0
    %1048 = vmatpush2.bf16.msra.mxu0 0
    %1049 = vmatprep.subr.bf16.mxu0 0
    %1050 = vmatpush2.bf16.msra.mxu0 0
    %1051 = vmatprep.subr.bf16.mxu0 0
    %1052 = vmatpush2.bf16.msra.mxu0 0
    %1053 = vmatprep.mubr.bf16.mxu0 0
    %1054 = vmatmul.mubr.bf16.gmra.mxu0 0
    %v1055 = vpop.f32.mrf.mxu0
    %v1056 = vadd.f32 0.0, %v1055
    %v1057 = vpop.f32.mrf.mxu0
    %v1058 = vadd.f32 0.0, %v1057
    %v1059 = vpop.f32.mrf.mxu0
    %v1060 = vpop.f32.mrf.mxu0
    %1061 = vdwg.mxu0
    %v1062 = vadd.f32 %v784, %v1015
    %v1063 = vadd.f32 %v785, %v1017
    %v1064 = vadd.f32 %v786, %v1056
    %v1065 = vadd.f32 %v787, %v1058
    %v1066 = vxor.u32 %v1062, 2147483648
    %v1067 = vmul.f32 %v1066, 1.442695
    %v1068 = vpow.pop %v1067
    %v1069 = vadd.f32 %v1068, 1.0
    %v1070 = vrcp.pop %v1069
    %v1071 = vmul.f32 1.0, %v1070
    %v1072 = vxor.u32 %v1063, 2147483648
    %v1073 = vmul.f32 %v1072, 1.442695
    %v1074 = vpow.pop %v1073
    %v1075 = vadd.f32 %v1074, 1.0
    %v1076 = vrcp.pop %v1075
    %v1077 = vmul.f32 1.0, %v1076
    %v1078 = vtanh.pop %v1064
    %v1079 = vxor.u32 %v1065, 2147483648
    %v1080 = vmul.f32 %v1079, 1.442695
    %v1081 = vpow.pop %v1080
    %v1082 = vadd.f32 %v1081, 1.0
    %v1083 = vrcp.pop %v1082
    %v1084 = vmul.f32 1.0, %v1083
    %v1085 = vmul.f32 %v1077, 0.0
    %v1086 = vmul.f32 %v1071, %v1078
    %v1087 = vadd.f32 %v1085, %v1086
    %v1088 = vtanh.pop %v1087
    %v1089 = vmul.f32 %v1084, %v1088
    %v1090 = vpack.c.bf16 %v1089, %v1089
    %1091 = vst [vmem:[#allocation3] sm:$0xf] %v1090
    %s1092 = smul.u32 1, 4
    %s1093 = smul.addr %s1092, 8
    %s1094 = scalar_lea.vmem [#allocation2], %s1093
    %v1095 = vld [vmem:[%s1094] sm:$0xff]
    %v1096 = vld [vmem:[%s1094 + $0x8] sm:$0xff]
    %v1097 = vld [vmem:[%s1094 + $0x10] sm:$0xff]
    %v1098 = vld [vmem:[%s1094 + $0x18] sm:$0xff]
    %v1099 = vld [vmem:[%s2] sm:$0xff]
    %v1100 = vld [vmem:[%s2 + $0x8] sm:$0xff]
    %v1101 = vld [vmem:[%s2 + $0x10] sm:$0xff]
    %v1102 = vld [vmem:[%s2 + $0x18] sm:$0xff]
    %v1103 = vld [vmem:[%s2 + $0x20] sm:$0xff]
    %v1104 = vld [vmem:[%s2 + $0x28] sm:$0xff]
    %v1105 = vld [vmem:[%s2 + $0x30] sm:$0xff]
    %v1106 = vld [vmem:[%s2 + $0x38] sm:$0xff]
    %v1107 = vld [vmem:[%s2 + $0x40] sm:$0xff]
    %v1108 = vld [vmem:[%s2 + $0x48] sm:$0xff]
    %v1109 = vld [vmem:[%s2 + $0x50] sm:$0xff]
    %v1110 = vld [vmem:[%s2 + $0x58] sm:$0xff]
    %v1111 = vld [vmem:[%s2 + $0x60] sm:$0xff]
    %v1112 = vld [vmem:[%s2 + $0x68] sm:$0xff]
    %v1113 = vld [vmem:[%s2 + $0x70] sm:$0xff]
    %v1114 = vld [vmem:[%s2 + $0x78] sm:$0xff]
    %v1115 = vld [vmem:[%s2 + $0x80] sm:$0xff]
    %v1116 = vld [vmem:[%s2 + $0x88] sm:$0xff]
    %v1117 = vld [vmem:[%s2 + $0x90] sm:$0xff]
    %v1118 = vld [vmem:[%s2 + $0x98] sm:$0xff]
    %v1119 = vld [vmem:[%s2 + $0xa0] sm:$0xff]
    %v1120 = vld [vmem:[%s2 + $0xa8] sm:$0xff]
    %v1121 = vld [vmem:[%s2 + $0xb0] sm:$0xff]
    %v1122 = vld [vmem:[%s2 + $0xb8] sm:$0xff]
    %v1123 = vld [vmem:[%s2 + $0xc0] sm:$0xff]
    %v1124 = vld [vmem:[%s2 + $0xc8] sm:$0xff]
    %v1125 = vld [vmem:[%s2 + $0xd0] sm:$0xff]
    %v1126 = vld [vmem:[%s2 + $0xd8] sm:$0xff]
    %v1127 = vld [vmem:[%s2 + $0xe0] sm:$0xff]
    %v1128 = vld [vmem:[%s2 + $0xe8] sm:$0xff]
    %v1129 = vld [vmem:[%s2 + $0xf0] sm:$0xff]
    %v1130 = vld [vmem:[%s2 + $0xf8] sm:$0xff]
    %v1163 = vunpack.c.l.b16 %v1099
    %v1164 = vunpack.c.h.b16 %v1099
    %v1165 = vunpack.c.l.b16 %v1100
    %v1166 = vunpack.c.h.b16 %v1100
    %v1167 = vunpack.c.l.b16 %v1101
    %v1168 = vunpack.c.h.b16 %v1101
    %v1169 = vunpack.c.l.b16 %v1102
    %v1170 = vunpack.c.h.b16 %v1102
    %v1171 = vunpack.c.l.b16 %v1103
    %v1172 = vunpack.c.h.b16 %v1103
    %v1173 = vunpack.c.l.b16 %v1104
    %v1174 = vunpack.c.h.b16 %v1104
    %v1175 = vunpack.c.l.b16 %v1105
    %v1176 = vunpack.c.h.b16 %v1105
    %v1177 = vunpack.c.l.b16 %v1106
    %v1178 = vunpack.c.h.b16 %v1106
    %v1179 = vunpack.c.l.b16 %v1107
    %v1180 = vunpack.c.h.b16 %v1107
    %v1181 = vunpack.c.l.b16 %v1108
    %v1182 = vunpack.c.h.b16 %v1108
    %v1183 = vunpack.c.l.b16 %v1109
    %v1184 = vunpack.c.h.b16 %v1109
    %v1185 = vunpack.c.l.b16 %v1110
    %v1186 = vunpack.c.h.b16 %v1110
    %v1187 = vunpack.c.l.b16 %v1111
    %v1188 = vunpack.c.h.b16 %v1111
    %v1189 = vunpack.c.l.b16 %v1112
    %v1190 = vunpack.c.h.b16 %v1112
    %v1191 = vunpack.c.l.b16 %v1113
    %v1192 = vunpack.c.h.b16 %v1113
    %v1193 = vunpack.c.l.b16 %v1114
    %v1194 = vunpack.c.h.b16 %v1114
    %v1195 = vunpack.c.l.b16 %v1115
    %v1196 = vunpack.c.h.b16 %v1115
    %v1197 = vunpack.c.l.b16 %v1116
    %v1198 = vunpack.c.h.b16 %v1116
    %v1199 = vunpack.c.l.b16 %v1117
    %v1200 = vunpack.c.h.b16 %v1117
    %v1201 = vunpack.c.l.b16 %v1118
    %v1202 = vunpack.c.h.b16 %v1118
    %v1203 = vunpack.c.l.b16 %v1119
    %v1204 = vunpack.c.h.b16 %v1119
    %v1205 = vunpack.c.l.b16 %v1120
    %v1206 = vunpack.c.h.b16 %v1120
    %v1207 = vunpack.c.l.b16 %v1121
    %v1208 = vunpack.c.h.b16 %v1121
    %v1209 = vunpack.c.l.b16 %v1122
    %v1210 = vunpack.c.h.b16 %v1122
    %v1211 = vunpack.c.l.b16 %v1123
    %v1212 = vunpack.c.h.b16 %v1123
    %v1213 = vunpack.c.l.b16 %v1124
    %v1214 = vunpack.c.h.b16 %v1124
    %v1215 = vunpack.c.l.b16 %v1125
    %v1216 = vunpack.c.h.b16 %v1125
    %v1217 = vunpack.c.l.b16 %v1126
    %v1218 = vunpack.c.h.b16 %v1126
    %v1219 = vunpack.c.l.b16 %v1127
    %v1220 = vunpack.c.h.b16 %v1127
    %v1221 = vunpack.c.l.b16 %v1128
    %v1222 = vunpack.c.h.b16 %v1128
    %v1223 = vunpack.c.l.b16 %v1129
    %v1224 = vunpack.c.h.b16 %v1129
    %v1225 = vunpack.c.l.b16 %v1130
    %v1226 = vunpack.c.h.b16 %v1130
    %v1227 = vpack.c.b16 %v1167, %v1163
    %v1228 = vpack.c.b16 %v1168, %v1164
    %v1229 = vpack.c.b16 %v1169, %v1165
    %v1230 = vpack.c.b16 %v1170, %v1166
    %v1231 = vpack.c.b16 %v1175, %v1171
    %v1232 = vpack.c.b16 %v1176, %v1172
    %v1233 = vpack.c.b16 %v1177, %v1173
    %v1234 = vpack.c.b16 %v1178, %v1174
    %v1235 = vpack.c.b16 %v1183, %v1179
    %v1236 = vpack.c.b16 %v1184, %v1180
    %v1237 = vpack.c.b16 %v1185, %v1181
    %v1238 = vpack.c.b16 %v1186, %v1182
    %v1239 = vpack.c.b16 %v1191, %v1187
    %v1240 = vpack.c.b16 %v1192, %v1188
    %v1241 = vpack.c.b16 %v1193, %v1189
    %v1242 = vpack.c.b16 %v1194, %v1190
    %v1243 = vpack.c.b16 %v1199, %v1195
    %v1244 = vpack.c.b16 %v1200, %v1196
    %v1245 = vpack.c.b16 %v1201, %v1197
    %v1246 = vpack.c.b16 %v1202, %v1198
    %v1247 = vpack.c.b16 %v1207, %v1203
    %v1248 = vpack.c.b16 %v1208, %v1204
    %v1249 = vpack.c.b16 %v1209, %v1205
    %v1250 = vpack.c.b16 %v1210, %v1206
    %v1251 = vpack.c.b16 %v1215, %v1211
    %v1252 = vpack.c.b16 %v1216, %v1212
    %v1253 = vpack.c.b16 %v1217, %v1213
    %v1254 = vpack.c.b16 %v1218, %v1214
    %v1255 = vpack.c.b16 %v1223, %v1219
    %v1256 = vpack.c.b16 %v1224, %v1220
    %v1257 = vpack.c.b16 %v1225, %v1221
    %v1258 = vpack.c.b16 %v1226, %v1222
    %1291 = vmatprep.subr.bf16.mxu0 %v1256
    %1292 = vmatpush1.bf16.msra.mxu0 %v1255
    %1293 = vmatprep.subr.bf16.mxu0 %v1252
    %1294 = vmatpush1.bf16.msra.mxu0 %v1251
    %1295 = vmatprep.subr.bf16.mxu0 %v1248
    %1296 = vmatpush1.bf16.msra.mxu0 %v1247
    %1297 = vmatprep.subr.bf16.mxu0 %v1244
    %1298 = vmatpush1.bf16.msra.mxu0 %v1243
    %1299 = vmatprep.subr.bf16.mxu0 %v1240
    %1300 = vmatpush1.bf16.msra.mxu0 %v1239
    %1301 = vmatprep.subr.bf16.mxu0 %v1236
    %1302 = vmatpush1.bf16.msra.mxu0 %v1235
    %1303 = vmatprep.subr.bf16.mxu0 %v1232
    %1304 = vmatpush1.bf16.msra.mxu0 %v1231
    %1305 = vmatprep.subr.bf16.mxu0 %v1228
    %1306 = vmatpush1.bf16.msra.mxu0 %v1227
    %1307 = vmatprep.subr.bf16.mxu0 0
    %1308 = vmatpush2.bf16.msra.mxu0 0
    %1309 = vmatprep.subr.bf16.mxu0 0
    %1310 = vmatpush2.bf16.msra.mxu0 0
    %1311 = vmatprep.subr.bf16.mxu0 0
    %1312 = vmatpush2.bf16.msra.mxu0 0
    %1313 = vmatprep.subr.bf16.mxu0 0
    %1314 = vmatpush2.bf16.msra.mxu0 0
    %1315 = vmatprep.subr.bf16.mxu0 0
    %1316 = vmatpush2.bf16.msra.mxu0 0
    %1317 = vmatprep.subr.bf16.mxu0 0
    %1318 = vmatpush2.bf16.msra.mxu0 0
    %1319 = vmatprep.subr.bf16.mxu0 0
    %1320 = vmatpush2.bf16.msra.mxu0 0
    %1321 = vmatprep.subr.bf16.mxu0 0
    %1322 = vmatpush2.bf16.msra.mxu0 0
    %1323 = vmatprep.mubr.bf16.mxu0 0
    %1324 = vmatmul.mubr.bf16.gmra.mxu0 %v1090
    %v1325 = vpop.f32.mrf.mxu0
    %v1326 = vadd.f32 0.0, %v1325
    %v1327 = vpop.f32.mrf.mxu0
    %v1328 = vadd.f32 0.0, %v1327
    %v1329 = vpop.f32.mrf.mxu0
    %v1330 = vpop.f32.mrf.mxu0
    %1331 = vdwg.mxu0
    %1332 = vmatprep.subr.bf16.mxu0 %v1258
    %1333 = vmatpush1.bf16.msra.mxu0 %v1257
    %1334 = vmatprep.subr.bf16.mxu0 %v1254
    %1335 = vmatpush1.bf16.msra.mxu0 %v1253
    %1336 = vmatprep.subr.bf16.mxu0 %v1250
    %1337 = vmatpush1.bf16.msra.mxu0 %v1249
    %1338 = vmatprep.subr.bf16.mxu0 %v1246
    %1339 = vmatpush1.bf16.msra.mxu0 %v1245
    %1340 = vmatprep.subr.bf16.mxu0 %v1242
    %1341 = vmatpush1.bf16.msra.mxu0 %v1241
    %1342 = vmatprep.subr.bf16.mxu0 %v1238
    %1343 = vmatpush1.bf16.msra.mxu0 %v1237
    %1344 = vmatprep.subr.bf16.mxu0 %v1234
    %1345 = vmatpush1.bf16.msra.mxu0 %v1233
    %1346 = vmatprep.subr.bf16.mxu0 %v1230
    %1347 = vmatpush1.bf16.msra.mxu0 %v1229
    %1348 = vmatprep.subr.bf16.mxu0 0
    %1349 = vmatpush2.bf16.msra.mxu0 0
    %1350 = vmatprep.subr.bf16.mxu0 0
    %1351 = vmatpush2.bf16.msra.mxu0 0
    %1352 = vmatprep.subr.bf16.mxu0 0
    %1353 = vmatpush2.bf16.msra.mxu0 0
    %1354 = vmatprep.subr.bf16.mxu0 0
    %1355 = vmatpush2.bf16.msra.mxu0 0
    %1356 = vmatprep.subr.bf16.mxu0 0
    %1357 = vmatpush2.bf16.msra.mxu0 0
    %1358 = vmatprep.subr.bf16.mxu0 0
    %1359 = vmatpush2.bf16.msra.mxu0 0
    %1360 = vmatprep.subr.bf16.mxu0 0
    %1361 = vmatpush2.bf16.msra.mxu0 0
    %1362 = vmatprep.subr.bf16.mxu0 0
    %1363 = vmatpush2.bf16.msra.mxu0 0
    %1364 = vmatprep.mubr.bf16.mxu0 0
    %1365 = vmatmul.mubr.bf16.gmra.mxu0 %v1090
    %v1366 = vpop.f32.mrf.mxu0
    %v1367 = vadd.f32 0.0, %v1366
    %v1368 = vpop.f32.mrf.mxu0
    %v1369 = vadd.f32 0.0, %v1368
    %v1370 = vpop.f32.mrf.mxu0
    %v1371 = vpop.f32.mrf.mxu0
    %1372 = vdwg.mxu0
    %v1373 = vadd.f32 %v1095, %v1326
    %v1374 = vadd.f32 %v1096, %v1328
    %v1375 = vadd.f32 %v1097, %v1367
    %v1376 = vadd.f32 %v1098, %v1369
    %v1377 = vxor.u32 %v1373, 2147483648
    %v1378 = vmul.f32 %v1377, 1.442695
    %v1379 = vpow.pop %v1378
    %v1380 = vadd.f32 %v1379, 1.0
    %v1381 = vrcp.pop %v1380
    %v1382 = vmul.f32 1.0, %v1381
    %v1383 = vxor.u32 %v1374, 2147483648
    %v1384 = vmul.f32 %v1383, 1.442695
    %v1385 = vpow.pop %v1384
    %v1386 = vadd.f32 %v1385, 1.0
    %v1387 = vrcp.pop %v1386
    %v1388 = vmul.f32 1.0, %v1387
    %v1389 = vtanh.pop %v1375
    %v1390 = vxor.u32 %v1376, 2147483648
    %v1391 = vmul.f32 %v1390, 1.442695
    %v1392 = vpow.pop %v1391
    %v1393 = vadd.f32 %v1392, 1.0
    %v1394 = vrcp.pop %v1393
    %v1395 = vmul.f32 1.0, %v1394
    %v1396 = vmul.f32 %v1388, %v1087
    %v1397 = vmul.f32 %v1382, %v1389
    %v1398 = vadd.f32 %v1396, %v1397
    %v1399 = vtanh.pop %v1398
    %v1400 = vmul.f32 %v1395, %v1399
    %v1401 = vpack.c.bf16 %v1400, %v1400
    %s1402 = scalar_lea.vmem [#allocation3], 4
    %1403 = vst [vmem:[%s1402] sm:$0xf] %v1401
    %s1404 = smul.u32 2, 4
    %s1405 = smul.addr %s1404, 8
    %s1406 = scalar_lea.vmem [#allocation2], %s1405
    %v1407 = vld [vmem:[%s1406] sm:$0xff]
    %v1408 = vld [vmem:[%s1406 + $0x8] sm:$0xff]
    %v1409 = vld [vmem:[%s1406 + $0x10] sm:$0xff]
    %v1410 = vld [vmem:[%s1406 + $0x18] sm:$0xff]
    %v1411 = vld [vmem:[%s2] sm:$0xff]
    %v1412 = vld [vmem:[%s2 + $0x8] sm:$0xff]
    %v1413 = vld [vmem:[%s2 + $0x10] sm:$0xff]
    %v1414 = vld [vmem:[%s2 + $0x18] sm:$0xff]
    %v1415 = vld [vmem:[%s2 + $0x20] sm:$0xff]
    %v1416 = vld [vmem:[%s2 + $0x28] sm:$0xff]
    %v1417 = vld [vmem:[%s2 + $0x30] sm:$0xff]
    %v1418 = vld [vmem:[%s2 + $0x38] sm:$0xff]
    %v1419 = vld [vmem:[%s2 + $0x40] sm:$0xff]
    %v1420 = vld [vmem:[%s2 + $0x48] sm:$0xff]
    %v1421 = vld [vmem:[%s2 + $0x50] sm:$0xff]
    %v1422 = vld [vmem:[%s2 + $0x58] sm:$0xff]
    %v1423 = vld [vmem:[%s2 + $0x60] sm:$0xff]
    %v1424 = vld [vmem:[%s2 + $0x68] sm:$0xff]
    %v1425 = vld [vmem:[%s2 + $0x70] sm:$0xff]
    %v1426 = vld [vmem:[%s2 + $0x78] sm:$0xff]
    %v1427 = vld [vmem:[%s2 + $0x80] sm:$0xff]
    %v1428 = vld [vmem:[%s2 + $0x88] sm:$0xff]
    %v1429 = vld [vmem:[%s2 + $0x90] sm:$0xff]
    %v1430 = vld [vmem:[%s2 + $0x98] sm:$0xff]
    %v1431 = vld [vmem:[%s2 + $0xa0] sm:$0xff]
    %v1432 = vld [vmem:[%s2 + $0xa8] sm:$0xff]
    %v1433 = vld [vmem:[%s2 + $0xb0] sm:$0xff]
    %v1434 = vld [vmem:[%s2 + $0xb8] sm:$0xff]
    %v1435 = vld [vmem:[%s2 + $0xc0] sm:$0xff]
    %v1436 = vld [vmem:[%s2 + $0xc8] sm:$0xff]
    %v1437 = vld [vmem:[%s2 + $0xd0] sm:$0xff]
    %v1438 = vld [vmem:[%s2 + $0xd8] sm:$0xff]
    %v1439 = vld [vmem:[%s2 + $0xe0] sm:$0xff]
    %v1440 = vld [vmem:[%s2 + $0xe8] sm:$0xff]
    %v1441 = vld [vmem:[%s2 + $0xf0] sm:$0xff]
    %v1442 = vld [vmem:[%s2 + $0xf8] sm:$0xff]
    %v1475 = vunpack.c.l.b16 %v1411
    %v1476 = vunpack.c.h.b16 %v1411
    %v1477 = vunpack.c.l.b16 %v1412
    %v1478 = vunpack.c.h.b16 %v1412
    %v1479 = vunpack.c.l.b16 %v1413
    %v1480 = vunpack.c.h.b16 %v1413
    %v1481 = vunpack.c.l.b16 %v1414
    %v1482 = vunpack.c.h.b16 %v1414
    %v1483 = vunpack.c.l.b16 %v1415
    %v1484 = vunpack.c.h.b16 %v1415
    %v1485 = vunpack.c.l.b16 %v1416
    %v1486 = vunpack.c.h.b16 %v1416
    %v1487 = vunpack.c.l.b16 %v1417
    %v1488 = vunpack.c.h.b16 %v1417
    %v1489 = vunpack.c.l.b16 %v1418
    %v1490 = vunpack.c.h.b16 %v1418
    %v1491 = vunpack.c.l.b16 %v1419
    %v1492 = vunpack.c.h.b16 %v1419
    %v1493 = vunpack.c.l.b16 %v1420
    %v1494 = vunpack.c.h.b16 %v1420
    %v1495 = vunpack.c.l.b16 %v1421
    %v1496 = vunpack.c.h.b16 %v1421
    %v1497 = vunpack.c.l.b16 %v1422
    %v1498 = vunpack.c.h.b16 %v1422
    %v1499 = vunpack.c.l.b16 %v1423
    %v1500 = vunpack.c.h.b16 %v1423
    %v1501 = vunpack.c.l.b16 %v1424
    %v1502 = vunpack.c.h.b16 %v1424
    %v1503 = vunpack.c.l.b16 %v1425
    %v1504 = vunpack.c.h.b16 %v1425
    %v1505 = vunpack.c.l.b16 %v1426
    %v1506 = vunpack.c.h.b16 %v1426
    %v1507 = vunpack.c.l.b16 %v1427
    %v1508 = vunpack.c.h.b16 %v1427
    %v1509 = vunpack.c.l.b16 %v1428
    %v1510 = vunpack.c.h.b16 %v1428
    %v1511 = vunpack.c.l.b16 %v1429
    %v1512 = vunpack.c.h.b16 %v1429
    %v1513 = vunpack.c.l.b16 %v1430
    %v1514 = vunpack.c.h.b16 %v1430
    %v1515 = vunpack.c.l.b16 %v1431
    %v1516 = vunpack.c.h.b16 %v1431
    %v1517 = vunpack.c.l.b16 %v1432
    %v1518 = vunpack.c.h.b16 %v1432
    %v1519 = vunpack.c.l.b16 %v1433
    %v1520 = vunpack.c.h.b16 %v1433
    %v1521 = vunpack.c.l.b16 %v1434
    %v1522 = vunpack.c.h.b16 %v1434
    %v1523 = vunpack.c.l.b16 %v1435
    %v1524 = vunpack.c.h.b16 %v1435
    %v1525 = vunpack.c.l.b16 %v1436
    %v1526 = vunpack.c.h.b16 %v1436
    %v1527 = vunpack.c.l.b16 %v1437
    %v1528 = vunpack.c.h.b16 %v1437
    %v1529 = vunpack.c.l.b16 %v1438
    %v1530 = vunpack.c.h.b16 %v1438
    %v1531 = vunpack.c.l.b16 %v1439
    %v1532 = vunpack.c.h.b16 %v1439
    %v1533 = vunpack.c.l.b16 %v1440
    %v1534 = vunpack.c.h.b16 %v1440
    %v1535 = vunpack.c.l.b16 %v1441
    %v1536 = vunpack.c.h.b16 %v1441
    %v1537 = vunpack.c.l.b16 %v1442
    %v1538 = vunpack.c.h.b16 %v1442
    %v1539 = vpack.c.b16 %v1479, %v1475
    %v1540 = vpack.c.b16 %v1480, %v1476
    %v1541 = vpack.c.b16 %v1481, %v1477
    %v1542 = vpack.c.b16 %v1482, %v1478
    %v1543 = vpack.c.b16 %v1487, %v1483
    %v1544 = vpack.c.b16 %v1488, %v1484
    %v1545 = vpack.c.b16 %v1489, %v1485
    %v1546 = vpack.c.b16 %v1490, %v1486
    %v1547 = vpack.c.b16 %v1495, %v1491
    %v1548 = vpack.c.b16 %v1496, %v1492
    %v1549 = vpack.c.b16 %v1497, %v1493
    %v1550 = vpack.c.b16 %v1498, %v1494
    %v1551 = vpack.c.b16 %v1503, %v1499
    %v1552 = vpack.c.b16 %v1504, %v1500
    %v1553 = vpack.c.b16 %v1505, %v1501
    %v1554 = vpack.c.b16 %v1506, %v1502
    %v1555 = vpack.c.b16 %v1511, %v1507
    %v1556 = vpack.c.b16 %v1512, %v1508
    %v1557 = vpack.c.b16 %v1513, %v1509
    %v1558 = vpack.c.b16 %v1514, %v1510
    %v1559 = vpack.c.b16 %v1519, %v1515
    %v1560 = vpack.c.b16 %v1520, %v1516
    %v1561 = vpack.c.b16 %v1521, %v1517
    %v1562 = vpack.c.b16 %v1522, %v1518
    %v1563 = vpack.c.b16 %v1527, %v1523
    %v1564 = vpack.c.b16 %v1528, %v1524
    %v1565 = vpack.c.b16 %v1529, %v1525
    %v1566 = vpack.c.b16 %v1530, %v1526
    %v1567 = vpack.c.b16 %v1535, %v1531
    %v1568 = vpack.c.b16 %v1536, %v1532
    %v1569 = vpack.c.b16 %v1537, %v1533
    %v1570 = vpack.c.b16 %v1538, %v1534
    %1603 = vmatprep.subr.bf16.mxu0 %v1568
    %1604 = vmatpush1.bf16.msra.mxu0 %v1567
    %1605 = vmatprep.subr.bf16.mxu0 %v1564
    %1606 = vmatpush1.bf16.msra.mxu0 %v1563
    %1607 = vmatprep.subr.bf16.mxu0 %v1560
    %1608 = vmatpush1.bf16.msra.mxu0 %v1559
    %1609 = vmatprep.subr.bf16.mxu0 %v1556
    %1610 = vmatpush1.bf16.msra.mxu0 %v1555
    %1611 = vmatprep.subr.bf16.mxu0 %v1552
    %1612 = vmatpush1.bf16.msra.mxu0 %v1551
    %1613 = vmatprep.subr.bf16.mxu0 %v1548
    %1614 = vmatpush1.bf16.msra.mxu0 %v1547
    %1615 = vmatprep.subr.bf16.mxu0 %v1544
    %1616 = vmatpush1.bf16.msra.mxu0 %v1543
    %1617 = vmatprep.subr.bf16.mxu0 %v1540
    %1618 = vmatpush1.bf16.msra.mxu0 %v1539
    %1619 = vmatprep.subr.bf16.mxu0 0
    %1620 = vmatpush2.bf16.msra.mxu0 0
    %1621 = vmatprep.subr.bf16.mxu0 0
    %1622 = vmatpush2.bf16.msra.mxu0 0
    %1623 = vmatprep.subr.bf16.mxu0 0
    %1624 = vmatpush2.bf16.msra.mxu0 0
    %1625 = vmatprep.subr.bf16.mxu0 0
    %1626 = vmatpush2.bf16.msra.mxu0 0
    %1627 = vmatprep.subr.bf16.mxu0 0
    %1628 = vmatpush2.bf16.msra.mxu0 0
    %1629 = vmatprep.subr.bf16.mxu0 0
    %1630 = vmatpush2.bf16.msra.mxu0 0
    %1631 = vmatprep.subr.bf16.mxu0 0
    %1632 = vmatpush2.bf16.msra.mxu0 0
    %1633 = vmatprep.subr.bf16.mxu0 0
    %1634 = vmatpush2.bf16.msra.mxu0 0
    %1635 = vmatprep.mubr.bf16.mxu0 0
    %1636 = vmatmul.mubr.bf16.gmra.mxu0 %v1401
    %v1637 = vpop.f32.mrf.mxu0
    %v1638 = vadd.f32 0.0, %v1637
    %v1639 = vpop.f32.mrf.mxu0
    %v1640 = vadd.f32 0.0, %v1639
    %v1641 = vpop.f32.mrf.mxu0
    %v1642 = vpop.f32.mrf.mxu0
    %1643 = vdwg.mxu0
    %1644 = vmatprep.subr.bf16.mxu0 %v1570
    %1645 = vmatpush1.bf16.msra.mxu0 %v1569
    %1646 = vmatprep.subr.bf16.mxu0 %v1566
    %1647 = vmatpush1.bf16.msra.mxu0 %v1565
    %1648 = vmatprep.subr.bf16.mxu0 %v1562
    %1649 = vmatpush1.bf16.msra.mxu0 %v1561
    %1650 = vmatprep.subr.bf16.mxu0 %v1558
    %1651 = vmatpush1.bf16.msra.mxu0 %v1557
    %1652 = vmatprep.subr.bf16.mxu0 %v1554
    %1653 = vmatpush1.bf16.msra.mxu0 %v1553
    %1654 = vmatprep.subr.bf16.mxu0 %v1550
    %1655 = vmatpush1.bf16.msra.mxu0 %v1549
    %1656 = vmatprep.subr.bf16.mxu0 %v1546
    %1657 = vmatpush1.bf16.msra.mxu0 %v1545
    %1658 = vmatprep.subr.bf16.mxu0 %v1542
    %1659 = vmatpush1.bf16.msra.mxu0 %v1541
    %1660 = vmatprep.subr.bf16.mxu0 0
    %1661 = vmatpush2.bf16.msra.mxu0 0
    %1662 = vmatprep.subr.bf16.mxu0 0
    %1663 = vmatpush2.bf16.msra.mxu0 0
    %1664 = vmatprep.subr.bf16.mxu0 0
    %1665 = vmatpush2.bf16.msra.mxu0 0
    %1666 = vmatprep.subr.bf16.mxu0 0
    %1667 = vmatpush2.bf16.msra.mxu0 0
    %1668 = vmatprep.subr.bf16.mxu0 0
    %1669 = vmatpush2.bf16.msra.mxu0 0
    %1670 = vmatprep.subr.bf16.mxu0 0
    %1671 = vmatpush2.bf16.msra.mxu0 0
    %1672 = vmatprep.subr.bf16.mxu0 0
    %1673 = vmatpush2.bf16.msra.mxu0 0
    %1674 = vmatprep.subr.bf16.mxu0 0
    %1675 = vmatpush2.bf16.msra.mxu0 0
    %1676 = vmatprep.mubr.bf16.mxu0 0
    %1677 = vmatmul.mubr.bf16.gmra.mxu0 %v1401
    %v1678 = vpop.f32.mrf.mxu0
    %v1679 = vadd.f32 0.0, %v1678
    %v1680 = vpop.f32.mrf.mxu0
    %v1681 = vadd.f32 0.0, %v1680
    %v1682 = vpop.f32.mrf.mxu0
    %v1683 = vpop.f32.mrf.mxu0
    %1684 = vdwg.mxu0
    %v1685 = vadd.f32 %v1407, %v1638
    %v1686 = vadd.f32 %v1408, %v1640
    %v1687 = vadd.f32 %v1409, %v1679
    %v1688 = vadd.f32 %v1410, %v1681
    %v1689 = vxor.u32 %v1685, 2147483648
    %v1690 = vmul.f32 %v1689, 1.442695
    %v1691 = vpow.pop %v1690
    %v1692 = vadd.f32 %v1691, 1.0
    %v1693 = vrcp.pop %v1692
    %v1694 = vmul.f32 1.0, %v1693
    %v1695 = vxor.u32 %v1686, 2147483648
    %v1696 = vmul.f32 %v1695, 1.442695
    %v1697 = vpow.pop %v1696
    %v1698 = vadd.f32 %v1697, 1.0
    %v1699 = vrcp.pop %v1698
    %v1700 = vmul.f32 1.0, %v1699
    %v1701 = vtanh.pop %v1687
    %v1702 = vxor.u32 %v1688, 2147483648
    %v1703 = vmul.f32 %v1702, 1.442695
    %v1704 = vpow.pop %v1703
    %v1705 = vadd.f32 %v1704, 1.0
    %v1706 = vrcp.pop %v1705
    %v1707 = vmul.f32 1.0, %v1706
    %v1708 = vmul.f32 %v1700, %v1398
    %v1709 = vmul.f32 %v1694, %v1701
    %v1710 = vadd.f32 %v1708, %v1709
    %v1711 = vtanh.pop %v1710
    %v1712 = vmul.f32 %v1707, %v1711
    %v1713 = vpack.c.bf16 %v1712, %v1712
    %s1714 = scalar_lea.vmem [#allocation3], 8
    %1715 = vst [vmem:[%s1714] sm:$0xf] %v1713
    %s1716 = smul.u32 3, 4
    %s1717 = smul.addr %s1716, 8
    %s1718 = scalar_lea.vmem [#allocation2], %s1717
    %v1719 = vld [vmem:[%s1718] sm:$0xff]
    %v1720 = vld [vmem:[%s1718 + $0x8] sm:$0xff]
    %v1721 = vld [vmem:[%s1718 + $0x10] sm:$0xff]
    %v1722 = vld [vmem:[%s1718 + $0x18] sm:$0xff]
    %v1723 = vld [vmem:[%s2] sm:$0xff]
    %v1724 = vld [vmem:[%s2 + $0x8] sm:$0xff]
    %v1725 = vld [vmem:[%s2 + $0x10] sm:$0xff]
    %v1726 = vld [vmem:[%s2 + $0x18] sm:$0xff]
    %v1727 = vld [vmem:[%s2 + $0x20] sm:$0xff]
    %v1728 = vld [vmem:[%s2 + $0x28] sm:$0xff]
    %v1729 = vld [vmem:[%s2 + $0x30] sm:$0xff]
    %v1730 = vld [vmem:[%s2 + $0x38] sm:$0xff]
    %v1731 = vld [vmem:[%s2 + $0x40] sm:$0xff]
    %v1732 = vld [vmem:[%s2 + $0x48] sm:$0xff]
    %v1733 = vld [vmem:[%s2 + $0x50] sm:$0xff]
    %v1734 = vld [vmem:[%s2 + $0x58] sm:$0xff]
    %v1735 = vld [vmem:[%s2 + $0x60] sm:$0xff]
    %v1736 = vld [vmem:[%s2 + $0x68] sm:$0xff]
    %v1737 = vld [vmem:[%s2 + $0x70] sm:$0xff]
    %v1738 = vld [vmem:[%s2 + $0x78] sm:$0xff]
    %v1739 = vld [vmem:[%s2 + $0x80] sm:$0xff]
    %v1740 = vld [vmem:[%s2 + $0x88] sm:$0xff]
    %v1741 = vld [vmem:[%s2 + $0x90] sm:$0xff]
    %v1742 = vld [vmem:[%s2 + $0x98] sm:$0xff]
    %v1743 = vld [vmem:[%s2 + $0xa0] sm:$0xff]
    %v1744 = vld [vmem:[%s2 + $0xa8] sm:$0xff]
    %v1745 = vld [vmem:[%s2 + $0xb0] sm:$0xff]
    %v1746 = vld [vmem:[%s2 + $0xb8] sm:$0xff]
    %v1747 = vld [vmem:[%s2 + $0xc0] sm:$0xff]
    %v1748 = vld [vmem:[%s2 + $0xc8] sm:$0xff]
    %v1749 = vld [vmem:[%s2 + $0xd0] sm:$0xff]
    %v1750 = vld [vmem:[%s2 + $0xd8] sm:$0xff]
    %v1751 = vld [vmem:[%s2 + $0xe0] sm:$0xff]
    %v1752 = vld [vmem:[%s2 + $0xe8] sm:$0xff]
    %v1753 = vld [vmem:[%s2 + $0xf0] sm:$0xff]
    %v1754 = vld [vmem:[%s2 + $0xf8] sm:$0xff]
    %v1787 = vunpack.c.l.b16 %v1723
    %v1788 = vunpack.c.h.b16 %v1723
    %v1789 = vunpack.c.l.b16 %v1724
    %v1790 = vunpack.c.h.b16 %v1724
    %v1791 = vunpack.c.l.b16 %v1725
    %v1792 = vunpack.c.h.b16 %v1725
    %v1793 = vunpack.c.l.b16 %v1726
    %v1794 = vunpack.c.h.b16 %v1726
    %v1795 = vunpack.c.l.b16 %v1727
    %v1796 = vunpack.c.h.b16 %v1727
    %v1797 = vunpack.c.l.b16 %v1728
    %v1798 = vunpack.c.h.b16 %v1728
    %v1799 = vunpack.c.l.b16 %v1729
    %v1800 = vunpack.c.h.b16 %v1729
    %v1801 = vunpack.c.l.b16 %v1730
    %v1802 = vunpack.c.h.b16 %v1730
    %v1803 = vunpack.c.l.b16 %v1731
    %v1804 = vunpack.c.h.b16 %v1731
    %v1805 = vunpack.c.l.b16 %v1732
    %v1806 = vunpack.c.h.b16 %v1732
    %v1807 = vunpack.c.l.b16 %v1733
    %v1808 = vunpack.c.h.b16 %v1733
    %v1809 = vunpack.c.l.b16 %v1734
    %v1810 = vunpack.c.h.b16 %v1734
    %v1811 = vunpack.c.l.b16 %v1735
    %v1812 = vunpack.c.h.b16 %v1735
    %v1813 = vunpack.c.l.b16 %v1736
    %v1814 = vunpack.c.h.b16 %v1736
    %v1815 = vunpack.c.l.b16 %v1737
    %v1816 = vunpack.c.h.b16 %v1737
    %v1817 = vunpack.c.l.b16 %v1738
    %v1818 = vunpack.c.h.b16 %v1738
    %v1819 = vunpack.c.l.b16 %v1739
    %v1820 = vunpack.c.h.b16 %v1739
    %v1821 = vunpack.c.l.b16 %v1740
    %v1822 = vunpack.c.h.b16 %v1740
    %v1823 = vunpack.c.l.b16 %v1741
    %v1824 = vunpack.c.h.b16 %v1741
    %v1825 = vunpack.c.l.b16 %v1742
    %v1826 = vunpack.c.h.b16 %v1742
    %v1827 = vunpack.c.l.b16 %v1743
    %v1828 = vunpack.c.h.b16 %v1743
    %v1829 = vunpack.c.l.b16 %v1744
    %v1830 = vunpack.c.h.b16 %v1744
    %v1831 = vunpack.c.l.b16 %v1745
    %v1832 = vunpack.c.h.b16 %v1745
    %v1833 = vunpack.c.l.b16 %v1746
    %v1834 = vunpack.c.h.b16 %v1746
    %v1835 = vunpack.c.l.b16 %v1747
    %v1836 = vunpack.c.h.b16 %v1747
    %v1837 = vunpack.c.l.b16 %v1748
    %v1838 = vunpack.c.h.b16 %v1748
    %v1839 = vunpack.c.l.b16 %v1749
    %v1840 = vunpack.c.h.b16 %v1749
    %v1841 = vunpack.c.l.b16 %v1750
    %v1842 = vunpack.c.h.b16 %v1750
    %v1843 = vunpack.c.l.b16 %v1751
    %v1844 = vunpack.c.h.b16 %v1751
    %v1845 = vunpack.c.l.b16 %v1752
    %v1846 = vunpack.c.h.b16 %v1752
    %v1847 = vunpack.c.l.b16 %v1753
    %v1848 = vunpack.c.h.b16 %v1753
    %v1849 = vunpack.c.l.b16 %v1754
    %v1850 = vunpack.c.h.b16 %v1754
    %v1851 = vpack.c.b16 %v1791, %v1787
    %v1852 = vpack.c.b16 %v1792, %v1788
    %v1853 = vpack.c.b16 %v1793, %v1789
    %v1854 = vpack.c.b16 %v1794, %v1790
    %v1855 = vpack.c.b16 %v1799, %v1795
    %v1856 = vpack.c.b16 %v1800, %v1796
    %v1857 = vpack.c.b16 %v1801, %v1797
    %v1858 = vpack.c.b16 %v1802, %v1798
    %v1859 = vpack.c.b16 %v1807, %v1803
    %v1860 = vpack.c.b16 %v1808, %v1804
    %v1861 = vpack.c.b16 %v1809, %v1805
    %v1862 = vpack.c.b16 %v1810, %v1806
    %v1863 = vpack.c.b16 %v1815, %v1811
    %v1864 = vpack.c.b16 %v1816, %v1812
    %v1865 = vpack.c.b16 %v1817, %v1813
    %v1866 = vpack.c.b16 %v1818, %v1814
    %v1867 = vpack.c.b16 %v1823, %v1819
    %v1868 = vpack.c.b16 %v1824, %v1820
    %v1869 = vpack.c.b16 %v1825, %v1821
    %v1870 = vpack.c.b16 %v1826, %v1822
    %v1871 = vpack.c.b16 %v1831, %v1827
    %v1872 = vpack.c.b16 %v1832, %v1828
    %v1873 = vpack.c.b16 %v1833, %v1829
    %v1874 = vpack.c.b16 %v1834, %v1830
    %v1875 = vpack.c.b16 %v1839, %v1835
    %v1876 = vpack.c.b16 %v1840, %v1836
    %v1877 = vpack.c.b16 %v1841, %v1837
    %v1878 = vpack.c.b16 %v1842, %v1838
    %v1879 = vpack.c.b16 %v1847, %v1843
    %v1880 = vpack.c.b16 %v1848, %v1844
    %v1881 = vpack.c.b16 %v1849, %v1845
    %v1882 = vpack.c.b16 %v1850, %v1846
    %1915 = vmatprep.subr.bf16.mxu0 %v1880
    %1916 = vmatpush1.bf16.msra.mxu0 %v1879
    %1917 = vmatprep.subr.bf16.mxu0 %v1876
    %1918 = vmatpush1.bf16.msra.mxu0 %v1875
    %1919 = vmatprep.subr.bf16.mxu0 %v1872
    %1920 = vmatpush1.bf16.msra.mxu0 %v1871
    %1921 = vmatprep.subr.bf16.mxu0 %v1868
    %1922 = vmatpush1.bf16.msra.mxu0 %v1867
    %1923 = vmatprep.subr.bf16.mxu0 %v1864
    %1924 = vmatpush1.bf16.msra.mxu0 %v1863
    %1925 = vmatprep.subr.bf16.mxu0 %v1860
    %1926 = vmatpush1.bf16.msra.mxu0 %v1859
    %1927 = vmatprep.subr.bf16.mxu0 %v1856
    %1928 = vmatpush1.bf16.msra.mxu0 %v1855
    %1929 = vmatprep.subr.bf16.mxu0 %v1852
    %1930 = vmatpush1.bf16.msra.mxu0 %v1851
    %1931 = vmatprep.subr.bf16.mxu0 0
    %1932 = vmatpush2.bf16.msra.mxu0 0
    %1933 = vmatprep.subr.bf16.mxu0 0
    %1934 = vmatpush2.bf16.msra.mxu0 0
    %1935 = vmatprep.subr.bf16.mxu0 0
    %1936 = vmatpush2.bf16.msra.mxu0 0
    %1937 = vmatprep.subr.bf16.mxu0 0
    %1938 = vmatpush2.bf16.msra.mxu0 0
    %1939 = vmatprep.subr.bf16.mxu0 0
    %1940 = vmatpush2.bf16.msra.mxu0 0
    %1941 = vmatprep.subr.bf16.mxu0 0
    %1942 = vmatpush2.bf16.msra.mxu0 0
    %1943 = vmatprep.subr.bf16.mxu0 0
    %1944 = vmatpush2.bf16.msra.mxu0 0
    %1945 = vmatprep.subr.bf16.mxu0 0
    %1946 = vmatpush2.bf16.msra.mxu0 0
    %1947 = vmatprep.mubr.bf16.mxu0 0
    %1948 = vmatmul.mubr.bf16.gmra.mxu0 %v1713
    %v1949 = vpop.f32.mrf.mxu0
    %v1950 = vadd.f32 0.0, %v1949
    %v1951 = vpop.f32.mrf.mxu0
    %v1952 = vadd.f32 0.0, %v1951
    %v1953 = vpop.f32.mrf.mxu0
    %v1954 = vpop.f32.mrf.mxu0
    %1955 = vdwg.mxu0
    %1956 = vmatprep.subr.bf16.mxu0 %v1882
    %1957 = vmatpush1.bf16.msra.mxu0 %v1881
    %1958 = vmatprep.subr.bf16.mxu0 %v1878
    %1959 = vmatpush1.bf16.msra.mxu0 %v1877
    %1960 = vmatprep.subr.bf16.mxu0 %v1874
    %1961 = vmatpush1.bf16.msra.mxu0 %v1873
    %1962 = vmatprep.subr.bf16.mxu0 %v1870
    %1963 = vmatpush1.bf16.msra.mxu0 %v1869
    %1964 = vmatprep.subr.bf16.mxu0 %v1866
    %1965 = vmatpush1.bf16.msra.mxu0 %v1865
    %1966 = vmatprep.subr.bf16.mxu0 %v1862
    %1967 = vmatpush1.bf16.msra.mxu0 %v1861
    %1968 = vmatprep.subr.bf16.mxu0 %v1858
    %1969 = vmatpush1.bf16.msra.mxu0 %v1857
    %1970 = vmatprep.subr.bf16.mxu0 %v1854
    %1971 = vmatpush1.bf16.msra.mxu0 %v1853
    %1972 = vmatprep.subr.bf16.mxu0 0
    %1973 = vmatpush2.bf16.msra.mxu0 0
    %1974 = vmatprep.subr.bf16.mxu0 0
    %1975 = vmatpush2.bf16.msra.mxu0 0
    %1976 = vmatprep.subr.bf16.mxu0 0
    %1977 = vmatpush2.bf16.msra.mxu0 0
    %1978 = vmatprep.subr.bf16.mxu0 0
    %1979 = vmatpush2.bf16.msra.mxu0 0
    %1980 = vmatprep.subr.bf16.mxu0 0
    %1981 = vmatpush2.bf16.msra.mxu0 0
    %1982 = vmatprep.subr.bf16.mxu0 0
    %1983 = vmatpush2.bf16.msra.mxu0 0
    %1984 = vmatprep.subr.bf16.mxu0 0
    %1985 = vmatpush2.bf16.msra.mxu0 0
    %1986 = vmatprep.subr.bf16.mxu0 0
    %1987 = vmatpush2.bf16.msra.mxu0 0
    %1988 = vmatprep.mubr.bf16.mxu0 0
    %1989 = vmatmul.mubr.bf16.gmra.mxu0 %v1713
    %v1990 = vpop.f32.mrf.mxu0
    %v1991 = vadd.f32 0.0, %v1990
    %v1992 = vpop.f32.mrf.mxu0
    %v1993 = vadd.f32 0.0, %v1992
    %v1994 = vpop.f32.mrf.mxu0
    %v1995 = vpop.f32.mrf.mxu0
    %1996 = vdwg.mxu0
    %v1997 = vadd.f32 %v1719, %v1950
    %v1998 = vadd.f32 %v1720, %v1952
    %v1999 = vadd.f32 %v1721, %v1991
    %v2000 = vadd.f32 %v1722, %v1993
    %v2001 = vxor.u32 %v1997, 2147483648
    %v2002 = vmul.f32 %v2001, 1.442695
    %v2003 = vpow.pop %v2002
    %v2004 = vadd.f32 %v2003, 1.0
    %v2005 = vrcp.pop %v2004
    %v2006 = vmul.f32 1.0, %v2005
    %v2007 = vxor.u32 %v1998, 2147483648
    %v2008 = vmul.f32 %v2007, 1.442695
    %v2009 = vpow.pop %v2008
    %v2010 = vadd.f32 %v2009, 1.0
    %v2011 = vrcp.pop %v2010
    %v2012 = vmul.f32 1.0, %v2011
    %v2013 = vtanh.pop %v1999
    %v2014 = vxor.u32 %v2000, 2147483648
    %v2015 = vmul.f32 %v2014, 1.442695
    %v2016 = vpow.pop %v2015
    %v2017 = vadd.f32 %v2016, 1.0
    %v2018 = vrcp.pop %v2017
    %v2019 = vmul.f32 1.0, %v2018
    %v2020 = vmul.f32 %v2012, %v1710
    %v2021 = vmul.f32 %v2006, %v2013
    %v2022 = vadd.f32 %v2020, %v2021
    %v2023 = vtanh.pop %v2022
    %v2024 = vmul.f32 %v2019, %v2023
    %v2025 = vpack.c.bf16 %v2024, %v2024
    %s2026 = scalar_lea.vmem [#allocation3], 12
    %2027 = vst [vmem:[%s2026] sm:$0xf] %v2025
    %s2028 = smul.u32 4, 4
    %s2029 = smul.addr %s2028, 8
    %s2030 = scalar_lea.vmem [#allocation2], %s2029
    %v2031 = vld [vmem:[%s2030] sm:$0xff]
    %v2032 = vld [vmem:[%s2030 + $0x8] sm:$0xff]
    %v2033 = vld [vmem:[%s2030 + $0x10] sm:$0xff]
    %v2034 = vld [vmem:[%s2030 + $0x18] sm:$0xff]
    %v2035 = vld [vmem:[%s2] sm:$0xff]
    %v2036 = vld [vmem:[%s2 + $0x8] sm:$0xff]
    %v2037 = vld [vmem:[%s2 + $0x10] sm:$0xff]
    %v2038 = vld [vmem:[%s2 + $0x18] sm:$0xff]
    %v2039 = vld [vmem:[%s2 + $0x20] sm:$0xff]
    %v2040 = vld [vmem:[%s2 + $0x28] sm:$0xff]
    %v2041 = vld [vmem:[%s2 + $0x30] sm:$0xff]
    %v2042 = vld [vmem:[%s2 + $0x38] sm:$0xff]
    %v2043 = vld [vmem:[%s2 + $0x40] sm:$0xff]
    %v2044 = vld [vmem:[%s2 + $0x48] sm:$0xff]
    %v2045 = vld [vmem:[%s2 + $0x50] sm:$0xff]
    %v2046 = vld [vmem:[%s2 + $0x58] sm:$0xff]
    %v2047 = vld [vmem:[%s2 + $0x60] sm:$0xff]
    %v2048 = vld [vmem:[%s2 + $0x68] sm:$0xff]
    %v2049 = vld [vmem:[%s2 + $0x70] sm:$0xff]
    %v2050 = vld [vmem:[%s2 + $0x78] sm:$0xff]
    %v2051 = vld [vmem:[%s2 + $0x80] sm:$0xff]
    %v2052 = vld [vmem:[%s2 + $0x88] sm:$0xff]
    %v2053 = vld [vmem:[%s2 + $0x90] sm:$0xff]
    %v2054 = vld [vmem:[%s2 + $0x98] sm:$0xff]
    %v2055 = vld [vmem:[%s2 + $0xa0] sm:$0xff]
    %v2056 = vld [vmem:[%s2 + $0xa8] sm:$0xff]
    %v2057 = vld [vmem:[%s2 + $0xb0] sm:$0xff]
    %v2058 = vld [vmem:[%s2 + $0xb8] sm:$0xff]
    %v2059 = vld [vmem:[%s2 + $0xc0] sm:$0xff]
    %v2060 = vld [vmem:[%s2 + $0xc8] sm:$0xff]
    %v2061 = vld [vmem:[%s2 + $0xd0] sm:$0xff]
    %v2062 = vld [vmem:[%s2 + $0xd8] sm:$0xff]
    %v2063 = vld [vmem:[%s2 + $0xe0] sm:$0xff]
    %v2064 = vld [vmem:[%s2 + $0xe8] sm:$0xff]
    %v2065 = vld [vmem:[%s2 + $0xf0] sm:$0xff]
    %v2066 = vld [vmem:[%s2 + $0xf8] sm:$0xff]
    %v2099 = vunpack.c.l.b16 %v2035
    %v2100 = vunpack.c.h.b16 %v2035
    %v2101 = vunpack.c.l.b16 %v2036
    %v2102 = vunpack.c.h.b16 %v2036
    %v2103 = vunpack.c.l.b16 %v2037
    %v2104 = vunpack.c.h.b16 %v2037
    %v2105 = vunpack.c.l.b16 %v2038
    %v2106 = vunpack.c.h.b16 %v2038
    %v2107 = vunpack.c.l.b16 %v2039
    %v2108 = vunpack.c.h.b16 %v2039
    %v2109 = vunpack.c.l.b16 %v2040
    %v2110 = vunpack.c.h.b16 %v2040
    %v2111 = vunpack.c.l.b16 %v2041
    %v2112 = vunpack.c.h.b16 %v2041
    %v2113 = vunpack.c.l.b16 %v2042
    %v2114 = vunpack.c.h.b16 %v2042
    %v2115 = vunpack.c.l.b16 %v2043
    %v2116 = vunpack.c.h.b16 %v2043
    %v2117 = vunpack.c.l.b16 %v2044
    %v2118 = vunpack.c.h.b16 %v2044
    %v2119 = vunpack.c.l.b16 %v2045
    %v2120 = vunpack.c.h.b16 %v2045
    %v2121 = vunpack.c.l.b16 %v2046
    %v2122 = vunpack.c.h.b16 %v2046
    %v2123 = vunpack.c.l.b16 %v2047
    %v2124 = vunpack.c.h.b16 %v2047
    %v2125 = vunpack.c.l.b16 %v2048
    %v2126 = vunpack.c.h.b16 %v2048
    %v2127 = vunpack.c.l.b16 %v2049
    %v2128 = vunpack.c.h.b16 %v2049
    %v2129 = vunpack.c.l.b16 %v2050
    %v2130 = vunpack.c.h.b16 %v2050
    %v2131 = vunpack.c.l.b16 %v2051
    %v2132 = vunpack.c.h.b16 %v2051
    %v2133 = vunpack.c.l.b16 %v2052
    %v2134 = vunpack.c.h.b16 %v2052
    %v2135 = vunpack.c.l.b16 %v2053
    %v2136 = vunpack.c.h.b16 %v2053
    %v2137 = vunpack.c.l.b16 %v2054
    %v2138 = vunpack.c.h.b16 %v2054
    %v2139 = vunpack.c.l.b16 %v2055
    %v2140 = vunpack.c.h.b16 %v2055
    %v2141 = vunpack.c.l.b16 %v2056
    %v2142 = vunpack.c.h.b16 %v2056
    %v2143 = vunpack.c.l.b16 %v2057
    %v2144 = vunpack.c.h.b16 %v2057
    %v2145 = vunpack.c.l.b16 %v2058
    %v2146 = vunpack.c.h.b16 %v2058
    %v2147 = vunpack.c.l.b16 %v2059
    %v2148 = vunpack.c.h.b16 %v2059
    %v2149 = vunpack.c.l.b16 %v2060
    %v2150 = vunpack.c.h.b16 %v2060
    %v2151 = vunpack.c.l.b16 %v2061
    %v2152 = vunpack.c.h.b16 %v2061
    %v2153 = vunpack.c.l.b16 %v2062
    %v2154 = vunpack.c.h.b16 %v2062
    %v2155 = vunpack.c.l.b16 %v2063
    %v2156 = vunpack.c.h.b16 %v2063
    %v2157 = vunpack.c.l.b16 %v2064
    %v2158 = vunpack.c.h.b16 %v2064
    %v2159 = vunpack.c.l.b16 %v2065
    %v2160 = vunpack.c.h.b16 %v2065
    %v2161 = vunpack.c.l.b16 %v2066
    %v2162 = vunpack.c.h.b16 %v2066
    %v2163 = vpack.c.b16 %v2103, %v2099
    %v2164 = vpack.c.b16 %v2104, %v2100
    %v2165 = vpack.c.b16 %v2105, %v2101
    %v2166 = vpack.c.b16 %v2106, %v2102
    %v2167 = vpack.c.b16 %v2111, %v2107
    %v2168 = vpack.c.b16 %v2112, %v2108
    %v2169 = vpack.c.b16 %v2113, %v2109
    %v2170 = vpack.c.b16 %v2114, %v2110
    %v2171 = vpack.c.b16 %v2119, %v2115
    %v2172 = vpack.c.b16 %v2120, %v2116
    %v2173 = vpack.c.b16 %v2121, %v2117
    %v2174 = vpack.c.b16 %v2122, %v2118
    %v2175 = vpack.c.b16 %v2127, %v2123
    %v2176 = vpack.c.b16 %v2128, %v2124
    %v2177 = vpack.c.b16 %v2129, %v2125
    %v2178 = vpack.c.b16 %v2130, %v2126
    %v2179 = vpack.c.b16 %v2135, %v2131
    %v2180 = vpack.c.b16 %v2136, %v2132
    %v2181 = vpack.c.b16 %v2137, %v2133
    %v2182 = vpack.c.b16 %v2138, %v2134
    %v2183 = vpack.c.b16 %v2143, %v2139
    %v2184 = vpack.c.b16 %v2144, %v2140
    %v2185 = vpack.c.b16 %v2145, %v2141
    %v2186 = vpack.c.b16 %v2146, %v2142
    %v2187 = vpack.c.b16 %v2151, %v2147
    %v2188 = vpack.c.b16 %v2152, %v2148
    %v2189 = vpack.c.b16 %v2153, %v2149
    %v2190 = vpack.c.b16 %v2154, %v2150
    %v2191 = vpack.c.b16 %v2159, %v2155
    %v2192 = vpack.c.b16 %v2160, %v2156
    %v2193 = vpack.c.b16 %v2161, %v2157
    %v2194 = vpack.c.b16 %v2162, %v2158
    %2227 = vmatprep.subr.bf16.mxu0 %v2192
    %2228 = vmatpush1.bf16.msra.mxu0 %v2191
    %2229 = vmatprep.subr.bf16.mxu0 %v2188
    %2230 = vmatpush1.bf16.msra.mxu0 %v2187
    %2231 = vmatprep.subr.bf16.mxu0 %v2184
    %2232 = vmatpush1.bf16.msra.mxu0 %v2183
    %2233 = vmatprep.subr.bf16.mxu0 %v2180
    %2234 = vmatpush1.bf16.msra.mxu0 %v2179
    %2235 = vmatprep.subr.bf16.mxu0 %v2176
    %2236 = vmatpush1.bf16.msra.mxu0 %v2175
    %2237 = vmatprep.subr.bf16.mxu0 %v2172
    %2238 = vmatpush1.bf16.msra.mxu0 %v2171
    %2239 = vmatprep.subr.bf16.mxu0 %v2168
    %2240 = vmatpush1.bf16.msra.mxu0 %v2167
    %2241 = vmatprep.subr.bf16.mxu0 %v2164
    %2242 = vmatpush1.bf16.msra.mxu0 %v2163
    %2243 = vmatprep.subr.bf16.mxu0 0
    %2244 = vmatpush2.bf16.msra.mxu0 0
    %2245 = vmatprep.subr.bf16.mxu0 0
    %2246 = vmatpush2.bf16.msra.mxu0 0
    %2247 = vmatprep.subr.bf16.mxu0 0
    %2248 = vmatpush2.bf16.msra.mxu0 0
    %2249 = vmatprep.subr.bf16.mxu0 0
    %2250 = vmatpush2.bf16.msra.mxu0 0
    %2251 = vmatprep.subr.bf16.mxu0 0
    %2252 = vmatpush2.bf16.msra.mxu0 0
    %2253 = vmatprep.subr.bf16.mxu0 0
    %2254 = vmatpush2.bf16.msra.mxu0 0
    %2255 = vmatprep.subr.bf16.mxu0 0
    %2256 = vmatpush2.bf16.msra.mxu0 0
    %2257 = vmatprep.subr.bf16.mxu0 0
    %2258 = vmatpush2.bf16.msra.mxu0 0
    %2259 = vmatprep.mubr.bf16.mxu0 0
    %2260 = vmatmul.mubr.bf16.gmra.mxu0 %v2025
    %v2261 = vpop.f32.mrf.mxu0
    %v2262 = vadd.f32 0.0, %v2261
    %v2263 = vpop.f32.mrf.mxu0
    %v2264 = vadd.f32 0.0, %v2263
    %v2265 = vpop.f32.mrf.mxu0
    %v2266 = vpop.f32.mrf.mxu0
    %2267 = vdwg.mxu0
    %2268 = vmatprep.subr.bf16.mxu0 %v2194
    %2269 = vmatpush1.bf16.msra.mxu0 %v2193
    %2270 = vmatprep.subr.bf16.mxu0 %v2190
    %2271 = vmatpush1.bf16.msra.mxu0 %v2189
    %2272 = vmatprep.subr.bf16.mxu0 %v2186
    %2273 = vmatpush1.bf16.msra.mxu0 %v2185
    %2274 = vmatprep.subr.bf16.mxu0 %v2182
    %2275 = vmatpush1.bf16.msra.mxu0 %v2181
    %2276 = vmatprep.subr.bf16.mxu0 %v2178
    %2277 = vmatpush1.bf16.msra.mxu0 %v2177
    %2278 = vmatprep.subr.bf16.mxu0 %v2174
    %2279 = vmatpush1.bf16.msra.mxu0 %v2173
    %2280 = vmatprep.subr.bf16.mxu0 %v2170
    %2281 = vmatpush1.bf16.msra.mxu0 %v2169
    %2282 = vmatprep.subr.bf16.mxu0 %v2166
    %2283 = vmatpush1.bf16.msra.mxu0 %v2165
    %2284 = vmatprep.subr.bf16.mxu0 0
    %2285 = vmatpush2.bf16.msra.mxu0 0
    %2286 = vmatprep.subr.bf16.mxu0 0
    %2287 = vmatpush2.bf16.msra.mxu0 0
    %2288 = vmatprep.subr.bf16.mxu0 0
    %2289 = vmatpush2.bf16.msra.mxu0 0
    %2290 = vmatprep.subr.bf16.mxu0 0
    %2291 = vmatpush2.bf16.msra.mxu0 0
    %2292 = vmatprep.subr.bf16.mxu0 0
    %2293 = vmatpush2.bf16.msra.mxu0 0
    %2294 = vmatprep.subr.bf16.mxu0 0
    %2295 = vmatpush2.bf16.msra.mxu0 0
    %2296 = vmatprep.subr.bf16.mxu0 0
    %2297 = vmatpush2.bf16.msra.mxu0 0
    %2298 = vmatprep.subr.bf16.mxu0 0
    %2299 = vmatpush2.bf16.msra.mxu0 0
    %2300 = vmatprep.mubr.bf16.mxu0 0
    %2301 = vmatmul.mubr.bf16.gmra.mxu0 %v2025
    %v2302 = vpop.f32.mrf.mxu0
    %v2303 = vadd.f32 0.0, %v2302
    %v2304 = vpop.f32.mrf.mxu0
    %v2305 = vadd.f32 0.0, %v2304
    %v2306 = vpop.f32.mrf.mxu0
    %v2307 = vpop.f32.mrf.mxu0
    %2308 = vdwg.mxu0
    %v2309 = vadd.f32 %v2031, %v2262
    %v2310 = vadd.f32 %v2032, %v2264
    %v2311 = vadd.f32 %v2033, %v2303
    %v2312 = vadd.f32 %v2034, %v2305
    %v2313 = vxor.u32 %v2309, 2147483648
    %v2314 = vmul.f32 %v2313, 1.442695
    %v2315 = vpow.pop %v2314
    %v2316 = vadd.f32 %v2315, 1.0
    %v2317 = vrcp.pop %v2316
    %v2318 = vmul.f32 1.0, %v2317
    %v2319 = vxor.u32 %v2310, 2147483648
    %v2320 = vmul.f32 %v2319, 1.442695
    %v2321 = vpow.pop %v2320
    %v2322 = vadd.f32 %v2321, 1.0
    %v2323 = vrcp.pop %v2322
    %v2324 = vmul.f32 1.0, %v2323
    %v2325 = vtanh.pop %v2311
    %v2326 = vxor.u32 %v2312, 2147483648
    %v2327 = vmul.f32 %v2326, 1.442695
    %v2328 = vpow.pop %v2327
    %v2329 = vadd.f32 %v2328, 1.0
    %v2330 = vrcp.pop %v2329
    %v2331 = vmul.f32 1.0, %v2330
    %v2332 = vmul.f32 %v2324, %v2022
    %v2333 = vmul.f32 %v2318, %v2325
    %v2334 = vadd.f32 %v2332, %v2333
    %v2335 = vtanh.pop %v2334
    %v2336 = vmul.f32 %v2331, %v2335
    %v2337 = vpack.c.bf16 %v2336, %v2336
    %s2338 = scalar_lea.vmem [#allocation3], 16
    %2339 = vst [vmem:[%s2338] sm:$0xf] %v2337
    %s2340 = smul.u32 5, 4
    %s2341 = smul.addr %s2340, 8
    %s2342 = scalar_lea.vmem [#allocation2], %s2341
    %v2343 = vld [vmem:[%s2342] sm:$0xff]
    %v2344 = vld [vmem:[%s2342 + $0x8] sm:$0xff]
    %v2345 = vld [vmem:[%s2342 + $0x10] sm:$0xff]
    %v2346 = vld [vmem:[%s2342 + $0x18] sm:$0xff]
    %v2347 = vld [vmem:[%s2] sm:$0xff]
    %v2348 = vld [vmem:[%s2 + $0x8] sm:$0xff]
    %v2349 = vld [vmem:[%s2 + $0x10] sm:$0xff]
    %v2350 = vld [vmem:[%s2 + $0x18] sm:$0xff]
    %v2351 = vld [vmem:[%s2 + $0x20] sm:$0xff]
    %v2352 = vld [vmem:[%s2 + $0x28] sm:$0xff]
    %v2353 = vld [vmem:[%s2 + $0x30] sm:$0xff]
    %v2354 = vld [vmem:[%s2 + $0x38] sm:$0xff]
    %v2355 = vld [vmem:[%s2 + $0x40] sm:$0xff]
    %v2356 = vld [vmem:[%s2 + $0x48] sm:$0xff]
    %v2357 = vld [vmem:[%s2 + $0x50] sm:$0xff]
    %v2358 = vld [vmem:[%s2 + $0x58] sm:$0xff]
    %v2359 = vld [vmem:[%s2 + $0x60] sm:$0xff]
    %v2360 = vld [vmem:[%s2 + $0x68] sm:$0xff]
    %v2361 = vld [vmem:[%s2 + $0x70] sm:$0xff]
    %v2362 = vld [vmem:[%s2 + $0x78] sm:$0xff]
    %v2363 = vld [vmem:[%s2 + $0x80] sm:$0xff]
    %v2364 = vld [vmem:[%s2 + $0x88] sm:$0xff]
    %v2365 = vld [vmem:[%s2 + $0x90] sm:$0xff]
    %v2366 = vld [vmem:[%s2 + $0x98] sm:$0xff]
    %v2367 = vld [vmem:[%s2 + $0xa0] sm:$0xff]
    %v2368 = vld [vmem:[%s2 + $0xa8] sm:$0xff]
    %v2369 = vld [vmem:[%s2 + $0xb0] sm:$0xff]
    %v2370 = vld [vmem:[%s2 + $0xb8] sm:$0xff]
    %v2371 = vld [vmem:[%s2 + $0xc0] sm:$0xff]
    %v2372 = vld [vmem:[%s2 + $0xc8] sm:$0xff]
    %v2373 = vld [vmem:[%s2 + $0xd0] sm:$0xff]
    %v2374 = vld [vmem:[%s2 + $0xd8] sm:$0xff]
    %v2375 = vld [vmem:[%s2 + $0xe0] sm:$0xff]
    %v2376 = vld [vmem:[%s2 + $0xe8] sm:$0xff]
    %v2377 = vld [vmem:[%s2 + $0xf0] sm:$0xff]
    %v2378 = vld [vmem:[%s2 + $0xf8] sm:$0xff]
    %v2411 = vunpack.c.l.b16 %v2347
    %v2412 = vunpack.c.h.b16 %v2347
    %v2413 = vunpack.c.l.b16 %v2348
    %v2414 = vunpack.c.h.b16 %v2348
    %v2415 = vunpack.c.l.b16 %v2349
    %v2416 = vunpack.c.h.b16 %v2349
    %v2417 = vunpack.c.l.b16 %v2350
    %v2418 = vunpack.c.h.b16 %v2350
    %v2419 = vunpack.c.l.b16 %v2351
    %v2420 = vunpack.c.h.b16 %v2351
    %v2421 = vunpack.c.l.b16 %v2352
    %v2422 = vunpack.c.h.b16 %v2352
    %v2423 = vunpack.c.l.b16 %v2353
    %v2424 = vunpack.c.h.b16 %v2353
    %v2425 = vunpack.c.l.b16 %v2354
    %v2426 = vunpack.c.h.b16 %v2354
    %v2427 = vunpack.c.l.b16 %v2355
    %v2428 = vunpack.c.h.b16 %v2355
    %v2429 = vunpack.c.l.b16 %v2356
    %v2430 = vunpack.c.h.b16 %v2356
    %v2431 = vunpack.c.l.b16 %v2357
    %v2432 = vunpack.c.h.b16 %v2357
    %v2433 = vunpack.c.l.b16 %v2358
    %v2434 = vunpack.c.h.b16 %v2358
    %v2435 = vunpack.c.l.b16 %v2359
    %v2436 = vunpack.c.h.b16 %v2359
    %v2437 = vunpack.c.l.b16 %v2360
    %v2438 = vunpack.c.h.b16 %v2360
    %v2439 = vunpack.c.l.b16 %v2361
    %v2440 = vunpack.c.h.b16 %v2361
    %v2441 = vunpack.c.l.b16 %v2362
    %v2442 = vunpack.c.h.b16 %v2362
    %v2443 = vunpack.c.l.b16 %v2363
    %v2444 = vunpack.c.h.b16 %v2363
    %v2445 = vunpack.c.l.b16 %v2364
    %v2446 = vunpack.c.h.b16 %v2364
    %v2447 = vunpack.c.l.b16 %v2365
    %v2448 = vunpack.c.h.b16 %v2365
    %v2449 = vunpack.c.l.b16 %v2366
    %v2450 = vunpack.c.h.b16 %v2366
    %v2451 = vunpack.c.l.b16 %v2367
    %v2452 = vunpack.c.h.b16 %v2367
    %v2453 = vunpack.c.l.b16 %v2368
    %v2454 = vunpack.c.h.b16 %v2368
    %v2455 = vunpack.c.l.b16 %v2369
    %v2456 = vunpack.c.h.b16 %v2369
    %v2457 = vunpack.c.l.b16 %v2370
    %v2458 = vunpack.c.h.b16 %v2370
    %v2459 = vunpack.c.l.b16 %v2371
    %v2460 = vunpack.c.h.b16 %v2371
    %v2461 = vunpack.c.l.b16 %v2372
    %v2462 = vunpack.c.h.b16 %v2372
    %v2463 = vunpack.c.l.b16 %v2373
    %v2464 = vunpack.c.h.b16 %v2373
    %v2465 = vunpack.c.l.b16 %v2374
    %v2466 = vunpack.c.h.b16 %v2374
    %v2467 = vunpack.c.l.b16 %v2375
    %v2468 = vunpack.c.h.b16 %v2375
    %v2469 = vunpack.c.l.b16 %v2376
    %v2470 = vunpack.c.h.b16 %v2376
    %v2471 = vunpack.c.l.b16 %v2377
    %v2472 = vunpack.c.h.b16 %v2377
    %v2473 = vunpack.c.l.b16 %v2378
    %v2474 = vunpack.c.h.b16 %v2378
    %v2475 = vpack.c.b16 %v2415, %v2411
    %v2476 = vpack.c.b16 %v2416, %v2412
    %v2477 = vpack.c.b16 %v2417, %v2413
    %v2478 = vpack.c.b16 %v2418, %v2414
    %v2479 = vpack.c.b16 %v2423, %v2419
    %v2480 = vpack.c.b16 %v2424, %v2420
    %v2481 = vpack.c.b16 %v2425, %v2421
    %v2482 = vpack.c.b16 %v2426, %v2422
    %v2483 = vpack.c.b16 %v2431, %v2427
    %v2484 = vpack.c.b16 %v2432, %v2428
    %v2485 = vpack.c.b16 %v2433, %v2429
    %v2486 = vpack.c.b16 %v2434, %v2430
    %v2487 = vpack.c.b16 %v2439, %v2435
    %v2488 = vpack.c.b16 %v2440, %v2436
    %v2489 = vpack.c.b16 %v2441, %v2437
    %v2490 = vpack.c.b16 %v2442, %v2438
    %v2491 = vpack.c.b16 %v2447, %v2443
    %v2492 = vpack.c.b16 %v2448, %v2444
    %v2493 = vpack.c.b16 %v2449, %v2445
    %v2494 = vpack.c.b16 %v2450, %v2446
    %v2495 = vpack.c.b16 %v2455, %v2451
    %v2496 = vpack.c.b16 %v2456, %v2452
    %v2497 = vpack.c.b16 %v2457, %v2453
    %v2498 = vpack.c.b16 %v2458, %v2454
    %v2499 = vpack.c.b16 %v2463, %v2459
    %v2500 = vpack.c.b16 %v2464, %v2460
    %v2501 = vpack.c.b16 %v2465, %v2461
    %v2502 = vpack.c.b16 %v2466, %v2462
    %v2503 = vpack.c.b16 %v2471, %v2467
    %v2504 = vpack.c.b16 %v2472, %v2468
    %v2505 = vpack.c.b16 %v2473, %v2469
    %v2506 = vpack.c.b16 %v2474, %v2470
    %2539 = vmatprep.subr.bf16.mxu0 %v2504
    %2540 = vmatpush1.bf16.msra.mxu0 %v2503
    %2541 = vmatprep.subr.bf16.mxu0 %v2500
    %2542 = vmatpush1.bf16.msra.mxu0 %v2499
    %2543 = vmatprep.subr.bf16.mxu0 %v2496
    %2544 = vmatpush1.bf16.msra.mxu0 %v2495
    %2545 = vmatprep.subr.bf16.mxu0 %v2492
    %2546 = vmatpush1.bf16.msra.mxu0 %v2491
    %2547 = vmatprep.subr.bf16.mxu0 %v2488
    %2548 = vmatpush1.bf16.msra.mxu0 %v2487
    %2549 = vmatprep.subr.bf16.mxu0 %v2484
    %2550 = vmatpush1.bf16.msra.mxu0 %v2483
    %2551 = vmatprep.subr.bf16.mxu0 %v2480
    %2552 = vmatpush1.bf16.msra.mxu0 %v2479
    %2553 = vmatprep.subr.bf16.mxu0 %v2476
    %2554 = vmatpush1.bf16.msra.mxu0 %v2475
    %2555 = vmatprep.subr.bf16.mxu0 0
    %2556 = vmatpush2.bf16.msra.mxu0 0
    %2557 = vmatprep.subr.bf16.mxu0 0
    %2558 = vmatpush2.bf16.msra.mxu0 0
    %2559 = vmatprep.subr.bf16.mxu0 0
    %2560 = vmatpush2.bf16.msra.mxu0 0
    %2561 = vmatprep.subr.bf16.mxu0 0
    %2562 = vmatpush2.bf16.msra.mxu0 0
    %2563 = vmatprep.subr.bf16.mxu0 0
    %2564 = vmatpush2.bf16.msra.mxu0 0
    %2565 = vmatprep.subr.bf16.mxu0 0
    %2566 = vmatpush2.bf16.msra.mxu0 0
    %2567 = vmatprep.subr.bf16.mxu0 0
    %2568 = vmatpush2.bf16.msra.mxu0 0
    %2569 = vmatprep.subr.bf16.mxu0 0
    %2570 = vmatpush2.bf16.msra.mxu0 0
    %2571 = vmatprep.mubr.bf16.mxu0 0
    %2572 = vmatmul.mubr.bf16.gmra.mxu0 %v2337
    %v2573 = vpop.f32.mrf.mxu0
    %v2574 = vadd.f32 0.0, %v2573
    %v2575 = vpop.f32.mrf.mxu0
    %v2576 = vadd.f32 0.0, %v2575
    %v2577 = vpop.f32.mrf.mxu0
    %v2578 = vpop.f32.mrf.mxu0
    %2579 = vdwg.mxu0
    %2580 = vmatprep.subr.bf16.mxu0 %v2506
    %2581 = vmatpush1.bf16.msra.mxu0 %v2505
    %2582 = vmatprep.subr.bf16.mxu0 %v2502
    %2583 = vmatpush1.bf16.msra.mxu0 %v2501
    %2584 = vmatprep.subr.bf16.mxu0 %v2498
    %2585 = vmatpush1.bf16.msra.mxu0 %v2497
    %2586 = vmatprep.subr.bf16.mxu0 %v2494
    %2587 = vmatpush1.bf16.msra.mxu0 %v2493
    %2588 = vmatprep.subr.bf16.mxu0 %v2490
    %2589 = vmatpush1.bf16.msra.mxu0 %v2489
    %2590 = vmatprep.subr.bf16.mxu0 %v2486
    %2591 = vmatpush1.bf16.msra.mxu0 %v2485
    %2592 = vmatprep.subr.bf16.mxu0 %v2482
    %2593 = vmatpush1.bf16.msra.mxu0 %v2481
    %2594 = vmatprep.subr.bf16.mxu0 %v2478
    %2595 = vmatpush1.bf16.msra.mxu0 %v2477
    %2596 = vmatprep.subr.bf16.mxu0 0
    %2597 = vmatpush2.bf16.msra.mxu0 0
    %2598 = vmatprep.subr.bf16.mxu0 0
    %2599 = vmatpush2.bf16.msra.mxu0 0
    %2600 = vmatprep.subr.bf16.mxu0 0
    %2601 = vmatpush2.bf16.msra.mxu0 0
    %2602 = vmatprep.subr.bf16.mxu0 0
    %2603 = vmatpush2.bf16.msra.mxu0 0
    %2604 = vmatprep.subr.bf16.mxu0 0
    %2605 = vmatpush2.bf16.msra.mxu0 0
    %2606 = vmatprep.subr.bf16.mxu0 0
    %2607 = vmatpush2.bf16.msra.mxu0 0
    %2608 = vmatprep.subr.bf16.mxu0 0
    %2609 = vmatpush2.bf16.msra.mxu0 0
    %2610 = vmatprep.subr.bf16.mxu0 0
    %2611 = vmatpush2.bf16.msra.mxu0 0
    %2612 = vmatprep.mubr.bf16.mxu0 0
    %2613 = vmatmul.mubr.bf16.gmra.mxu0 %v2337
    %v2614 = vpop.f32.mrf.mxu0
    %v2615 = vadd.f32 0.0, %v2614
    %v2616 = vpop.f32.mrf.mxu0
    %v2617 = vadd.f32 0.0, %v2616
    %v2618 = vpop.f32.mrf.mxu0
    %v2619 = vpop.f32.mrf.mxu0
    %2620 = vdwg.mxu0
    %v2621 = vadd.f32 %v2343, %v2574
    %v2622 = vadd.f32 %v2344, %v2576
    %v2623 = vadd.f32 %v2345, %v2615
    %v2624 = vadd.f32 %v2346, %v2617
    %v2625 = vxor.u32 %v2621, 2147483648
    %v2626 = vmul.f32 %v2625, 1.442695
    %v2627 = vpow.pop %v2626
    %v2628 = vadd.f32 %v2627, 1.0
    %v2629 = vrcp.pop %v2628
    %v2630 = vmul.f32 1.0, %v2629
    %v2631 = vxor.u32 %v2622, 2147483648
    %v2632 = vmul.f32 %v2631, 1.442695
    %v2633 = vpow.pop %v2632
    %v2634 = vadd.f32 %v2633, 1.0
    %v2635 = vrcp.pop %v2634
    %v2636 = vmul.f32 1.0, %v2635
    %v2637 = vtanh.pop %v2623
    %v2638 = vxor.u32 %v2624, 2147483648
    %v2639 = vmul.f32 %v2638, 1.442695
    %v2640 = vpow.pop %v2639
    %v2641 = vadd.f32 %v2640, 1.0
    %v2642 = vrcp.pop %v2641
    %v2643 = vmul.f32 1.0, %v2642
    %v2644 = vmul.f32 %v2636, %v2334
    %v2645 = vmul.f32 %v2630, %v2637
    %v2646 = vadd.f32 %v2644, %v2645
    %v2647 = vtanh.pop %v2646
    %v2648 = vmul.f32 %v2643, %v2647
    %v2649 = vpack.c.bf16 %v2648, %v2648
    %s2650 = scalar_lea.vmem [#allocation3], 20
    %2651 = vst [vmem:[%s2650] sm:$0xf] %v2649
    %s2652 = smul.u32 6, 4
    %s2653 = smul.addr %s2652, 8
    %s2654 = scalar_lea.vmem [#allocation2], %s2653
    %v2655 = vld [vmem:[%s2654] sm:$0xff]
    %v2656 = vld [vmem:[%s2654 + $0x8] sm:$0xff]
    %v2657 = vld [vmem:[%s2654 + $0x10] sm:$0xff]
    %v2658 = vld [vmem:[%s2654 + $0x18] sm:$0xff]
    %v2659 = vld [vmem:[%s2] sm:$0xff]
    %v2660 = vld [vmem:[%s2 + $0x8] sm:$0xff]
    %v2661 = vld [vmem:[%s2 + $0x10] sm:$0xff]
    %v2662 = vld [vmem:[%s2 + $0x18] sm:$0xff]
    %v2663 = vld [vmem:[%s2 + $0x20] sm:$0xff]
    %v2664 = vld [vmem:[%s2 + $0x28] sm:$0xff]
    %v2665 = vld [vmem:[%s2 + $0x30] sm:$0xff]
    %v2666 = vld [vmem:[%s2 + $0x38] sm:$0xff]
    %v2667 = vld [vmem:[%s2 + $0x40] sm:$0xff]
    %v2668 = vld [vmem:[%s2 + $0x48] sm:$0xff]
    %v2669 = vld [vmem:[%s2 + $0x50] sm:$0xff]
    %v2670 = vld [vmem:[%s2 + $0x58] sm:$0xff]
    %v2671 = vld [vmem:[%s2 + $0x60] sm:$0xff]
    %v2672 = vld [vmem:[%s2 + $0x68] sm:$0xff]
    %v2673 = vld [vmem:[%s2 + $0x70] sm:$0xff]
    %v2674 = vld [vmem:[%s2 + $0x78] sm:$0xff]
    %v2675 = vld [vmem:[%s2 + $0x80] sm:$0xff]
    %v2676 = vld [vmem:[%s2 + $0x88] sm:$0xff]
    %v2677 = vld [vmem:[%s2 + $0x90] sm:$0xff]
    %v2678 = vld [vmem:[%s2 + $0x98] sm:$0xff]
    %v2679 = vld [vmem:[%s2 + $0xa0] sm:$0xff]
    %v2680 = vld [vmem:[%s2 + $0xa8] sm:$0xff]
    %v2681 = vld [vmem:[%s2 + $0xb0] sm:$0xff]
    %v2682 = vld [vmem:[%s2 + $0xb8] sm:$0xff]
    %v2683 = vld [vmem:[%s2 + $0xc0] sm:$0xff]
    %v2684 = vld [vmem:[%s2 + $0xc8] sm:$0xff]
    %v2685 = vld [vmem:[%s2 + $0xd0] sm:$0xff]
    %v2686 = vld [vmem:[%s2 + $0xd8] sm:$0xff]
    %v2687 = vld [vmem:[%s2 + $0xe0] sm:$0xff]
    %v2688 = vld [vmem:[%s2 + $0xe8] sm:$0xff]
    %v2689 = vld [vmem:[%s2 + $0xf0] sm:$0xff]
    %v2690 = vld [vmem:[%s2 + $0xf8] sm:$0xff]
    %v2723 = vunpack.c.l.b16 %v2659
    %v2724 = vunpack.c.h.b16 %v2659
    %v2725 = vunpack.c.l.b16 %v2660
    %v2726 = vunpack.c.h.b16 %v2660
    %v2727 = vunpack.c.l.b16 %v2661
    %v2728 = vunpack.c.h.b16 %v2661
    %v2729 = vunpack.c.l.b16 %v2662
    %v2730 = vunpack.c.h.b16 %v2662
    %v2731 = vunpack.c.l.b16 %v2663
    %v2732 = vunpack.c.h.b16 %v2663
    %v2733 = vunpack.c.l.b16 %v2664
    %v2734 = vunpack.c.h.b16 %v2664
    %v2735 = vunpack.c.l.b16 %v2665
    %v2736 = vunpack.c.h.b16 %v2665
    %v2737 = vunpack.c.l.b16 %v2666
    %v2738 = vunpack.c.h.b16 %v2666
    %v2739 = vunpack.c.l.b16 %v2667
    %v2740 = vunpack.c.h.b16 %v2667
    %v2741 = vunpack.c.l.b16 %v2668
    %v2742 = vunpack.c.h.b16 %v2668
    %v2743 = vunpack.c.l.b16 %v2669
    %v2744 = vunpack.c.h.b16 %v2669
    %v2745 = vunpack.c.l.b16 %v2670
    %v2746 = vunpack.c.h.b16 %v2670
    %v2747 = vunpack.c.l.b16 %v2671
    %v2748 = vunpack.c.h.b16 %v2671
    %v2749 = vunpack.c.l.b16 %v2672
    %v2750 = vunpack.c.h.b16 %v2672
    %v2751 = vunpack.c.l.b16 %v2673
    %v2752 = vunpack.c.h.b16 %v2673
    %v2753 = vunpack.c.l.b16 %v2674
    %v2754 = vunpack.c.h.b16 %v2674
    %v2755 = vunpack.c.l.b16 %v2675
    %v2756 = vunpack.c.h.b16 %v2675
    %v2757 = vunpack.c.l.b16 %v2676
    %v2758 = vunpack.c.h.b16 %v2676
    %v2759 = vunpack.c.l.b16 %v2677
    %v2760 = vunpack.c.h.b16 %v2677
    %v2761 = vunpack.c.l.b16 %v2678
    %v2762 = vunpack.c.h.b16 %v2678
    %v2763 = vunpack.c.l.b16 %v2679
    %v2764 = vunpack.c.h.b16 %v2679
    %v2765 = vunpack.c.l.b16 %v2680
    %v2766 = vunpack.c.h.b16 %v2680
    %v2767 = vunpack.c.l.b16 %v2681
    %v2768 = vunpack.c.h.b16 %v2681
    %v2769 = vunpack.c.l.b16 %v2682
    %v2770 = vunpack.c.h.b16 %v2682
    %v2771 = vunpack.c.l.b16 %v2683
    %v2772 = vunpack.c.h.b16 %v2683
    %v2773 = vunpack.c.l.b16 %v2684
    %v2774 = vunpack.c.h.b16 %v2684
    %v2775 = vunpack.c.l.b16 %v2685
    %v2776 = vunpack.c.h.b16 %v2685
    %v2777 = vunpack.c.l.b16 %v2686
    %v2778 = vunpack.c.h.b16 %v2686
    %v2779 = vunpack.c.l.b16 %v2687
    %v2780 = vunpack.c.h.b16 %v2687
    %v2781 = vunpack.c.l.b16 %v2688
    %v2782 = vunpack.c.h.b16 %v2688
    %v2783 = vunpack.c.l.b16 %v2689
    %v2784 = vunpack.c.h.b16 %v2689
    %v2785 = vunpack.c.l.b16 %v2690
    %v2786 = vunpack.c.h.b16 %v2690
    %v2787 = vpack.c.b16 %v2727, %v2723
    %v2788 = vpack.c.b16 %v2728, %v2724
    %v2789 = vpack.c.b16 %v2729, %v2725
    %v2790 = vpack.c.b16 %v2730, %v2726
    %v2791 = vpack.c.b16 %v2735, %v2731
    %v2792 = vpack.c.b16 %v2736, %v2732
    %v2793 = vpack.c.b16 %v2737, %v2733
    %v2794 = vpack.c.b16 %v2738, %v2734
    %v2795 = vpack.c.b16 %v2743, %v2739
    %v2796 = vpack.c.b16 %v2744, %v2740
    %v2797 = vpack.c.b16 %v2745, %v2741
    %v2798 = vpack.c.b16 %v2746, %v2742
    %v2799 = vpack.c.b16 %v2751, %v2747
    %v2800 = vpack.c.b16 %v2752, %v2748
    %v2801 = vpack.c.b16 %v2753, %v2749
    %v2802 = vpack.c.b16 %v2754, %v2750
    %v2803 = vpack.c.b16 %v2759, %v2755
    %v2804 = vpack.c.b16 %v2760, %v2756
    %v2805 = vpack.c.b16 %v2761, %v2757
    %v2806 = vpack.c.b16 %v2762, %v2758
    %v2807 = vpack.c.b16 %v2767, %v2763
    %v2808 = vpack.c.b16 %v2768, %v2764
    %v2809 = vpack.c.b16 %v2769, %v2765
    %v2810 = vpack.c.b16 %v2770, %v2766
    %v2811 = vpack.c.b16 %v2775, %v2771
    %v2812 = vpack.c.b16 %v2776, %v2772
    %v2813 = vpack.c.b16 %v2777, %v2773
    %v2814 = vpack.c.b16 %v2778, %v2774
    %v2815 = vpack.c.b16 %v2783, %v2779
    %v2816 = vpack.c.b16 %v2784, %v2780
    %v2817 = vpack.c.b16 %v2785, %v2781
    %v2818 = vpack.c.b16 %v2786, %v2782
    %2851 = vmatprep.subr.bf16.mxu0 %v2816
    %2852 = vmatpush1.bf16.msra.mxu0 %v2815
    %2853 = vmatprep.subr.bf16.mxu0 %v2812
    %2854 = vmatpush1.bf16.msra.mxu0 %v2811
    %2855 = vmatprep.subr.bf16.mxu0 %v2808
    %2856 = vmatpush1.bf16.msra.mxu0 %v2807
    %2857 = vmatprep.subr.bf16.mxu0 %v2804
    %2858 = vmatpush1.bf16.msra.mxu0 %v2803
    %2859 = vmatprep.subr.bf16.mxu0 %v2800
    %2860 = vmatpush1.bf16.msra.mxu0 %v2799
    %2861 = vmatprep.subr.bf16.mxu0 %v2796
    %2862 = vmatpush1.bf16.msra.mxu0 %v2795
    %2863 = vmatprep.subr.bf16.mxu0 %v2792
    %2864 = vmatpush1.bf16.msra.mxu0 %v2791
    %2865 = vmatprep.subr.bf16.mxu0 %v2788
    %2866 = vmatpush1.bf16.msra.mxu0 %v2787
    %2867 = vmatprep.subr.bf16.mxu0 0
    %2868 = vmatpush2.bf16.msra.mxu0 0
    %2869 = vmatprep.subr.bf16.mxu0 0
    %2870 = vmatpush2.bf16.msra.mxu0 0
    %2871 = vmatprep.subr.bf16.mxu0 0
    %2872 = vmatpush2.bf16.msra.mxu0 0
    %2873 = vmatprep.subr.bf16.mxu0 0
    %2874 = vmatpush2.bf16.msra.mxu0 0
    %2875 = vmatprep.subr.bf16.mxu0 0
    %2876 = vmatpush2.bf16.msra.mxu0 0
    %2877 = vmatprep.subr.bf16.mxu0 0
    %2878 = vmatpush2.bf16.msra.mxu0 0
    %2879 = vmatprep.subr.bf16.mxu0 0
    %2880 = vmatpush2.bf16.msra.mxu0 0
    %2881 = vmatprep.subr.bf16.mxu0 0
    %2882 = vmatpush2.bf16.msra.mxu0 0
    %2883 = vmatprep.mubr.bf16.mxu0 0
    %2884 = vmatmul.mubr.bf16.gmra.mxu0 %v2649
    %v2885 = vpop.f32.mrf.mxu0
    %v2886 = vadd.f32 0.0, %v2885
    %v2887 = vpop.f32.mrf.mxu0
    %v2888 = vadd.f32 0.0, %v2887
    %v2889 = vpop.f32.mrf.mxu0
    %v2890 = vpop.f32.mrf.mxu0
    %2891 = vdwg.mxu0
    %2892 = vmatprep.subr.bf16.mxu0 %v2818
    %2893 = vmatpush1.bf16.msra.mxu0 %v2817
    %2894 = vmatprep.subr.bf16.mxu0 %v2814
    %2895 = vmatpush1.bf16.msra.mxu0 %v2813
    %2896 = vmatprep.subr.bf16.mxu0 %v2810
    %2897 = vmatpush1.bf16.msra.mxu0 %v2809
    %2898 = vmatprep.subr.bf16.mxu0 %v2806
    %2899 = vmatpush1.bf16.msra.mxu0 %v2805
    %2900 = vmatprep.subr.bf16.mxu0 %v2802
    %2901 = vmatpush1.bf16.msra.mxu0 %v2801
    %2902 = vmatprep.subr.bf16.mxu0 %v2798
    %2903 = vmatpush1.bf16.msra.mxu0 %v2797
    %2904 = vmatprep.subr.bf16.mxu0 %v2794
    %2905 = vmatpush1.bf16.msra.mxu0 %v2793
    %2906 = vmatprep.subr.bf16.mxu0 %v2790
    %2907 = vmatpush1.bf16.msra.mxu0 %v2789
    %2908 = vmatprep.subr.bf16.mxu0 0
    %2909 = vmatpush2.bf16.msra.mxu0 0
    %2910 = vmatprep.subr.bf16.mxu0 0
    %2911 = vmatpush2.bf16.msra.mxu0 0
    %2912 = vmatprep.subr.bf16.mxu0 0
    %2913 = vmatpush2.bf16.msra.mxu0 0
    %2914 = vmatprep.subr.bf16.mxu0 0
    %2915 = vmatpush2.bf16.msra.mxu0 0
    %2916 = vmatprep.subr.bf16.mxu0 0
    %2917 = vmatpush2.bf16.msra.mxu0 0
    %2918 = vmatprep.subr.bf16.mxu0 0
    %2919 = vmatpush2.bf16.msra.mxu0 0
    %2920 = vmatprep.subr.bf16.mxu0 0
    %2921 = vmatpush2.bf16.msra.mxu0 0
    %2922 = vmatprep.subr.bf16.mxu0 0
    %2923 = vmatpush2.bf16.msra.mxu0 0
    %2924 = vmatprep.mubr.bf16.mxu0 0
    %2925 = vmatmul.mubr.bf16.gmra.mxu0 %v2649
    %v2926 = vpop.f32.mrf.mxu0
    %v2927 = vadd.f32 0.0, %v2926
    %v2928 = vpop.f32.mrf.mxu0
    %v2929 = vadd.f32 0.0, %v2928
    %v2930 = vpop.f32.mrf.mxu0
    %v2931 = vpop.f32.mrf.mxu0
    %2932 = vdwg.mxu0
    %v2933 = vadd.f32 %v2655, %v2886
    %v2934 = vadd.f32 %v2656, %v2888
    %v2935 = vadd.f32 %v2657, %v2927
    %v2936 = vadd.f32 %v2658, %v2929
    %v2937 = vxor.u32 %v2933, 2147483648
    %v2938 = vmul.f32 %v2937, 1.442695
    %v2939 = vpow.pop %v2938
    %v2940 = vadd.f32 %v2939, 1.0
    %v2941 = vrcp.pop %v2940
    %v2942 = vmul.f32 1.0, %v2941
    %v2943 = vxor.u32 %v2934, 2147483648
    %v2944 = vmul.f32 %v2943, 1.442695
    %v2945 = vpow.pop %v2944
    %v2946 = vadd.f32 %v2945, 1.0
    %v2947 = vrcp.pop %v2946
    %v2948 = vmul.f32 1.0, %v2947
    %v2949 = vtanh.pop %v2935
    %v2950 = vxor.u32 %v2936, 2147483648
    %v2951 = vmul.f32 %v2950, 1.442695
    %v2952 = vpow.pop %v2951
    %v2953 = vadd.f32 %v2952, 1.0
    %v2954 = vrcp.pop %v2953
    %v2955 = vmul.f32 1.0, %v2954
    %v2956 = vmul.f32 %v2948, %v2646
    %v2957 = vmul.f32 %v2942, %v2949
    %v2958 = vadd.f32 %v2956, %v2957
    %v2959 = vtanh.pop %v2958
    %v2960 = vmul.f32 %v2955, %v2959
    %v2961 = vpack.c.bf16 %v2960, %v2960
    %s2962 = scalar_lea.vmem [#allocation3], 24
    %2963 = vst [vmem:[%s2962] sm:$0xf] %v2961
    %s2964 = smul.u32 7, 4
    %s2965 = smul.addr %s2964, 8
    %s2966 = scalar_lea.vmem [#allocation2], %s2965
    %v2967 = vld [vmem:[%s2966] sm:$0xff]
    %v2968 = vld [vmem:[%s2966 + $0x8] sm:$0xff]
    %v2969 = vld [vmem:[%s2966 + $0x10] sm:$0xff]
    %v2970 = vld [vmem:[%s2966 + $0x18] sm:$0xff]
    %v2971 = vld [vmem:[%s2] sm:$0xff]
    %v2972 = vld [vmem:[%s2 + $0x8] sm:$0xff]
    %v2973 = vld [vmem:[%s2 + $0x10] sm:$0xff]
    %v2974 = vld [vmem:[%s2 + $0x18] sm:$0xff]
    %v2975 = vld [vmem:[%s2 + $0x20] sm:$0xff]
    %v2976 = vld [vmem:[%s2 + $0x28] sm:$0xff]
    %v2977 = vld [vmem:[%s2 + $0x30] sm:$0xff]
    %v2978 = vld [vmem:[%s2 + $0x38] sm:$0xff]
    %v2979 = vld [vmem:[%s2 + $0x40] sm:$0xff]
    %v2980 = vld [vmem:[%s2 + $0x48] sm:$0xff]
    %v2981 = vld [vmem:[%s2 + $0x50] sm:$0xff]
    %v2982 = vld [vmem:[%s2 + $0x58] sm:$0xff]
    %v2983 = vld [vmem:[%s2 + $0x60] sm:$0xff]
    %v2984 = vld [vmem:[%s2 + $0x68] sm:$0xff]
    %v2985 = vld [vmem:[%s2 + $0x70] sm:$0xff]
    %v2986 = vld [vmem:[%s2 + $0x78] sm:$0xff]
    %v2987 = vld [vmem:[%s2 + $0x80] sm:$0xff]
    %v2988 = vld [vmem:[%s2 + $0x88] sm:$0xff]
    %v2989 = vld [vmem:[%s2 + $0x90] sm:$0xff]
    %v2990 = vld [vmem:[%s2 + $0x98] sm:$0xff]
    %v2991 = vld [vmem:[%s2 + $0xa0] sm:$0xff]
    %v2992 = vld [vmem:[%s2 + $0xa8] sm:$0xff]
    %v2993 = vld [vmem:[%s2 + $0xb0] sm:$0xff]
    %v2994 = vld [vmem:[%s2 + $0xb8] sm:$0xff]
    %v2995 = vld [vmem:[%s2 + $0xc0] sm:$0xff]
    %v2996 = vld [vmem:[%s2 + $0xc8] sm:$0xff]
    %v2997 = vld [vmem:[%s2 + $0xd0] sm:$0xff]
    %v2998 = vld [vmem:[%s2 + $0xd8] sm:$0xff]
    %v2999 = vld [vmem:[%s2 + $0xe0] sm:$0xff]
    %v3000 = vld [vmem:[%s2 + $0xe8] sm:$0xff]
    %v3001 = vld [vmem:[%s2 + $0xf0] sm:$0xff]
    %v3002 = vld [vmem:[%s2 + $0xf8] sm:$0xff]
    %v3035 = vunpack.c.l.b16 %v2971
    %v3036 = vunpack.c.h.b16 %v2971
    %v3037 = vunpack.c.l.b16 %v2972
    %v3038 = vunpack.c.h.b16 %v2972
    %v3039 = vunpack.c.l.b16 %v2973
    %v3040 = vunpack.c.h.b16 %v2973
    %v3041 = vunpack.c.l.b16 %v2974
    %v3042 = vunpack.c.h.b16 %v2974
    %v3043 = vunpack.c.l.b16 %v2975
    %v3044 = vunpack.c.h.b16 %v2975
    %v3045 = vunpack.c.l.b16 %v2976
    %v3046 = vunpack.c.h.b16 %v2976
    %v3047 = vunpack.c.l.b16 %v2977
    %v3048 = vunpack.c.h.b16 %v2977
    %v3049 = vunpack.c.l.b16 %v2978
    %v3050 = vunpack.c.h.b16 %v2978
    %v3051 = vunpack.c.l.b16 %v2979
    %v3052 = vunpack.c.h.b16 %v2979
    %v3053 = vunpack.c.l.b16 %v2980
    %v3054 = vunpack.c.h.b16 %v2980
    %v3055 = vunpack.c.l.b16 %v2981
    %v3056 = vunpack.c.h.b16 %v2981
    %v3057 = vunpack.c.l.b16 %v2982
    %v3058 = vunpack.c.h.b16 %v2982
    %v3059 = vunpack.c.l.b16 %v2983
    %v3060 = vunpack.c.h.b16 %v2983
    %v3061 = vunpack.c.l.b16 %v2984
    %v3062 = vunpack.c.h.b16 %v2984
    %v3063 = vunpack.c.l.b16 %v2985
    %v3064 = vunpack.c.h.b16 %v2985
    %v3065 = vunpack.c.l.b16 %v2986
    %v3066 = vunpack.c.h.b16 %v2986
    %v3067 = vunpack.c.l.b16 %v2987
    %v3068 = vunpack.c.h.b16 %v2987
    %v3069 = vunpack.c.l.b16 %v2988
    %v3070 = vunpack.c.h.b16 %v2988
    %v3071 = vunpack.c.l.b16 %v2989
    %v3072 = vunpack.c.h.b16 %v2989
    %v3073 = vunpack.c.l.b16 %v2990
    %v3074 = vunpack.c.h.b16 %v2990
    %v3075 = vunpack.c.l.b16 %v2991
    %v3076 = vunpack.c.h.b16 %v2991
    %v3077 = vunpack.c.l.b16 %v2992
    %v3078 = vunpack.c.h.b16 %v2992
    %v3079 = vunpack.c.l.b16 %v2993
    %v3080 = vunpack.c.h.b16 %v2993
    %v3081 = vunpack.c.l.b16 %v2994
    %v3082 = vunpack.c.h.b16 %v2994
    %v3083 = vunpack.c.l.b16 %v2995
    %v3084 = vunpack.c.h.b16 %v2995
    %v3085 = vunpack.c.l.b16 %v2996
    %v3086 = vunpack.c.h.b16 %v2996
    %v3087 = vunpack.c.l.b16 %v2997
    %v3088 = vunpack.c.h.b16 %v2997
    %v3089 = vunpack.c.l.b16 %v2998
    %v3090 = vunpack.c.h.b16 %v2998
    %v3091 = vunpack.c.l.b16 %v2999
    %v3092 = vunpack.c.h.b16 %v2999
    %v3093 = vunpack.c.l.b16 %v3000
    %v3094 = vunpack.c.h.b16 %v3000
    %v3095 = vunpack.c.l.b16 %v3001
    %v3096 = vunpack.c.h.b16 %v3001
    %v3097 = vunpack.c.l.b16 %v3002
    %v3098 = vunpack.c.h.b16 %v3002
    %v3099 = vpack.c.b16 %v3039, %v3035
    %v3100 = vpack.c.b16 %v3040, %v3036
    %v3101 = vpack.c.b16 %v3041, %v3037
    %v3102 = vpack.c.b16 %v3042, %v3038
    %v3103 = vpack.c.b16 %v3047, %v3043
    %v3104 = vpack.c.b16 %v3048, %v3044
    %v3105 = vpack.c.b16 %v3049, %v3045
    %v3106 = vpack.c.b16 %v3050, %v3046
    %v3107 = vpack.c.b16 %v3055, %v3051
    %v3108 = vpack.c.b16 %v3056, %v3052
    %v3109 = vpack.c.b16 %v3057, %v3053
    %v3110 = vpack.c.b16 %v3058, %v3054
    %v3111 = vpack.c.b16 %v3063, %v3059
    %v3112 = vpack.c.b16 %v3064, %v3060
    %v3113 = vpack.c.b16 %v3065, %v3061
    %v3114 = vpack.c.b16 %v3066, %v3062
    %v3115 = vpack.c.b16 %v3071, %v3067
    %v3116 = vpack.c.b16 %v3072, %v3068
    %v3117 = vpack.c.b16 %v3073, %v3069
    %v3118 = vpack.c.b16 %v3074, %v3070
    %v3119 = vpack.c.b16 %v3079, %v3075
    %v3120 = vpack.c.b16 %v3080, %v3076
    %v3121 = vpack.c.b16 %v3081, %v3077
    %v3122 = vpack.c.b16 %v3082, %v3078
    %v3123 = vpack.c.b16 %v3087, %v3083
    %v3124 = vpack.c.b16 %v3088, %v3084
    %v3125 = vpack.c.b16 %v3089, %v3085
    %v3126 = vpack.c.b16 %v3090, %v3086
    %v3127 = vpack.c.b16 %v3095, %v3091
    %v3128 = vpack.c.b16 %v3096, %v3092
    %v3129 = vpack.c.b16 %v3097, %v3093
    %v3130 = vpack.c.b16 %v3098, %v3094
    %3163 = vmatprep.subr.bf16.mxu0 %v3128
    %3164 = vmatpush1.bf16.msra.mxu0 %v3127
    %3165 = vmatprep.subr.bf16.mxu0 %v3124
    %3166 = vmatpush1.bf16.msra.mxu0 %v3123
    %3167 = vmatprep.subr.bf16.mxu0 %v3120
    %3168 = vmatpush1.bf16.msra.mxu0 %v3119
    %3169 = vmatprep.subr.bf16.mxu0 %v3116
    %3170 = vmatpush1.bf16.msra.mxu0 %v3115
    %3171 = vmatprep.subr.bf16.mxu0 %v3112
    %3172 = vmatpush1.bf16.msra.mxu0 %v3111
    %3173 = vmatprep.subr.bf16.mxu0 %v3108
    %3174 = vmatpush1.bf16.msra.mxu0 %v3107
    %3175 = vmatprep.subr.bf16.mxu0 %v3104
    %3176 = vmatpush1.bf16.msra.mxu0 %v3103
    %3177 = vmatprep.subr.bf16.mxu0 %v3100
    %3178 = vmatpush1.bf16.msra.mxu0 %v3099
    %3179 = vmatprep.subr.bf16.mxu0 0
    %3180 = vmatpush2.bf16.msra.mxu0 0
    %3181 = vmatprep.subr.bf16.mxu0 0
    %3182 = vmatpush2.bf16.msra.mxu0 0
    %3183 = vmatprep.subr.bf16.mxu0 0
    %3184 = vmatpush2.bf16.msra.mxu0 0
    %3185 = vmatprep.subr.bf16.mxu0 0
    %3186 = vmatpush2.bf16.msra.mxu0 0
    %3187 = vmatprep.subr.bf16.mxu0 0
    %3188 = vmatpush2.bf16.msra.mxu0 0
    %3189 = vmatprep.subr.bf16.mxu0 0
    %3190 = vmatpush2.bf16.msra.mxu0 0
    %3191 = vmatprep.subr.bf16.mxu0 0
    %3192 = vmatpush2.bf16.msra.mxu0 0
    %3193 = vmatprep.subr.bf16.mxu0 0
    %3194 = vmatpush2.bf16.msra.mxu0 0
    %3195 = vmatprep.mubr.bf16.mxu0 0
    %3196 = vmatmul.mubr.bf16.gmra.mxu0 %v2961
    %v3197 = vpop.f32.mrf.mxu0
    %v3198 = vadd.f32 0.0, %v3197
    %v3199 = vpop.f32.mrf.mxu0
    %v3200 = vadd.f32 0.0, %v3199
    %v3201 = vpop.f32.mrf.mxu0
    %v3202 = vpop.f32.mrf.mxu0
    %3203 = vdwg.mxu0
    %3204 = vmatprep.subr.bf16.mxu0 %v3130
    %3205 = vmatpush1.bf16.msra.mxu0 %v3129
    %3206 = vmatprep.subr.bf16.mxu0 %v3126
    %3207 = vmatpush1.bf16.msra.mxu0 %v3125
    %3208 = vmatprep.subr.bf16.mxu0 %v3122
    %3209 = vmatpush1.bf16.msra.mxu0 %v3121
    %3210 = vmatprep.subr.bf16.mxu0 %v3118
    %3211 = vmatpush1.bf16.msra.mxu0 %v3117
    %3212 = vmatprep.subr.bf16.mxu0 %v3114
    %3213 = vmatpush1.bf16.msra.mxu0 %v3113
    %3214 = vmatprep.subr.bf16.mxu0 %v3110
    %3215 = vmatpush1.bf16.msra.mxu0 %v3109
    %3216 = vmatprep.subr.bf16.mxu0 %v3106
    %3217 = vmatpush1.bf16.msra.mxu0 %v3105
    %3218 = vmatprep.subr.bf16.mxu0 %v3102
    %3219 = vmatpush1.bf16.msra.mxu0 %v3101
    %3220 = vmatprep.subr.bf16.mxu0 0
    %3221 = vmatpush2.bf16.msra.mxu0 0
    %3222 = vmatprep.subr.bf16.mxu0 0
    %3223 = vmatpush2.bf16.msra.mxu0 0
    %3224 = vmatprep.subr.bf16.mxu0 0
    %3225 = vmatpush2.bf16.msra.mxu0 0
    %3226 = vmatprep.subr.bf16.mxu0 0
    %3227 = vmatpush2.bf16.msra.mxu0 0
    %3228 = vmatprep.subr.bf16.mxu0 0
    %3229 = vmatpush2.bf16.msra.mxu0 0
    %3230 = vmatprep.subr.bf16.mxu0 0
    %3231 = vmatpush2.bf16.msra.mxu0 0
    %3232 = vmatprep.subr.bf16.mxu0 0
    %3233 = vmatpush2.bf16.msra.mxu0 0
    %3234 = vmatprep.subr.bf16.mxu0 0
    %3235 = vmatpush2.bf16.msra.mxu0 0
    %3236 = vmatprep.mubr.bf16.mxu0 0
    %3237 = vmatmul.mubr.bf16.gmra.mxu0 %v2961
    %v3238 = vpop.f32.mrf.mxu0
    %v3239 = vadd.f32 0.0, %v3238
    %v3240 = vpop.f32.mrf.mxu0
    %v3241 = vadd.f32 0.0, %v3240
    %v3242 = vpop.f32.mrf.mxu0
    %v3243 = vpop.f32.mrf.mxu0
    %3244 = vdwg.mxu0
    %v3245 = vadd.f32 %v2967, %v3198
    %v3246 = vadd.f32 %v2968, %v3200
    %v3247 = vadd.f32 %v2969, %v3239
    %v3248 = vadd.f32 %v2970, %v3241
    %v3249 = vxor.u32 %v3245, 2147483648
    %v3250 = vmul.f32 %v3249, 1.442695
    %v3251 = vpow.pop %v3250
    %v3252 = vadd.f32 %v3251, 1.0
    %v3253 = vrcp.pop %v3252
    %v3254 = vmul.f32 1.0, %v3253
    %v3255 = vxor.u32 %v3246, 2147483648
    %v3256 = vmul.f32 %v3255, 1.442695
    %v3257 = vpow.pop %v3256
    %v3258 = vadd.f32 %v3257, 1.0
    %v3259 = vrcp.pop %v3258
    %v3260 = vmul.f32 1.0, %v3259
    %v3261 = vtanh.pop %v3247
    %v3262 = vxor.u32 %v3248, 2147483648
    %v3263 = vmul.f32 %v3262, 1.442695
    %v3264 = vpow.pop %v3263
    %v3265 = vadd.f32 %v3264, 1.0
    %v3266 = vrcp.pop %v3265
    %v3267 = vmul.f32 1.0, %v3266
    %v3268 = vmul.f32 %v3260, %v2958
    %v3269 = vmul.f32 %v3254, %v3261
    %v3270 = vadd.f32 %v3268, %v3269
    %v3271 = vtanh.pop %v3270
    %v3272 = vmul.f32 %v3267, %v3271
    %v3273 = vpack.c.bf16 %v3272, %v3272
    %s3274 = scalar_lea.vmem [#allocation3], 28
    %3275 = vst [vmem:[%s3274] sm:$0xf] %v3273
    %s3276 = smul.u32 8, 4
    %s3277 = smul.addr %s3276, 8
    %s3278 = scalar_lea.vmem [#allocation2], %s3277
    %v3279 = vld [vmem:[%s3278] sm:$0xff]
    %v3280 = vld [vmem:[%s3278 + $0x8] sm:$0xff]
    %v3281 = vld [vmem:[%s3278 + $0x10] sm:$0xff]
    %v3282 = vld [vmem:[%s3278 + $0x18] sm:$0xff]
    %v3283 = vld [vmem:[%s2] sm:$0xff]
    %v3284 = vld [vmem:[%s2 + $0x8] sm:$0xff]
    %v3285 = vld [vmem:[%s2 + $0x10] sm:$0xff]
    %v3286 = vld [vmem:[%s2 + $0x18] sm:$0xff]
    %v3287 = vld [vmem:[%s2 + $0x20] sm:$0xff]
    %v3288 = vld [vmem:[%s2 + $0x28] sm:$0xff]
    %v3289 = vld [vmem:[%s2 + $0x30] sm:$0xff]
    %v3290 = vld [vmem:[%s2 + $0x38] sm:$0xff]
    %v3291 = vld [vmem:[%s2 + $0x40] sm:$0xff]
    %v3292 = vld [vmem:[%s2 + $0x48] sm:$0xff]
    %v3293 = vld [vmem:[%s2 + $0x50] sm:$0xff]
    %v3294 = vld [vmem:[%s2 + $0x58] sm:$0xff]
    %v3295 = vld [vmem:[%s2 + $0x60] sm:$0xff]
    %v3296 = vld [vmem:[%s2 + $0x68] sm:$0xff]
    %v3297 = vld [vmem:[%s2 + $0x70] sm:$0xff]
    %v3298 = vld [vmem:[%s2 + $0x78] sm:$0xff]
    %v3299 = vld [vmem:[%s2 + $0x80] sm:$0xff]
    %v3300 = vld [vmem:[%s2 + $0x88] sm:$0xff]
    %v3301 = vld [vmem:[%s2 + $0x90] sm:$0xff]
    %v3302 = vld [vmem:[%s2 + $0x98] sm:$0xff]
    %v3303 = vld [vmem:[%s2 + $0xa0] sm:$0xff]
    %v3304 = vld [vmem:[%s2 + $0xa8] sm:$0xff]
    %v3305 = vld [vmem:[%s2 + $0xb0] sm:$0xff]
    %v3306 = vld [vmem:[%s2 + $0xb8] sm:$0xff]
    %v3307 = vld [vmem:[%s2 + $0xc0] sm:$0xff]
    %v3308 = vld [vmem:[%s2 + $0xc8] sm:$0xff]
    %v3309 = vld [vmem:[%s2 + $0xd0] sm:$0xff]
    %v3310 = vld [vmem:[%s2 + $0xd8] sm:$0xff]
    %v3311 = vld [vmem:[%s2 + $0xe0] sm:$0xff]
    %v3312 = vld [vmem:[%s2 + $0xe8] sm:$0xff]
    %v3313 = vld [vmem:[%s2 + $0xf0] sm:$0xff]
    %v3314 = vld [vmem:[%s2 + $0xf8] sm:$0xff]
    %v3347 = vunpack.c.l.b16 %v3283
    %v3348 = vunpack.c.h.b16 %v3283
    %v3349 = vunpack.c.l.b16 %v3284
    %v3350 = vunpack.c.h.b16 %v3284
    %v3351 = vunpack.c.l.b16 %v3285
    %v3352 = vunpack.c.h.b16 %v3285
    %v3353 = vunpack.c.l.b16 %v3286
    %v3354 = vunpack.c.h.b16 %v3286
    %v3355 = vunpack.c.l.b16 %v3287
    %v3356 = vunpack.c.h.b16 %v3287
    %v3357 = vunpack.c.l.b16 %v3288
    %v3358 = vunpack.c.h.b16 %v3288
    %v3359 = vunpack.c.l.b16 %v3289
    %v3360 = vunpack.c.h.b16 %v3289
    %v3361 = vunpack.c.l.b16 %v3290
    %v3362 = vunpack.c.h.b16 %v3290
    %v3363 = vunpack.c.l.b16 %v3291
    %v3364 = vunpack.c.h.b16 %v3291
    %v3365 = vunpack.c.l.b16 %v3292
    %v3366 = vunpack.c.h.b16 %v3292
    %v3367 = vunpack.c.l.b16 %v3293
    %v3368 = vunpack.c.h.b16 %v3293
    %v3369 = vunpack.c.l.b16 %v3294
    %v3370 = vunpack.c.h.b16 %v3294
    %v3371 = vunpack.c.l.b16 %v3295
    %v3372 = vunpack.c.h.b16 %v3295
    %v3373 = vunpack.c.l.b16 %v3296
    %v3374 = vunpack.c.h.b16 %v3296
    %v3375 = vunpack.c.l.b16 %v3297
    %v3376 = vunpack.c.h.b16 %v3297
    %v3377 = vunpack.c.l.b16 %v3298
    %v3378 = vunpack.c.h.b16 %v3298
    %v3379 = vunpack.c.l.b16 %v3299
    %v3380 = vunpack.c.h.b16 %v3299
    %v3381 = vunpack.c.l.b16 %v3300
    %v3382 = vunpack.c.h.b16 %v3300
    %v3383 = vunpack.c.l.b16 %v3301
    %v3384 = vunpack.c.h.b16 %v3301
    %v3385 = vunpack.c.l.b16 %v3302
    %v3386 = vunpack.c.h.b16 %v3302
    %v3387 = vunpack.c.l.b16 %v3303
    %v3388 = vunpack.c.h.b16 %v3303
    %v3389 = vunpack.c.l.b16 %v3304
    %v3390 = vunpack.c.h.b16 %v3304
    %v3391 = vunpack.c.l.b16 %v3305
    %v3392 = vunpack.c.h.b16 %v3305
    %v3393 = vunpack.c.l.b16 %v3306
    %v3394 = vunpack.c.h.b16 %v3306
    %v3395 = vunpack.c.l.b16 %v3307
    %v3396 = vunpack.c.h.b16 %v3307
    %v3397 = vunpack.c.l.b16 %v3308
    %v3398 = vunpack.c.h.b16 %v3308
    %v3399 = vunpack.c.l.b16 %v3309
    %v3400 = vunpack.c.h.b16 %v3309
    %v3401 = vunpack.c.l.b16 %v3310
    %v3402 = vunpack.c.h.b16 %v3310
    %v3403 = vunpack.c.l.b16 %v3311
    %v3404 = vunpack.c.h.b16 %v3311
    %v3405 = vunpack.c.l.b16 %v3312
    %v3406 = vunpack.c.h.b16 %v3312
    %v3407 = vunpack.c.l.b16 %v3313
    %v3408 = vunpack.c.h.b16 %v3313
    %v3409 = vunpack.c.l.b16 %v3314
    %v3410 = vunpack.c.h.b16 %v3314
    %v3411 = vpack.c.b16 %v3351, %v3347
    %v3412 = vpack.c.b16 %v3352, %v3348
    %v3413 = vpack.c.b16 %v3353, %v3349
    %v3414 = vpack.c.b16 %v3354, %v3350
    %v3415 = vpack.c.b16 %v3359, %v3355
    %v3416 = vpack.c.b16 %v3360, %v3356
    %v3417 = vpack.c.b16 %v3361, %v3357
    %v3418 = vpack.c.b16 %v3362, %v3358
    %v3419 = vpack.c.b16 %v3367, %v3363
    %v3420 = vpack.c.b16 %v3368, %v3364
    %v3421 = vpack.c.b16 %v3369, %v3365
    %v3422 = vpack.c.b16 %v3370, %v3366
    %v3423 = vpack.c.b16 %v3375, %v3371
    %v3424 = vpack.c.b16 %v3376, %v3372
    %v3425 = vpack.c.b16 %v3377, %v3373
    %v3426 = vpack.c.b16 %v3378, %v3374
    %v3427 = vpack.c.b16 %v3383, %v3379
    %v3428 = vpack.c.b16 %v3384, %v3380
    %v3429 = vpack.c.b16 %v3385, %v3381
    %v3430 = vpack.c.b16 %v3386, %v3382
    %v3431 = vpack.c.b16 %v3391, %v3387
    %v3432 = vpack.c.b16 %v3392, %v3388
    %v3433 = vpack.c.b16 %v3393, %v3389
    %v3434 = vpack.c.b16 %v3394, %v3390
    %v3435 = vpack.c.b16 %v3399, %v3395
    %v3436 = vpack.c.b16 %v3400, %v3396
    %v3437 = vpack.c.b16 %v3401, %v3397
    %v3438 = vpack.c.b16 %v3402, %v3398
    %v3439 = vpack.c.b16 %v3407, %v3403
    %v3440 = vpack.c.b16 %v3408, %v3404
    %v3441 = vpack.c.b16 %v3409, %v3405
    %v3442 = vpack.c.b16 %v3410, %v3406
    %3475 = vmatprep.subr.bf16.mxu0 %v3440
    %3476 = vmatpush1.bf16.msra.mxu0 %v3439
    %3477 = vmatprep.subr.bf16.mxu0 %v3436
    %3478 = vmatpush1.bf16.msra.mxu0 %v3435
    %3479 = vmatprep.subr.bf16.mxu0 %v3432
    %3480 = vmatpush1.bf16.msra.mxu0 %v3431
    %3481 = vmatprep.subr.bf16.mxu0 %v3428
    %3482 = vmatpush1.bf16.msra.mxu0 %v3427
    %3483 = vmatprep.subr.bf16.mxu0 %v3424
    %3484 = vmatpush1.bf16.msra.mxu0 %v3423
    %3485 = vmatprep.subr.bf16.mxu0 %v3420
    %3486 = vmatpush1.bf16.msra.mxu0 %v3419
    %3487 = vmatprep.subr.bf16.mxu0 %v3416
    %3488 = vmatpush1.bf16.msra.mxu0 %v3415
    %3489 = vmatprep.subr.bf16.mxu0 %v3412
    %3490 = vmatpush1.bf16.msra.mxu0 %v3411
    %3491 = vmatprep.subr.bf16.mxu0 0
    %3492 = vmatpush2.bf16.msra.mxu0 0
    %3493 = vmatprep.subr.bf16.mxu0 0
    %3494 = vmatpush2.bf16.msra.mxu0 0
    %3495 = vmatprep.subr.bf16.mxu0 0
    %3496 = vmatpush2.bf16.msra.mxu0 0
    %3497 = vmatprep.subr.bf16.mxu0 0
    %3498 = vmatpush2.bf16.msra.mxu0 0
    %3499 = vmatprep.subr.bf16.mxu0 0
    %3500 = vmatpush2.bf16.msra.mxu0 0
    %3501 = vmatprep.subr.bf16.mxu0 0
    %3502 = vmatpush2.bf16.msra.mxu0 0
    %3503 = vmatprep.subr.bf16.mxu0 0
    %3504 = vmatpush2.bf16.msra.mxu0 0
    %3505 = vmatprep.subr.bf16.mxu0 0
    %3506 = vmatpush2.bf16.msra.mxu0 0
    %3507 = vmatprep.mubr.bf16.mxu0 0
    %3508 = vmatmul.mubr.bf16.gmra.mxu0 %v3273
    %v3509 = vpop.f32.mrf.mxu0
    %v3510 = vadd.f32 0.0, %v3509
    %v3511 = vpop.f32.mrf.mxu0
    %v3512 = vadd.f32 0.0, %v3511
    %v3513 = vpop.f32.mrf.mxu0
    %v3514 = vpop.f32.mrf.mxu0
    %3515 = vdwg.mxu0
    %3516 = vmatprep.subr.bf16.mxu0 %v3442
    %3517 = vmatpush1.bf16.msra.mxu0 %v3441
    %3518 = vmatprep.subr.bf16.mxu0 %v3438
    %3519 = vmatpush1.bf16.msra.mxu0 %v3437
    %3520 = vmatprep.subr.bf16.mxu0 %v3434
    %3521 = vmatpush1.bf16.msra.mxu0 %v3433
    %3522 = vmatprep.subr.bf16.mxu0 %v3430
    %3523 = vmatpush1.bf16.msra.mxu0 %v3429
    %3524 = vmatprep.subr.bf16.mxu0 %v3426
    %3525 = vmatpush1.bf16.msra.mxu0 %v3425
    %3526 = vmatprep.subr.bf16.mxu0 %v3422
    %3527 = vmatpush1.bf16.msra.mxu0 %v3421
    %3528 = vmatprep.subr.bf16.mxu0 %v3418
    %3529 = vmatpush1.bf16.msra.mxu0 %v3417
    %3530 = vmatprep.subr.bf16.mxu0 %v3414
    %3531 = vmatpush1.bf16.msra.mxu0 %v3413
    %3532 = vmatprep.subr.bf16.mxu0 0
    %3533 = vmatpush2.bf16.msra.mxu0 0
    %3534 = vmatprep.subr.bf16.mxu0 0
    %3535 = vmatpush2.bf16.msra.mxu0 0
    %3536 = vmatprep.subr.bf16.mxu0 0
    %3537 = vmatpush2.bf16.msra.mxu0 0
    %3538 = vmatprep.subr.bf16.mxu0 0
    %3539 = vmatpush2.bf16.msra.mxu0 0
    %3540 = vmatprep.subr.bf16.mxu0 0
    %3541 = vmatpush2.bf16.msra.mxu0 0
    %3542 = vmatprep.subr.bf16.mxu0 0
    %3543 = vmatpush2.bf16.msra.mxu0 0
    %3544 = vmatprep.subr.bf16.mxu0 0
    %3545 = vmatpush2.bf16.msra.mxu0 0
    %3546 = vmatprep.subr.bf16.mxu0 0
    %3547 = vmatpush2.bf16.msra.mxu0 0
    %3548 = vmatprep.mubr.bf16.mxu0 0
    %3549 = vmatmul.mubr.bf16.gmra.mxu0 %v3273
    %v3550 = vpop.f32.mrf.mxu0
    %v3551 = vadd.f32 0.0, %v3550
    %v3552 = vpop.f32.mrf.mxu0
    %v3553 = vadd.f32 0.0, %v3552
    %v3554 = vpop.f32.mrf.mxu0
    %v3555 = vpop.f32.mrf.mxu0
    %3556 = vdwg.mxu0
    %v3557 = vadd.f32 %v3279, %v3510
    %v3558 = vadd.f32 %v3280, %v3512
    %v3559 = vadd.f32 %v3281, %v3551
    %v3560 = vadd.f32 %v3282, %v3553
    %v3561 = vxor.u32 %v3557, 2147483648
    %v3562 = vmul.f32 %v3561, 1.442695
    %v3563 = vpow.pop %v3562
    %v3564 = vadd.f32 %v3563, 1.0
    %v3565 = vrcp.pop %v3564
    %v3566 = vmul.f32 1.0, %v3565
    %v3567 = vxor.u32 %v3558, 2147483648
    %v3568 = vmul.f32 %v3567, 1.442695
    %v3569 = vpow.pop %v3568
    %v3570 = vadd.f32 %v3569, 1.0
    %v3571 = vrcp.pop %v3570
    %v3572 = vmul.f32 1.0, %v3571
    %v3573 = vtanh.pop %v3559
    %v3574 = vxor.u32 %v3560, 2147483648
    %v3575 = vmul.f32 %v3574, 1.442695
    %v3576 = vpow.pop %v3575
    %v3577 = vadd.f32 %v3576, 1.0
    %v3578 = vrcp.pop %v3577
    %v3579 = vmul.f32 1.0, %v3578
    %v3580 = vmul.f32 %v3572, %v3270
    %v3581 = vmul.f32 %v3566, %v3573
    %v3582 = vadd.f32 %v3580, %v3581
    %v3583 = vtanh.pop %v3582
    %v3584 = vmul.f32 %v3579, %v3583
    %v3585 = vpack.c.bf16 %v3584, %v3584
    %s3586 = scalar_lea.vmem [#allocation3], 32
    %3587 = vst [vmem:[%s3586] sm:$0xf] %v3585
    %s3588 = smul.u32 9, 4
    %s3589 = smul.addr %s3588, 8
    %s3590 = scalar_lea.vmem [#allocation2], %s3589
    %v3591 = vld [vmem:[%s3590] sm:$0xff]
    %v3592 = vld [vmem:[%s3590 + $0x8] sm:$0xff]
    %v3593 = vld [vmem:[%s3590 + $0x10] sm:$0xff]
    %v3594 = vld [vmem:[%s3590 + $0x18] sm:$0xff]
    %v3595 = vld [vmem:[%s2] sm:$0xff]
    %v3596 = vld [vmem:[%s2 + $0x8] sm:$0xff]
    %v3597 = vld [vmem:[%s2 + $0x10] sm:$0xff]
    %v3598 = vld [vmem:[%s2 + $0x18] sm:$0xff]
    %v3599 = vld [vmem:[%s2 + $0x20] sm:$0xff]
    %v3600 = vld [vmem:[%s2 + $0x28] sm:$0xff]
    %v3601 = vld [vmem:[%s2 + $0x30] sm:$0xff]
    %v3602 = vld [vmem:[%s2 + $0x38] sm:$0xff]
    %v3603 = vld [vmem:[%s2 + $0x40] sm:$0xff]
    %v3604 = vld [vmem:[%s2 + $0x48] sm:$0xff]
    %v3605 = vld [vmem:[%s2 + $0x50] sm:$0xff]
    %v3606 = vld [vmem:[%s2 + $0x58] sm:$0xff]
    %v3607 = vld [vmem:[%s2 + $0x60] sm:$0xff]
    %v3608 = vld [vmem:[%s2 + $0x68] sm:$0xff]
    %v3609 = vld [vmem:[%s2 + $0x70] sm:$0xff]
    %v3610 = vld [vmem:[%s2 + $0x78] sm:$0xff]
    %v3611 = vld [vmem:[%s2 + $0x80] sm:$0xff]
    %v3612 = vld [vmem:[%s2 + $0x88] sm:$0xff]
    %v3613 = vld [vmem:[%s2 + $0x90] sm:$0xff]
    %v3614 = vld [vmem:[%s2 + $0x98] sm:$0xff]
    %v3615 = vld [vmem:[%s2 + $0xa0] sm:$0xff]
    %v3616 = vld [vmem:[%s2 + $0xa8] sm:$0xff]
    %v3617 = vld [vmem:[%s2 + $0xb0] sm:$0xff]
    %v3618 = vld [vmem:[%s2 + $0xb8] sm:$0xff]
    %v3619 = vld [vmem:[%s2 + $0xc0] sm:$0xff]
    %v3620 = vld [vmem:[%s2 + $0xc8] sm:$0xff]
    %v3621 = vld [vmem:[%s2 + $0xd0] sm:$0xff]
    %v3622 = vld [vmem:[%s2 + $0xd8] sm:$0xff]
    %v3623 = vld [vmem:[%s2 + $0xe0] sm:$0xff]
    %v3624 = vld [vmem:[%s2 + $0xe8] sm:$0xff]
    %v3625 = vld [vmem:[%s2 + $0xf0] sm:$0xff]
    %v3626 = vld [vmem:[%s2 + $0xf8] sm:$0xff]
    %v3659 = vunpack.c.l.b16 %v3595
    %v3660 = vunpack.c.h.b16 %v3595
    %v3661 = vunpack.c.l.b16 %v3596
    %v3662 = vunpack.c.h.b16 %v3596
    %v3663 = vunpack.c.l.b16 %v3597
    %v3664 = vunpack.c.h.b16 %v3597
    %v3665 = vunpack.c.l.b16 %v3598
    %v3666 = vunpack.c.h.b16 %v3598
    %v3667 = vunpack.c.l.b16 %v3599
    %v3668 = vunpack.c.h.b16 %v3599
    %v3669 = vunpack.c.l.b16 %v3600
    %v3670 = vunpack.c.h.b16 %v3600
    %v3671 = vunpack.c.l.b16 %v3601
    %v3672 = vunpack.c.h.b16 %v3601
    %v3673 = vunpack.c.l.b16 %v3602
    %v3674 = vunpack.c.h.b16 %v3602
    %v3675 = vunpack.c.l.b16 %v3603
    %v3676 = vunpack.c.h.b16 %v3603
    %v3677 = vunpack.c.l.b16 %v3604
    %v3678 = vunpack.c.h.b16 %v3604
    %v3679 = vunpack.c.l.b16 %v3605
    %v3680 = vunpack.c.h.b16 %v3605
    %v3681 = vunpack.c.l.b16 %v3606
    %v3682 = vunpack.c.h.b16 %v3606
    %v3683 = vunpack.c.l.b16 %v3607
    %v3684 = vunpack.c.h.b16 %v3607
    %v3685 = vunpack.c.l.b16 %v3608
    %v3686 = vunpack.c.h.b16 %v3608
    %v3687 = vunpack.c.l.b16 %v3609
    %v3688 = vunpack.c.h.b16 %v3609
    %v3689 = vunpack.c.l.b16 %v3610
    %v3690 = vunpack.c.h.b16 %v3610
    %v3691 = vunpack.c.l.b16 %v3611
    %v3692 = vunpack.c.h.b16 %v3611
    %v3693 = vunpack.c.l.b16 %v3612
    %v3694 = vunpack.c.h.b16 %v3612
    %v3695 = vunpack.c.l.b16 %v3613
    %v3696 = vunpack.c.h.b16 %v3613
    %v3697 = vunpack.c.l.b16 %v3614
    %v3698 = vunpack.c.h.b16 %v3614
    %v3699 = vunpack.c.l.b16 %v3615
    %v3700 = vunpack.c.h.b16 %v3615
    %v3701 = vunpack.c.l.b16 %v3616
    %v3702 = vunpack.c.h.b16 %v3616
    %v3703 = vunpack.c.l.b16 %v3617
    %v3704 = vunpack.c.h.b16 %v3617
    %v3705 = vunpack.c.l.b16 %v3618
    %v3706 = vunpack.c.h.b16 %v3618
    %v3707 = vunpack.c.l.b16 %v3619
    %v3708 = vunpack.c.h.b16 %v3619
    %v3709 = vunpack.c.l.b16 %v3620
    %v3710 = vunpack.c.h.b16 %v3620
    %v3711 = vunpack.c.l.b16 %v3621
    %v3712 = vunpack.c.h.b16 %v3621
    %v3713 = vunpack.c.l.b16 %v3622
    %v3714 = vunpack.c.h.b16 %v3622
    %v3715 = vunpack.c.l.b16 %v3623
    %v3716 = vunpack.c.h.b16 %v3623
    %v3717 = vunpack.c.l.b16 %v3624
    %v3718 = vunpack.c.h.b16 %v3624
    %v3719 = vunpack.c.l.b16 %v3625
    %v3720 = vunpack.c.h.b16 %v3625
    %v3721 = vunpack.c.l.b16 %v3626
    %v3722 = vunpack.c.h.b16 %v3626
    %v3723 = vpack.c.b16 %v3663, %v3659
    %v3724 = vpack.c.b16 %v3664, %v3660
    %v3725 = vpack.c.b16 %v3665, %v3661
    %v3726 = vpack.c.b16 %v3666, %v3662
    %v3727 = vpack.c.b16 %v3671, %v3667
    %v3728 = vpack.c.b16 %v3672, %v3668
    %v3729 = vpack.c.b16 %v3673, %v3669
    %v3730 = vpack.c.b16 %v3674, %v3670
    %v3731 = vpack.c.b16 %v3679, %v3675
    %v3732 = vpack.c.b16 %v3680, %v3676
    %v3733 = vpack.c.b16 %v3681, %v3677
    %v3734 = vpack.c.b16 %v3682, %v3678
    %v3735 = vpack.c.b16 %v3687, %v3683
    %v3736 = vpack.c.b16 %v3688, %v3684
    %v3737 = vpack.c.b16 %v3689, %v3685
    %v3738 = vpack.c.b16 %v3690, %v3686
    %v3739 = vpack.c.b16 %v3695, %v3691
    %v3740 = vpack.c.b16 %v3696, %v3692
    %v3741 = vpack.c.b16 %v3697, %v3693
    %v3742 = vpack.c.b16 %v3698, %v3694
    %v3743 = vpack.c.b16 %v3703, %v3699
    %v3744 = vpack.c.b16 %v3704, %v3700
    %v3745 = vpack.c.b16 %v3705, %v3701
    %v3746 = vpack.c.b16 %v3706, %v3702
    %v3747 = vpack.c.b16 %v3711, %v3707
    %v3748 = vpack.c.b16 %v3712, %v3708
    %v3749 = vpack.c.b16 %v3713, %v3709
    %v3750 = vpack.c.b16 %v3714, %v3710
    %v3751 = vpack.c.b16 %v3719, %v3715
    %v3752 = vpack.c.b16 %v3720, %v3716
    %v3753 = vpack.c.b16 %v3721, %v3717
    %v3754 = vpack.c.b16 %v3722, %v3718
    %3787 = vmatprep.subr.bf16.mxu0 %v3752
    %3788 = vmatpush1.bf16.msra.mxu0 %v3751
    %3789 = vmatprep.subr.bf16.mxu0 %v3748
    %3790 = vmatpush1.bf16.msra.mxu0 %v3747
    %3791 = vmatprep.subr.bf16.mxu0 %v3744
    %3792 = vmatpush1.bf16.msra.mxu0 %v3743
    %3793 = vmatprep.subr.bf16.mxu0 %v3740
    %3794 = vmatpush1.bf16.msra.mxu0 %v3739
    %3795 = vmatprep.subr.bf16.mxu0 %v3736
    %3796 = vmatpush1.bf16.msra.mxu0 %v3735
    %3797 = vmatprep.subr.bf16.mxu0 %v3732
    %3798 = vmatpush1.bf16.msra.mxu0 %v3731
    %3799 = vmatprep.subr.bf16.mxu0 %v3728
    %3800 = vmatpush1.bf16.msra.mxu0 %v3727
    %3801 = vmatprep.subr.bf16.mxu0 %v3724
    %3802 = vmatpush1.bf16.msra.mxu0 %v3723
    %3803 = vmatprep.subr.bf16.mxu0 0
    %3804 = vmatpush2.bf16.msra.mxu0 0
    %3805 = vmatprep.subr.bf16.mxu0 0
    %3806 = vmatpush2.bf16.msra.mxu0 0
    %3807 = vmatprep.subr.bf16.mxu0 0
    %3808 = vmatpush2.bf16.msra.mxu0 0
    %3809 = vmatprep.subr.bf16.mxu0 0
    %3810 = vmatpush2.bf16.msra.mxu0 0
    %3811 = vmatprep.subr.bf16.mxu0 0
    %3812 = vmatpush2.bf16.msra.mxu0 0
    %3813 = vmatprep.subr.bf16.mxu0 0
    %3814 = vmatpush2.bf16.msra.mxu0 0
    %3815 = vmatprep.subr.bf16.mxu0 0
    %3816 = vmatpush2.bf16.msra.mxu0 0
    %3817 = vmatprep.subr.bf16.mxu0 0
    %3818 = vmatpush2.bf16.msra.mxu0 0
    %3819 = vmatprep.mubr.bf16.mxu0 0
    %3820 = vmatmul.mubr.bf16.gmra.mxu0 %v3585
    %v3821 = vpop.f32.mrf.mxu0
    %v3822 = vadd.f32 0.0, %v3821
    %v3823 = vpop.f32.mrf.mxu0
    %v3824 = vadd.f32 0.0, %v3823
    %v3825 = vpop.f32.mrf.mxu0
    %v3826 = vpop.f32.mrf.mxu0
    %3827 = vdwg.mxu0
    %3828 = vmatprep.subr.bf16.mxu0 %v3754
    %3829 = vmatpush1.bf16.msra.mxu0 %v3753
    %3830 = vmatprep.subr.bf16.mxu0 %v3750
    %3831 = vmatpush1.bf16.msra.mxu0 %v3749
    %3832 = vmatprep.subr.bf16.mxu0 %v3746
    %3833 = vmatpush1.bf16.msra.mxu0 %v3745
    %3834 = vmatprep.subr.bf16.mxu0 %v3742
    %3835 = vmatpush1.bf16.msra.mxu0 %v3741
    %3836 = vmatprep.subr.bf16.mxu0 %v3738
    %3837 = vmatpush1.bf16.msra.mxu0 %v3737
    %3838 = vmatprep.subr.bf16.mxu0 %v3734
    %3839 = vmatpush1.bf16.msra.mxu0 %v3733
    %3840 = vmatprep.subr.bf16.mxu0 %v3730
    %3841 = vmatpush1.bf16.msra.mxu0 %v3729
    %3842 = vmatprep.subr.bf16.mxu0 %v3726
    %3843 = vmatpush1.bf16.msra.mxu0 %v3725
    %3844 = vmatprep.subr.bf16.mxu0 0
    %3845 = vmatpush2.bf16.msra.mxu0 0
    %3846 = vmatprep.subr.bf16.mxu0 0
    %3847 = vmatpush2.bf16.msra.mxu0 0
    %3848 = vmatprep.subr.bf16.mxu0 0
    %3849 = vmatpush2.bf16.msra.mxu0 0
    %3850 = vmatprep.subr.bf16.mxu0 0
    %3851 = vmatpush2.bf16.msra.mxu0 0
    %3852 = vmatprep.subr.bf16.mxu0 0
    %3853 = vmatpush2.bf16.msra.mxu0 0
    %3854 = vmatprep.subr.bf16.mxu0 0
    %3855 = vmatpush2.bf16.msra.mxu0 0
    %3856 = vmatprep.subr.bf16.mxu0 0
    %3857 = vmatpush2.bf16.msra.mxu0 0
    %3858 = vmatprep.subr.bf16.mxu0 0
    %3859 = vmatpush2.bf16.msra.mxu0 0
    %3860 = vmatprep.mubr.bf16.mxu0 0
    %3861 = vmatmul.mubr.bf16.gmra.mxu0 %v3585
    %v3862 = vpop.f32.mrf.mxu0
    %v3863 = vadd.f32 0.0, %v3862
    %v3864 = vpop.f32.mrf.mxu0
    %v3865 = vadd.f32 0.0, %v3864
    %v3866 = vpop.f32.mrf.mxu0
    %v3867 = vpop.f32.mrf.mxu0
    %3868 = vdwg.mxu0
    %v3869 = vadd.f32 %v3591, %v3822
    %v3870 = vadd.f32 %v3592, %v3824
    %v3871 = vadd.f32 %v3593, %v3863
    %v3872 = vadd.f32 %v3594, %v3865
    %v3873 = vxor.u32 %v3869, 2147483648
    %v3874 = vmul.f32 %v3873, 1.442695
    %v3875 = vpow.pop %v3874
    %v3876 = vadd.f32 %v3875, 1.0
    %v3877 = vrcp.pop %v3876
    %v3878 = vmul.f32 1.0, %v3877
    %v3879 = vxor.u32 %v3870, 2147483648
    %v3880 = vmul.f32 %v3879, 1.442695
    %v3881 = vpow.pop %v3880
    %v3882 = vadd.f32 %v3881, 1.0
    %v3883 = vrcp.pop %v3882
    %v3884 = vmul.f32 1.0, %v3883
    %v3885 = vtanh.pop %v3871
    %v3886 = vxor.u32 %v3872, 2147483648
    %v3887 = vmul.f32 %v3886, 1.442695
    %v3888 = vpow.pop %v3887
    %v3889 = vadd.f32 %v3888, 1.0
    %v3890 = vrcp.pop %v3889
    %v3891 = vmul.f32 1.0, %v3890
    %v3892 = vmul.f32 %v3884, %v3582
    %v3893 = vmul.f32 %v3878, %v3885
    %v3894 = vadd.f32 %v3892, %v3893
    %v3895 = vtanh.pop %v3894
    %v3896 = vmul.f32 %v3891, %v3895
    %v3897 = vpack.c.bf16 %v3896, %v3896
    %s3898 = scalar_lea.vmem [#allocation3], 36
    %3899 = vst [vmem:[%s3898] sm:$0xf] %v3897
    %s3900 = smul.u32 10, 4
    %s3901 = smul.addr %s3900, 8
    %s3902 = scalar_lea.vmem [#allocation2], %s3901
    %v3903 = vld [vmem:[%s3902] sm:$0xff]
    %v3904 = vld [vmem:[%s3902 + $0x8] sm:$0xff]
    %v3905 = vld [vmem:[%s3902 + $0x10] sm:$0xff]
    %v3906 = vld [vmem:[%s3902 + $0x18] sm:$0xff]
    %v3907 = vld [vmem:[%s2] sm:$0xff]
    %v3908 = vld [vmem:[%s2 + $0x8] sm:$0xff]
    %v3909 = vld [vmem:[%s2 + $0x10] sm:$0xff]
    %v3910 = vld [vmem:[%s2 + $0x18] sm:$0xff]
    %v3911 = vld [vmem:[%s2 + $0x20] sm:$0xff]
    %v3912 = vld [vmem:[%s2 + $0x28] sm:$0xff]
    %v3913 = vld [vmem:[%s2 + $0x30] sm:$0xff]
    %v3914 = vld [vmem:[%s2 + $0x38] sm:$0xff]
    %v3915 = vld [vmem:[%s2 + $0x40] sm:$0xff]
    %v3916 = vld [vmem:[%s2 + $0x48] sm:$0xff]
    %v3917 = vld [vmem:[%s2 + $0x50] sm:$0xff]
    %v3918 = vld [vmem:[%s2 + $0x58] sm:$0xff]
    %v3919 = vld [vmem:[%s2 + $0x60] sm:$0xff]
    %v3920 = vld [vmem:[%s2 + $0x68] sm:$0xff]
    %v3921 = vld [vmem:[%s2 + $0x70] sm:$0xff]
    %v3922 = vld [vmem:[%s2 + $0x78] sm:$0xff]
    %v3923 = vld [vmem:[%s2 + $0x80] sm:$0xff]
    %v3924 = vld [vmem:[%s2 + $0x88] sm:$0xff]
    %v3925 = vld [vmem:[%s2 + $0x90] sm:$0xff]
    %v3926 = vld [vmem:[%s2 + $0x98] sm:$0xff]
    %v3927 = vld [vmem:[%s2 + $0xa0] sm:$0xff]
    %v3928 = vld [vmem:[%s2 + $0xa8] sm:$0xff]
    %v3929 = vld [vmem:[%s2 + $0xb0] sm:$0xff]
    %v3930 = vld [vmem:[%s2 + $0xb8] sm:$0xff]
    %v3931 = vld [vmem:[%s2 + $0xc0] sm:$0xff]
    %v3932 = vld [vmem:[%s2 + $0xc8] sm:$0xff]
    %v3933 = vld [vmem:[%s2 + $0xd0] sm:$0xff]
    %v3934 = vld [vmem:[%s2 + $0xd8] sm:$0xff]
    %v3935 = vld [vmem:[%s2 + $0xe0] sm:$0xff]
    %v3936 = vld [vmem:[%s2 + $0xe8] sm:$0xff]
    %v3937 = vld [vmem:[%s2 + $0xf0] sm:$0xff]
    %v3938 = vld [vmem:[%s2 + $0xf8] sm:$0xff]
    %v3971 = vunpack.c.l.b16 %v3907
    %v3972 = vunpack.c.h.b16 %v3907
    %v3973 = vunpack.c.l.b16 %v3908
    %v3974 = vunpack.c.h.b16 %v3908
    %v3975 = vunpack.c.l.b16 %v3909
    %v3976 = vunpack.c.h.b16 %v3909
    %v3977 = vunpack.c.l.b16 %v3910
    %v3978 = vunpack.c.h.b16 %v3910
    %v3979 = vunpack.c.l.b16 %v3911
    %v3980 = vunpack.c.h.b16 %v3911
    %v3981 = vunpack.c.l.b16 %v3912
    %v3982 = vunpack.c.h.b16 %v3912
    %v3983 = vunpack.c.l.b16 %v3913
    %v3984 = vunpack.c.h.b16 %v3913
    %v3985 = vunpack.c.l.b16 %v3914
    %v3986 = vunpack.c.h.b16 %v3914
    %v3987 = vunpack.c.l.b16 %v3915
    %v3988 = vunpack.c.h.b16 %v3915
    %v3989 = vunpack.c.l.b16 %v3916
    %v3990 = vunpack.c.h.b16 %v3916
    %v3991 = vunpack.c.l.b16 %v3917
    %v3992 = vunpack.c.h.b16 %v3917
    %v3993 = vunpack.c.l.b16 %v3918
    %v3994 = vunpack.c.h.b16 %v3918
    %v3995 = vunpack.c.l.b16 %v3919
    %v3996 = vunpack.c.h.b16 %v3919
    %v3997 = vunpack.c.l.b16 %v3920
    %v3998 = vunpack.c.h.b16 %v3920
    %v3999 = vunpack.c.l.b16 %v3921
    %v4000 = vunpack.c.h.b16 %v3921
    %v4001 = vunpack.c.l.b16 %v3922
    %v4002 = vunpack.c.h.b16 %v3922
    %v4003 = vunpack.c.l.b16 %v3923
    %v4004 = vunpack.c.h.b16 %v3923
    %v4005 = vunpack.c.l.b16 %v3924
    %v4006 = vunpack.c.h.b16 %v3924
    %v4007 = vunpack.c.l.b16 %v3925
    %v4008 = vunpack.c.h.b16 %v3925
    %v4009 = vunpack.c.l.b16 %v3926
    %v4010 = vunpack.c.h.b16 %v3926
    %v4011 = vunpack.c.l.b16 %v3927
    %v4012 = vunpack.c.h.b16 %v3927
    %v4013 = vunpack.c.l.b16 %v3928
    %v4014 = vunpack.c.h.b16 %v3928
    %v4015 = vunpack.c.l.b16 %v3929
    %v4016 = vunpack.c.h.b16 %v3929
    %v4017 = vunpack.c.l.b16 %v3930
    %v4018 = vunpack.c.h.b16 %v3930
    %v4019 = vunpack.c.l.b16 %v3931
    %v4020 = vunpack.c.h.b16 %v3931
    %v4021 = vunpack.c.l.b16 %v3932
    %v4022 = vunpack.c.h.b16 %v3932
    %v4023 = vunpack.c.l.b16 %v3933
    %v4024 = vunpack.c.h.b16 %v3933
    %v4025 = vunpack.c.l.b16 %v3934
    %v4026 = vunpack.c.h.b16 %v3934
    %v4027 = vunpack.c.l.b16 %v3935
    %v4028 = vunpack.c.h.b16 %v3935
    %v4029 = vunpack.c.l.b16 %v3936
    %v4030 = vunpack.c.h.b16 %v3936
    %v4031 = vunpack.c.l.b16 %v3937
    %v4032 = vunpack.c.h.b16 %v3937
    %v4033 = vunpack.c.l.b16 %v3938
    %v4034 = vunpack.c.h.b16 %v3938
    %v4035 = vpack.c.b16 %v3975, %v3971
    %v4036 = vpack.c.b16 %v3976, %v3972
    %v4037 = vpack.c.b16 %v3977, %v3973
    %v4038 = vpack.c.b16 %v3978, %v3974
    %v4039 = vpack.c.b16 %v3983, %v3979
    %v4040 = vpack.c.b16 %v3984, %v3980
    %v4041 = vpack.c.b16 %v3985, %v3981
    %v4042 = vpack.c.b16 %v3986, %v3982
    %v4043 = vpack.c.b16 %v3991, %v3987
    %v4044 = vpack.c.b16 %v3992, %v3988
    %v4045 = vpack.c.b16 %v3993, %v3989
    %v4046 = vpack.c.b16 %v3994, %v3990
    %v4047 = vpack.c.b16 %v3999, %v3995
    %v4048 = vpack.c.b16 %v4000, %v3996
    %v4049 = vpack.c.b16 %v4001, %v3997
    %v4050 = vpack.c.b16 %v4002, %v3998
    %v4051 = vpack.c.b16 %v4007, %v4003
    %v4052 = vpack.c.b16 %v4008, %v4004
    %v4053 = vpack.c.b16 %v4009, %v4005
    %v4054 = vpack.c.b16 %v4010, %v4006
    %v4055 = vpack.c.b16 %v4015, %v4011
    %v4056 = vpack.c.b16 %v4016, %v4012
    %v4057 = vpack.c.b16 %v4017, %v4013
    %v4058 = vpack.c.b16 %v4018, %v4014
    %v4059 = vpack.c.b16 %v4023, %v4019
    %v4060 = vpack.c.b16 %v4024, %v4020
    %v4061 = vpack.c.b16 %v4025, %v4021
    %v4062 = vpack.c.b16 %v4026, %v4022
    %v4063 = vpack.c.b16 %v4031, %v4027
    %v4064 = vpack.c.b16 %v4032, %v4028
    %v4065 = vpack.c.b16 %v4033, %v4029
    %v4066 = vpack.c.b16 %v4034, %v4030
    %4099 = vmatprep.subr.bf16.mxu0 %v4064
    %4100 = vmatpush1.bf16.msra.mxu0 %v4063
    %4101 = vmatprep.subr.bf16.mxu0 %v4060
    %4102 = vmatpush1.bf16.msra.mxu0 %v4059
    %4103 = vmatprep.subr.bf16.mxu0 %v4056
    %4104 = vmatpush1.bf16.msra.mxu0 %v4055
    %4105 = vmatprep.subr.bf16.mxu0 %v4052
    %4106 = vmatpush1.bf16.msra.mxu0 %v4051
    %4107 = vmatprep.subr.bf16.mxu0 %v4048
    %4108 = vmatpush1.bf16.msra.mxu0 %v4047
    %4109 = vmatprep.subr.bf16.mxu0 %v4044
    %4110 = vmatpush1.bf16.msra.mxu0 %v4043
    %4111 = vmatprep.subr.bf16.mxu0 %v4040
    %4112 = vmatpush1.bf16.msra.mxu0 %v4039
    %4113 = vmatprep.subr.bf16.mxu0 %v4036
    %4114 = vmatpush1.bf16.msra.mxu0 %v4035
    %4115 = vmatprep.subr.bf16.mxu0 0
    %4116 = vmatpush2.bf16.msra.mxu0 0
    %4117 = vmatprep.subr.bf16.mxu0 0
    %4118 = vmatpush2.bf16.msra.mxu0 0
    %4119 = vmatprep.subr.bf16.mxu0 0
    %4120 = vmatpush2.bf16.msra.mxu0 0
    %4121 = vmatprep.subr.bf16.mxu0 0
    %4122 = vmatpush2.bf16.msra.mxu0 0
    %4123 = vmatprep.subr.bf16.mxu0 0
    %4124 = vmatpush2.bf16.msra.mxu0 0
    %4125 = vmatprep.subr.bf16.mxu0 0
    %4126 = vmatpush2.bf16.msra.mxu0 0
    %4127 = vmatprep.subr.bf16.mxu0 0
    %4128 = vmatpush2.bf16.msra.mxu0 0
    %4129 = vmatprep.subr.bf16.mxu0 0
    %4130 = vmatpush2.bf16.msra.mxu0 0
    %4131 = vmatprep.mubr.bf16.mxu0 0
    %4132 = vmatmul.mubr.bf16.gmra.mxu0 %v3897
    %v4133 = vpop.f32.mrf.mxu0
    %v4134 = vadd.f32 0.0, %v4133
    %v4135 = vpop.f32.mrf.mxu0
    %v4136 = vadd.f32 0.0, %v4135
    %v4137 = vpop.f32.mrf.mxu0
    %v4138 = vpop.f32.mrf.mxu0
    %4139 = vdwg.mxu0
    %4140 = vmatprep.subr.bf16.mxu0 %v4066
    %4141 = vmatpush1.bf16.msra.mxu0 %v4065
    %4142 = vmatprep.subr.bf16.mxu0 %v4062
    %4143 = vmatpush1.bf16.msra.mxu0 %v4061
    %4144 = vmatprep.subr.bf16.mxu0 %v4058
    %4145 = vmatpush1.bf16.msra.mxu0 %v4057
    %4146 = vmatprep.subr.bf16.mxu0 %v4054
    %4147 = vmatpush1.bf16.msra.mxu0 %v4053
    %4148 = vmatprep.subr.bf16.mxu0 %v4050
    %4149 = vmatpush1.bf16.msra.mxu0 %v4049
    %4150 = vmatprep.subr.bf16.mxu0 %v4046
    %4151 = vmatpush1.bf16.msra.mxu0 %v4045
    %4152 = vmatprep.subr.bf16.mxu0 %v4042
    %4153 = vmatpush1.bf16.msra.mxu0 %v4041
    %4154 = vmatprep.subr.bf16.mxu0 %v4038
    %4155 = vmatpush1.bf16.msra.mxu0 %v4037
    %4156 = vmatprep.subr.bf16.mxu0 0
    %4157 = vmatpush2.bf16.msra.mxu0 0
    %4158 = vmatprep.subr.bf16.mxu0 0
    %4159 = vmatpush2.bf16.msra.mxu0 0
    %4160 = vmatprep.subr.bf16.mxu0 0
    %4161 = vmatpush2.bf16.msra.mxu0 0
    %4162 = vmatprep.subr.bf16.mxu0 0
    %4163 = vmatpush2.bf16.msra.mxu0 0
    %4164 = vmatprep.subr.bf16.mxu0 0
    %4165 = vmatpush2.bf16.msra.mxu0 0
    %4166 = vmatprep.subr.bf16.mxu0 0
    %4167 = vmatpush2.bf16.msra.mxu0 0
    %4168 = vmatprep.subr.bf16.mxu0 0
    %4169 = vmatpush2.bf16.msra.mxu0 0
    %4170 = vmatprep.subr.bf16.mxu0 0
    %4171 = vmatpush2.bf16.msra.mxu0 0
    %4172 = vmatprep.mubr.bf16.mxu0 0
    %4173 = vmatmul.mubr.bf16.gmra.mxu0 %v3897
    %v4174 = vpop.f32.mrf.mxu0
    %v4175 = vadd.f32 0.0, %v4174
    %v4176 = vpop.f32.mrf.mxu0
    %v4177 = vadd.f32 0.0, %v4176
    %v4178 = vpop.f32.mrf.mxu0
    %v4179 = vpop.f32.mrf.mxu0
    %4180 = vdwg.mxu0
    %v4181 = vadd.f32 %v3903, %v4134
    %v4182 = vadd.f32 %v3904, %v4136
    %v4183 = vadd.f32 %v3905, %v4175
    %v4184 = vadd.f32 %v3906, %v4177
    %v4185 = vxor.u32 %v4181, 2147483648
    %v4186 = vmul.f32 %v4185, 1.442695
    %v4187 = vpow.pop %v4186
    %v4188 = vadd.f32 %v4187, 1.0
    %v4189 = vrcp.pop %v4188
    %v4190 = vmul.f32 1.0, %v4189
    %v4191 = vxor.u32 %v4182, 2147483648
    %v4192 = vmul.f32 %v4191, 1.442695
    %v4193 = vpow.pop %v4192
    %v4194 = vadd.f32 %v4193, 1.0
    %v4195 = vrcp.pop %v4194
    %v4196 = vmul.f32 1.0, %v4195
    %v4197 = vtanh.pop %v4183
    %v4198 = vxor.u32 %v4184, 2147483648
    %v4199 = vmul.f32 %v4198, 1.442695
    %v4200 = vpow.pop %v4199
    %v4201 = vadd.f32 %v4200, 1.0
    %v4202 = vrcp.pop %v4201
    %v4203 = vmul.f32 1.0, %v4202
    %v4204 = vmul.f32 %v4196, %v3894
    %v4205 = vmul.f32 %v4190, %v4197
    %v4206 = vadd.f32 %v4204, %v4205
    %v4207 = vtanh.pop %v4206
    %v4208 = vmul.f32 %v4203, %v4207
    %v4209 = vpack.c.bf16 %v4208, %v4208
    %s4210 = scalar_lea.vmem [#allocation3], 40
    %4211 = vst [vmem:[%s4210] sm:$0xf] %v4209
    %s4212 = smul.u32 11, 4
    %s4213 = smul.addr %s4212, 8
    %s4214 = scalar_lea.vmem [#allocation2], %s4213
    %v4215 = vld [vmem:[%s4214] sm:$0xff]
    %v4216 = vld [vmem:[%s4214 + $0x8] sm:$0xff]
    %v4217 = vld [vmem:[%s4214 + $0x10] sm:$0xff]
    %v4218 = vld [vmem:[%s4214 + $0x18] sm:$0xff]
    %v4219 = vld [vmem:[%s2] sm:$0xff]
    %v4220 = vld [vmem:[%s2 + $0x8] sm:$0xff]
    %v4221 = vld [vmem:[%s2 + $0x10] sm:$0xff]
    %v4222 = vld [vmem:[%s2 + $0x18] sm:$0xff]
    %v4223 = vld [vmem:[%s2 + $0x20] sm:$0xff]
    %v4224 = vld [vmem:[%s2 + $0x28] sm:$0xff]
    %v4225 = vld [vmem:[%s2 + $0x30] sm:$0xff]
    %v4226 = vld [vmem:[%s2 + $0x38] sm:$0xff]
    %v4227 = vld [vmem:[%s2 + $0x40] sm:$0xff]
    %v4228 = vld [vmem:[%s2 + $0x48] sm:$0xff]
    %v4229 = vld [vmem:[%s2 + $0x50] sm:$0xff]
    %v4230 = vld [vmem:[%s2 + $0x58] sm:$0xff]
    %v4231 = vld [vmem:[%s2 + $0x60] sm:$0xff]
    %v4232 = vld [vmem:[%s2 + $0x68] sm:$0xff]
    %v4233 = vld [vmem:[%s2 + $0x70] sm:$0xff]
    %v4234 = vld [vmem:[%s2 + $0x78] sm:$0xff]
    %v4235 = vld [vmem:[%s2 + $0x80] sm:$0xff]
    %v4236 = vld [vmem:[%s2 + $0x88] sm:$0xff]
    %v4237 = vld [vmem:[%s2 + $0x90] sm:$0xff]
    %v4238 = vld [vmem:[%s2 + $0x98] sm:$0xff]
    %v4239 = vld [vmem:[%s2 + $0xa0] sm:$0xff]
    %v4240 = vld [vmem:[%s2 + $0xa8] sm:$0xff]
    %v4241 = vld [vmem:[%s2 + $0xb0] sm:$0xff]
    %v4242 = vld [vmem:[%s2 + $0xb8] sm:$0xff]
    %v4243 = vld [vmem:[%s2 + $0xc0] sm:$0xff]
    %v4244 = vld [vmem:[%s2 + $0xc8] sm:$0xff]
    %v4245 = vld [vmem:[%s2 + $0xd0] sm:$0xff]
    %v4246 = vld [vmem:[%s2 + $0xd8] sm:$0xff]
    %v4247 = vld [vmem:[%s2 + $0xe0] sm:$0xff]
    %v4248 = vld [vmem:[%s2 + $0xe8] sm:$0xff]
    %v4249 = vld [vmem:[%s2 + $0xf0] sm:$0xff]
    %v4250 = vld [vmem:[%s2 + $0xf8] sm:$0xff]
    %v4283 = vunpack.c.l.b16 %v4219
    %v4284 = vunpack.c.h.b16 %v4219
    %v4285 = vunpack.c.l.b16 %v4220
    %v4286 = vunpack.c.h.b16 %v4220
    %v4287 = vunpack.c.l.b16 %v4221
    %v4288 = vunpack.c.h.b16 %v4221
    %v4289 = vunpack.c.l.b16 %v4222
    %v4290 = vunpack.c.h.b16 %v4222
    %v4291 = vunpack.c.l.b16 %v4223
    %v4292 = vunpack.c.h.b16 %v4223
    %v4293 = vunpack.c.l.b16 %v4224
    %v4294 = vunpack.c.h.b16 %v4224
    %v4295 = vunpack.c.l.b16 %v4225
    %v4296 = vunpack.c.h.b16 %v4225
    %v4297 = vunpack.c.l.b16 %v4226
    %v4298 = vunpack.c.h.b16 %v4226
    %v4299 = vunpack.c.l.b16 %v4227
    %v4300 = vunpack.c.h.b16 %v4227
    %v4301 = vunpack.c.l.b16 %v4228
    %v4302 = vunpack.c.h.b16 %v4228
    %v4303 = vunpack.c.l.b16 %v4229
    %v4304 = vunpack.c.h.b16 %v4229
    %v4305 = vunpack.c.l.b16 %v4230
    %v4306 = vunpack.c.h.b16 %v4230
    %v4307 = vunpack.c.l.b16 %v4231
    %v4308 = vunpack.c.h.b16 %v4231
    %v4309 = vunpack.c.l.b16 %v4232
    %v4310 = vunpack.c.h.b16 %v4232
    %v4311 = vunpack.c.l.b16 %v4233
    %v4312 = vunpack.c.h.b16 %v4233
    %v4313 = vunpack.c.l.b16 %v4234
    %v4314 = vunpack.c.h.b16 %v4234
    %v4315 = vunpack.c.l.b16 %v4235
    %v4316 = vunpack.c.h.b16 %v4235
    %v4317 = vunpack.c.l.b16 %v4236
    %v4318 = vunpack.c.h.b16 %v4236
    %v4319 = vunpack.c.l.b16 %v4237
    %v4320 = vunpack.c.h.b16 %v4237
    %v4321 = vunpack.c.l.b16 %v4238
    %v4322 = vunpack.c.h.b16 %v4238
    %v4323 = vunpack.c.l.b16 %v4239
    %v4324 = vunpack.c.h.b16 %v4239
    %v4325 = vunpack.c.l.b16 %v4240
    %v4326 = vunpack.c.h.b16 %v4240
    %v4327 = vunpack.c.l.b16 %v4241
    %v4328 = vunpack.c.h.b16 %v4241
    %v4329 = vunpack.c.l.b16 %v4242
    %v4330 = vunpack.c.h.b16 %v4242
    %v4331 = vunpack.c.l.b16 %v4243
    %v4332 = vunpack.c.h.b16 %v4243
    %v4333 = vunpack.c.l.b16 %v4244
    %v4334 = vunpack.c.h.b16 %v4244
    %v4335 = vunpack.c.l.b16 %v4245
    %v4336 = vunpack.c.h.b16 %v4245
    %v4337 = vunpack.c.l.b16 %v4246
    %v4338 = vunpack.c.h.b16 %v4246
    %v4339 = vunpack.c.l.b16 %v4247
    %v4340 = vunpack.c.h.b16 %v4247
    %v4341 = vunpack.c.l.b16 %v4248
    %v4342 = vunpack.c.h.b16 %v4248
    %v4343 = vunpack.c.l.b16 %v4249
    %v4344 = vunpack.c.h.b16 %v4249
    %v4345 = vunpack.c.l.b16 %v4250
    %v4346 = vunpack.c.h.b16 %v4250
    %v4347 = vpack.c.b16 %v4287, %v4283
    %v4348 = vpack.c.b16 %v4288, %v4284
    %v4349 = vpack.c.b16 %v4289, %v4285
    %v4350 = vpack.c.b16 %v4290, %v4286
    %v4351 = vpack.c.b16 %v4295, %v4291
    %v4352 = vpack.c.b16 %v4296, %v4292
    %v4353 = vpack.c.b16 %v4297, %v4293
    %v4354 = vpack.c.b16 %v4298, %v4294
    %v4355 = vpack.c.b16 %v4303, %v4299
    %v4356 = vpack.c.b16 %v4304, %v4300
    %v4357 = vpack.c.b16 %v4305, %v4301
    %v4358 = vpack.c.b16 %v4306, %v4302
    %v4359 = vpack.c.b16 %v4311, %v4307
    %v4360 = vpack.c.b16 %v4312, %v4308
    %v4361 = vpack.c.b16 %v4313, %v4309
    %v4362 = vpack.c.b16 %v4314, %v4310
    %v4363 = vpack.c.b16 %v4319, %v4315
    %v4364 = vpack.c.b16 %v4320, %v4316
    %v4365 = vpack.c.b16 %v4321, %v4317
    %v4366 = vpack.c.b16 %v4322, %v4318
    %v4367 = vpack.c.b16 %v4327, %v4323
    %v4368 = vpack.c.b16 %v4328, %v4324
    %v4369 = vpack.c.b16 %v4329, %v4325
    %v4370 = vpack.c.b16 %v4330, %v4326
    %v4371 = vpack.c.b16 %v4335, %v4331
    %v4372 = vpack.c.b16 %v4336, %v4332
    %v4373 = vpack.c.b16 %v4337, %v4333
    %v4374 = vpack.c.b16 %v4338, %v4334
    %v4375 = vpack.c.b16 %v4343, %v4339
    %v4376 = vpack.c.b16 %v4344, %v4340
    %v4377 = vpack.c.b16 %v4345, %v4341
    %v4378 = vpack.c.b16 %v4346, %v4342
    %4411 = vmatprep.subr.bf16.mxu0 %v4376
    %4412 = vmatpush1.bf16.msra.mxu0 %v4375
    %4413 = vmatprep.subr.bf16.mxu0 %v4372
    %4414 = vmatpush1.bf16.msra.mxu0 %v4371
    %4415 = vmatprep.subr.bf16.mxu0 %v4368
    %4416 = vmatpush1.bf16.msra.mxu0 %v4367
    %4417 = vmatprep.subr.bf16.mxu0 %v4364
    %4418 = vmatpush1.bf16.msra.mxu0 %v4363
    %4419 = vmatprep.subr.bf16.mxu0 %v4360
    %4420 = vmatpush1.bf16.msra.mxu0 %v4359
    %4421 = vmatprep.subr.bf16.mxu0 %v4356
    %4422 = vmatpush1.bf16.msra.mxu0 %v4355
    %4423 = vmatprep.subr.bf16.mxu0 %v4352
    %4424 = vmatpush1.bf16.msra.mxu0 %v4351
    %4425 = vmatprep.subr.bf16.mxu0 %v4348
    %4426 = vmatpush1.bf16.msra.mxu0 %v4347
    %4427 = vmatprep.subr.bf16.mxu0 0
    %4428 = vmatpush2.bf16.msra.mxu0 0
    %4429 = vmatprep.subr.bf16.mxu0 0
    %4430 = vmatpush2.bf16.msra.mxu0 0
    %4431 = vmatprep.subr.bf16.mxu0 0
    %4432 = vmatpush2.bf16.msra.mxu0 0
    %4433 = vmatprep.subr.bf16.mxu0 0
    %4434 = vmatpush2.bf16.msra.mxu0 0
    %4435 = vmatprep.subr.bf16.mxu0 0
    %4436 = vmatpush2.bf16.msra.mxu0 0
    %4437 = vmatprep.subr.bf16.mxu0 0
    %4438 = vmatpush2.bf16.msra.mxu0 0
    %4439 = vmatprep.subr.bf16.mxu0 0
    %4440 = vmatpush2.bf16.msra.mxu0 0
    %4441 = vmatprep.subr.bf16.mxu0 0
    %4442 = vmatpush2.bf16.msra.mxu0 0
    %4443 = vmatprep.mubr.bf16.mxu0 0
    %4444 = vmatmul.mubr.bf16.gmra.mxu0 %v4209
    %v4445 = vpop.f32.mrf.mxu0
    %v4446 = vadd.f32 0.0, %v4445
    %v4447 = vpop.f32.mrf.mxu0
    %v4448 = vadd.f32 0.0, %v4447
    %v4449 = vpop.f32.mrf.mxu0
    %v4450 = vpop.f32.mrf.mxu0
    %4451 = vdwg.mxu0
    %4452 = vmatprep.subr.bf16.mxu0 %v4378
    %4453 = vmatpush1.bf16.msra.mxu0 %v4377
    %4454 = vmatprep.subr.bf16.mxu0 %v4374
    %4455 = vmatpush1.bf16.msra.mxu0 %v4373
    %4456 = vmatprep.subr.bf16.mxu0 %v4370
    %4457 = vmatpush1.bf16.msra.mxu0 %v4369
    %4458 = vmatprep.subr.bf16.mxu0 %v4366
    %4459 = vmatpush1.bf16.msra.mxu0 %v4365
    %4460 = vmatprep.subr.bf16.mxu0 %v4362
    %4461 = vmatpush1.bf16.msra.mxu0 %v4361
    %4462 = vmatprep.subr.bf16.mxu0 %v4358
    %4463 = vmatpush1.bf16.msra.mxu0 %v4357
    %4464 = vmatprep.subr.bf16.mxu0 %v4354
    %4465 = vmatpush1.bf16.msra.mxu0 %v4353
    %4466 = vmatprep.subr.bf16.mxu0 %v4350
    %4467 = vmatpush1.bf16.msra.mxu0 %v4349
    %4468 = vmatprep.subr.bf16.mxu0 0
    %4469 = vmatpush2.bf16.msra.mxu0 0
    %4470 = vmatprep.subr.bf16.mxu0 0
    %4471 = vmatpush2.bf16.msra.mxu0 0
    %4472 = vmatprep.subr.bf16.mxu0 0
    %4473 = vmatpush2.bf16.msra.mxu0 0
    %4474 = vmatprep.subr.bf16.mxu0 0
    %4475 = vmatpush2.bf16.msra.mxu0 0
    %4476 = vmatprep.subr.bf16.mxu0 0
    %4477 = vmatpush2.bf16.msra.mxu0 0
    %4478 = vmatprep.subr.bf16.mxu0 0
    %4479 = vmatpush2.bf16.msra.mxu0 0
    %4480 = vmatprep.subr.bf16.mxu0 0
    %4481 = vmatpush2.bf16.msra.mxu0 0
    %4482 = vmatprep.subr.bf16.mxu0 0
    %4483 = vmatpush2.bf16.msra.mxu0 0
    %4484 = vmatprep.mubr.bf16.mxu0 0
    %4485 = vmatmul.mubr.bf16.gmra.mxu0 %v4209
    %v4486 = vpop.f32.mrf.mxu0
    %v4487 = vadd.f32 0.0, %v4486
    %v4488 = vpop.f32.mrf.mxu0
    %v4489 = vadd.f32 0.0, %v4488
    %v4490 = vpop.f32.mrf.mxu0
    %v4491 = vpop.f32.mrf.mxu0
    %4492 = vdwg.mxu0
    %v4493 = vadd.f32 %v4215, %v4446
    %v4494 = vadd.f32 %v4216, %v4448
    %v4495 = vadd.f32 %v4217, %v4487
    %v4496 = vadd.f32 %v4218, %v4489
    %v4497 = vxor.u32 %v4493, 2147483648
    %v4498 = vmul.f32 %v4497, 1.442695
    %v4499 = vpow.pop %v4498
    %v4500 = vadd.f32 %v4499, 1.0
    %v4501 = vrcp.pop %v4500
    %v4502 = vmul.f32 1.0, %v4501
    %v4503 = vxor.u32 %v4494, 2147483648
    %v4504 = vmul.f32 %v4503, 1.442695
    %v4505 = vpow.pop %v4504
    %v4506 = vadd.f32 %v4505, 1.0
    %v4507 = vrcp.pop %v4506
    %v4508 = vmul.f32 1.0, %v4507
    %v4509 = vtanh.pop %v4495
    %v4510 = vxor.u32 %v4496, 2147483648
    %v4511 = vmul.f32 %v4510, 1.442695
    %v4512 = vpow.pop %v4511
    %v4513 = vadd.f32 %v4512, 1.0
    %v4514 = vrcp.pop %v4513
    %v4515 = vmul.f32 1.0, %v4514
    %v4516 = vmul.f32 %v4508, %v4206
    %v4517 = vmul.f32 %v4502, %v4509
    %v4518 = vadd.f32 %v4516, %v4517
    %v4519 = vtanh.pop %v4518
    %v4520 = vmul.f32 %v4515, %v4519
    %v4521 = vpack.c.bf16 %v4520, %v4520
    %s4522 = scalar_lea.vmem [#allocation3], 44
    %4523 = vst [vmem:[%s4522] sm:$0xf] %v4521
    %s4524 = smul.u32 12, 4
    %s4525 = smul.addr %s4524, 8
    %s4526 = scalar_lea.vmem [#allocation2], %s4525
    %v4527 = vld [vmem:[%s4526] sm:$0xff]
    %v4528 = vld [vmem:[%s4526 + $0x8] sm:$0xff]
    %v4529 = vld [vmem:[%s4526 + $0x10] sm:$0xff]
    %v4530 = vld [vmem:[%s4526 + $0x18] sm:$0xff]
    %v4531 = vld [vmem:[%s2] sm:$0xff]
    %v4532 = vld [vmem:[%s2 + $0x8] sm:$0xff]
    %v4533 = vld [vmem:[%s2 + $0x10] sm:$0xff]
    %v4534 = vld [vmem:[%s2 + $0x18] sm:$0xff]
    %v4535 = vld [vmem:[%s2 + $0x20] sm:$0xff]
    %v4536 = vld [vmem:[%s2 + $0x28] sm:$0xff]
    %v4537 = vld [vmem:[%s2 + $0x30] sm:$0xff]
    %v4538 = vld [vmem:[%s2 + $0x38] sm:$0xff]
    %v4539 = vld [vmem:[%s2 + $0x40] sm:$0xff]
    %v4540 = vld [vmem:[%s2 + $0x48] sm:$0xff]
    %v4541 = vld [vmem:[%s2 + $0x50] sm:$0xff]
    %v4542 = vld [vmem:[%s2 + $0x58] sm:$0xff]
    %v4543 = vld [vmem:[%s2 + $0x60] sm:$0xff]
    %v4544 = vld [vmem:[%s2 + $0x68] sm:$0xff]
    %v4545 = vld [vmem:[%s2 + $0x70] sm:$0xff]
    %v4546 = vld [vmem:[%s2 + $0x78] sm:$0xff]
    %v4547 = vld [vmem:[%s2 + $0x80] sm:$0xff]
    %v4548 = vld [vmem:[%s2 + $0x88] sm:$0xff]
    %v4549 = vld [vmem:[%s2 + $0x90] sm:$0xff]
    %v4550 = vld [vmem:[%s2 + $0x98] sm:$0xff]
    %v4551 = vld [vmem:[%s2 + $0xa0] sm:$0xff]
    %v4552 = vld [vmem:[%s2 + $0xa8] sm:$0xff]
    %v4553 = vld [vmem:[%s2 + $0xb0] sm:$0xff]
    %v4554 = vld [vmem:[%s2 + $0xb8] sm:$0xff]
    %v4555 = vld [vmem:[%s2 + $0xc0] sm:$0xff]
    %v4556 = vld [vmem:[%s2 + $0xc8] sm:$0xff]
    %v4557 = vld [vmem:[%s2 + $0xd0] sm:$0xff]
    %v4558 = vld [vmem:[%s2 + $0xd8] sm:$0xff]
    %v4559 = vld [vmem:[%s2 + $0xe0] sm:$0xff]
    %v4560 = vld [vmem:[%s2 + $0xe8] sm:$0xff]
    %v4561 = vld [vmem:[%s2 + $0xf0] sm:$0xff]
    %v4562 = vld [vmem:[%s2 + $0xf8] sm:$0xff]
    %v4595 = vunpack.c.l.b16 %v4531
    %v4596 = vunpack.c.h.b16 %v4531
    %v4597 = vunpack.c.l.b16 %v4532
    %v4598 = vunpack.c.h.b16 %v4532
    %v4599 = vunpack.c.l.b16 %v4533
    %v4600 = vunpack.c.h.b16 %v4533
    %v4601 = vunpack.c.l.b16 %v4534
    %v4602 = vunpack.c.h.b16 %v4534
    %v4603 = vunpack.c.l.b16 %v4535
    %v4604 = vunpack.c.h.b16 %v4535
    %v4605 = vunpack.c.l.b16 %v4536
    %v4606 = vunpack.c.h.b16 %v4536
    %v4607 = vunpack.c.l.b16 %v4537
    %v4608 = vunpack.c.h.b16 %v4537
    %v4609 = vunpack.c.l.b16 %v4538
    %v4610 = vunpack.c.h.b16 %v4538
    %v4611 = vunpack.c.l.b16 %v4539
    %v4612 = vunpack.c.h.b16 %v4539
    %v4613 = vunpack.c.l.b16 %v4540
    %v4614 = vunpack.c.h.b16 %v4540
    %v4615 = vunpack.c.l.b16 %v4541
    %v4616 = vunpack.c.h.b16 %v4541
    %v4617 = vunpack.c.l.b16 %v4542
    %v4618 = vunpack.c.h.b16 %v4542
    %v4619 = vunpack.c.l.b16 %v4543
    %v4620 = vunpack.c.h.b16 %v4543
    %v4621 = vunpack.c.l.b16 %v4544
    %v4622 = vunpack.c.h.b16 %v4544
    %v4623 = vunpack.c.l.b16 %v4545
    %v4624 = vunpack.c.h.b16 %v4545
    %v4625 = vunpack.c.l.b16 %v4546
    %v4626 = vunpack.c.h.b16 %v4546
    %v4627 = vunpack.c.l.b16 %v4547
    %v4628 = vunpack.c.h.b16 %v4547
    %v4629 = vunpack.c.l.b16 %v4548
    %v4630 = vunpack.c.h.b16 %v4548
    %v4631 = vunpack.c.l.b16 %v4549
    %v4632 = vunpack.c.h.b16 %v4549
    %v4633 = vunpack.c.l.b16 %v4550
    %v4634 = vunpack.c.h.b16 %v4550
    %v4635 = vunpack.c.l.b16 %v4551
    %v4636 = vunpack.c.h.b16 %v4551
    %v4637 = vunpack.c.l.b16 %v4552
    %v4638 = vunpack.c.h.b16 %v4552
    %v4639 = vunpack.c.l.b16 %v4553
    %v4640 = vunpack.c.h.b16 %v4553
    %v4641 = vunpack.c.l.b16 %v4554
    %v4642 = vunpack.c.h.b16 %v4554
    %v4643 = vunpack.c.l.b16 %v4555
    %v4644 = vunpack.c.h.b16 %v4555
    %v4645 = vunpack.c.l.b16 %v4556
    %v4646 = vunpack.c.h.b16 %v4556
    %v4647 = vunpack.c.l.b16 %v4557
    %v4648 = vunpack.c.h.b16 %v4557
    %v4649 = vunpack.c.l.b16 %v4558
    %v4650 = vunpack.c.h.b16 %v4558
    %v4651 = vunpack.c.l.b16 %v4559
    %v4652 = vunpack.c.h.b16 %v4559
    %v4653 = vunpack.c.l.b16 %v4560
    %v4654 = vunpack.c.h.b16 %v4560
    %v4655 = vunpack.c.l.b16 %v4561
    %v4656 = vunpack.c.h.b16 %v4561
    %v4657 = vunpack.c.l.b16 %v4562
    %v4658 = vunpack.c.h.b16 %v4562
    %v4659 = vpack.c.b16 %v4599, %v4595
    %v4660 = vpack.c.b16 %v4600, %v4596
    %v4661 = vpack.c.b16 %v4601, %v4597
    %v4662 = vpack.c.b16 %v4602, %v4598
    %v4663 = vpack.c.b16 %v4607, %v4603
    %v4664 = vpack.c.b16 %v4608, %v4604
    %v4665 = vpack.c.b16 %v4609, %v4605
    %v4666 = vpack.c.b16 %v4610, %v4606
    %v4667 = vpack.c.b16 %v4615, %v4611
    %v4668 = vpack.c.b16 %v4616, %v4612
    %v4669 = vpack.c.b16 %v4617, %v4613
    %v4670 = vpack.c.b16 %v4618, %v4614
    %v4671 = vpack.c.b16 %v4623, %v4619
    %v4672 = vpack.c.b16 %v4624, %v4620
    %v4673 = vpack.c.b16 %v4625, %v4621
    %v4674 = vpack.c.b16 %v4626, %v4622
    %v4675 = vpack.c.b16 %v4631, %v4627
    %v4676 = vpack.c.b16 %v4632, %v4628
    %v4677 = vpack.c.b16 %v4633, %v4629
    %v4678 = vpack.c.b16 %v4634, %v4630
    %v4679 = vpack.c.b16 %v4639, %v4635
    %v4680 = vpack.c.b16 %v4640, %v4636
    %v4681 = vpack.c.b16 %v4641, %v4637
    %v4682 = vpack.c.b16 %v4642, %v4638
    %v4683 = vpack.c.b16 %v4647, %v4643
    %v4684 = vpack.c.b16 %v4648, %v4644
    %v4685 = vpack.c.b16 %v4649, %v4645
    %v4686 = vpack.c.b16 %v4650, %v4646
    %v4687 = vpack.c.b16 %v4655, %v4651
    %v4688 = vpack.c.b16 %v4656, %v4652
    %v4689 = vpack.c.b16 %v4657, %v4653
    %v4690 = vpack.c.b16 %v4658, %v4654
    %4723 = vmatprep.subr.bf16.mxu0 %v4688
    %4724 = vmatpush1.bf16.msra.mxu0 %v4687
    %4725 = vmatprep.subr.bf16.mxu0 %v4684
    %4726 = vmatpush1.bf16.msra.mxu0 %v4683
    %4727 = vmatprep.subr.bf16.mxu0 %v4680
    %4728 = vmatpush1.bf16.msra.mxu0 %v4679
    %4729 = vmatprep.subr.bf16.mxu0 %v4676
    %4730 = vmatpush1.bf16.msra.mxu0 %v4675
    %4731 = vmatprep.subr.bf16.mxu0 %v4672
    %4732 = vmatpush1.bf16.msra.mxu0 %v4671
    %4733 = vmatprep.subr.bf16.mxu0 %v4668
    %4734 = vmatpush1.bf16.msra.mxu0 %v4667
    %4735 = vmatprep.subr.bf16.mxu0 %v4664
    %4736 = vmatpush1.bf16.msra.mxu0 %v4663
    %4737 = vmatprep.subr.bf16.mxu0 %v4660
    %4738 = vmatpush1.bf16.msra.mxu0 %v4659
    %4739 = vmatprep.subr.bf16.mxu0 0
    %4740 = vmatpush2.bf16.msra.mxu0 0
    %4741 = vmatprep.subr.bf16.mxu0 0
    %4742 = vmatpush2.bf16.msra.mxu0 0
    %4743 = vmatprep.subr.bf16.mxu0 0
    %4744 = vmatpush2.bf16.msra.mxu0 0
    %4745 = vmatprep.subr.bf16.mxu0 0
    %4746 = vmatpush2.bf16.msra.mxu0 0
    %4747 = vmatprep.subr.bf16.mxu0 0
    %4748 = vmatpush2.bf16.msra.mxu0 0
    %4749 = vmatprep.subr.bf16.mxu0 0
    %4750 = vmatpush2.bf16.msra.mxu0 0
    %4751 = vmatprep.subr.bf16.mxu0 0
    %4752 = vmatpush2.bf16.msra.mxu0 0
    %4753 = vmatprep.subr.bf16.mxu0 0
    %4754 = vmatpush2.bf16.msra.mxu0 0
    %4755 = vmatprep.mubr.bf16.mxu0 0
    %4756 = vmatmul.mubr.bf16.gmra.mxu0 %v4521
    %v4757 = vpop.f32.mrf.mxu0
    %v4758 = vadd.f32 0.0, %v4757
    %v4759 = vpop.f32.mrf.mxu0
    %v4760 = vadd.f32 0.0, %v4759
    %v4761 = vpop.f32.mrf.mxu0
    %v4762 = vpop.f32.mrf.mxu0
    %4763 = vdwg.mxu0
    %4764 = vmatprep.subr.bf16.mxu0 %v4690
    %4765 = vmatpush1.bf16.msra.mxu0 %v4689
    %4766 = vmatprep.subr.bf16.mxu0 %v4686
    %4767 = vmatpush1.bf16.msra.mxu0 %v4685
    %4768 = vmatprep.subr.bf16.mxu0 %v4682
    %4769 = vmatpush1.bf16.msra.mxu0 %v4681
    %4770 = vmatprep.subr.bf16.mxu0 %v4678
    %4771 = vmatpush1.bf16.msra.mxu0 %v4677
    %4772 = vmatprep.subr.bf16.mxu0 %v4674
    %4773 = vmatpush1.bf16.msra.mxu0 %v4673
    %4774 = vmatprep.subr.bf16.mxu0 %v4670
    %4775 = vmatpush1.bf16.msra.mxu0 %v4669
    %4776 = vmatprep.subr.bf16.mxu0 %v4666
    %4777 = vmatpush1.bf16.msra.mxu0 %v4665
    %4778 = vmatprep.subr.bf16.mxu0 %v4662
    %4779 = vmatpush1.bf16.msra.mxu0 %v4661
    %4780 = vmatprep.subr.bf16.mxu0 0
    %4781 = vmatpush2.bf16.msra.mxu0 0
    %4782 = vmatprep.subr.bf16.mxu0 0
    %4783 = vmatpush2.bf16.msra.mxu0 0
    %4784 = vmatprep.subr.bf16.mxu0 0
    %4785 = vmatpush2.bf16.msra.mxu0 0
    %4786 = vmatprep.subr.bf16.mxu0 0
    %4787 = vmatpush2.bf16.msra.mxu0 0
    %4788 = vmatprep.subr.bf16.mxu0 0
    %4789 = vmatpush2.bf16.msra.mxu0 0
    %4790 = vmatprep.subr.bf16.mxu0 0
    %4791 = vmatpush2.bf16.msra.mxu0 0
    %4792 = vmatprep.subr.bf16.mxu0 0
    %4793 = vmatpush2.bf16.msra.mxu0 0
    %4794 = vmatprep.subr.bf16.mxu0 0
    %4795 = vmatpush2.bf16.msra.mxu0 0
    %4796 = vmatprep.mubr.bf16.mxu0 0
    %4797 = vmatmul.mubr.bf16.gmra.mxu0 %v4521
    %v4798 = vpop.f32.mrf.mxu0
    %v4799 = vadd.f32 0.0, %v4798
    %v4800 = vpop.f32.mrf.mxu0
    %v4801 = vadd.f32 0.0, %v4800
    %v4802 = vpop.f32.mrf.mxu0
    %v4803 = vpop.f32.mrf.mxu0
    %4804 = vdwg.mxu0
    %v4805 = vadd.f32 %v4527, %v4758
    %v4806 = vadd.f32 %v4528, %v4760
    %v4807 = vadd.f32 %v4529, %v4799
    %v4808 = vadd.f32 %v4530, %v4801
    %v4809 = vxor.u32 %v4805, 2147483648
    %v4810 = vmul.f32 %v4809, 1.442695
    %v4811 = vpow.pop %v4810
    %v4812 = vadd.f32 %v4811, 1.0
    %v4813 = vrcp.pop %v4812
    %v4814 = vmul.f32 1.0, %v4813
    %v4815 = vxor.u32 %v4806, 2147483648
    %v4816 = vmul.f32 %v4815, 1.442695
    %v4817 = vpow.pop %v4816
    %v4818 = vadd.f32 %v4817, 1.0
    %v4819 = vrcp.pop %v4818
    %v4820 = vmul.f32 1.0, %v4819
    %v4821 = vtanh.pop %v4807
    %v4822 = vxor.u32 %v4808, 2147483648
    %v4823 = vmul.f32 %v4822, 1.442695
    %v4824 = vpow.pop %v4823
    %v4825 = vadd.f32 %v4824, 1.0
    %v4826 = vrcp.pop %v4825
    %v4827 = vmul.f32 1.0, %v4826
    %v4828 = vmul.f32 %v4820, %v4518
    %v4829 = vmul.f32 %v4814, %v4821
    %v4830 = vadd.f32 %v4828, %v4829
    %v4831 = vtanh.pop %v4830
    %v4832 = vmul.f32 %v4827, %v4831
    %v4833 = vpack.c.bf16 %v4832, %v4832
    %s4834 = scalar_lea.vmem [#allocation3], 48
    %4835 = vst [vmem:[%s4834] sm:$0xf] %v4833
    %s4836 = smul.u32 13, 4
    %s4837 = smul.addr %s4836, 8
    %s4838 = scalar_lea.vmem [#allocation2], %s4837
    %v4839 = vld [vmem:[%s4838] sm:$0xff]
    %v4840 = vld [vmem:[%s4838 + $0x8] sm:$0xff]
    %v4841 = vld [vmem:[%s4838 + $0x10] sm:$0xff]
    %v4842 = vld [vmem:[%s4838 + $0x18] sm:$0xff]
    %v4843 = vld [vmem:[%s2] sm:$0xff]
    %v4844 = vld [vmem:[%s2 + $0x8] sm:$0xff]
    %v4845 = vld [vmem:[%s2 + $0x10] sm:$0xff]
    %v4846 = vld [vmem:[%s2 + $0x18] sm:$0xff]
    %v4847 = vld [vmem:[%s2 + $0x20] sm:$0xff]
    %v4848 = vld [vmem:[%s2 + $0x28] sm:$0xff]
    %v4849 = vld [vmem:[%s2 + $0x30] sm:$0xff]
    %v4850 = vld [vmem:[%s2 + $0x38] sm:$0xff]
    %v4851 = vld [vmem:[%s2 + $0x40] sm:$0xff]
    %v4852 = vld [vmem:[%s2 + $0x48] sm:$0xff]
    %v4853 = vld [vmem:[%s2 + $0x50] sm:$0xff]
    %v4854 = vld [vmem:[%s2 + $0x58] sm:$0xff]
    %v4855 = vld [vmem:[%s2 + $0x60] sm:$0xff]
    %v4856 = vld [vmem:[%s2 + $0x68] sm:$0xff]
    %v4857 = vld [vmem:[%s2 + $0x70] sm:$0xff]
    %v4858 = vld [vmem:[%s2 + $0x78] sm:$0xff]
    %v4859 = vld [vmem:[%s2 + $0x80] sm:$0xff]
    %v4860 = vld [vmem:[%s2 + $0x88] sm:$0xff]
    %v4861 = vld [vmem:[%s2 + $0x90] sm:$0xff]
    %v4862 = vld [vmem:[%s2 + $0x98] sm:$0xff]
    %v4863 = vld [vmem:[%s2 + $0xa0] sm:$0xff]
    %v4864 = vld [vmem:[%s2 + $0xa8] sm:$0xff]
    %v4865 = vld [vmem:[%s2 + $0xb0] sm:$0xff]
    %v4866 = vld [vmem:[%s2 + $0xb8] sm:$0xff]
    %v4867 = vld [vmem:[%s2 + $0xc0] sm:$0xff]
    %v4868 = vld [vmem:[%s2 + $0xc8] sm:$0xff]
    %v4869 = vld [vmem:[%s2 + $0xd0] sm:$0xff]
    %v4870 = vld [vmem:[%s2 + $0xd8] sm:$0xff]
    %v4871 = vld [vmem:[%s2 + $0xe0] sm:$0xff]
    %v4872 = vld [vmem:[%s2 + $0xe8] sm:$0xff]
    %v4873 = vld [vmem:[%s2 + $0xf0] sm:$0xff]
    %v4874 = vld [vmem:[%s2 + $0xf8] sm:$0xff]
    %v4907 = vunpack.c.l.b16 %v4843
    %v4908 = vunpack.c.h.b16 %v4843
    %v4909 = vunpack.c.l.b16 %v4844
    %v4910 = vunpack.c.h.b16 %v4844
    %v4911 = vunpack.c.l.b16 %v4845
    %v4912 = vunpack.c.h.b16 %v4845
    %v4913 = vunpack.c.l.b16 %v4846
    %v4914 = vunpack.c.h.b16 %v4846
    %v4915 = vunpack.c.l.b16 %v4847
    %v4916 = vunpack.c.h.b16 %v4847
    %v4917 = vunpack.c.l.b16 %v4848
    %v4918 = vunpack.c.h.b16 %v4848
    %v4919 = vunpack.c.l.b16 %v4849
    %v4920 = vunpack.c.h.b16 %v4849
    %v4921 = vunpack.c.l.b16 %v4850
    %v4922 = vunpack.c.h.b16 %v4850
    %v4923 = vunpack.c.l.b16 %v4851
    %v4924 = vunpack.c.h.b16 %v4851
    %v4925 = vunpack.c.l.b16 %v4852
    %v4926 = vunpack.c.h.b16 %v4852
    %v4927 = vunpack.c.l.b16 %v4853
    %v4928 = vunpack.c.h.b16 %v4853
    %v4929 = vunpack.c.l.b16 %v4854
    %v4930 = vunpack.c.h.b16 %v4854
    %v4931 = vunpack.c.l.b16 %v4855
    %v4932 = vunpack.c.h.b16 %v4855
    %v4933 = vunpack.c.l.b16 %v4856
    %v4934 = vunpack.c.h.b16 %v4856
    %v4935 = vunpack.c.l.b16 %v4857
    %v4936 = vunpack.c.h.b16 %v4857
    %v4937 = vunpack.c.l.b16 %v4858
    %v4938 = vunpack.c.h.b16 %v4858
    %v4939 = vunpack.c.l.b16 %v4859
    %v4940 = vunpack.c.h.b16 %v4859
    %v4941 = vunpack.c.l.b16 %v4860
    %v4942 = vunpack.c.h.b16 %v4860
    %v4943 = vunpack.c.l.b16 %v4861
    %v4944 = vunpack.c.h.b16 %v4861
    %v4945 = vunpack.c.l.b16 %v4862
    %v4946 = vunpack.c.h.b16 %v4862
    %v4947 = vunpack.c.l.b16 %v4863
    %v4948 = vunpack.c.h.b16 %v4863
    %v4949 = vunpack.c.l.b16 %v4864
    %v4950 = vunpack.c.h.b16 %v4864
    %v4951 = vunpack.c.l.b16 %v4865
    %v4952 = vunpack.c.h.b16 %v4865
    %v4953 = vunpack.c.l.b16 %v4866
    %v4954 = vunpack.c.h.b16 %v4866
    %v4955 = vunpack.c.l.b16 %v4867
    %v4956 = vunpack.c.h.b16 %v4867
    %v4957 = vunpack.c.l.b16 %v4868
    %v4958 = vunpack.c.h.b16 %v4868
    %v4959 = vunpack.c.l.b16 %v4869
    %v4960 = vunpack.c.h.b16 %v4869
    %v4961 = vunpack.c.l.b16 %v4870
    %v4962 = vunpack.c.h.b16 %v4870
    %v4963 = vunpack.c.l.b16 %v4871
    %v4964 = vunpack.c.h.b16 %v4871
    %v4965 = vunpack.c.l.b16 %v4872
    %v4966 = vunpack.c.h.b16 %v4872
    %v4967 = vunpack.c.l.b16 %v4873
    %v4968 = vunpack.c.h.b16 %v4873
    %v4969 = vunpack.c.l.b16 %v4874
    %v4970 = vunpack.c.h.b16 %v4874
    %v4971 = vpack.c.b16 %v4911, %v4907
    %v4972 = vpack.c.b16 %v4912, %v4908
    %v4973 = vpack.c.b16 %v4913, %v4909
    %v4974 = vpack.c.b16 %v4914, %v4910
    %v4975 = vpack.c.b16 %v4919, %v4915
    %v4976 = vpack.c.b16 %v4920, %v4916
    %v4977 = vpack.c.b16 %v4921, %v4917
    %v4978 = vpack.c.b16 %v4922, %v4918
    %v4979 = vpack.c.b16 %v4927, %v4923
    %v4980 = vpack.c.b16 %v4928, %v4924
    %v4981 = vpack.c.b16 %v4929, %v4925
    %v4982 = vpack.c.b16 %v4930, %v4926
    %v4983 = vpack.c.b16 %v4935, %v4931
    %v4984 = vpack.c.b16 %v4936, %v4932
    %v4985 = vpack.c.b16 %v4937, %v4933
    %v4986 = vpack.c.b16 %v4938, %v4934
    %v4987 = vpack.c.b16 %v4943, %v4939
    %v4988 = vpack.c.b16 %v4944, %v4940
    %v4989 = vpack.c.b16 %v4945, %v4941
    %v4990 = vpack.c.b16 %v4946, %v4942
    %v4991 = vpack.c.b16 %v4951, %v4947
    %v4992 = vpack.c.b16 %v4952, %v4948
    %v4993 = vpack.c.b16 %v4953, %v4949
    %v4994 = vpack.c.b16 %v4954, %v4950
    %v4995 = vpack.c.b16 %v4959, %v4955
    %v4996 = vpack.c.b16 %v4960, %v4956
    %v4997 = vpack.c.b16 %v4961, %v4957
    %v4998 = vpack.c.b16 %v4962, %v4958
    %v4999 = vpack.c.b16 %v4967, %v4963
    %v5000 = vpack.c.b16 %v4968, %v4964
    %v5001 = vpack.c.b16 %v4969, %v4965
    %v5002 = vpack.c.b16 %v4970, %v4966
    %5035 = vmatprep.subr.bf16.mxu0 %v5000
    %5036 = vmatpush1.bf16.msra.mxu0 %v4999
    %5037 = vmatprep.subr.bf16.mxu0 %v4996
    %5038 = vmatpush1.bf16.msra.mxu0 %v4995
    %5039 = vmatprep.subr.bf16.mxu0 %v4992
    %5040 = vmatpush1.bf16.msra.mxu0 %v4991
    %5041 = vmatprep.subr.bf16.mxu0 %v4988
    %5042 = vmatpush1.bf16.msra.mxu0 %v4987
    %5043 = vmatprep.subr.bf16.mxu0 %v4984
    %5044 = vmatpush1.bf16.msra.mxu0 %v4983
    %5045 = vmatprep.subr.bf16.mxu0 %v4980
    %5046 = vmatpush1.bf16.msra.mxu0 %v4979
    %5047 = vmatprep.subr.bf16.mxu0 %v4976
    %5048 = vmatpush1.bf16.msra.mxu0 %v4975
    %5049 = vmatprep.subr.bf16.mxu0 %v4972
    %5050 = vmatpush1.bf16.msra.mxu0 %v4971
    %5051 = vmatprep.subr.bf16.mxu0 0
    %5052 = vmatpush2.bf16.msra.mxu0 0
    %5053 = vmatprep.subr.bf16.mxu0 0
    %5054 = vmatpush2.bf16.msra.mxu0 0
    %5055 = vmatprep.subr.bf16.mxu0 0
    %5056 = vmatpush2.bf16.msra.mxu0 0
    %5057 = vmatprep.subr.bf16.mxu0 0
    %5058 = vmatpush2.bf16.msra.mxu0 0
    %5059 = vmatprep.subr.bf16.mxu0 0
    %5060 = vmatpush2.bf16.msra.mxu0 0
    %5061 = vmatprep.subr.bf16.mxu0 0
    %5062 = vmatpush2.bf16.msra.mxu0 0
    %5063 = vmatprep.subr.bf16.mxu0 0
    %5064 = vmatpush2.bf16.msra.mxu0 0
    %5065 = vmatprep.subr.bf16.mxu0 0
    %5066 = vmatpush2.bf16.msra.mxu0 0
    %5067 = vmatprep.mubr.bf16.mxu0 0
    %5068 = vmatmul.mubr.bf16.gmra.mxu0 %v4833
    %v5069 = vpop.f32.mrf.mxu0
    %v5070 = vadd.f32 0.0, %v5069
    %v5071 = vpop.f32.mrf.mxu0
    %v5072 = vadd.f32 0.0, %v5071
    %v5073 = vpop.f32.mrf.mxu0
    %v5074 = vpop.f32.mrf.mxu0
    %5075 = vdwg.mxu0
    %5076 = vmatprep.subr.bf16.mxu0 %v5002
    %5077 = vmatpush1.bf16.msra.mxu0 %v5001
    %5078 = vmatprep.subr.bf16.mxu0 %v4998
    %5079 = vmatpush1.bf16.msra.mxu0 %v4997
    %5080 = vmatprep.subr.bf16.mxu0 %v4994
    %5081 = vmatpush1.bf16.msra.mxu0 %v4993
    %5082 = vmatprep.subr.bf16.mxu0 %v4990
    %5083 = vmatpush1.bf16.msra.mxu0 %v4989
    %5084 = vmatprep.subr.bf16.mxu0 %v4986
    %5085 = vmatpush1.bf16.msra.mxu0 %v4985
    %5086 = vmatprep.subr.bf16.mxu0 %v4982
    %5087 = vmatpush1.bf16.msra.mxu0 %v4981
    %5088 = vmatprep.subr.bf16.mxu0 %v4978
    %5089 = vmatpush1.bf16.msra.mxu0 %v4977
    %5090 = vmatprep.subr.bf16.mxu0 %v4974
    %5091 = vmatpush1.bf16.msra.mxu0 %v4973
    %5092 = vmatprep.subr.bf16.mxu0 0
    %5093 = vmatpush2.bf16.msra.mxu0 0
    %5094 = vmatprep.subr.bf16.mxu0 0
    %5095 = vmatpush2.bf16.msra.mxu0 0
    %5096 = vmatprep.subr.bf16.mxu0 0
    %5097 = vmatpush2.bf16.msra.mxu0 0
    %5098 = vmatprep.subr.bf16.mxu0 0
    %5099 = vmatpush2.bf16.msra.mxu0 0
    %5100 = vmatprep.subr.bf16.mxu0 0
    %5101 = vmatpush2.bf16.msra.mxu0 0
    %5102 = vmatprep.subr.bf16.mxu0 0
    %5103 = vmatpush2.bf16.msra.mxu0 0
    %5104 = vmatprep.subr.bf16.mxu0 0
    %5105 = vmatpush2.bf16.msra.mxu0 0
    %5106 = vmatprep.subr.bf16.mxu0 0
    %5107 = vmatpush2.bf16.msra.mxu0 0
    %5108 = vmatprep.mubr.bf16.mxu0 0
    %5109 = vmatmul.mubr.bf16.gmra.mxu0 %v4833
    %v5110 = vpop.f32.mrf.mxu0
    %v5111 = vadd.f32 0.0, %v5110
    %v5112 = vpop.f32.mrf.mxu0
    %v5113 = vadd.f32 0.0, %v5112
    %v5114 = vpop.f32.mrf.mxu0
    %v5115 = vpop.f32.mrf.mxu0
    %5116 = vdwg.mxu0
    %v5117 = vadd.f32 %v4839, %v5070
    %v5118 = vadd.f32 %v4840, %v5072
    %v5119 = vadd.f32 %v4841, %v5111
    %v5120 = vadd.f32 %v4842, %v5113
    %v5121 = vxor.u32 %v5117, 2147483648
    %v5122 = vmul.f32 %v5121, 1.442695
    %v5123 = vpow.pop %v5122
    %v5124 = vadd.f32 %v5123, 1.0
    %v5125 = vrcp.pop %v5124
    %v5126 = vmul.f32 1.0, %v5125
    %v5127 = vxor.u32 %v5118, 2147483648
    %v5128 = vmul.f32 %v5127, 1.442695
    %v5129 = vpow.pop %v5128
    %v5130 = vadd.f32 %v5129, 1.0
    %v5131 = vrcp.pop %v5130
    %v5132 = vmul.f32 1.0, %v5131
    %v5133 = vtanh.pop %v5119
    %v5134 = vxor.u32 %v5120, 2147483648
    %v5135 = vmul.f32 %v5134, 1.442695
    %v5136 = vpow.pop %v5135
    %v5137 = vadd.f32 %v5136, 1.0
    %v5138 = vrcp.pop %v5137
    %v5139 = vmul.f32 1.0, %v5138
    %v5140 = vmul.f32 %v5132, %v4830
    %v5141 = vmul.f32 %v5126, %v5133
    %v5142 = vadd.f32 %v5140, %v5141
    %v5143 = vtanh.pop %v5142
    %v5144 = vmul.f32 %v5139, %v5143
    %v5145 = vpack.c.bf16 %v5144, %v5144
    %s5146 = scalar_lea.vmem [#allocation3], 52
    %5147 = vst [vmem:[%s5146] sm:$0xf] %v5145
    %s5148 = smul.u32 14, 4
    %s5149 = smul.addr %s5148, 8
    %s5150 = scalar_lea.vmem [#allocation2], %s5149
    %v5151 = vld [vmem:[%s5150] sm:$0xff]
    %v5152 = vld [vmem:[%s5150 + $0x8] sm:$0xff]
    %v5153 = vld [vmem:[%s5150 + $0x10] sm:$0xff]
    %v5154 = vld [vmem:[%s5150 + $0x18] sm:$0xff]
    %v5155 = vld [vmem:[%s2] sm:$0xff]
    %v5156 = vld [vmem:[%s2 + $0x8] sm:$0xff]
    %v5157 = vld [vmem:[%s2 + $0x10] sm:$0xff]
    %v5158 = vld [vmem:[%s2 + $0x18] sm:$0xff]
    %v5159 = vld [vmem:[%s2 + $0x20] sm:$0xff]
    %v5160 = vld [vmem:[%s2 + $0x28] sm:$0xff]
    %v5161 = vld [vmem:[%s2 + $0x30] sm:$0xff]
    %v5162 = vld [vmem:[%s2 + $0x38] sm:$0xff]
    %v5163 = vld [vmem:[%s2 + $0x40] sm:$0xff]
    %v5164 = vld [vmem:[%s2 + $0x48] sm:$0xff]
    %v5165 = vld [vmem:[%s2 + $0x50] sm:$0xff]
    %v5166 = vld [vmem:[%s2 + $0x58] sm:$0xff]
    %v5167 = vld [vmem:[%s2 + $0x60] sm:$0xff]
    %v5168 = vld [vmem:[%s2 + $0x68] sm:$0xff]
    %v5169 = vld [vmem:[%s2 + $0x70] sm:$0xff]
    %v5170 = vld [vmem:[%s2 + $0x78] sm:$0xff]
    %v5171 = vld [vmem:[%s2 + $0x80] sm:$0xff]
    %v5172 = vld [vmem:[%s2 + $0x88] sm:$0xff]
    %v5173 = vld [vmem:[%s2 + $0x90] sm:$0xff]
    %v5174 = vld [vmem:[%s2 + $0x98] sm:$0xff]
    %v5175 = vld [vmem:[%s2 + $0xa0] sm:$0xff]
    %v5176 = vld [vmem:[%s2 + $0xa8] sm:$0xff]
    %v5177 = vld [vmem:[%s2 + $0xb0] sm:$0xff]
    %v5178 = vld [vmem:[%s2 + $0xb8] sm:$0xff]
    %v5179 = vld [vmem:[%s2 + $0xc0] sm:$0xff]
    %v5180 = vld [vmem:[%s2 + $0xc8] sm:$0xff]
    %v5181 = vld [vmem:[%s2 + $0xd0] sm:$0xff]
    %v5182 = vld [vmem:[%s2 + $0xd8] sm:$0xff]
    %v5183 = vld [vmem:[%s2 + $0xe0] sm:$0xff]
    %v5184 = vld [vmem:[%s2 + $0xe8] sm:$0xff]
    %v5185 = vld [vmem:[%s2 + $0xf0] sm:$0xff]
    %v5186 = vld [vmem:[%s2 + $0xf8] sm:$0xff]
    %v5219 = vunpack.c.l.b16 %v5155
    %v5220 = vunpack.c.h.b16 %v5155
    %v5221 = vunpack.c.l.b16 %v5156
    %v5222 = vunpack.c.h.b16 %v5156
    %v5223 = vunpack.c.l.b16 %v5157
    %v5224 = vunpack.c.h.b16 %v5157
    %v5225 = vunpack.c.l.b16 %v5158
    %v5226 = vunpack.c.h.b16 %v5158
    %v5227 = vunpack.c.l.b16 %v5159
    %v5228 = vunpack.c.h.b16 %v5159
    %v5229 = vunpack.c.l.b16 %v5160
    %v5230 = vunpack.c.h.b16 %v5160
    %v5231 = vunpack.c.l.b16 %v5161
    %v5232 = vunpack.c.h.b16 %v5161
    %v5233 = vunpack.c.l.b16 %v5162
    %v5234 = vunpack.c.h.b16 %v5162
    %v5235 = vunpack.c.l.b16 %v5163
    %v5236 = vunpack.c.h.b16 %v5163
    %v5237 = vunpack.c.l.b16 %v5164
    %v5238 = vunpack.c.h.b16 %v5164
    %v5239 = vunpack.c.l.b16 %v5165
    %v5240 = vunpack.c.h.b16 %v5165
    %v5241 = vunpack.c.l.b16 %v5166
    %v5242 = vunpack.c.h.b16 %v5166
    %v5243 = vunpack.c.l.b16 %v5167
    %v5244 = vunpack.c.h.b16 %v5167
    %v5245 = vunpack.c.l.b16 %v5168
    %v5246 = vunpack.c.h.b16 %v5168
    %v5247 = vunpack.c.l.b16 %v5169
    %v5248 = vunpack.c.h.b16 %v5169
    %v5249 = vunpack.c.l.b16 %v5170
    %v5250 = vunpack.c.h.b16 %v5170
    %v5251 = vunpack.c.l.b16 %v5171
    %v5252 = vunpack.c.h.b16 %v5171
    %v5253 = vunpack.c.l.b16 %v5172
    %v5254 = vunpack.c.h.b16 %v5172
    %v5255 = vunpack.c.l.b16 %v5173
    %v5256 = vunpack.c.h.b16 %v5173
    %v5257 = vunpack.c.l.b16 %v5174
    %v5258 = vunpack.c.h.b16 %v5174
    %v5259 = vunpack.c.l.b16 %v5175
    %v5260 = vunpack.c.h.b16 %v5175
    %v5261 = vunpack.c.l.b16 %v5176
    %v5262 = vunpack.c.h.b16 %v5176
    %v5263 = vunpack.c.l.b16 %v5177
    %v5264 = vunpack.c.h.b16 %v5177
    %v5265 = vunpack.c.l.b16 %v5178
    %v5266 = vunpack.c.h.b16 %v5178
    %v5267 = vunpack.c.l.b16 %v5179
    %v5268 = vunpack.c.h.b16 %v5179
    %v5269 = vunpack.c.l.b16 %v5180
    %v5270 = vunpack.c.h.b16 %v5180
    %v5271 = vunpack.c.l.b16 %v5181
    %v5272 = vunpack.c.h.b16 %v5181
    %v5273 = vunpack.c.l.b16 %v5182
    %v5274 = vunpack.c.h.b16 %v5182
    %v5275 = vunpack.c.l.b16 %v5183
    %v5276 = vunpack.c.h.b16 %v5183
    %v5277 = vunpack.c.l.b16 %v5184
    %v5278 = vunpack.c.h.b16 %v5184
    %v5279 = vunpack.c.l.b16 %v5185
    %v5280 = vunpack.c.h.b16 %v5185
    %v5281 = vunpack.c.l.b16 %v5186
    %v5282 = vunpack.c.h.b16 %v5186
    %v5283 = vpack.c.b16 %v5223, %v5219
    %v5284 = vpack.c.b16 %v5224, %v5220
    %v5285 = vpack.c.b16 %v5225, %v5221
    %v5286 = vpack.c.b16 %v5226, %v5222
    %v5287 = vpack.c.b16 %v5231, %v5227
    %v5288 = vpack.c.b16 %v5232, %v5228
    %v5289 = vpack.c.b16 %v5233, %v5229
    %v5290 = vpack.c.b16 %v5234, %v5230
    %v5291 = vpack.c.b16 %v5239, %v5235
    %v5292 = vpack.c.b16 %v5240, %v5236
    %v5293 = vpack.c.b16 %v5241, %v5237
    %v5294 = vpack.c.b16 %v5242, %v5238
    %v5295 = vpack.c.b16 %v5247, %v5243
    %v5296 = vpack.c.b16 %v5248, %v5244
    %v5297 = vpack.c.b16 %v5249, %v5245
    %v5298 = vpack.c.b16 %v5250, %v5246
    %v5299 = vpack.c.b16 %v5255, %v5251
    %v5300 = vpack.c.b16 %v5256, %v5252
    %v5301 = vpack.c.b16 %v5257, %v5253
    %v5302 = vpack.c.b16 %v5258, %v5254
    %v5303 = vpack.c.b16 %v5263, %v5259
    %v5304 = vpack.c.b16 %v5264, %v5260
    %v5305 = vpack.c.b16 %v5265, %v5261
    %v5306 = vpack.c.b16 %v5266, %v5262
    %v5307 = vpack.c.b16 %v5271, %v5267
    %v5308 = vpack.c.b16 %v5272, %v5268
    %v5309 = vpack.c.b16 %v5273, %v5269
    %v5310 = vpack.c.b16 %v5274, %v5270
    %v5311 = vpack.c.b16 %v5279, %v5275
    %v5312 = vpack.c.b16 %v5280, %v5276
    %v5313 = vpack.c.b16 %v5281, %v5277
    %v5314 = vpack.c.b16 %v5282, %v5278
    %5347 = vmatprep.subr.bf16.mxu0 %v5312
    %5348 = vmatpush1.bf16.msra.mxu0 %v5311
    %5349 = vmatprep.subr.bf16.mxu0 %v5308
    %5350 = vmatpush1.bf16.msra.mxu0 %v5307
    %5351 = vmatprep.subr.bf16.mxu0 %v5304
    %5352 = vmatpush1.bf16.msra.mxu0 %v5303
    %5353 = vmatprep.subr.bf16.mxu0 %v5300
    %5354 = vmatpush1.bf16.msra.mxu0 %v5299
    %5355 = vmatprep.subr.bf16.mxu0 %v5296
    %5356 = vmatpush1.bf16.msra.mxu0 %v5295
    %5357 = vmatprep.subr.bf16.mxu0 %v5292
    %5358 = vmatpush1.bf16.msra.mxu0 %v5291
    %5359 = vmatprep.subr.bf16.mxu0 %v5288
    %5360 = vmatpush1.bf16.msra.mxu0 %v5287
    %5361 = vmatprep.subr.bf16.mxu0 %v5284
    %5362 = vmatpush1.bf16.msra.mxu0 %v5283
    %5363 = vmatprep.subr.bf16.mxu0 0
    %5364 = vmatpush2.bf16.msra.mxu0 0
    %5365 = vmatprep.subr.bf16.mxu0 0
    %5366 = vmatpush2.bf16.msra.mxu0 0
    %5367 = vmatprep.subr.bf16.mxu0 0
    %5368 = vmatpush2.bf16.msra.mxu0 0
    %5369 = vmatprep.subr.bf16.mxu0 0
    %5370 = vmatpush2.bf16.msra.mxu0 0
    %5371 = vmatprep.subr.bf16.mxu0 0
    %5372 = vmatpush2.bf16.msra.mxu0 0
    %5373 = vmatprep.subr.bf16.mxu0 0
    %5374 = vmatpush2.bf16.msra.mxu0 0
    %5375 = vmatprep.subr.bf16.mxu0 0
    %5376 = vmatpush2.bf16.msra.mxu0 0
    %5377 = vmatprep.subr.bf16.mxu0 0
    %5378 = vmatpush2.bf16.msra.mxu0 0
    %5379 = vmatprep.mubr.bf16.mxu0 0
    %5380 = vmatmul.mubr.bf16.gmra.mxu0 %v5145
    %v5381 = vpop.f32.mrf.mxu0
    %v5382 = vadd.f32 0.0, %v5381
    %v5383 = vpop.f32.mrf.mxu0
    %v5384 = vadd.f32 0.0, %v5383
    %v5385 = vpop.f32.mrf.mxu0
    %v5386 = vpop.f32.mrf.mxu0
    %5387 = vdwg.mxu0
    %5388 = vmatprep.subr.bf16.mxu0 %v5314
    %5389 = vmatpush1.bf16.msra.mxu0 %v5313
    %5390 = vmatprep.subr.bf16.mxu0 %v5310
    %5391 = vmatpush1.bf16.msra.mxu0 %v5309
    %5392 = vmatprep.subr.bf16.mxu0 %v5306
    %5393 = vmatpush1.bf16.msra.mxu0 %v5305
    %5394 = vmatprep.subr.bf16.mxu0 %v5302
    %5395 = vmatpush1.bf16.msra.mxu0 %v5301
    %5396 = vmatprep.subr.bf16.mxu0 %v5298
    %5397 = vmatpush1.bf16.msra.mxu0 %v5297
    %5398 = vmatprep.subr.bf16.mxu0 %v5294
    %5399 = vmatpush1.bf16.msra.mxu0 %v5293
    %5400 = vmatprep.subr.bf16.mxu0 %v5290
    %5401 = vmatpush1.bf16.msra.mxu0 %v5289
    %5402 = vmatprep.subr.bf16.mxu0 %v5286
    %5403 = vmatpush1.bf16.msra.mxu0 %v5285
    %5404 = vmatprep.subr.bf16.mxu0 0
    %5405 = vmatpush2.bf16.msra.mxu0 0
    %5406 = vmatprep.subr.bf16.mxu0 0
    %5407 = vmatpush2.bf16.msra.mxu0 0
    %5408 = vmatprep.subr.bf16.mxu0 0
    %5409 = vmatpush2.bf16.msra.mxu0 0
    %5410 = vmatprep.subr.bf16.mxu0 0
    %5411 = vmatpush2.bf16.msra.mxu0 0
    %5412 = vmatprep.subr.bf16.mxu0 0
    %5413 = vmatpush2.bf16.msra.mxu0 0
    %5414 = vmatprep.subr.bf16.mxu0 0
    %5415 = vmatpush2.bf16.msra.mxu0 0
    %5416 = vmatprep.subr.bf16.mxu0 0
    %5417 = vmatpush2.bf16.msra.mxu0 0
    %5418 = vmatprep.subr.bf16.mxu0 0
    %5419 = vmatpush2.bf16.msra.mxu0 0
    %5420 = vmatprep.mubr.bf16.mxu0 0
    %5421 = vmatmul.mubr.bf16.gmra.mxu0 %v5145
    %v5422 = vpop.f32.mrf.mxu0
    %v5423 = vadd.f32 0.0, %v5422
    %v5424 = vpop.f32.mrf.mxu0
    %v5425 = vadd.f32 0.0, %v5424
    %v5426 = vpop.f32.mrf.mxu0
    %v5427 = vpop.f32.mrf.mxu0
    %5428 = vdwg.mxu0
    %v5429 = vadd.f32 %v5151, %v5382
    %v5430 = vadd.f32 %v5152, %v5384
    %v5431 = vadd.f32 %v5153, %v5423
    %v5432 = vadd.f32 %v5154, %v5425
    %v5433 = vxor.u32 %v5429, 2147483648
    %v5434 = vmul.f32 %v5433, 1.442695
    %v5435 = vpow.pop %v5434
    %v5436 = vadd.f32 %v5435, 1.0
    %v5437 = vrcp.pop %v5436
    %v5438 = vmul.f32 1.0, %v5437
    %v5439 = vxor.u32 %v5430, 2147483648
    %v5440 = vmul.f32 %v5439, 1.442695
    %v5441 = vpow.pop %v5440
    %v5442 = vadd.f32 %v5441, 1.0
    %v5443 = vrcp.pop %v5442
    %v5444 = vmul.f32 1.0, %v5443
    %v5445 = vtanh.pop %v5431
    %v5446 = vxor.u32 %v5432, 2147483648
    %v5447 = vmul.f32 %v5446, 1.442695
    %v5448 = vpow.pop %v5447
    %v5449 = vadd.f32 %v5448, 1.0
    %v5450 = vrcp.pop %v5449
    %v5451 = vmul.f32 1.0, %v5450
    %v5452 = vmul.f32 %v5444, %v5142
    %v5453 = vmul.f32 %v5438, %v5445
    %v5454 = vadd.f32 %v5452, %v5453
    %v5455 = vtanh.pop %v5454
    %v5456 = vmul.f32 %v5451, %v5455
    %v5457 = vpack.c.bf16 %v5456, %v5456
    %s5458 = scalar_lea.vmem [#allocation3], 56
    %5459 = vst [vmem:[%s5458] sm:$0xf] %v5457
    %s5460 = smul.u32 15, 4
    %s5461 = smul.addr %s5460, 8
    %s5462 = scalar_lea.vmem [#allocation2], %s5461
    %v5463 = vld [vmem:[%s5462] sm:$0xff]
    %v5464 = vld [vmem:[%s5462 + $0x8] sm:$0xff]
    %v5465 = vld [vmem:[%s5462 + $0x10] sm:$0xff]
    %v5466 = vld [vmem:[%s5462 + $0x18] sm:$0xff]
    %v5467 = vld [vmem:[%s2] sm:$0xff]
    %v5468 = vld [vmem:[%s2 + $0x8] sm:$0xff]
    %v5469 = vld [vmem:[%s2 + $0x10] sm:$0xff]
    %v5470 = vld [vmem:[%s2 + $0x18] sm:$0xff]
    %v5471 = vld [vmem:[%s2 + $0x20] sm:$0xff]
    %v5472 = vld [vmem:[%s2 + $0x28] sm:$0xff]
    %v5473 = vld [vmem:[%s2 + $0x30] sm:$0xff]
    %v5474 = vld [vmem:[%s2 + $0x38] sm:$0xff]
    %v5475 = vld [vmem:[%s2 + $0x40] sm:$0xff]
    %v5476 = vld [vmem:[%s2 + $0x48] sm:$0xff]
    %v5477 = vld [vmem:[%s2 + $0x50] sm:$0xff]
    %v5478 = vld [vmem:[%s2 + $0x58] sm:$0xff]
    %v5479 = vld [vmem:[%s2 + $0x60] sm:$0xff]
    %v5480 = vld [vmem:[%s2 + $0x68] sm:$0xff]
    %v5481 = vld [vmem:[%s2 + $0x70] sm:$0xff]
    %v5482 = vld [vmem:[%s2 + $0x78] sm:$0xff]
    %v5483 = vld [vmem:[%s2 + $0x80] sm:$0xff]
    %v5484 = vld [vmem:[%s2 + $0x88] sm:$0xff]
    %v5485 = vld [vmem:[%s2 + $0x90] sm:$0xff]
    %v5486 = vld [vmem:[%s2 + $0x98] sm:$0xff]
    %v5487 = vld [vmem:[%s2 + $0xa0] sm:$0xff]
    %v5488 = vld [vmem:[%s2 + $0xa8] sm:$0xff]
    %v5489 = vld [vmem:[%s2 + $0xb0] sm:$0xff]
    %v5490 = vld [vmem:[%s2 + $0xb8] sm:$0xff]
    %v5491 = vld [vmem:[%s2 + $0xc0] sm:$0xff]
    %v5492 = vld [vmem:[%s2 + $0xc8] sm:$0xff]
    %v5493 = vld [vmem:[%s2 + $0xd0] sm:$0xff]
    %v5494 = vld [vmem:[%s2 + $0xd8] sm:$0xff]
    %v5495 = vld [vmem:[%s2 + $0xe0] sm:$0xff]
    %v5496 = vld [vmem:[%s2 + $0xe8] sm:$0xff]
    %v5497 = vld [vmem:[%s2 + $0xf0] sm:$0xff]
    %v5498 = vld [vmem:[%s2 + $0xf8] sm:$0xff]
    %v5531 = vunpack.c.l.b16 %v5467
    %v5532 = vunpack.c.h.b16 %v5467
    %v5533 = vunpack.c.l.b16 %v5468
    %v5534 = vunpack.c.h.b16 %v5468
    %v5535 = vunpack.c.l.b16 %v5469
    %v5536 = vunpack.c.h.b16 %v5469
    %v5537 = vunpack.c.l.b16 %v5470
    %v5538 = vunpack.c.h.b16 %v5470
    %v5539 = vunpack.c.l.b16 %v5471
    %v5540 = vunpack.c.h.b16 %v5471
    %v5541 = vunpack.c.l.b16 %v5472
    %v5542 = vunpack.c.h.b16 %v5472
    %v5543 = vunpack.c.l.b16 %v5473
    %v5544 = vunpack.c.h.b16 %v5473
    %v5545 = vunpack.c.l.b16 %v5474
    %v5546 = vunpack.c.h.b16 %v5474
    %v5547 = vunpack.c.l.b16 %v5475
    %v5548 = vunpack.c.h.b16 %v5475
    %v5549 = vunpack.c.l.b16 %v5476
    %v5550 = vunpack.c.h.b16 %v5476
    %v5551 = vunpack.c.l.b16 %v5477
    %v5552 = vunpack.c.h.b16 %v5477
    %v5553 = vunpack.c.l.b16 %v5478
    %v5554 = vunpack.c.h.b16 %v5478
    %v5555 = vunpack.c.l.b16 %v5479
    %v5556 = vunpack.c.h.b16 %v5479
    %v5557 = vunpack.c.l.b16 %v5480
    %v5558 = vunpack.c.h.b16 %v5480
    %v5559 = vunpack.c.l.b16 %v5481
    %v5560 = vunpack.c.h.b16 %v5481
    %v5561 = vunpack.c.l.b16 %v5482
    %v5562 = vunpack.c.h.b16 %v5482
    %v5563 = vunpack.c.l.b16 %v5483
    %v5564 = vunpack.c.h.b16 %v5483
    %v5565 = vunpack.c.l.b16 %v5484
    %v5566 = vunpack.c.h.b16 %v5484
    %v5567 = vunpack.c.l.b16 %v5485
    %v5568 = vunpack.c.h.b16 %v5485
    %v5569 = vunpack.c.l.b16 %v5486
    %v5570 = vunpack.c.h.b16 %v5486
    %v5571 = vunpack.c.l.b16 %v5487
    %v5572 = vunpack.c.h.b16 %v5487
    %v5573 = vunpack.c.l.b16 %v5488
    %v5574 = vunpack.c.h.b16 %v5488
    %v5575 = vunpack.c.l.b16 %v5489
    %v5576 = vunpack.c.h.b16 %v5489
    %v5577 = vunpack.c.l.b16 %v5490
    %v5578 = vunpack.c.h.b16 %v5490
    %v5579 = vunpack.c.l.b16 %v5491
    %v5580 = vunpack.c.h.b16 %v5491
    %v5581 = vunpack.c.l.b16 %v5492
    %v5582 = vunpack.c.h.b16 %v5492
    %v5583 = vunpack.c.l.b16 %v5493
    %v5584 = vunpack.c.h.b16 %v5493
    %v5585 = vunpack.c.l.b16 %v5494
    %v5586 = vunpack.c.h.b16 %v5494
    %v5587 = vunpack.c.l.b16 %v5495
    %v5588 = vunpack.c.h.b16 %v5495
    %v5589 = vunpack.c.l.b16 %v5496
    %v5590 = vunpack.c.h.b16 %v5496
    %v5591 = vunpack.c.l.b16 %v5497
    %v5592 = vunpack.c.h.b16 %v5497
    %v5593 = vunpack.c.l.b16 %v5498
    %v5594 = vunpack.c.h.b16 %v5498
    %v5595 = vpack.c.b16 %v5535, %v5531
    %v5596 = vpack.c.b16 %v5536, %v5532
    %v5597 = vpack.c.b16 %v5537, %v5533
    %v5598 = vpack.c.b16 %v5538, %v5534
    %v5599 = vpack.c.b16 %v5543, %v5539
    %v5600 = vpack.c.b16 %v5544, %v5540
    %v5601 = vpack.c.b16 %v5545, %v5541
    %v5602 = vpack.c.b16 %v5546, %v5542
    %v5603 = vpack.c.b16 %v5551, %v5547
    %v5604 = vpack.c.b16 %v5552, %v5548
    %v5605 = vpack.c.b16 %v5553, %v5549
    %v5606 = vpack.c.b16 %v5554, %v5550
    %v5607 = vpack.c.b16 %v5559, %v5555
    %v5608 = vpack.c.b16 %v5560, %v5556
    %v5609 = vpack.c.b16 %v5561, %v5557
    %v5610 = vpack.c.b16 %v5562, %v5558
    %v5611 = vpack.c.b16 %v5567, %v5563
    %v5612 = vpack.c.b16 %v5568, %v5564
    %v5613 = vpack.c.b16 %v5569, %v5565
    %v5614 = vpack.c.b16 %v5570, %v5566
    %v5615 = vpack.c.b16 %v5575, %v5571
    %v5616 = vpack.c.b16 %v5576, %v5572
    %v5617 = vpack.c.b16 %v5577, %v5573
    %v5618 = vpack.c.b16 %v5578, %v5574
    %v5619 = vpack.c.b16 %v5583, %v5579
    %v5620 = vpack.c.b16 %v5584, %v5580
    %v5621 = vpack.c.b16 %v5585, %v5581
    %v5622 = vpack.c.b16 %v5586, %v5582
    %v5623 = vpack.c.b16 %v5591, %v5587
    %v5624 = vpack.c.b16 %v5592, %v5588
    %v5625 = vpack.c.b16 %v5593, %v5589
    %v5626 = vpack.c.b16 %v5594, %v5590
    %5659 = vmatprep.subr.bf16.mxu0 %v5624
    %5660 = vmatpush1.bf16.msra.mxu0 %v5623
    %5661 = vmatprep.subr.bf16.mxu0 %v5620
    %5662 = vmatpush1.bf16.msra.mxu0 %v5619
    %5663 = vmatprep.subr.bf16.mxu0 %v5616
    %5664 = vmatpush1.bf16.msra.mxu0 %v5615
    %5665 = vmatprep.subr.bf16.mxu0 %v5612
    %5666 = vmatpush1.bf16.msra.mxu0 %v5611
    %5667 = vmatprep.subr.bf16.mxu0 %v5608
    %5668 = vmatpush1.bf16.msra.mxu0 %v5607
    %5669 = vmatprep.subr.bf16.mxu0 %v5604
    %5670 = vmatpush1.bf16.msra.mxu0 %v5603
    %5671 = vmatprep.subr.bf16.mxu0 %v5600
    %5672 = vmatpush1.bf16.msra.mxu0 %v5599
    %5673 = vmatprep.subr.bf16.mxu0 %v5596
    %5674 = vmatpush1.bf16.msra.mxu0 %v5595
    %5675 = vmatprep.subr.bf16.mxu0 0
    %5676 = vmatpush2.bf16.msra.mxu0 0
    %5677 = vmatprep.subr.bf16.mxu0 0
    %5678 = vmatpush2.bf16.msra.mxu0 0
    %5679 = vmatprep.subr.bf16.mxu0 0
    %5680 = vmatpush2.bf16.msra.mxu0 0
    %5681 = vmatprep.subr.bf16.mxu0 0
    %5682 = vmatpush2.bf16.msra.mxu0 0
    %5683 = vmatprep.subr.bf16.mxu0 0
    %5684 = vmatpush2.bf16.msra.mxu0 0
    %5685 = vmatprep.subr.bf16.mxu0 0
    %5686 = vmatpush2.bf16.msra.mxu0 0
    %5687 = vmatprep.subr.bf16.mxu0 0
    %5688 = vmatpush2.bf16.msra.mxu0 0
    %5689 = vmatprep.subr.bf16.mxu0 0
    %5690 = vmatpush2.bf16.msra.mxu0 0
    %5691 = vmatprep.mubr.bf16.mxu0 0
    %5692 = vmatmul.mubr.bf16.gmra.mxu0 %v5457
    %v5693 = vpop.f32.mrf.mxu0
    %v5694 = vadd.f32 0.0, %v5693
    %v5695 = vpop.f32.mrf.mxu0
    %v5696 = vadd.f32 0.0, %v5695
    %v5697 = vpop.f32.mrf.mxu0
    %v5698 = vpop.f32.mrf.mxu0
    %5699 = vdwg.mxu0
    %5700 = vmatprep.subr.bf16.mxu0 %v5626
    %5701 = vmatpush1.bf16.msra.mxu0 %v5625
    %5702 = vmatprep.subr.bf16.mxu0 %v5622
    %5703 = vmatpush1.bf16.msra.mxu0 %v5621
    %5704 = vmatprep.subr.bf16.mxu0 %v5618
    %5705 = vmatpush1.bf16.msra.mxu0 %v5617
    %5706 = vmatprep.subr.bf16.mxu0 %v5614
    %5707 = vmatpush1.bf16.msra.mxu0 %v5613
    %5708 = vmatprep.subr.bf16.mxu0 %v5610
    %5709 = vmatpush1.bf16.msra.mxu0 %v5609
    %5710 = vmatprep.subr.bf16.mxu0 %v5606
    %5711 = vmatpush1.bf16.msra.mxu0 %v5605
    %5712 = vmatprep.subr.bf16.mxu0 %v5602
    %5713 = vmatpush1.bf16.msra.mxu0 %v5601
    %5714 = vmatprep.subr.bf16.mxu0 %v5598
    %5715 = vmatpush1.bf16.msra.mxu0 %v5597
    %5716 = vmatprep.subr.bf16.mxu0 0
    %5717 = vmatpush2.bf16.msra.mxu0 0
    %5718 = vmatprep.subr.bf16.mxu0 0
    %5719 = vmatpush2.bf16.msra.mxu0 0
    %5720 = vmatprep.subr.bf16.mxu0 0
    %5721 = vmatpush2.bf16.msra.mxu0 0
    %5722 = vmatprep.subr.bf16.mxu0 0
    %5723 = vmatpush2.bf16.msra.mxu0 0
    %5724 = vmatprep.subr.bf16.mxu0 0
    %5725 = vmatpush2.bf16.msra.mxu0 0
    %5726 = vmatprep.subr.bf16.mxu0 0
    %5727 = vmatpush2.bf16.msra.mxu0 0
    %5728 = vmatprep.subr.bf16.mxu0 0
    %5729 = vmatpush2.bf16.msra.mxu0 0
    %5730 = vmatprep.subr.bf16.mxu0 0
    %5731 = vmatpush2.bf16.msra.mxu0 0
    %5732 = vmatprep.mubr.bf16.mxu0 0
    %5733 = vmatmul.mubr.bf16.gmra.mxu0 %v5457
    %v5734 = vpop.f32.mrf.mxu0
    %v5735 = vadd.f32 0.0, %v5734
    %v5736 = vpop.f32.mrf.mxu0
    %v5737 = vadd.f32 0.0, %v5736
    %v5738 = vpop.f32.mrf.mxu0
    %v5739 = vpop.f32.mrf.mxu0
    %5740 = vdwg.mxu0
    %v5741 = vadd.f32 %v5463, %v5694
    %v5742 = vadd.f32 %v5464, %v5696
    %v5743 = vadd.f32 %v5465, %v5735
    %v5744 = vadd.f32 %v5466, %v5737
    %v5745 = vxor.u32 %v5741, 2147483648
    %v5746 = vmul.f32 %v5745, 1.442695
    %v5747 = vpow.pop %v5746
    %v5748 = vadd.f32 %v5747, 1.0
    %v5749 = vrcp.pop %v5748
    %v5750 = vmul.f32 1.0, %v5749
    %v5751 = vxor.u32 %v5742, 2147483648
    %v5752 = vmul.f32 %v5751, 1.442695
    %v5753 = vpow.pop %v5752
    %v5754 = vadd.f32 %v5753, 1.0
    %v5755 = vrcp.pop %v5754
    %v5756 = vmul.f32 1.0, %v5755
    %v5757 = vtanh.pop %v5743
    %v5758 = vxor.u32 %v5744, 2147483648
    %v5759 = vmul.f32 %v5758, 1.442695
    %v5760 = vpow.pop %v5759
    %v5761 = vadd.f32 %v5760, 1.0
    %v5762 = vrcp.pop %v5761
    %v5763 = vmul.f32 1.0, %v5762
    %v5764 = vmul.f32 %v5756, %v5454
    %v5765 = vmul.f32 %v5750, %v5757
    %v5766 = vadd.f32 %v5764, %v5765
    %v5767 = vtanh.pop %v5766
    %v5768 = vmul.f32 %v5763, %v5767
    %v5769 = vpack.c.bf16 %v5768, %v5768
    %s5770 = scalar_lea.vmem [#allocation3], 60
    %5771 = vst [vmem:[%s5770] sm:$0xf] %v5769
    %s5772 = smul.u32 16, 4
    %s5773 = smul.addr %s5772, 8
    %s5774 = scalar_lea.vmem [#allocation2], %s5773
    %v5775 = vld [vmem:[%s5774] sm:$0xff]
    %v5776 = vld [vmem:[%s5774 + $0x8] sm:$0xff]
    %v5777 = vld [vmem:[%s5774 + $0x10] sm:$0xff]
    %v5778 = vld [vmem:[%s5774 + $0x18] sm:$0xff]
    %v5779 = vld [vmem:[%s2] sm:$0xff]
    %v5780 = vld [vmem:[%s2 + $0x8] sm:$0xff]
    %v5781 = vld [vmem:[%s2 + $0x10] sm:$0xff]
    %v5782 = vld [vmem:[%s2 + $0x18] sm:$0xff]
    %v5783 = vld [vmem:[%s2 + $0x20] sm:$0xff]
    %v5784 = vld [vmem:[%s2 + $0x28] sm:$0xff]
    %v5785 = vld [vmem:[%s2 + $0x30] sm:$0xff]
    %v5786 = vld [vmem:[%s2 + $0x38] sm:$0xff]
    %v5787 = vld [vmem:[%s2 + $0x40] sm:$0xff]
    %v5788 = vld [vmem:[%s2 + $0x48] sm:$0xff]
    %v5789 = vld [vmem:[%s2 + $0x50] sm:$0xff]
    %v5790 = vld [vmem:[%s2 + $0x58] sm:$0xff]
    %v5791 = vld [vmem:[%s2 + $0x60] sm:$0xff]
    %v5792 = vld [vmem:[%s2 + $0x68] sm:$0xff]
    %v5793 = vld [vmem:[%s2 + $0x70] sm:$0xff]
    %v5794 = vld [vmem:[%s2 + $0x78] sm:$0xff]
    %v5795 = vld [vmem:[%s2 + $0x80] sm:$0xff]
    %v5796 = vld [vmem:[%s2 + $0x88] sm:$0xff]
    %v5797 = vld [vmem:[%s2 + $0x90] sm:$0xff]
    %v5798 = vld [vmem:[%s2 + $0x98] sm:$0xff]
    %v5799 = vld [vmem:[%s2 + $0xa0] sm:$0xff]
    %v5800 = vld [vmem:[%s2 + $0xa8] sm:$0xff]
    %v5801 = vld [vmem:[%s2 + $0xb0] sm:$0xff]
    %v5802 = vld [vmem:[%s2 + $0xb8] sm:$0xff]
    %v5803 = vld [vmem:[%s2 + $0xc0] sm:$0xff]
    %v5804 = vld [vmem:[%s2 + $0xc8] sm:$0xff]
    %v5805 = vld [vmem:[%s2 + $0xd0] sm:$0xff]
    %v5806 = vld [vmem:[%s2 + $0xd8] sm:$0xff]
    %v5807 = vld [vmem:[%s2 + $0xe0] sm:$0xff]
    %v5808 = vld [vmem:[%s2 + $0xe8] sm:$0xff]
    %v5809 = vld [vmem:[%s2 + $0xf0] sm:$0xff]
    %v5810 = vld [vmem:[%s2 + $0xf8] sm:$0xff]
    %v5843 = vunpack.c.l.b16 %v5779
    %v5844 = vunpack.c.h.b16 %v5779
    %v5845 = vunpack.c.l.b16 %v5780
    %v5846 = vunpack.c.h.b16 %v5780
    %v5847 = vunpack.c.l.b16 %v5781
    %v5848 = vunpack.c.h.b16 %v5781
    %v5849 = vunpack.c.l.b16 %v5782
    %v5850 = vunpack.c.h.b16 %v5782
    %v5851 = vunpack.c.l.b16 %v5783
    %v5852 = vunpack.c.h.b16 %v5783
    %v5853 = vunpack.c.l.b16 %v5784
    %v5854 = vunpack.c.h.b16 %v5784
    %v5855 = vunpack.c.l.b16 %v5785
    %v5856 = vunpack.c.h.b16 %v5785
    %v5857 = vunpack.c.l.b16 %v5786
    %v5858 = vunpack.c.h.b16 %v5786
    %v5859 = vunpack.c.l.b16 %v5787
    %v5860 = vunpack.c.h.b16 %v5787
    %v5861 = vunpack.c.l.b16 %v5788
    %v5862 = vunpack.c.h.b16 %v5788
    %v5863 = vunpack.c.l.b16 %v5789
    %v5864 = vunpack.c.h.b16 %v5789
    %v5865 = vunpack.c.l.b16 %v5790
    %v5866 = vunpack.c.h.b16 %v5790
    %v5867 = vunpack.c.l.b16 %v5791
    %v5868 = vunpack.c.h.b16 %v5791
    %v5869 = vunpack.c.l.b16 %v5792
    %v5870 = vunpack.c.h.b16 %v5792
    %v5871 = vunpack.c.l.b16 %v5793
    %v5872 = vunpack.c.h.b16 %v5793
    %v5873 = vunpack.c.l.b16 %v5794
    %v5874 = vunpack.c.h.b16 %v5794
    %v5875 = vunpack.c.l.b16 %v5795
    %v5876 = vunpack.c.h.b16 %v5795
    %v5877 = vunpack.c.l.b16 %v5796
    %v5878 = vunpack.c.h.b16 %v5796
    %v5879 = vunpack.c.l.b16 %v5797
    %v5880 = vunpack.c.h.b16 %v5797
    %v5881 = vunpack.c.l.b16 %v5798
    %v5882 = vunpack.c.h.b16 %v5798
    %v5883 = vunpack.c.l.b16 %v5799
    %v5884 = vunpack.c.h.b16 %v5799
    %v5885 = vunpack.c.l.b16 %v5800
    %v5886 = vunpack.c.h.b16 %v5800
    %v5887 = vunpack.c.l.b16 %v5801
    %v5888 = vunpack.c.h.b16 %v5801
    %v5889 = vunpack.c.l.b16 %v5802
    %v5890 = vunpack.c.h.b16 %v5802
    %v5891 = vunpack.c.l.b16 %v5803
    %v5892 = vunpack.c.h.b16 %v5803
    %v5893 = vunpack.c.l.b16 %v5804
    %v5894 = vunpack.c.h.b16 %v5804
    %v5895 = vunpack.c.l.b16 %v5805
    %v5896 = vunpack.c.h.b16 %v5805
    %v5897 = vunpack.c.l.b16 %v5806
    %v5898 = vunpack.c.h.b16 %v5806
    %v5899 = vunpack.c.l.b16 %v5807
    %v5900 = vunpack.c.h.b16 %v5807
    %v5901 = vunpack.c.l.b16 %v5808
    %v5902 = vunpack.c.h.b16 %v5808
    %v5903 = vunpack.c.l.b16 %v5809
    %v5904 = vunpack.c.h.b16 %v5809
    %v5905 = vunpack.c.l.b16 %v5810
    %v5906 = vunpack.c.h.b16 %v5810
    %v5907 = vpack.c.b16 %v5847, %v5843
    %v5908 = vpack.c.b16 %v5848, %v5844
    %v5909 = vpack.c.b16 %v5849, %v5845
    %v5910 = vpack.c.b16 %v5850, %v5846
    %v5911 = vpack.c.b16 %v5855, %v5851
    %v5912 = vpack.c.b16 %v5856, %v5852
    %v5913 = vpack.c.b16 %v5857, %v5853
    %v5914 = vpack.c.b16 %v5858, %v5854
    %v5915 = vpack.c.b16 %v5863, %v5859
    %v5916 = vpack.c.b16 %v5864, %v5860
    %v5917 = vpack.c.b16 %v5865, %v5861
    %v5918 = vpack.c.b16 %v5866, %v5862
    %v5919 = vpack.c.b16 %v5871, %v5867
    %v5920 = vpack.c.b16 %v5872, %v5868
    %v5921 = vpack.c.b16 %v5873, %v5869
    %v5922 = vpack.c.b16 %v5874, %v5870
    %v5923 = vpack.c.b16 %v5879, %v5875
    %v5924 = vpack.c.b16 %v5880, %v5876
    %v5925 = vpack.c.b16 %v5881, %v5877
    %v5926 = vpack.c.b16 %v5882, %v5878
    %v5927 = vpack.c.b16 %v5887, %v5883
    %v5928 = vpack.c.b16 %v5888, %v5884
    %v5929 = vpack.c.b16 %v5889, %v5885
    %v5930 = vpack.c.b16 %v5890, %v5886
    %v5931 = vpack.c.b16 %v5895, %v5891
    %v5932 = vpack.c.b16 %v5896, %v5892
    %v5933 = vpack.c.b16 %v5897, %v5893
    %v5934 = vpack.c.b16 %v5898, %v5894
    %v5935 = vpack.c.b16 %v5903, %v5899
    %v5936 = vpack.c.b16 %v5904, %v5900
    %v5937 = vpack.c.b16 %v5905, %v5901
    %v5938 = vpack.c.b16 %v5906, %v5902
    %5971 = vmatprep.subr.bf16.mxu0 %v5936
    %5972 = vmatpush1.bf16.msra.mxu0 %v5935
    %5973 = vmatprep.subr.bf16.mxu0 %v5932
    %5974 = vmatpush1.bf16.msra.mxu0 %v5931
    %5975 = vmatprep.subr.bf16.mxu0 %v5928
    %5976 = vmatpush1.bf16.msra.mxu0 %v5927
    %5977 = vmatprep.subr.bf16.mxu0 %v5924
    %5978 = vmatpush1.bf16.msra.mxu0 %v5923
    %5979 = vmatprep.subr.bf16.mxu0 %v5920
    %5980 = vmatpush1.bf16.msra.mxu0 %v5919
    %5981 = vmatprep.subr.bf16.mxu0 %v5916
    %5982 = vmatpush1.bf16.msra.mxu0 %v5915
    %5983 = vmatprep.subr.bf16.mxu0 %v5912
    %5984 = vmatpush1.bf16.msra.mxu0 %v5911
    %5985 = vmatprep.subr.bf16.mxu0 %v5908
    %5986 = vmatpush1.bf16.msra.mxu0 %v5907
    %5987 = vmatprep.subr.bf16.mxu0 0
    %5988 = vmatpush2.bf16.msra.mxu0 0
    %5989 = vmatprep.subr.bf16.mxu0 0
    %5990 = vmatpush2.bf16.msra.mxu0 0
    %5991 = vmatprep.subr.bf16.mxu0 0
    %5992 = vmatpush2.bf16.msra.mxu0 0
    %5993 = vmatprep.subr.bf16.mxu0 0
    %5994 = vmatpush2.bf16.msra.mxu0 0
    %5995 = vmatprep.subr.bf16.mxu0 0
    %5996 = vmatpush2.bf16.msra.mxu0 0
    %5997 = vmatprep.subr.bf16.mxu0 0
    %5998 = vmatpush2.bf16.msra.mxu0 0
    %5999 = vmatprep.subr.bf16.mxu0 0
    %6000 = vmatpush2.bf16.msra.mxu0 0
    %6001 = vmatprep.subr.bf16.mxu0 0
    %6002 = vmatpush2.bf16.msra.mxu0 0
    %6003 = vmatprep.mubr.bf16.mxu0 0
    %6004 = vmatmul.mubr.bf16.gmra.mxu0 %v5769
    %v6005 = vpop.f32.mrf.mxu0
    %v6006 = vadd.f32 0.0, %v6005
    %v6007 = vpop.f32.mrf.mxu0
    %v6008 = vadd.f32 0.0, %v6007
    %v6009 = vpop.f32.mrf.mxu0
    %v6010 = vpop.f32.mrf.mxu0
    %6011 = vdwg.mxu0
    %6012 = vmatprep.subr.bf16.mxu0 %v5938
    %6013 = vmatpush1.bf16.msra.mxu0 %v5937
    %6014 = vmatprep.subr.bf16.mxu0 %v5934
    %6015 = vmatpush1.bf16.msra.mxu0 %v5933
    %6016 = vmatprep.subr.bf16.mxu0 %v5930
    %6017 = vmatpush1.bf16.msra.mxu0 %v5929
    %6018 = vmatprep.subr.bf16.mxu0 %v5926
    %6019 = vmatpush1.bf16.msra.mxu0 %v5925
    %6020 = vmatprep.subr.bf16.mxu0 %v5922
    %6021 = vmatpush1.bf16.msra.mxu0 %v5921
    %6022 = vmatprep.subr.bf16.mxu0 %v5918
    %6023 = vmatpush1.bf16.msra.mxu0 %v5917
    %6024 = vmatprep.subr.bf16.mxu0 %v5914
    %6025 = vmatpush1.bf16.msra.mxu0 %v5913
    %6026 = vmatprep.subr.bf16.mxu0 %v5910
    %6027 = vmatpush1.bf16.msra.mxu0 %v5909
    %6028 = vmatprep.subr.bf16.mxu0 0
    %6029 = vmatpush2.bf16.msra.mxu0 0
    %6030 = vmatprep.subr.bf16.mxu0 0
    %6031 = vmatpush2.bf16.msra.mxu0 0
    %6032 = vmatprep.subr.bf16.mxu0 0
    %6033 = vmatpush2.bf16.msra.mxu0 0
    %6034 = vmatprep.subr.bf16.mxu0 0
    %6035 = vmatpush2.bf16.msra.mxu0 0
    %6036 = vmatprep.subr.bf16.mxu0 0
    %6037 = vmatpush2.bf16.msra.mxu0 0
    %6038 = vmatprep.subr.bf16.mxu0 0
    %6039 = vmatpush2.bf16.msra.mxu0 0
    %6040 = vmatprep.subr.bf16.mxu0 0
    %6041 = vmatpush2.bf16.msra.mxu0 0
    %6042 = vmatprep.subr.bf16.mxu0 0
    %6043 = vmatpush2.bf16.msra.mxu0 0
    %6044 = vmatprep.mubr.bf16.mxu0 0
    %6045 = vmatmul.mubr.bf16.gmra.mxu0 %v5769
    %v6046 = vpop.f32.mrf.mxu0
    %v6047 = vadd.f32 0.0, %v6046
    %v6048 = vpop.f32.mrf.mxu0
    %v6049 = vadd.f32 0.0, %v6048
    %v6050 = vpop.f32.mrf.mxu0
    %v6051 = vpop.f32.mrf.mxu0
    %6052 = vdwg.mxu0
    %v6053 = vadd.f32 %v5775, %v6006
    %v6054 = vadd.f32 %v5776, %v6008
    %v6055 = vadd.f32 %v5777, %v6047
    %v6056 = vadd.f32 %v5778, %v6049
    %v6057 = vxor.u32 %v6053, 2147483648
    %v6058 = vmul.f32 %v6057, 1.442695
    %v6059 = vpow.pop %v6058
    %v6060 = vadd.f32 %v6059, 1.0
    %v6061 = vrcp.pop %v6060
    %v6062 = vmul.f32 1.0, %v6061
    %v6063 = vxor.u32 %v6054, 2147483648
    %v6064 = vmul.f32 %v6063, 1.442695
    %v6065 = vpow.pop %v6064
    %v6066 = vadd.f32 %v6065, 1.0
    %v6067 = vrcp.pop %v6066
    %v6068 = vmul.f32 1.0, %v6067
    %v6069 = vtanh.pop %v6055
    %v6070 = vxor.u32 %v6056, 2147483648
    %v6071 = vmul.f32 %v6070, 1.442695
    %v6072 = vpow.pop %v6071
    %v6073 = vadd.f32 %v6072, 1.0
    %v6074 = vrcp.pop %v6073
    %v6075 = vmul.f32 1.0, %v6074
    %v6076 = vmul.f32 %v6068, %v5766
    %v6077 = vmul.f32 %v6062, %v6069
    %v6078 = vadd.f32 %v6076, %v6077
    %v6079 = vtanh.pop %v6078
    %v6080 = vmul.f32 %v6075, %v6079
    %v6081 = vpack.c.bf16 %v6080, %v6080
    %s6082 = scalar_lea.vmem [#allocation3], 64
    %6083 = vst [vmem:[%s6082] sm:$0xf] %v6081
    %s6084 = smul.u32 17, 4
    %s6085 = smul.addr %s6084, 8
    %s6086 = scalar_lea.vmem [#allocation2], %s6085
    %v6087 = vld [vmem:[%s6086] sm:$0xff]
    %v6088 = vld [vmem:[%s6086 + $0x8] sm:$0xff]
    %v6089 = vld [vmem:[%s6086 + $0x10] sm:$0xff]
    %v6090 = vld [vmem:[%s6086 + $0x18] sm:$0xff]
    %v6091 = vld [vmem:[%s2] sm:$0xff]
    %v6092 = vld [vmem:[%s2 + $0x8] sm:$0xff]
    %v6093 = vld [vmem:[%s2 + $0x10] sm:$0xff]
    %v6094 = vld [vmem:[%s2 + $0x18] sm:$0xff]
    %v6095 = vld [vmem:[%s2 + $0x20] sm:$0xff]
    %v6096 = vld [vmem:[%s2 + $0x28] sm:$0xff]
    %v6097 = vld [vmem:[%s2 + $0x30] sm:$0xff]
    %v6098 = vld [vmem:[%s2 + $0x38] sm:$0xff]
    %v6099 = vld [vmem:[%s2 + $0x40] sm:$0xff]
    %v6100 = vld [vmem:[%s2 + $0x48] sm:$0xff]
    %v6101 = vld [vmem:[%s2 + $0x50] sm:$0xff]
    %v6102 = vld [vmem:[%s2 + $0x58] sm:$0xff]
    %v6103 = vld [vmem:[%s2 + $0x60] sm:$0xff]
    %v6104 = vld [vmem:[%s2 + $0x68] sm:$0xff]
    %v6105 = vld [vmem:[%s2 + $0x70] sm:$0xff]
    %v6106 = vld [vmem:[%s2 + $0x78] sm:$0xff]
    %v6107 = vld [vmem:[%s2 + $0x80] sm:$0xff]
    %v6108 = vld [vmem:[%s2 + $0x88] sm:$0xff]
    %v6109 = vld [vmem:[%s2 + $0x90] sm:$0xff]
    %v6110 = vld [vmem:[%s2 + $0x98] sm:$0xff]
    %v6111 = vld [vmem:[%s2 + $0xa0] sm:$0xff]
    %v6112 = vld [vmem:[%s2 + $0xa8] sm:$0xff]
    %v6113 = vld [vmem:[%s2 + $0xb0] sm:$0xff]
    %v6114 = vld [vmem:[%s2 + $0xb8] sm:$0xff]
    %v6115 = vld [vmem:[%s2 + $0xc0] sm:$0xff]
    %v6116 = vld [vmem:[%s2 + $0xc8] sm:$0xff]
    %v6117 = vld [vmem:[%s2 + $0xd0] sm:$0xff]
    %v6118 = vld [vmem:[%s2 + $0xd8] sm:$0xff]
    %v6119 = vld [vmem:[%s2 + $0xe0] sm:$0xff]
    %v6120 = vld [vmem:[%s2 + $0xe8] sm:$0xff]
    %v6121 = vld [vmem:[%s2 + $0xf0] sm:$0xff]
    %v6122 = vld [vmem:[%s2 + $0xf8] sm:$0xff]
    %v6155 = vunpack.c.l.b16 %v6091
    %v6156 = vunpack.c.h.b16 %v6091
    %v6157 = vunpack.c.l.b16 %v6092
    %v6158 = vunpack.c.h.b16 %v6092
    %v6159 = vunpack.c.l.b16 %v6093
    %v6160 = vunpack.c.h.b16 %v6093
    %v6161 = vunpack.c.l.b16 %v6094
    %v6162 = vunpack.c.h.b16 %v6094
    %v6163 = vunpack.c.l.b16 %v6095
    %v6164 = vunpack.c.h.b16 %v6095
    %v6165 = vunpack.c.l.b16 %v6096
    %v6166 = vunpack.c.h.b16 %v6096
    %v6167 = vunpack.c.l.b16 %v6097
    %v6168 = vunpack.c.h.b16 %v6097
    %v6169 = vunpack.c.l.b16 %v6098
    %v6170 = vunpack.c.h.b16 %v6098
    %v6171 = vunpack.c.l.b16 %v6099
    %v6172 = vunpack.c.h.b16 %v6099
    %v6173 = vunpack.c.l.b16 %v6100
    %v6174 = vunpack.c.h.b16 %v6100
    %v6175 = vunpack.c.l.b16 %v6101
    %v6176 = vunpack.c.h.b16 %v6101
    %v6177 = vunpack.c.l.b16 %v6102
    %v6178 = vunpack.c.h.b16 %v6102
    %v6179 = vunpack.c.l.b16 %v6103
    %v6180 = vunpack.c.h.b16 %v6103
    %v6181 = vunpack.c.l.b16 %v6104
    %v6182 = vunpack.c.h.b16 %v6104
    %v6183 = vunpack.c.l.b16 %v6105
    %v6184 = vunpack.c.h.b16 %v6105
    %v6185 = vunpack.c.l.b16 %v6106
    %v6186 = vunpack.c.h.b16 %v6106
    %v6187 = vunpack.c.l.b16 %v6107
    %v6188 = vunpack.c.h.b16 %v6107
    %v6189 = vunpack.c.l.b16 %v6108
    %v6190 = vunpack.c.h.b16 %v6108
    %v6191 = vunpack.c.l.b16 %v6109
    %v6192 = vunpack.c.h.b16 %v6109
    %v6193 = vunpack.c.l.b16 %v6110
    %v6194 = vunpack.c.h.b16 %v6110
    %v6195 = vunpack.c.l.b16 %v6111
    %v6196 = vunpack.c.h.b16 %v6111
    %v6197 = vunpack.c.l.b16 %v6112
    %v6198 = vunpack.c.h.b16 %v6112
    %v6199 = vunpack.c.l.b16 %v6113
    %v6200 = vunpack.c.h.b16 %v6113
    %v6201 = vunpack.c.l.b16 %v6114
    %v6202 = vunpack.c.h.b16 %v6114
    %v6203 = vunpack.c.l.b16 %v6115
    %v6204 = vunpack.c.h.b16 %v6115
    %v6205 = vunpack.c.l.b16 %v6116
    %v6206 = vunpack.c.h.b16 %v6116
    %v6207 = vunpack.c.l.b16 %v6117
    %v6208 = vunpack.c.h.b16 %v6117
    %v6209 = vunpack.c.l.b16 %v6118
    %v6210 = vunpack.c.h.b16 %v6118
    %v6211 = vunpack.c.l.b16 %v6119
    %v6212 = vunpack.c.h.b16 %v6119
    %v6213 = vunpack.c.l.b16 %v6120
    %v6214 = vunpack.c.h.b16 %v6120
    %v6215 = vunpack.c.l.b16 %v6121
    %v6216 = vunpack.c.h.b16 %v6121
    %v6217 = vunpack.c.l.b16 %v6122
    %v6218 = vunpack.c.h.b16 %v6122
    %v6219 = vpack.c.b16 %v6159, %v6155
    %v6220 = vpack.c.b16 %v6160, %v6156
    %v6221 = vpack.c.b16 %v6161, %v6157
    %v6222 = vpack.c.b16 %v6162, %v6158
    %v6223 = vpack.c.b16 %v6167, %v6163
    %v6224 = vpack.c.b16 %v6168, %v6164
    %v6225 = vpack.c.b16 %v6169, %v6165
    %v6226 = vpack.c.b16 %v6170, %v6166
    %v6227 = vpack.c.b16 %v6175, %v6171
    %v6228 = vpack.c.b16 %v6176, %v6172
    %v6229 = vpack.c.b16 %v6177, %v6173
    %v6230 = vpack.c.b16 %v6178, %v6174
    %v6231 = vpack.c.b16 %v6183, %v6179
    %v6232 = vpack.c.b16 %v6184, %v6180
    %v6233 = vpack.c.b16 %v6185, %v6181
    %v6234 = vpack.c.b16 %v6186, %v6182
    %v6235 = vpack.c.b16 %v6191, %v6187
    %v6236 = vpack.c.b16 %v6192, %v6188
    %v6237 = vpack.c.b16 %v6193, %v6189
    %v6238 = vpack.c.b16 %v6194, %v6190
    %v6239 = vpack.c.b16 %v6199, %v6195
    %v6240 = vpack.c.b16 %v6200, %v6196
    %v6241 = vpack.c.b16 %v6201, %v6197
    %v6242 = vpack.c.b16 %v6202, %v6198
    %v6243 = vpack.c.b16 %v6207, %v6203
    %v6244 = vpack.c.b16 %v6208, %v6204
    %v6245 = vpack.c.b16 %v6209, %v6205
    %v6246 = vpack.c.b16 %v6210, %v6206
    %v6247 = vpack.c.b16 %v6215, %v6211
    %v6248 = vpack.c.b16 %v6216, %v6212
    %v6249 = vpack.c.b16 %v6217, %v6213
    %v6250 = vpack.c.b16 %v6218, %v6214
    %6283 = vmatprep.subr.bf16.mxu0 %v6248
    %6284 = vmatpush1.bf16.msra.mxu0 %v6247
    %6285 = vmatprep.subr.bf16.mxu0 %v6244
    %6286 = vmatpush1.bf16.msra.mxu0 %v6243
    %6287 = vmatprep.subr.bf16.mxu0 %v6240
    %6288 = vmatpush1.bf16.msra.mxu0 %v6239
    %6289 = vmatprep.subr.bf16.mxu0 %v6236
    %6290 = vmatpush1.bf16.msra.mxu0 %v6235
    %6291 = vmatprep.subr.bf16.mxu0 %v6232
    %6292 = vmatpush1.bf16.msra.mxu0 %v6231
    %6293 = vmatprep.subr.bf16.mxu0 %v6228
    %6294 = vmatpush1.bf16.msra.mxu0 %v6227
    %6295 = vmatprep.subr.bf16.mxu0 %v6224
    %6296 = vmatpush1.bf16.msra.mxu0 %v6223
    %6297 = vmatprep.subr.bf16.mxu0 %v6220
    %6298 = vmatpush1.bf16.msra.mxu0 %v6219
    %6299 = vmatprep.subr.bf16.mxu0 0
    %6300 = vmatpush2.bf16.msra.mxu0 0
    %6301 = vmatprep.subr.bf16.mxu0 0
    %6302 = vmatpush2.bf16.msra.mxu0 0
    %6303 = vmatprep.subr.bf16.mxu0 0
    %6304 = vmatpush2.bf16.msra.mxu0 0
    %6305 = vmatprep.subr.bf16.mxu0 0
    %6306 = vmatpush2.bf16.msra.mxu0 0
    %6307 = vmatprep.subr.bf16.mxu0 0
    %6308 = vmatpush2.bf16.msra.mxu0 0
    %6309 = vmatprep.subr.bf16.mxu0 0
    %6310 = vmatpush2.bf16.msra.mxu0 0
    %6311 = vmatprep.subr.bf16.mxu0 0
    %6312 = vmatpush2.bf16.msra.mxu0 0
    %6313 = vmatprep.subr.bf16.mxu0 0
    %6314 = vmatpush2.bf16.msra.mxu0 0
    %6315 = vmatprep.mubr.bf16.mxu0 0
    %6316 = vmatmul.mubr.bf16.gmra.mxu0 %v6081
    %v6317 = vpop.f32.mrf.mxu0
    %v6318 = vadd.f32 0.0, %v6317
    %v6319 = vpop.f32.mrf.mxu0
    %v6320 = vadd.f32 0.0, %v6319
    %v6321 = vpop.f32.mrf.mxu0
    %v6322 = vpop.f32.mrf.mxu0
    %6323 = vdwg.mxu0
    %6324 = vmatprep.subr.bf16.mxu0 %v6250
    %6325 = vmatpush1.bf16.msra.mxu0 %v6249
    %6326 = vmatprep.subr.bf16.mxu0 %v6246
    %6327 = vmatpush1.bf16.msra.mxu0 %v6245
    %6328 = vmatprep.subr.bf16.mxu0 %v6242
    %6329 = vmatpush1.bf16.msra.mxu0 %v6241
    %6330 = vmatprep.subr.bf16.mxu0 %v6238
    %6331 = vmatpush1.bf16.msra.mxu0 %v6237
    %6332 = vmatprep.subr.bf16.mxu0 %v6234
    %6333 = vmatpush1.bf16.msra.mxu0 %v6233
    %6334 = vmatprep.subr.bf16.mxu0 %v6230
    %6335 = vmatpush1.bf16.msra.mxu0 %v6229
    %6336 = vmatprep.subr.bf16.mxu0 %v6226
    %6337 = vmatpush1.bf16.msra.mxu0 %v6225
    %6338 = vmatprep.subr.bf16.mxu0 %v6222
    %6339 = vmatpush1.bf16.msra.mxu0 %v6221
    %6340 = vmatprep.subr.bf16.mxu0 0
    %6341 = vmatpush2.bf16.msra.mxu0 0
    %6342 = vmatprep.subr.bf16.mxu0 0
    %6343 = vmatpush2.bf16.msra.mxu0 0
    %6344 = vmatprep.subr.bf16.mxu0 0
    %6345 = vmatpush2.bf16.msra.mxu0 0
    %6346 = vmatprep.subr.bf16.mxu0 0
    %6347 = vmatpush2.bf16.msra.mxu0 0
    %6348 = vmatprep.subr.bf16.mxu0 0
    %6349 = vmatpush2.bf16.msra.mxu0 0
    %6350 = vmatprep.subr.bf16.mxu0 0
    %6351 = vmatpush2.bf16.msra.mxu0 0
    %6352 = vmatprep.subr.bf16.mxu0 0
    %6353 = vmatpush2.bf16.msra.mxu0 0
    %6354 = vmatprep.subr.bf16.mxu0 0
    %6355 = vmatpush2.bf16.msra.mxu0 0
    %6356 = vmatprep.mubr.bf16.mxu0 0
    %6357 = vmatmul.mubr.bf16.gmra.mxu0 %v6081
    %v6358 = vpop.f32.mrf.mxu0
    %v6359 = vadd.f32 0.0, %v6358
    %v6360 = vpop.f32.mrf.mxu0
    %v6361 = vadd.f32 0.0, %v6360
    %v6362 = vpop.f32.mrf.mxu0
    %v6363 = vpop.f32.mrf.mxu0
    %6364 = vdwg.mxu0
    %v6365 = vadd.f32 %v6087, %v6318
    %v6366 = vadd.f32 %v6088, %v6320
    %v6367 = vadd.f32 %v6089, %v6359
    %v6368 = vadd.f32 %v6090, %v6361
    %v6369 = vxor.u32 %v6365, 2147483648
    %v6370 = vmul.f32 %v6369, 1.442695
    %v6371 = vpow.pop %v6370
    %v6372 = vadd.f32 %v6371, 1.0
    %v6373 = vrcp.pop %v6372
    %v6374 = vmul.f32 1.0, %v6373
    %v6375 = vxor.u32 %v6366, 2147483648
    %v6376 = vmul.f32 %v6375, 1.442695
    %v6377 = vpow.pop %v6376
    %v6378 = vadd.f32 %v6377, 1.0
    %v6379 = vrcp.pop %v6378
    %v6380 = vmul.f32 1.0, %v6379
    %v6381 = vtanh.pop %v6367
    %v6382 = vxor.u32 %v6368, 2147483648
    %v6383 = vmul.f32 %v6382, 1.442695
    %v6384 = vpow.pop %v6383
    %v6385 = vadd.f32 %v6384, 1.0
    %v6386 = vrcp.pop %v6385
    %v6387 = vmul.f32 1.0, %v6386
    %v6388 = vmul.f32 %v6380, %v6078
    %v6389 = vmul.f32 %v6374, %v6381
    %v6390 = vadd.f32 %v6388, %v6389
    %v6391 = vtanh.pop %v6390
    %v6392 = vmul.f32 %v6387, %v6391
    %v6393 = vpack.c.bf16 %v6392, %v6392
    %s6394 = scalar_lea.vmem [#allocation3], 68
    %6395 = vst [vmem:[%s6394] sm:$0xf] %v6393
    %s6396 = smul.u32 18, 4
    %s6397 = smul.addr %s6396, 8
    %s6398 = scalar_lea.vmem [#allocation2], %s6397
    %v6399 = vld [vmem:[%s6398] sm:$0xff]
    %v6400 = vld [vmem:[%s6398 + $0x8] sm:$0xff]
    %v6401 = vld [vmem:[%s6398 + $0x10] sm:$0xff]
    %v6402 = vld [vmem:[%s6398 + $0x18] sm:$0xff]
    %v6403 = vld [vmem:[%s2] sm:$0xff]
    %v6404 = vld [vmem:[%s2 + $0x8] sm:$0xff]
    %v6405 = vld [vmem:[%s2 + $0x10] sm:$0xff]
    %v6406 = vld [vmem:[%s2 + $0x18] sm:$0xff]
    %v6407 = vld [vmem:[%s2 + $0x20] sm:$0xff]
    %v6408 = vld [vmem:[%s2 + $0x28] sm:$0xff]
    %v6409 = vld [vmem:[%s2 + $0x30] sm:$0xff]
    %v6410 = vld [vmem:[%s2 + $0x38] sm:$0xff]
    %v6411 = vld [vmem:[%s2 + $0x40] sm:$0xff]
    %v6412 = vld [vmem:[%s2 + $0x48] sm:$0xff]
    %v6413 = vld [vmem:[%s2 + $0x50] sm:$0xff]
    %v6414 = vld [vmem:[%s2 + $0x58] sm:$0xff]
    %v6415 = vld [vmem:[%s2 + $0x60] sm:$0xff]
    %v6416 = vld [vmem:[%s2 + $0x68] sm:$0xff]
    %v6417 = vld [vmem:[%s2 + $0x70] sm:$0xff]
    %v6418 = vld [vmem:[%s2 + $0x78] sm:$0xff]
    %v6419 = vld [vmem:[%s2 + $0x80] sm:$0xff]
    %v6420 = vld [vmem:[%s2 + $0x88] sm:$0xff]
    %v6421 = vld [vmem:[%s2 + $0x90] sm:$0xff]
    %v6422 = vld [vmem:[%s2 + $0x98] sm:$0xff]
    %v6423 = vld [vmem:[%s2 + $0xa0] sm:$0xff]
    %v6424 = vld [vmem:[%s2 + $0xa8] sm:$0xff]
    %v6425 = vld [vmem:[%s2 + $0xb0] sm:$0xff]
    %v6426 = vld [vmem:[%s2 + $0xb8] sm:$0xff]
    %v6427 = vld [vmem:[%s2 + $0xc0] sm:$0xff]
    %v6428 = vld [vmem:[%s2 + $0xc8] sm:$0xff]
    %v6429 = vld [vmem:[%s2 + $0xd0] sm:$0xff]
    %v6430 = vld [vmem:[%s2 + $0xd8] sm:$0xff]
    %v6431 = vld [vmem:[%s2 + $0xe0] sm:$0xff]
    %v6432 = vld [vmem:[%s2 + $0xe8] sm:$0xff]
    %v6433 = vld [vmem:[%s2 + $0xf0] sm:$0xff]
    %v6434 = vld [vmem:[%s2 + $0xf8] sm:$0xff]
    %v6467 = vunpack.c.l.b16 %v6403
    %v6468 = vunpack.c.h.b16 %v6403
    %v6469 = vunpack.c.l.b16 %v6404
    %v6470 = vunpack.c.h.b16 %v6404
    %v6471 = vunpack.c.l.b16 %v6405
    %v6472 = vunpack.c.h.b16 %v6405
    %v6473 = vunpack.c.l.b16 %v6406
    %v6474 = vunpack.c.h.b16 %v6406
    %v6475 = vunpack.c.l.b16 %v6407
    %v6476 = vunpack.c.h.b16 %v6407
    %v6477 = vunpack.c.l.b16 %v6408
    %v6478 = vunpack.c.h.b16 %v6408
    %v6479 = vunpack.c.l.b16 %v6409
    %v6480 = vunpack.c.h.b16 %v6409
    %v6481 = vunpack.c.l.b16 %v6410
    %v6482 = vunpack.c.h.b16 %v6410
    %v6483 = vunpack.c.l.b16 %v6411
    %v6484 = vunpack.c.h.b16 %v6411
    %v6485 = vunpack.c.l.b16 %v6412
    %v6486 = vunpack.c.h.b16 %v6412
    %v6487 = vunpack.c.l.b16 %v6413
    %v6488 = vunpack.c.h.b16 %v6413
    %v6489 = vunpack.c.l.b16 %v6414
    %v6490 = vunpack.c.h.b16 %v6414
    %v6491 = vunpack.c.l.b16 %v6415
    %v6492 = vunpack.c.h.b16 %v6415
    %v6493 = vunpack.c.l.b16 %v6416
    %v6494 = vunpack.c.h.b16 %v6416
    %v6495 = vunpack.c.l.b16 %v6417
    %v6496 = vunpack.c.h.b16 %v6417
    %v6497 = vunpack.c.l.b16 %v6418
    %v6498 = vunpack.c.h.b16 %v6418
    %v6499 = vunpack.c.l.b16 %v6419
    %v6500 = vunpack.c.h.b16 %v6419
    %v6501 = vunpack.c.l.b16 %v6420
    %v6502 = vunpack.c.h.b16 %v6420
    %v6503 = vunpack.c.l.b16 %v6421
    %v6504 = vunpack.c.h.b16 %v6421
    %v6505 = vunpack.c.l.b16 %v6422
    %v6506 = vunpack.c.h.b16 %v6422
    %v6507 = vunpack.c.l.b16 %v6423
    %v6508 = vunpack.c.h.b16 %v6423
    %v6509 = vunpack.c.l.b16 %v6424
    %v6510 = vunpack.c.h.b16 %v6424
    %v6511 = vunpack.c.l.b16 %v6425
    %v6512 = vunpack.c.h.b16 %v6425
    %v6513 = vunpack.c.l.b16 %v6426
    %v6514 = vunpack.c.h.b16 %v6426
    %v6515 = vunpack.c.l.b16 %v6427
    %v6516 = vunpack.c.h.b16 %v6427
    %v6517 = vunpack.c.l.b16 %v6428
    %v6518 = vunpack.c.h.b16 %v6428
    %v6519 = vunpack.c.l.b16 %v6429
    %v6520 = vunpack.c.h.b16 %v6429
    %v6521 = vunpack.c.l.b16 %v6430
    %v6522 = vunpack.c.h.b16 %v6430
    %v6523 = vunpack.c.l.b16 %v6431
    %v6524 = vunpack.c.h.b16 %v6431
    %v6525 = vunpack.c.l.b16 %v6432
    %v6526 = vunpack.c.h.b16 %v6432
    %v6527 = vunpack.c.l.b16 %v6433
    %v6528 = vunpack.c.h.b16 %v6433
    %v6529 = vunpack.c.l.b16 %v6434
    %v6530 = vunpack.c.h.b16 %v6434
    %v6531 = vpack.c.b16 %v6471, %v6467
    %v6532 = vpack.c.b16 %v6472, %v6468
    %v6533 = vpack.c.b16 %v6473, %v6469
    %v6534 = vpack.c.b16 %v6474, %v6470
    %v6535 = vpack.c.b16 %v6479, %v6475
    %v6536 = vpack.c.b16 %v6480, %v6476
    %v6537 = vpack.c.b16 %v6481, %v6477
    %v6538 = vpack.c.b16 %v6482, %v6478
    %v6539 = vpack.c.b16 %v6487, %v6483
    %v6540 = vpack.c.b16 %v6488, %v6484
    %v6541 = vpack.c.b16 %v6489, %v6485
    %v6542 = vpack.c.b16 %v6490, %v6486
    %v6543 = vpack.c.b16 %v6495, %v6491
    %v6544 = vpack.c.b16 %v6496, %v6492
    %v6545 = vpack.c.b16 %v6497, %v6493
    %v6546 = vpack.c.b16 %v6498, %v6494
    %v6547 = vpack.c.b16 %v6503, %v6499
    %v6548 = vpack.c.b16 %v6504, %v6500
    %v6549 = vpack.c.b16 %v6505, %v6501
    %v6550 = vpack.c.b16 %v6506, %v6502
    %v6551 = vpack.c.b16 %v6511, %v6507
    %v6552 = vpack.c.b16 %v6512, %v6508
    %v6553 = vpack.c.b16 %v6513, %v6509
    %v6554 = vpack.c.b16 %v6514, %v6510
    %v6555 = vpack.c.b16 %v6519, %v6515
    %v6556 = vpack.c.b16 %v6520, %v6516
    %v6557 = vpack.c.b16 %v6521, %v6517
    %v6558 = vpack.c.b16 %v6522, %v6518
    %v6559 = vpack.c.b16 %v6527, %v6523
    %v6560 = vpack.c.b16 %v6528, %v6524
    %v6561 = vpack.c.b16 %v6529, %v6525
    %v6562 = vpack.c.b16 %v6530, %v6526
    %6595 = vmatprep.subr.bf16.mxu0 %v6560
    %6596 = vmatpush1.bf16.msra.mxu0 %v6559
    %6597 = vmatprep.subr.bf16.mxu0 %v6556
    %6598 = vmatpush1.bf16.msra.mxu0 %v6555
    %6599 = vmatprep.subr.bf16.mxu0 %v6552
    %6600 = vmatpush1.bf16.msra.mxu0 %v6551
    %6601 = vmatprep.subr.bf16.mxu0 %v6548
    %6602 = vmatpush1.bf16.msra.mxu0 %v6547
    %6603 = vmatprep.subr.bf16.mxu0 %v6544
    %6604 = vmatpush1.bf16.msra.mxu0 %v6543
    %6605 = vmatprep.subr.bf16.mxu0 %v6540
    %6606 = vmatpush1.bf16.msra.mxu0 %v6539
    %6607 = vmatprep.subr.bf16.mxu0 %v6536
    %6608 = vmatpush1.bf16.msra.mxu0 %v6535
    %6609 = vmatprep.subr.bf16.mxu0 %v6532
    %6610 = vmatpush1.bf16.msra.mxu0 %v6531
    %6611 = vmatprep.subr.bf16.mxu0 0
    %6612 = vmatpush2.bf16.msra.mxu0 0
    %6613 = vmatprep.subr.bf16.mxu0 0
    %6614 = vmatpush2.bf16.msra.mxu0 0
    %6615 = vmatprep.subr.bf16.mxu0 0
    %6616 = vmatpush2.bf16.msra.mxu0 0
    %6617 = vmatprep.subr.bf16.mxu0 0
    %6618 = vmatpush2.bf16.msra.mxu0 0
    %6619 = vmatprep.subr.bf16.mxu0 0
    %6620 = vmatpush2.bf16.msra.mxu0 0
    %6621 = vmatprep.subr.bf16.mxu0 0
    %6622 = vmatpush2.bf16.msra.mxu0 0
    %6623 = vmatprep.subr.bf16.mxu0 0
    %6624 = vmatpush2.bf16.msra.mxu0 0
    %6625 = vmatprep.subr.bf16.mxu0 0
    %6626 = vmatpush2.bf16.msra.mxu0 0
    %6627 = vmatprep.mubr.bf16.mxu0 0
    %6628 = vmatmul.mubr.bf16.gmra.mxu0 %v6393
    %v6629 = vpop.f32.mrf.mxu0
    %v6630 = vadd.f32 0.0, %v6629
    %v6631 = vpop.f32.mrf.mxu0
    %v6632 = vadd.f32 0.0, %v6631
    %v6633 = vpop.f32.mrf.mxu0
    %v6634 = vpop.f32.mrf.mxu0
    %6635 = vdwg.mxu0
    %6636 = vmatprep.subr.bf16.mxu0 %v6562
    %6637 = vmatpush1.bf16.msra.mxu0 %v6561
    %6638 = vmatprep.subr.bf16.mxu0 %v6558
    %6639 = vmatpush1.bf16.msra.mxu0 %v6557
    %6640 = vmatprep.subr.bf16.mxu0 %v6554
    %6641 = vmatpush1.bf16.msra.mxu0 %v6553
    %6642 = vmatprep.subr.bf16.mxu0 %v6550
    %6643 = vmatpush1.bf16.msra.mxu0 %v6549
    %6644 = vmatprep.subr.bf16.mxu0 %v6546
    %6645 = vmatpush1.bf16.msra.mxu0 %v6545
    %6646 = vmatprep.subr.bf16.mxu0 %v6542
    %6647 = vmatpush1.bf16.msra.mxu0 %v6541
    %6648 = vmatprep.subr.bf16.mxu0 %v6538
    %6649 = vmatpush1.bf16.msra.mxu0 %v6537
    %6650 = vmatprep.subr.bf16.mxu0 %v6534
    %6651 = vmatpush1.bf16.msra.mxu0 %v6533
    %6652 = vmatprep.subr.bf16.mxu0 0
    %6653 = vmatpush2.bf16.msra.mxu0 0
    %6654 = vmatprep.subr.bf16.mxu0 0
    %6655 = vmatpush2.bf16.msra.mxu0 0
    %6656 = vmatprep.subr.bf16.mxu0 0
    %6657 = vmatpush2.bf16.msra.mxu0 0
    %6658 = vmatprep.subr.bf16.mxu0 0
    %6659 = vmatpush2.bf16.msra.mxu0 0
    %6660 = vmatprep.subr.bf16.mxu0 0
    %6661 = vmatpush2.bf16.msra.mxu0 0
    %6662 = vmatprep.subr.bf16.mxu0 0
    %6663 = vmatpush2.bf16.msra.mxu0 0
    %6664 = vmatprep.subr.bf16.mxu0 0
    %6665 = vmatpush2.bf16.msra.mxu0 0
    %6666 = vmatprep.subr.bf16.mxu0 0
    %6667 = vmatpush2.bf16.msra.mxu0 0
    %6668 = vmatprep.mubr.bf16.mxu0 0
    %6669 = vmatmul.mubr.bf16.gmra.mxu0 %v6393
    %v6670 = vpop.f32.mrf.mxu0
    %v6671 = vadd.f32 0.0, %v6670
    %v6672 = vpop.f32.mrf.mxu0
    %v6673 = vadd.f32 0.0, %v6672
    %v6674 = vpop.f32.mrf.mxu0
    %v6675 = vpop.f32.mrf.mxu0
    %6676 = vdwg.mxu0
    %v6677 = vadd.f32 %v6399, %v6630
    %v6678 = vadd.f32 %v6400, %v6632
    %v6679 = vadd.f32 %v6401, %v6671
    %v6680 = vadd.f32 %v6402, %v6673
    %v6681 = vxor.u32 %v6677, 2147483648
    %v6682 = vmul.f32 %v6681, 1.442695
    %v6683 = vpow.pop %v6682
    %v6684 = vadd.f32 %v6683, 1.0
    %v6685 = vrcp.pop %v6684
    %v6686 = vmul.f32 1.0, %v6685
    %v6687 = vxor.u32 %v6678, 2147483648
    %v6688 = vmul.f32 %v6687, 1.442695
    %v6689 = vpow.pop %v6688
    %v6690 = vadd.f32 %v6689, 1.0
    %v6691 = vrcp.pop %v6690
    %v6692 = vmul.f32 1.0, %v6691
    %v6693 = vtanh.pop %v6679
    %v6694 = vxor.u32 %v6680, 2147483648
    %v6695 = vmul.f32 %v6694, 1.442695
    %v6696 = vpow.pop %v6695
    %v6697 = vadd.f32 %v6696, 1.0
    %v6698 = vrcp.pop %v6697
    %v6699 = vmul.f32 1.0, %v6698
    %v6700 = vmul.f32 %v6692, %v6390
    %v6701 = vmul.f32 %v6686, %v6693
    %v6702 = vadd.f32 %v6700, %v6701
    %v6703 = vtanh.pop %v6702
    %v6704 = vmul.f32 %v6699, %v6703
    %v6705 = vpack.c.bf16 %v6704, %v6704
    %s6706 = scalar_lea.vmem [#allocation3], 72
    %6707 = vst [vmem:[%s6706] sm:$0xf] %v6705
    %s6708 = smul.u32 19, 4
    %s6709 = smul.addr %s6708, 8
    %s6710 = scalar_lea.vmem [#allocation2], %s6709
    %v6711 = vld [vmem:[%s6710] sm:$0xff]
    %v6712 = vld [vmem:[%s6710 + $0x8] sm:$0xff]
    %v6713 = vld [vmem:[%s6710 + $0x10] sm:$0xff]
    %v6714 = vld [vmem:[%s6710 + $0x18] sm:$0xff]
    %v6715 = vld [vmem:[%s2] sm:$0xff]
    %v6716 = vld [vmem:[%s2 + $0x8] sm:$0xff]
    %v6717 = vld [vmem:[%s2 + $0x10] sm:$0xff]
    %v6718 = vld [vmem:[%s2 + $0x18] sm:$0xff]
    %v6719 = vld [vmem:[%s2 + $0x20] sm:$0xff]
    %v6720 = vld [vmem:[%s2 + $0x28] sm:$0xff]
    %v6721 = vld [vmem:[%s2 + $0x30] sm:$0xff]
    %v6722 = vld [vmem:[%s2 + $0x38] sm:$0xff]
    %v6723 = vld [vmem:[%s2 + $0x40] sm:$0xff]
    %v6724 = vld [vmem:[%s2 + $0x48] sm:$0xff]
    %v6725 = vld [vmem:[%s2 + $0x50] sm:$0xff]
    %v6726 = vld [vmem:[%s2 + $0x58] sm:$0xff]
    %v6727 = vld [vmem:[%s2 + $0x60] sm:$0xff]
    %v6728 = vld [vmem:[%s2 + $0x68] sm:$0xff]
    %v6729 = vld [vmem:[%s2 + $0x70] sm:$0xff]
    %v6730 = vld [vmem:[%s2 + $0x78] sm:$0xff]
    %v6731 = vld [vmem:[%s2 + $0x80] sm:$0xff]
    %v6732 = vld [vmem:[%s2 + $0x88] sm:$0xff]
    %v6733 = vld [vmem:[%s2 + $0x90] sm:$0xff]
    %v6734 = vld [vmem:[%s2 + $0x98] sm:$0xff]
    %v6735 = vld [vmem:[%s2 + $0xa0] sm:$0xff]
    %v6736 = vld [vmem:[%s2 + $0xa8] sm:$0xff]
    %v6737 = vld [vmem:[%s2 + $0xb0] sm:$0xff]
    %v6738 = vld [vmem:[%s2 + $0xb8] sm:$0xff]
    %v6739 = vld [vmem:[%s2 + $0xc0] sm:$0xff]
    %v6740 = vld [vmem:[%s2 + $0xc8] sm:$0xff]
    %v6741 = vld [vmem:[%s2 + $0xd0] sm:$0xff]
    %v6742 = vld [vmem:[%s2 + $0xd8] sm:$0xff]
    %v6743 = vld [vmem:[%s2 + $0xe0] sm:$0xff]
    %v6744 = vld [vmem:[%s2 + $0xe8] sm:$0xff]
    %v6745 = vld [vmem:[%s2 + $0xf0] sm:$0xff]
    %v6746 = vld [vmem:[%s2 + $0xf8] sm:$0xff]
    %v6779 = vunpack.c.l.b16 %v6715
    %v6780 = vunpack.c.h.b16 %v6715
    %v6781 = vunpack.c.l.b16 %v6716
    %v6782 = vunpack.c.h.b16 %v6716
    %v6783 = vunpack.c.l.b16 %v6717
    %v6784 = vunpack.c.h.b16 %v6717
    %v6785 = vunpack.c.l.b16 %v6718
    %v6786 = vunpack.c.h.b16 %v6718
    %v6787 = vunpack.c.l.b16 %v6719
    %v6788 = vunpack.c.h.b16 %v6719
    %v6789 = vunpack.c.l.b16 %v6720
    %v6790 = vunpack.c.h.b16 %v6720
    %v6791 = vunpack.c.l.b16 %v6721
    %v6792 = vunpack.c.h.b16 %v6721
    %v6793 = vunpack.c.l.b16 %v6722
    %v6794 = vunpack.c.h.b16 %v6722
    %v6795 = vunpack.c.l.b16 %v6723
    %v6796 = vunpack.c.h.b16 %v6723
    %v6797 = vunpack.c.l.b16 %v6724
    %v6798 = vunpack.c.h.b16 %v6724
    %v6799 = vunpack.c.l.b16 %v6725
    %v6800 = vunpack.c.h.b16 %v6725
    %v6801 = vunpack.c.l.b16 %v6726
    %v6802 = vunpack.c.h.b16 %v6726
    %v6803 = vunpack.c.l.b16 %v6727
    %v6804 = vunpack.c.h.b16 %v6727
    %v6805 = vunpack.c.l.b16 %v6728
    %v6806 = vunpack.c.h.b16 %v6728
    %v6807 = vunpack.c.l.b16 %v6729
    %v6808 = vunpack.c.h.b16 %v6729
    %v6809 = vunpack.c.l.b16 %v6730
    %v6810 = vunpack.c.h.b16 %v6730
    %v6811 = vunpack.c.l.b16 %v6731
    %v6812 = vunpack.c.h.b16 %v6731
    %v6813 = vunpack.c.l.b16 %v6732
    %v6814 = vunpack.c.h.b16 %v6732
    %v6815 = vunpack.c.l.b16 %v6733
    %v6816 = vunpack.c.h.b16 %v6733
    %v6817 = vunpack.c.l.b16 %v6734
    %v6818 = vunpack.c.h.b16 %v6734
    %v6819 = vunpack.c.l.b16 %v6735
    %v6820 = vunpack.c.h.b16 %v6735
    %v6821 = vunpack.c.l.b16 %v6736
    %v6822 = vunpack.c.h.b16 %v6736
    %v6823 = vunpack.c.l.b16 %v6737
    %v6824 = vunpack.c.h.b16 %v6737
    %v6825 = vunpack.c.l.b16 %v6738
    %v6826 = vunpack.c.h.b16 %v6738
    %v6827 = vunpack.c.l.b16 %v6739
    %v6828 = vunpack.c.h.b16 %v6739
    %v6829 = vunpack.c.l.b16 %v6740
    %v6830 = vunpack.c.h.b16 %v6740
    %v6831 = vunpack.c.l.b16 %v6741
    %v6832 = vunpack.c.h.b16 %v6741
    %v6833 = vunpack.c.l.b16 %v6742
    %v6834 = vunpack.c.h.b16 %v6742
    %v6835 = vunpack.c.l.b16 %v6743
    %v6836 = vunpack.c.h.b16 %v6743
    %v6837 = vunpack.c.l.b16 %v6744
    %v6838 = vunpack.c.h.b16 %v6744
    %v6839 = vunpack.c.l.b16 %v6745
    %v6840 = vunpack.c.h.b16 %v6745
    %v6841 = vunpack.c.l.b16 %v6746
    %v6842 = vunpack.c.h.b16 %v6746
    %v6843 = vpack.c.b16 %v6783, %v6779
    %v6844 = vpack.c.b16 %v6784, %v6780
    %v6845 = vpack.c.b16 %v6785, %v6781
    %v6846 = vpack.c.b16 %v6786, %v6782
    %v6847 = vpack.c.b16 %v6791, %v6787
    %v6848 = vpack.c.b16 %v6792, %v6788
    %v6849 = vpack.c.b16 %v6793, %v6789
    %v6850 = vpack.c.b16 %v6794, %v6790
    %v6851 = vpack.c.b16 %v6799, %v6795
    %v6852 = vpack.c.b16 %v6800, %v6796
    %v6853 = vpack.c.b16 %v6801, %v6797
    %v6854 = vpack.c.b16 %v6802, %v6798
    %v6855 = vpack.c.b16 %v6807, %v6803
    %v6856 = vpack.c.b16 %v6808, %v6804
    %v6857 = vpack.c.b16 %v6809, %v6805
    %v6858 = vpack.c.b16 %v6810, %v6806
    %v6859 = vpack.c.b16 %v6815, %v6811
    %v6860 = vpack.c.b16 %v6816, %v6812
    %v6861 = vpack.c.b16 %v6817, %v6813
    %v6862 = vpack.c.b16 %v6818, %v6814
    %v6863 = vpack.c.b16 %v6823, %v6819
    %v6864 = vpack.c.b16 %v6824, %v6820
    %v6865 = vpack.c.b16 %v6825, %v6821
    %v6866 = vpack.c.b16 %v6826, %v6822
    %v6867 = vpack.c.b16 %v6831, %v6827
    %v6868 = vpack.c.b16 %v6832, %v6828
    %v6869 = vpack.c.b16 %v6833, %v6829
    %v6870 = vpack.c.b16 %v6834, %v6830
    %v6871 = vpack.c.b16 %v6839, %v6835
    %v6872 = vpack.c.b16 %v6840, %v6836
    %v6873 = vpack.c.b16 %v6841, %v6837
    %v6874 = vpack.c.b16 %v6842, %v6838
    %6907 = vmatprep.subr.bf16.mxu0 %v6872
    %6908 = vmatpush1.bf16.msra.mxu0 %v6871
    %6909 = vmatprep.subr.bf16.mxu0 %v6868
    %6910 = vmatpush1.bf16.msra.mxu0 %v6867
    %6911 = vmatprep.subr.bf16.mxu0 %v6864
    %6912 = vmatpush1.bf16.msra.mxu0 %v6863
    %6913 = vmatprep.subr.bf16.mxu0 %v6860
    %6914 = vmatpush1.bf16.msra.mxu0 %v6859
    %6915 = vmatprep.subr.bf16.mxu0 %v6856
    %6916 = vmatpush1.bf16.msra.mxu0 %v6855
    %6917 = vmatprep.subr.bf16.mxu0 %v6852
    %6918 = vmatpush1.bf16.msra.mxu0 %v6851
    %6919 = vmatprep.subr.bf16.mxu0 %v6848
    %6920 = vmatpush1.bf16.msra.mxu0 %v6847
    %6921 = vmatprep.subr.bf16.mxu0 %v6844
    %6922 = vmatpush1.bf16.msra.mxu0 %v6843
    %6923 = vmatprep.subr.bf16.mxu0 0
    %6924 = vmatpush2.bf16.msra.mxu0 0
    %6925 = vmatprep.subr.bf16.mxu0 0
    %6926 = vmatpush2.bf16.msra.mxu0 0
    %6927 = vmatprep.subr.bf16.mxu0 0
    %6928 = vmatpush2.bf16.msra.mxu0 0
    %6929 = vmatprep.subr.bf16.mxu0 0
    %6930 = vmatpush2.bf16.msra.mxu0 0
    %6931 = vmatprep.subr.bf16.mxu0 0
    %6932 = vmatpush2.bf16.msra.mxu0 0
    %6933 = vmatprep.subr.bf16.mxu0 0
    %6934 = vmatpush2.bf16.msra.mxu0 0
    %6935 = vmatprep.subr.bf16.mxu0 0
    %6936 = vmatpush2.bf16.msra.mxu0 0
    %6937 = vmatprep.subr.bf16.mxu0 0
    %6938 = vmatpush2.bf16.msra.mxu0 0
    %6939 = vmatprep.mubr.bf16.mxu0 0
    %6940 = vmatmul.mubr.bf16.gmra.mxu0 %v6705
    %v6941 = vpop.f32.mrf.mxu0
    %v6942 = vadd.f32 0.0, %v6941
    %v6943 = vpop.f32.mrf.mxu0
    %v6944 = vadd.f32 0.0, %v6943
    %v6945 = vpop.f32.mrf.mxu0
    %v6946 = vpop.f32.mrf.mxu0
    %6947 = vdwg.mxu0
    %6948 = vmatprep.subr.bf16.mxu0 %v6874
    %6949 = vmatpush1.bf16.msra.mxu0 %v6873
    %6950 = vmatprep.subr.bf16.mxu0 %v6870
    %6951 = vmatpush1.bf16.msra.mxu0 %v6869
    %6952 = vmatprep.subr.bf16.mxu0 %v6866
    %6953 = vmatpush1.bf16.msra.mxu0 %v6865
    %6954 = vmatprep.subr.bf16.mxu0 %v6862
    %6955 = vmatpush1.bf16.msra.mxu0 %v6861
    %6956 = vmatprep.subr.bf16.mxu0 %v6858
    %6957 = vmatpush1.bf16.msra.mxu0 %v6857
    %6958 = vmatprep.subr.bf16.mxu0 %v6854
    %6959 = vmatpush1.bf16.msra.mxu0 %v6853
    %6960 = vmatprep.subr.bf16.mxu0 %v6850
    %6961 = vmatpush1.bf16.msra.mxu0 %v6849
    %6962 = vmatprep.subr.bf16.mxu0 %v6846
    %6963 = vmatpush1.bf16.msra.mxu0 %v6845
    %6964 = vmatprep.subr.bf16.mxu0 0
    %6965 = vmatpush2.bf16.msra.mxu0 0
    %6966 = vmatprep.subr.bf16.mxu0 0
    %6967 = vmatpush2.bf16.msra.mxu0 0
    %6968 = vmatprep.subr.bf16.mxu0 0
    %6969 = vmatpush2.bf16.msra.mxu0 0
    %6970 = vmatprep.subr.bf16.mxu0 0
    %6971 = vmatpush2.bf16.msra.mxu0 0
    %6972 = vmatprep.subr.bf16.mxu0 0
    %6973 = vmatpush2.bf16.msra.mxu0 0
    %6974 = vmatprep.subr.bf16.mxu0 0
    %6975 = vmatpush2.bf16.msra.mxu0 0
    %6976 = vmatprep.subr.bf16.mxu0 0
    %6977 = vmatpush2.bf16.msra.mxu0 0
    %6978 = vmatprep.subr.bf16.mxu0 0
    %6979 = vmatpush2.bf16.msra.mxu0 0
    %6980 = vmatprep.mubr.bf16.mxu0 0
    %6981 = vmatmul.mubr.bf16.gmra.mxu0 %v6705
    %v6982 = vpop.f32.mrf.mxu0
    %v6983 = vadd.f32 0.0, %v6982
    %v6984 = vpop.f32.mrf.mxu0
    %v6985 = vadd.f32 0.0, %v6984
    %v6986 = vpop.f32.mrf.mxu0
    %v6987 = vpop.f32.mrf.mxu0
    %6988 = vdwg.mxu0
    %v6989 = vadd.f32 %v6711, %v6942
    %v6990 = vadd.f32 %v6712, %v6944
    %v6991 = vadd.f32 %v6713, %v6983
    %v6992 = vadd.f32 %v6714, %v6985
    %v6993 = vxor.u32 %v6989, 2147483648
    %v6994 = vmul.f32 %v6993, 1.442695
    %v6995 = vpow.pop %v6994
    %v6996 = vadd.f32 %v6995, 1.0
    %v6997 = vrcp.pop %v6996
    %v6998 = vmul.f32 1.0, %v6997
    %v6999 = vxor.u32 %v6990, 2147483648
    %v7000 = vmul.f32 %v6999, 1.442695
    %v7001 = vpow.pop %v7000
    %v7002 = vadd.f32 %v7001, 1.0
    %v7003 = vrcp.pop %v7002
    %v7004 = vmul.f32 1.0, %v7003
    %v7005 = vtanh.pop %v6991
    %v7006 = vxor.u32 %v6992, 2147483648
    %v7007 = vmul.f32 %v7006, 1.442695
    %v7008 = vpow.pop %v7007
    %v7009 = vadd.f32 %v7008, 1.0
    %v7010 = vrcp.pop %v7009
    %v7011 = vmul.f32 1.0, %v7010
    %v7012 = vmul.f32 %v7004, %v6702
    %v7013 = vmul.f32 %v6998, %v7005
    %v7014 = vadd.f32 %v7012, %v7013
    %v7015 = vtanh.pop %v7014
    %v7016 = vmul.f32 %v7011, %v7015
    %v7017 = vpack.c.bf16 %v7016, %v7016
    %s7018 = scalar_lea.vmem [#allocation3], 76
    %7019 = vst [vmem:[%s7018] sm:$0xf] %v7017
    %s7020 = smul.u32 20, 4
    %s7021 = smul.addr %s7020, 8
    %s7022 = scalar_lea.vmem [#allocation2], %s7021
    %v7023 = vld [vmem:[%s7022] sm:$0xff]
    %v7024 = vld [vmem:[%s7022 + $0x8] sm:$0xff]
    %v7025 = vld [vmem:[%s7022 + $0x10] sm:$0xff]
    %v7026 = vld [vmem:[%s7022 + $0x18] sm:$0xff]
    %v7027 = vld [vmem:[%s2] sm:$0xff]
    %v7028 = vld [vmem:[%s2 + $0x8] sm:$0xff]
    %v7029 = vld [vmem:[%s2 + $0x10] sm:$0xff]
    %v7030 = vld [vmem:[%s2 + $0x18] sm:$0xff]
    %v7031 = vld [vmem:[%s2 + $0x20] sm:$0xff]
    %v7032 = vld [vmem:[%s2 + $0x28] sm:$0xff]
    %v7033 = vld [vmem:[%s2 + $0x30] sm:$0xff]
    %v7034 = vld [vmem:[%s2 + $0x38] sm:$0xff]
    %v7035 = vld [vmem:[%s2 + $0x40] sm:$0xff]
    %v7036 = vld [vmem:[%s2 + $0x48] sm:$0xff]
    %v7037 = vld [vmem:[%s2 + $0x50] sm:$0xff]
    %v7038 = vld [vmem:[%s2 + $0x58] sm:$0xff]
    %v7039 = vld [vmem:[%s2 + $0x60] sm:$0xff]
    %v7040 = vld [vmem:[%s2 + $0x68] sm:$0xff]
    %v7041 = vld [vmem:[%s2 + $0x70] sm:$0xff]
    %v7042 = vld [vmem:[%s2 + $0x78] sm:$0xff]
    %v7043 = vld [vmem:[%s2 + $0x80] sm:$0xff]
    %v7044 = vld [vmem:[%s2 + $0x88] sm:$0xff]
    %v7045 = vld [vmem:[%s2 + $0x90] sm:$0xff]
    %v7046 = vld [vmem:[%s2 + $0x98] sm:$0xff]
    %v7047 = vld [vmem:[%s2 + $0xa0] sm:$0xff]
    %v7048 = vld [vmem:[%s2 + $0xa8] sm:$0xff]
    %v7049 = vld [vmem:[%s2 + $0xb0] sm:$0xff]
    %v7050 = vld [vmem:[%s2 + $0xb8] sm:$0xff]
    %v7051 = vld [vmem:[%s2 + $0xc0] sm:$0xff]
    %v7052 = vld [vmem:[%s2 + $0xc8] sm:$0xff]
    %v7053 = vld [vmem:[%s2 + $0xd0] sm:$0xff]
    %v7054 = vld [vmem:[%s2 + $0xd8] sm:$0xff]
    %v7055 = vld [vmem:[%s2 + $0xe0] sm:$0xff]
    %v7056 = vld [vmem:[%s2 + $0xe8] sm:$0xff]
    %v7057 = vld [vmem:[%s2 + $0xf0] sm:$0xff]
    %v7058 = vld [vmem:[%s2 + $0xf8] sm:$0xff]
    %v7091 = vunpack.c.l.b16 %v7027
    %v7092 = vunpack.c.h.b16 %v7027
    %v7093 = vunpack.c.l.b16 %v7028
    %v7094 = vunpack.c.h.b16 %v7028
    %v7095 = vunpack.c.l.b16 %v7029
    %v7096 = vunpack.c.h.b16 %v7029
    %v7097 = vunpack.c.l.b16 %v7030
    %v7098 = vunpack.c.h.b16 %v7030
    %v7099 = vunpack.c.l.b16 %v7031
    %v7100 = vunpack.c.h.b16 %v7031
    %v7101 = vunpack.c.l.b16 %v7032
    %v7102 = vunpack.c.h.b16 %v7032
    %v7103 = vunpack.c.l.b16 %v7033
    %v7104 = vunpack.c.h.b16 %v7033
    %v7105 = vunpack.c.l.b16 %v7034
    %v7106 = vunpack.c.h.b16 %v7034
    %v7107 = vunpack.c.l.b16 %v7035
    %v7108 = vunpack.c.h.b16 %v7035
    %v7109 = vunpack.c.l.b16 %v7036
    %v7110 = vunpack.c.h.b16 %v7036
    %v7111 = vunpack.c.l.b16 %v7037
    %v7112 = vunpack.c.h.b16 %v7037
    %v7113 = vunpack.c.l.b16 %v7038
    %v7114 = vunpack.c.h.b16 %v7038
    %v7115 = vunpack.c.l.b16 %v7039
    %v7116 = vunpack.c.h.b16 %v7039
    %v7117 = vunpack.c.l.b16 %v7040
    %v7118 = vunpack.c.h.b16 %v7040
    %v7119 = vunpack.c.l.b16 %v7041
    %v7120 = vunpack.c.h.b16 %v7041
    %v7121 = vunpack.c.l.b16 %v7042
    %v7122 = vunpack.c.h.b16 %v7042
    %v7123 = vunpack.c.l.b16 %v7043
    %v7124 = vunpack.c.h.b16 %v7043
    %v7125 = vunpack.c.l.b16 %v7044
    %v7126 = vunpack.c.h.b16 %v7044
    %v7127 = vunpack.c.l.b16 %v7045
    %v7128 = vunpack.c.h.b16 %v7045
    %v7129 = vunpack.c.l.b16 %v7046
    %v7130 = vunpack.c.h.b16 %v7046
    %v7131 = vunpack.c.l.b16 %v7047
    %v7132 = vunpack.c.h.b16 %v7047
    %v7133 = vunpack.c.l.b16 %v7048
    %v7134 = vunpack.c.h.b16 %v7048
    %v7135 = vunpack.c.l.b16 %v7049
    %v7136 = vunpack.c.h.b16 %v7049
    %v7137 = vunpack.c.l.b16 %v7050
    %v7138 = vunpack.c.h.b16 %v7050
    %v7139 = vunpack.c.l.b16 %v7051
    %v7140 = vunpack.c.h.b16 %v7051
    %v7141 = vunpack.c.l.b16 %v7052
    %v7142 = vunpack.c.h.b16 %v7052
    %v7143 = vunpack.c.l.b16 %v7053
    %v7144 = vunpack.c.h.b16 %v7053
    %v7145 = vunpack.c.l.b16 %v7054
    %v7146 = vunpack.c.h.b16 %v7054
    %v7147 = vunpack.c.l.b16 %v7055
    %v7148 = vunpack.c.h.b16 %v7055
    %v7149 = vunpack.c.l.b16 %v7056
    %v7150 = vunpack.c.h.b16 %v7056
    %v7151 = vunpack.c.l.b16 %v7057
    %v7152 = vunpack.c.h.b16 %v7057
    %v7153 = vunpack.c.l.b16 %v7058
    %v7154 = vunpack.c.h.b16 %v7058
    %v7155 = vpack.c.b16 %v7095, %v7091
    %v7156 = vpack.c.b16 %v7096, %v7092
    %v7157 = vpack.c.b16 %v7097, %v7093
    %v7158 = vpack.c.b16 %v7098, %v7094
    %v7159 = vpack.c.b16 %v7103, %v7099
    %v7160 = vpack.c.b16 %v7104, %v7100
    %v7161 = vpack.c.b16 %v7105, %v7101
    %v7162 = vpack.c.b16 %v7106, %v7102
    %v7163 = vpack.c.b16 %v7111, %v7107
    %v7164 = vpack.c.b16 %v7112, %v7108
    %v7165 = vpack.c.b16 %v7113, %v7109
    %v7166 = vpack.c.b16 %v7114, %v7110
    %v7167 = vpack.c.b16 %v7119, %v7115
    %v7168 = vpack.c.b16 %v7120, %v7116
    %v7169 = vpack.c.b16 %v7121, %v7117
    %v7170 = vpack.c.b16 %v7122, %v7118
    %v7171 = vpack.c.b16 %v7127, %v7123
    %v7172 = vpack.c.b16 %v7128, %v7124
    %v7173 = vpack.c.b16 %v7129, %v7125
    %v7174 = vpack.c.b16 %v7130, %v7126
    %v7175 = vpack.c.b16 %v7135, %v7131
    %v7176 = vpack.c.b16 %v7136, %v7132
    %v7177 = vpack.c.b16 %v7137, %v7133
    %v7178 = vpack.c.b16 %v7138, %v7134
    %v7179 = vpack.c.b16 %v7143, %v7139
    %v7180 = vpack.c.b16 %v7144, %v7140
    %v7181 = vpack.c.b16 %v7145, %v7141
    %v7182 = vpack.c.b16 %v7146, %v7142
    %v7183 = vpack.c.b16 %v7151, %v7147
    %v7184 = vpack.c.b16 %v7152, %v7148
    %v7185 = vpack.c.b16 %v7153, %v7149
    %v7186 = vpack.c.b16 %v7154, %v7150
    %7219 = vmatprep.subr.bf16.mxu0 %v7184
    %7220 = vmatpush1.bf16.msra.mxu0 %v7183
    %7221 = vmatprep.subr.bf16.mxu0 %v7180
    %7222 = vmatpush1.bf16.msra.mxu0 %v7179
    %7223 = vmatprep.subr.bf16.mxu0 %v7176
    %7224 = vmatpush1.bf16.msra.mxu0 %v7175
    %7225 = vmatprep.subr.bf16.mxu0 %v7172
    %7226 = vmatpush1.bf16.msra.mxu0 %v7171
    %7227 = vmatprep.subr.bf16.mxu0 %v7168
    %7228 = vmatpush1.bf16.msra.mxu0 %v7167
    %7229 = vmatprep.subr.bf16.mxu0 %v7164
    %7230 = vmatpush1.bf16.msra.mxu0 %v7163
    %7231 = vmatprep.subr.bf16.mxu0 %v7160
    %7232 = vmatpush1.bf16.msra.mxu0 %v7159
    %7233 = vmatprep.subr.bf16.mxu0 %v7156
    %7234 = vmatpush1.bf16.msra.mxu0 %v7155
    %7235 = vmatprep.subr.bf16.mxu0 0
    %7236 = vmatpush2.bf16.msra.mxu0 0
    %7237 = vmatprep.subr.bf16.mxu0 0
    %7238 = vmatpush2.bf16.msra.mxu0 0
    %7239 = vmatprep.subr.bf16.mxu0 0
    %7240 = vmatpush2.bf16.msra.mxu0 0
    %7241 = vmatprep.subr.bf16.mxu0 0
    %7242 = vmatpush2.bf16.msra.mxu0 0
    %7243 = vmatprep.subr.bf16.mxu0 0
    %7244 = vmatpush2.bf16.msra.mxu0 0
    %7245 = vmatprep.subr.bf16.mxu0 0
    %7246 = vmatpush2.bf16.msra.mxu0 0
    %7247 = vmatprep.subr.bf16.mxu0 0
    %7248 = vmatpush2.bf16.msra.mxu0 0
    %7249 = vmatprep.subr.bf16.mxu0 0
    %7250 = vmatpush2.bf16.msra.mxu0 0
    %7251 = vmatprep.mubr.bf16.mxu0 0
    %7252 = vmatmul.mubr.bf16.gmra.mxu0 %v7017
    %v7253 = vpop.f32.mrf.mxu0
    %v7254 = vadd.f32 0.0, %v7253
    %v7255 = vpop.f32.mrf.mxu0
    %v7256 = vadd.f32 0.0, %v7255
    %v7257 = vpop.f32.mrf.mxu0
    %v7258 = vpop.f32.mrf.mxu0
    %7259 = vdwg.mxu0
    %7260 = vmatprep.subr.bf16.mxu0 %v7186
    %7261 = vmatpush1.bf16.msra.mxu0 %v7185
    %7262 = vmatprep.subr.bf16.mxu0 %v7182
    %7263 = vmatpush1.bf16.msra.mxu0 %v7181
    %7264 = vmatprep.subr.bf16.mxu0 %v7178
    %7265 = vmatpush1.bf16.msra.mxu0 %v7177
    %7266 = vmatprep.subr.bf16.mxu0 %v7174
    %7267 = vmatpush1.bf16.msra.mxu0 %v7173
    %7268 = vmatprep.subr.bf16.mxu0 %v7170
    %7269 = vmatpush1.bf16.msra.mxu0 %v7169
    %7270 = vmatprep.subr.bf16.mxu0 %v7166
    %7271 = vmatpush1.bf16.msra.mxu0 %v7165
    %7272 = vmatprep.subr.bf16.mxu0 %v7162
    %7273 = vmatpush1.bf16.msra.mxu0 %v7161
    %7274 = vmatprep.subr.bf16.mxu0 %v7158
    %7275 = vmatpush1.bf16.msra.mxu0 %v7157
    %7276 = vmatprep.subr.bf16.mxu0 0
    %7277 = vmatpush2.bf16.msra.mxu0 0
    %7278 = vmatprep.subr.bf16.mxu0 0
    %7279 = vmatpush2.bf16.msra.mxu0 0
    %7280 = vmatprep.subr.bf16.mxu0 0
    %7281 = vmatpush2.bf16.msra.mxu0 0
    %7282 = vmatprep.subr.bf16.mxu0 0
    %7283 = vmatpush2.bf16.msra.mxu0 0
    %7284 = vmatprep.subr.bf16.mxu0 0
    %7285 = vmatpush2.bf16.msra.mxu0 0
    %7286 = vmatprep.subr.bf16.mxu0 0
    %7287 = vmatpush2.bf16.msra.mxu0 0
    %7288 = vmatprep.subr.bf16.mxu0 0
    %7289 = vmatpush2.bf16.msra.mxu0 0
    %7290 = vmatprep.subr.bf16.mxu0 0
    %7291 = vmatpush2.bf16.msra.mxu0 0
    %7292 = vmatprep.mubr.bf16.mxu0 0
    %7293 = vmatmul.mubr.bf16.gmra.mxu0 %v7017
    %v7294 = vpop.f32.mrf.mxu0
    %v7295 = vadd.f32 0.0, %v7294
    %v7296 = vpop.f32.mrf.mxu0
    %v7297 = vadd.f32 0.0, %v7296
    %v7298 = vpop.f32.mrf.mxu0
    %v7299 = vpop.f32.mrf.mxu0
    %7300 = vdwg.mxu0
    %v7301 = vadd.f32 %v7023, %v7254
    %v7302 = vadd.f32 %v7024, %v7256
    %v7303 = vadd.f32 %v7025, %v7295
    %v7304 = vadd.f32 %v7026, %v7297
    %v7305 = vxor.u32 %v7301, 2147483648
    %v7306 = vmul.f32 %v7305, 1.442695
    %v7307 = vpow.pop %v7306
    %v7308 = vadd.f32 %v7307, 1.0
    %v7309 = vrcp.pop %v7308
    %v7310 = vmul.f32 1.0, %v7309
    %v7311 = vxor.u32 %v7302, 2147483648
    %v7312 = vmul.f32 %v7311, 1.442695
    %v7313 = vpow.pop %v7312
    %v7314 = vadd.f32 %v7313, 1.0
    %v7315 = vrcp.pop %v7314
    %v7316 = vmul.f32 1.0, %v7315
    %v7317 = vtanh.pop %v7303
    %v7318 = vxor.u32 %v7304, 2147483648
    %v7319 = vmul.f32 %v7318, 1.442695
    %v7320 = vpow.pop %v7319
    %v7321 = vadd.f32 %v7320, 1.0
    %v7322 = vrcp.pop %v7321
    %v7323 = vmul.f32 1.0, %v7322
    %v7324 = vmul.f32 %v7316, %v7014
    %v7325 = vmul.f32 %v7310, %v7317
    %v7326 = vadd.f32 %v7324, %v7325
    %v7327 = vtanh.pop %v7326
    %v7328 = vmul.f32 %v7323, %v7327
    %v7329 = vpack.c.bf16 %v7328, %v7328
    %s7330 = scalar_lea.vmem [#allocation3], 80
    %7331 = vst [vmem:[%s7330] sm:$0xf] %v7329
    %s7332 = smul.u32 21, 4
    %s7333 = smul.addr %s7332, 8
    %s7334 = scalar_lea.vmem [#allocation2], %s7333
    %v7335 = vld [vmem:[%s7334] sm:$0xff]
    %v7336 = vld [vmem:[%s7334 + $0x8] sm:$0xff]
    %v7337 = vld [vmem:[%s7334 + $0x10] sm:$0xff]
    %v7338 = vld [vmem:[%s7334 + $0x18] sm:$0xff]
    %v7339 = vld [vmem:[%s2] sm:$0xff]
    %v7340 = vld [vmem:[%s2 + $0x8] sm:$0xff]
    %v7341 = vld [vmem:[%s2 + $0x10] sm:$0xff]
    %v7342 = vld [vmem:[%s2 + $0x18] sm:$0xff]
    %v7343 = vld [vmem:[%s2 + $0x20] sm:$0xff]
    %v7344 = vld [vmem:[%s2 + $0x28] sm:$0xff]
    %v7345 = vld [vmem:[%s2 + $0x30] sm:$0xff]
    %v7346 = vld [vmem:[%s2 + $0x38] sm:$0xff]
    %v7347 = vld [vmem:[%s2 + $0x40] sm:$0xff]
    %v7348 = vld [vmem:[%s2 + $0x48] sm:$0xff]
    %v7349 = vld [vmem:[%s2 + $0x50] sm:$0xff]
    %v7350 = vld [vmem:[%s2 + $0x58] sm:$0xff]
    %v7351 = vld [vmem:[%s2 + $0x60] sm:$0xff]
    %v7352 = vld [vmem:[%s2 + $0x68] sm:$0xff]
    %v7353 = vld [vmem:[%s2 + $0x70] sm:$0xff]
    %v7354 = vld [vmem:[%s2 + $0x78] sm:$0xff]
    %v7355 = vld [vmem:[%s2 + $0x80] sm:$0xff]
    %v7356 = vld [vmem:[%s2 + $0x88] sm:$0xff]
    %v7357 = vld [vmem:[%s2 + $0x90] sm:$0xff]
    %v7358 = vld [vmem:[%s2 + $0x98] sm:$0xff]
    %v7359 = vld [vmem:[%s2 + $0xa0] sm:$0xff]
    %v7360 = vld [vmem:[%s2 + $0xa8] sm:$0xff]
    %v7361 = vld [vmem:[%s2 + $0xb0] sm:$0xff]
    %v7362 = vld [vmem:[%s2 + $0xb8] sm:$0xff]
    %v7363 = vld [vmem:[%s2 + $0xc0] sm:$0xff]
    %v7364 = vld [vmem:[%s2 + $0xc8] sm:$0xff]
    %v7365 = vld [vmem:[%s2 + $0xd0] sm:$0xff]
    %v7366 = vld [vmem:[%s2 + $0xd8] sm:$0xff]
    %v7367 = vld [vmem:[%s2 + $0xe0] sm:$0xff]
    %v7368 = vld [vmem:[%s2 + $0xe8] sm:$0xff]
    %v7369 = vld [vmem:[%s2 + $0xf0] sm:$0xff]
    %v7370 = vld [vmem:[%s2 + $0xf8] sm:$0xff]
    %v7403 = vunpack.c.l.b16 %v7339
    %v7404 = vunpack.c.h.b16 %v7339
    %v7405 = vunpack.c.l.b16 %v7340
    %v7406 = vunpack.c.h.b16 %v7340
    %v7407 = vunpack.c.l.b16 %v7341
    %v7408 = vunpack.c.h.b16 %v7341
    %v7409 = vunpack.c.l.b16 %v7342
    %v7410 = vunpack.c.h.b16 %v7342
    %v7411 = vunpack.c.l.b16 %v7343
    %v7412 = vunpack.c.h.b16 %v7343
    %v7413 = vunpack.c.l.b16 %v7344
    %v7414 = vunpack.c.h.b16 %v7344
    %v7415 = vunpack.c.l.b16 %v7345
    %v7416 = vunpack.c.h.b16 %v7345
    %v7417 = vunpack.c.l.b16 %v7346
    %v7418 = vunpack.c.h.b16 %v7346
    %v7419 = vunpack.c.l.b16 %v7347
    %v7420 = vunpack.c.h.b16 %v7347
    %v7421 = vunpack.c.l.b16 %v7348
    %v7422 = vunpack.c.h.b16 %v7348
    %v7423 = vunpack.c.l.b16 %v7349
    %v7424 = vunpack.c.h.b16 %v7349
    %v7425 = vunpack.c.l.b16 %v7350
    %v7426 = vunpack.c.h.b16 %v7350
    %v7427 = vunpack.c.l.b16 %v7351
    %v7428 = vunpack.c.h.b16 %v7351
    %v7429 = vunpack.c.l.b16 %v7352
    %v7430 = vunpack.c.h.b16 %v7352
    %v7431 = vunpack.c.l.b16 %v7353
    %v7432 = vunpack.c.h.b16 %v7353
    %v7433 = vunpack.c.l.b16 %v7354
    %v7434 = vunpack.c.h.b16 %v7354
    %v7435 = vunpack.c.l.b16 %v7355
    %v7436 = vunpack.c.h.b16 %v7355
    %v7437 = vunpack.c.l.b16 %v7356
    %v7438 = vunpack.c.h.b16 %v7356
    %v7439 = vunpack.c.l.b16 %v7357
    %v7440 = vunpack.c.h.b16 %v7357
    %v7441 = vunpack.c.l.b16 %v7358
    %v7442 = vunpack.c.h.b16 %v7358
    %v7443 = vunpack.c.l.b16 %v7359
    %v7444 = vunpack.c.h.b16 %v7359
    %v7445 = vunpack.c.l.b16 %v7360
    %v7446 = vunpack.c.h.b16 %v7360
    %v7447 = vunpack.c.l.b16 %v7361
    %v7448 = vunpack.c.h.b16 %v7361
    %v7449 = vunpack.c.l.b16 %v7362
    %v7450 = vunpack.c.h.b16 %v7362
    %v7451 = vunpack.c.l.b16 %v7363
    %v7452 = vunpack.c.h.b16 %v7363
    %v7453 = vunpack.c.l.b16 %v7364
    %v7454 = vunpack.c.h.b16 %v7364
    %v7455 = vunpack.c.l.b16 %v7365
    %v7456 = vunpack.c.h.b16 %v7365
    %v7457 = vunpack.c.l.b16 %v7366
    %v7458 = vunpack.c.h.b16 %v7366
    %v7459 = vunpack.c.l.b16 %v7367
    %v7460 = vunpack.c.h.b16 %v7367
    %v7461 = vunpack.c.l.b16 %v7368
    %v7462 = vunpack.c.h.b16 %v7368
    %v7463 = vunpack.c.l.b16 %v7369
    %v7464 = vunpack.c.h.b16 %v7369
    %v7465 = vunpack.c.l.b16 %v7370
    %v7466 = vunpack.c.h.b16 %v7370
    %v7467 = vpack.c.b16 %v7407, %v7403
    %v7468 = vpack.c.b16 %v7408, %v7404
    %v7469 = vpack.c.b16 %v7409, %v7405
    %v7470 = vpack.c.b16 %v7410, %v7406
    %v7471 = vpack.c.b16 %v7415, %v7411
    %v7472 = vpack.c.b16 %v7416, %v7412
    %v7473 = vpack.c.b16 %v7417, %v7413
    %v7474 = vpack.c.b16 %v7418, %v7414
    %v7475 = vpack.c.b16 %v7423, %v7419
    %v7476 = vpack.c.b16 %v7424, %v7420
    %v7477 = vpack.c.b16 %v7425, %v7421
    %v7478 = vpack.c.b16 %v7426, %v7422
    %v7479 = vpack.c.b16 %v7431, %v7427
    %v7480 = vpack.c.b16 %v7432, %v7428
    %v7481 = vpack.c.b16 %v7433, %v7429
    %v7482 = vpack.c.b16 %v7434, %v7430
    %v7483 = vpack.c.b16 %v7439, %v7435
    %v7484 = vpack.c.b16 %v7440, %v7436
    %v7485 = vpack.c.b16 %v7441, %v7437
    %v7486 = vpack.c.b16 %v7442, %v7438
    %v7487 = vpack.c.b16 %v7447, %v7443
    %v7488 = vpack.c.b16 %v7448, %v7444
    %v7489 = vpack.c.b16 %v7449, %v7445
    %v7490 = vpack.c.b16 %v7450, %v7446
    %v7491 = vpack.c.b16 %v7455, %v7451
    %v7492 = vpack.c.b16 %v7456, %v7452
    %v7493 = vpack.c.b16 %v7457, %v7453
    %v7494 = vpack.c.b16 %v7458, %v7454
    %v7495 = vpack.c.b16 %v7463, %v7459
    %v7496 = vpack.c.b16 %v7464, %v7460
    %v7497 = vpack.c.b16 %v7465, %v7461
    %v7498 = vpack.c.b16 %v7466, %v7462
    %7531 = vmatprep.subr.bf16.mxu0 %v7496
    %7532 = vmatpush1.bf16.msra.mxu0 %v7495
    %7533 = vmatprep.subr.bf16.mxu0 %v7492
    %7534 = vmatpush1.bf16.msra.mxu0 %v7491
    %7535 = vmatprep.subr.bf16.mxu0 %v7488
    %7536 = vmatpush1.bf16.msra.mxu0 %v7487
    %7537 = vmatprep.subr.bf16.mxu0 %v7484
    %7538 = vmatpush1.bf16.msra.mxu0 %v7483
    %7539 = vmatprep.subr.bf16.mxu0 %v7480
    %7540 = vmatpush1.bf16.msra.mxu0 %v7479
    %7541 = vmatprep.subr.bf16.mxu0 %v7476
    %7542 = vmatpush1.bf16.msra.mxu0 %v7475
    %7543 = vmatprep.subr.bf16.mxu0 %v7472
    %7544 = vmatpush1.bf16.msra.mxu0 %v7471
    %7545 = vmatprep.subr.bf16.mxu0 %v7468
    %7546 = vmatpush1.bf16.msra.mxu0 %v7467
    %7547 = vmatprep.subr.bf16.mxu0 0
    %7548 = vmatpush2.bf16.msra.mxu0 0
    %7549 = vmatprep.subr.bf16.mxu0 0
    %7550 = vmatpush2.bf16.msra.mxu0 0
    %7551 = vmatprep.subr.bf16.mxu0 0
    %7552 = vmatpush2.bf16.msra.mxu0 0
    %7553 = vmatprep.subr.bf16.mxu0 0
    %7554 = vmatpush2.bf16.msra.mxu0 0
    %7555 = vmatprep.subr.bf16.mxu0 0
    %7556 = vmatpush2.bf16.msra.mxu0 0
    %7557 = vmatprep.subr.bf16.mxu0 0
    %7558 = vmatpush2.bf16.msra.mxu0 0
    %7559 = vmatprep.subr.bf16.mxu0 0
    %7560 = vmatpush2.bf16.msra.mxu0 0
    %7561 = vmatprep.subr.bf16.mxu0 0
    %7562 = vmatpush2.bf16.msra.mxu0 0
    %7563 = vmatprep.mubr.bf16.mxu0 0
    %7564 = vmatmul.mubr.bf16.gmra.mxu0 %v7329
    %v7565 = vpop.f32.mrf.mxu0
    %v7566 = vadd.f32 0.0, %v7565
    %v7567 = vpop.f32.mrf.mxu0
    %v7568 = vadd.f32 0.0, %v7567
    %v7569 = vpop.f32.mrf.mxu0
    %v7570 = vpop.f32.mrf.mxu0
    %7571 = vdwg.mxu0
    %7572 = vmatprep.subr.bf16.mxu0 %v7498
    %7573 = vmatpush1.bf16.msra.mxu0 %v7497
    %7574 = vmatprep.subr.bf16.mxu0 %v7494
    %7575 = vmatpush1.bf16.msra.mxu0 %v7493
    %7576 = vmatprep.subr.bf16.mxu0 %v7490
    %7577 = vmatpush1.bf16.msra.mxu0 %v7489
    %7578 = vmatprep.subr.bf16.mxu0 %v7486
    %7579 = vmatpush1.bf16.msra.mxu0 %v7485
    %7580 = vmatprep.subr.bf16.mxu0 %v7482
    %7581 = vmatpush1.bf16.msra.mxu0 %v7481
    %7582 = vmatprep.subr.bf16.mxu0 %v7478
    %7583 = vmatpush1.bf16.msra.mxu0 %v7477
    %7584 = vmatprep.subr.bf16.mxu0 %v7474
    %7585 = vmatpush1.bf16.msra.mxu0 %v7473
    %7586 = vmatprep.subr.bf16.mxu0 %v7470
    %7587 = vmatpush1.bf16.msra.mxu0 %v7469
    %7588 = vmatprep.subr.bf16.mxu0 0
    %7589 = vmatpush2.bf16.msra.mxu0 0
    %7590 = vmatprep.subr.bf16.mxu0 0
    %7591 = vmatpush2.bf16.msra.mxu0 0
    %7592 = vmatprep.subr.bf16.mxu0 0
    %7593 = vmatpush2.bf16.msra.mxu0 0
    %7594 = vmatprep.subr.bf16.mxu0 0
    %7595 = vmatpush2.bf16.msra.mxu0 0
    %7596 = vmatprep.subr.bf16.mxu0 0
    %7597 = vmatpush2.bf16.msra.mxu0 0
    %7598 = vmatprep.subr.bf16.mxu0 0
    %7599 = vmatpush2.bf16.msra.mxu0 0
    %7600 = vmatprep.subr.bf16.mxu0 0
    %7601 = vmatpush2.bf16.msra.mxu0 0
    %7602 = vmatprep.subr.bf16.mxu0 0
    %7603 = vmatpush2.bf16.msra.mxu0 0
    %7604 = vmatprep.mubr.bf16.mxu0 0
    %7605 = vmatmul.mubr.bf16.gmra.mxu0 %v7329
    %v7606 = vpop.f32.mrf.mxu0
    %v7607 = vadd.f32 0.0, %v7606
    %v7608 = vpop.f32.mrf.mxu0
    %v7609 = vadd.f32 0.0, %v7608
    %v7610 = vpop.f32.mrf.mxu0
    %v7611 = vpop.f32.mrf.mxu0
    %7612 = vdwg.mxu0
    %v7613 = vadd.f32 %v7335, %v7566
    %v7614 = vadd.f32 %v7336, %v7568
    %v7615 = vadd.f32 %v7337, %v7607
    %v7616 = vadd.f32 %v7338, %v7609
    %v7617 = vxor.u32 %v7613, 2147483648
    %v7618 = vmul.f32 %v7617, 1.442695
    %v7619 = vpow.pop %v7618
    %v7620 = vadd.f32 %v7619, 1.0
    %v7621 = vrcp.pop %v7620
    %v7622 = vmul.f32 1.0, %v7621
    %v7623 = vxor.u32 %v7614, 2147483648
    %v7624 = vmul.f32 %v7623, 1.442695
    %v7625 = vpow.pop %v7624
    %v7626 = vadd.f32 %v7625, 1.0
    %v7627 = vrcp.pop %v7626
    %v7628 = vmul.f32 1.0, %v7627
    %v7629 = vtanh.pop %v7615
    %v7630 = vxor.u32 %v7616, 2147483648
    %v7631 = vmul.f32 %v7630, 1.442695
    %v7632 = vpow.pop %v7631
    %v7633 = vadd.f32 %v7632, 1.0
    %v7634 = vrcp.pop %v7633
    %v7635 = vmul.f32 1.0, %v7634
    %v7636 = vmul.f32 %v7628, %v7326
    %v7637 = vmul.f32 %v7622, %v7629
    %v7638 = vadd.f32 %v7636, %v7637
    %v7639 = vtanh.pop %v7638
    %v7640 = vmul.f32 %v7635, %v7639
    %v7641 = vpack.c.bf16 %v7640, %v7640
    %s7642 = scalar_lea.vmem [#allocation3], 84
    %7643 = vst [vmem:[%s7642] sm:$0xf] %v7641
    %s7644 = smul.u32 22, 4
    %s7645 = smul.addr %s7644, 8
    %s7646 = scalar_lea.vmem [#allocation2], %s7645
    %v7647 = vld [vmem:[%s7646] sm:$0xff]
    %v7648 = vld [vmem:[%s7646 + $0x8] sm:$0xff]
    %v7649 = vld [vmem:[%s7646 + $0x10] sm:$0xff]
    %v7650 = vld [vmem:[%s7646 + $0x18] sm:$0xff]
    %v7651 = vld [vmem:[%s2] sm:$0xff]
    %v7652 = vld [vmem:[%s2 + $0x8] sm:$0xff]
    %v7653 = vld [vmem:[%s2 + $0x10] sm:$0xff]
    %v7654 = vld [vmem:[%s2 + $0x18] sm:$0xff]
    %v7655 = vld [vmem:[%s2 + $0x20] sm:$0xff]
    %v7656 = vld [vmem:[%s2 + $0x28] sm:$0xff]
    %v7657 = vld [vmem:[%s2 + $0x30] sm:$0xff]
    %v7658 = vld [vmem:[%s2 + $0x38] sm:$0xff]
    %v7659 = vld [vmem:[%s2 + $0x40] sm:$0xff]
    %v7660 = vld [vmem:[%s2 + $0x48] sm:$0xff]
    %v7661 = vld [vmem:[%s2 + $0x50] sm:$0xff]
    %v7662 = vld [vmem:[%s2 + $0x58] sm:$0xff]
    %v7663 = vld [vmem:[%s2 + $0x60] sm:$0xff]
    %v7664 = vld [vmem:[%s2 + $0x68] sm:$0xff]
    %v7665 = vld [vmem:[%s2 + $0x70] sm:$0xff]
    %v7666 = vld [vmem:[%s2 + $0x78] sm:$0xff]
    %v7667 = vld [vmem:[%s2 + $0x80] sm:$0xff]
    %v7668 = vld [vmem:[%s2 + $0x88] sm:$0xff]
    %v7669 = vld [vmem:[%s2 + $0x90] sm:$0xff]
    %v7670 = vld [vmem:[%s2 + $0x98] sm:$0xff]
    %v7671 = vld [vmem:[%s2 + $0xa0] sm:$0xff]
    %v7672 = vld [vmem:[%s2 + $0xa8] sm:$0xff]
    %v7673 = vld [vmem:[%s2 + $0xb0] sm:$0xff]
    %v7674 = vld [vmem:[%s2 + $0xb8] sm:$0xff]
    %v7675 = vld [vmem:[%s2 + $0xc0] sm:$0xff]
    %v7676 = vld [vmem:[%s2 + $0xc8] sm:$0xff]
    %v7677 = vld [vmem:[%s2 + $0xd0] sm:$0xff]
    %v7678 = vld [vmem:[%s2 + $0xd8] sm:$0xff]
    %v7679 = vld [vmem:[%s2 + $0xe0] sm:$0xff]
    %v7680 = vld [vmem:[%s2 + $0xe8] sm:$0xff]
    %v7681 = vld [vmem:[%s2 + $0xf0] sm:$0xff]
    %v7682 = vld [vmem:[%s2 + $0xf8] sm:$0xff]
    %v7715 = vunpack.c.l.b16 %v7651
    %v7716 = vunpack.c.h.b16 %v7651
    %v7717 = vunpack.c.l.b16 %v7652
    %v7718 = vunpack.c.h.b16 %v7652
    %v7719 = vunpack.c.l.b16 %v7653
    %v7720 = vunpack.c.h.b16 %v7653
    %v7721 = vunpack.c.l.b16 %v7654
    %v7722 = vunpack.c.h.b16 %v7654
    %v7723 = vunpack.c.l.b16 %v7655
    %v7724 = vunpack.c.h.b16 %v7655
    %v7725 = vunpack.c.l.b16 %v7656
    %v7726 = vunpack.c.h.b16 %v7656
    %v7727 = vunpack.c.l.b16 %v7657
    %v7728 = vunpack.c.h.b16 %v7657
    %v7729 = vunpack.c.l.b16 %v7658
    %v7730 = vunpack.c.h.b16 %v7658
    %v7731 = vunpack.c.l.b16 %v7659
    %v7732 = vunpack.c.h.b16 %v7659
    %v7733 = vunpack.c.l.b16 %v7660
    %v7734 = vunpack.c.h.b16 %v7660
    %v7735 = vunpack.c.l.b16 %v7661
    %v7736 = vunpack.c.h.b16 %v7661
    %v7737 = vunpack.c.l.b16 %v7662
    %v7738 = vunpack.c.h.b16 %v7662
    %v7739 = vunpack.c.l.b16 %v7663
    %v7740 = vunpack.c.h.b16 %v7663
    %v7741 = vunpack.c.l.b16 %v7664
    %v7742 = vunpack.c.h.b16 %v7664
    %v7743 = vunpack.c.l.b16 %v7665
    %v7744 = vunpack.c.h.b16 %v7665
    %v7745 = vunpack.c.l.b16 %v7666
    %v7746 = vunpack.c.h.b16 %v7666
    %v7747 = vunpack.c.l.b16 %v7667
    %v7748 = vunpack.c.h.b16 %v7667
    %v7749 = vunpack.c.l.b16 %v7668
    %v7750 = vunpack.c.h.b16 %v7668
    %v7751 = vunpack.c.l.b16 %v7669
    %v7752 = vunpack.c.h.b16 %v7669
    %v7753 = vunpack.c.l.b16 %v7670
    %v7754 = vunpack.c.h.b16 %v7670
    %v7755 = vunpack.c.l.b16 %v7671
    %v7756 = vunpack.c.h.b16 %v7671
    %v7757 = vunpack.c.l.b16 %v7672
    %v7758 = vunpack.c.h.b16 %v7672
    %v7759 = vunpack.c.l.b16 %v7673
    %v7760 = vunpack.c.h.b16 %v7673
    %v7761 = vunpack.c.l.b16 %v7674
    %v7762 = vunpack.c.h.b16 %v7674
    %v7763 = vunpack.c.l.b16 %v7675
    %v7764 = vunpack.c.h.b16 %v7675
    %v7765 = vunpack.c.l.b16 %v7676
    %v7766 = vunpack.c.h.b16 %v7676
    %v7767 = vunpack.c.l.b16 %v7677
    %v7768 = vunpack.c.h.b16 %v7677
    %v7769 = vunpack.c.l.b16 %v7678
    %v7770 = vunpack.c.h.b16 %v7678
    %v7771 = vunpack.c.l.b16 %v7679
    %v7772 = vunpack.c.h.b16 %v7679
    %v7773 = vunpack.c.l.b16 %v7680
    %v7774 = vunpack.c.h.b16 %v7680
    %v7775 = vunpack.c.l.b16 %v7681
    %v7776 = vunpack.c.h.b16 %v7681
    %v7777 = vunpack.c.l.b16 %v7682
    %v7778 = vunpack.c.h.b16 %v7682
    %v7779 = vpack.c.b16 %v7719, %v7715
    %v7780 = vpack.c.b16 %v7720, %v7716
    %v7781 = vpack.c.b16 %v7721, %v7717
    %v7782 = vpack.c.b16 %v7722, %v7718
    %v7783 = vpack.c.b16 %v7727, %v7723
    %v7784 = vpack.c.b16 %v7728, %v7724
    %v7785 = vpack.c.b16 %v7729, %v7725
    %v7786 = vpack.c.b16 %v7730, %v7726
    %v7787 = vpack.c.b16 %v7735, %v7731
    %v7788 = vpack.c.b16 %v7736, %v7732
    %v7789 = vpack.c.b16 %v7737, %v7733
    %v7790 = vpack.c.b16 %v7738, %v7734
    %v7791 = vpack.c.b16 %v7743, %v7739
    %v7792 = vpack.c.b16 %v7744, %v7740
    %v7793 = vpack.c.b16 %v7745, %v7741
    %v7794 = vpack.c.b16 %v7746, %v7742
    %v7795 = vpack.c.b16 %v7751, %v7747
    %v7796 = vpack.c.b16 %v7752, %v7748
    %v7797 = vpack.c.b16 %v7753, %v7749
    %v7798 = vpack.c.b16 %v7754, %v7750
    %v7799 = vpack.c.b16 %v7759, %v7755
    %v7800 = vpack.c.b16 %v7760, %v7756
    %v7801 = vpack.c.b16 %v7761, %v7757
    %v7802 = vpack.c.b16 %v7762, %v7758
    %v7803 = vpack.c.b16 %v7767, %v7763
    %v7804 = vpack.c.b16 %v7768, %v7764
    %v7805 = vpack.c.b16 %v7769, %v7765
    %v7806 = vpack.c.b16 %v7770, %v7766
    %v7807 = vpack.c.b16 %v7775, %v7771
    %v7808 = vpack.c.b16 %v7776, %v7772
    %v7809 = vpack.c.b16 %v7777, %v7773
    %v7810 = vpack.c.b16 %v7778, %v7774
    %7843 = vmatprep.subr.bf16.mxu0 %v7808
    %7844 = vmatpush1.bf16.msra.mxu0 %v7807
    %7845 = vmatprep.subr.bf16.mxu0 %v7804
    %7846 = vmatpush1.bf16.msra.mxu0 %v7803
    %7847 = vmatprep.subr.bf16.mxu0 %v7800
    %7848 = vmatpush1.bf16.msra.mxu0 %v7799
    %7849 = vmatprep.subr.bf16.mxu0 %v7796
    %7850 = vmatpush1.bf16.msra.mxu0 %v7795
    %7851 = vmatprep.subr.bf16.mxu0 %v7792
    %7852 = vmatpush1.bf16.msra.mxu0 %v7791
    %7853 = vmatprep.subr.bf16.mxu0 %v7788
    %7854 = vmatpush1.bf16.msra.mxu0 %v7787
    %7855 = vmatprep.subr.bf16.mxu0 %v7784
    %7856 = vmatpush1.bf16.msra.mxu0 %v7783
    %7857 = vmatprep.subr.bf16.mxu0 %v7780
    %7858 = vmatpush1.bf16.msra.mxu0 %v7779
    %7859 = vmatprep.subr.bf16.mxu0 0
    %7860 = vmatpush2.bf16.msra.mxu0 0
    %7861 = vmatprep.subr.bf16.mxu0 0
    %7862 = vmatpush2.bf16.msra.mxu0 0
    %7863 = vmatprep.subr.bf16.mxu0 0
    %7864 = vmatpush2.bf16.msra.mxu0 0
    %7865 = vmatprep.subr.bf16.mxu0 0
    %7866 = vmatpush2.bf16.msra.mxu0 0
    %7867 = vmatprep.subr.bf16.mxu0 0
    %7868 = vmatpush2.bf16.msra.mxu0 0
    %7869 = vmatprep.subr.bf16.mxu0 0
    %7870 = vmatpush2.bf16.msra.mxu0 0
    %7871 = vmatprep.subr.bf16.mxu0 0
    %7872 = vmatpush2.bf16.msra.mxu0 0
    %7873 = vmatprep.subr.bf16.mxu0 0
    %7874 = vmatpush2.bf16.msra.mxu0 0
    %7875 = vmatprep.mubr.bf16.mxu0 0
    %7876 = vmatmul.mubr.bf16.gmra.mxu0 %v7641
    %v7877 = vpop.f32.mrf.mxu0
    %v7878 = vadd.f32 0.0, %v7877
    %v7879 = vpop.f32.mrf.mxu0
    %v7880 = vadd.f32 0.0, %v7879
    %v7881 = vpop.f32.mrf.mxu0
    %v7882 = vpop.f32.mrf.mxu0
    %7883 = vdwg.mxu0
    %7884 = vmatprep.subr.bf16.mxu0 %v7810
    %7885 = vmatpush1.bf16.msra.mxu0 %v7809
    %7886 = vmatprep.subr.bf16.mxu0 %v7806
    %7887 = vmatpush1.bf16.msra.mxu0 %v7805
    %7888 = vmatprep.subr.bf16.mxu0 %v7802
    %7889 = vmatpush1.bf16.msra.mxu0 %v7801
    %7890 = vmatprep.subr.bf16.mxu0 %v7798
    %7891 = vmatpush1.bf16.msra.mxu0 %v7797
    %7892 = vmatprep.subr.bf16.mxu0 %v7794
    %7893 = vmatpush1.bf16.msra.mxu0 %v7793
    %7894 = vmatprep.subr.bf16.mxu0 %v7790
    %7895 = vmatpush1.bf16.msra.mxu0 %v7789
    %7896 = vmatprep.subr.bf16.mxu0 %v7786
    %7897 = vmatpush1.bf16.msra.mxu0 %v7785
    %7898 = vmatprep.subr.bf16.mxu0 %v7782
    %7899 = vmatpush1.bf16.msra.mxu0 %v7781
    %7900 = vmatprep.subr.bf16.mxu0 0
    %7901 = vmatpush2.bf16.msra.mxu0 0
    %7902 = vmatprep.subr.bf16.mxu0 0
    %7903 = vmatpush2.bf16.msra.mxu0 0
    %7904 = vmatprep.subr.bf16.mxu0 0
    %7905 = vmatpush2.bf16.msra.mxu0 0
    %7906 = vmatprep.subr.bf16.mxu0 0
    %7907 = vmatpush2.bf16.msra.mxu0 0
    %7908 = vmatprep.subr.bf16.mxu0 0
    %7909 = vmatpush2.bf16.msra.mxu0 0
    %7910 = vmatprep.subr.bf16.mxu0 0
    %7911 = vmatpush2.bf16.msra.mxu0 0
    %7912 = vmatprep.subr.bf16.mxu0 0
    %7913 = vmatpush2.bf16.msra.mxu0 0
    %7914 = vmatprep.subr.bf16.mxu0 0
    %7915 = vmatpush2.bf16.msra.mxu0 0
    %7916 = vmatprep.mubr.bf16.mxu0 0
    %7917 = vmatmul.mubr.bf16.gmra.mxu0 %v7641
    %v7918 = vpop.f32.mrf.mxu0
    %v7919 = vadd.f32 0.0, %v7918
    %v7920 = vpop.f32.mrf.mxu0
    %v7921 = vadd.f32 0.0, %v7920
    %v7922 = vpop.f32.mrf.mxu0
    %v7923 = vpop.f32.mrf.mxu0
    %7924 = vdwg.mxu0
    %v7925 = vadd.f32 %v7647, %v7878
    %v7926 = vadd.f32 %v7648, %v7880
    %v7927 = vadd.f32 %v7649, %v7919
    %v7928 = vadd.f32 %v7650, %v7921
    %v7929 = vxor.u32 %v7925, 2147483648
    %v7930 = vmul.f32 %v7929, 1.442695
    %v7931 = vpow.pop %v7930
    %v7932 = vadd.f32 %v7931, 1.0
    %v7933 = vrcp.pop %v7932
    %v7934 = vmul.f32 1.0, %v7933
    %v7935 = vxor.u32 %v7926, 2147483648
    %v7936 = vmul.f32 %v7935, 1.442695
    %v7937 = vpow.pop %v7936
    %v7938 = vadd.f32 %v7937, 1.0
    %v7939 = vrcp.pop %v7938
    %v7940 = vmul.f32 1.0, %v7939
    %v7941 = vtanh.pop %v7927
    %v7942 = vxor.u32 %v7928, 2147483648
    %v7943 = vmul.f32 %v7942, 1.442695
    %v7944 = vpow.pop %v7943
    %v7945 = vadd.f32 %v7944, 1.0
    %v7946 = vrcp.pop %v7945
    %v7947 = vmul.f32 1.0, %v7946
    %v7948 = vmul.f32 %v7940, %v7638
    %v7949 = vmul.f32 %v7934, %v7941
    %v7950 = vadd.f32 %v7948, %v7949
    %v7951 = vtanh.pop %v7950
    %v7952 = vmul.f32 %v7947, %v7951
    %v7953 = vpack.c.bf16 %v7952, %v7952
    %s7954 = scalar_lea.vmem [#allocation3], 88
    %7955 = vst [vmem:[%s7954] sm:$0xf] %v7953
    %s7956 = smul.u32 23, 4
    %s7957 = smul.addr %s7956, 8
    %s7958 = scalar_lea.vmem [#allocation2], %s7957
    %v7959 = vld [vmem:[%s7958] sm:$0xff]
    %v7960 = vld [vmem:[%s7958 + $0x8] sm:$0xff]
    %v7961 = vld [vmem:[%s7958 + $0x10] sm:$0xff]
    %v7962 = vld [vmem:[%s7958 + $0x18] sm:$0xff]
    %v7963 = vld [vmem:[%s2] sm:$0xff]
    %v7964 = vld [vmem:[%s2 + $0x8] sm:$0xff]
    %v7965 = vld [vmem:[%s2 + $0x10] sm:$0xff]
    %v7966 = vld [vmem:[%s2 + $0x18] sm:$0xff]
    %v7967 = vld [vmem:[%s2 + $0x20] sm:$0xff]
    %v7968 = vld [vmem:[%s2 + $0x28] sm:$0xff]
    %v7969 = vld [vmem:[%s2 + $0x30] sm:$0xff]
    %v7970 = vld [vmem:[%s2 + $0x38] sm:$0xff]
    %v7971 = vld [vmem:[%s2 + $0x40] sm:$0xff]
    %v7972 = vld [vmem:[%s2 + $0x48] sm:$0xff]
    %v7973 = vld [vmem:[%s2 + $0x50] sm:$0xff]
    %v7974 = vld [vmem:[%s2 + $0x58] sm:$0xff]
    %v7975 = vld [vmem:[%s2 + $0x60] sm:$0xff]
    %v7976 = vld [vmem:[%s2 + $0x68] sm:$0xff]
    %v7977 = vld [vmem:[%s2 + $0x70] sm:$0xff]
    %v7978 = vld [vmem:[%s2 + $0x78] sm:$0xff]
    %v7979 = vld [vmem:[%s2 + $0x80] sm:$0xff]
    %v7980 = vld [vmem:[%s2 + $0x88] sm:$0xff]
    %v7981 = vld [vmem:[%s2 + $0x90] sm:$0xff]
    %v7982 = vld [vmem:[%s2 + $0x98] sm:$0xff]
    %v7983 = vld [vmem:[%s2 + $0xa0] sm:$0xff]
    %v7984 = vld [vmem:[%s2 + $0xa8] sm:$0xff]
    %v7985 = vld [vmem:[%s2 + $0xb0] sm:$0xff]
    %v7986 = vld [vmem:[%s2 + $0xb8] sm:$0xff]
    %v7987 = vld [vmem:[%s2 + $0xc0] sm:$0xff]
    %v7988 = vld [vmem:[%s2 + $0xc8] sm:$0xff]
    %v7989 = vld [vmem:[%s2 + $0xd0] sm:$0xff]
    %v7990 = vld [vmem:[%s2 + $0xd8] sm:$0xff]
    %v7991 = vld [vmem:[%s2 + $0xe0] sm:$0xff]
    %v7992 = vld [vmem:[%s2 + $0xe8] sm:$0xff]
    %v7993 = vld [vmem:[%s2 + $0xf0] sm:$0xff]
    %v7994 = vld [vmem:[%s2 + $0xf8] sm:$0xff]
    %v8027 = vunpack.c.l.b16 %v7963
    %v8028 = vunpack.c.h.b16 %v7963
    %v8029 = vunpack.c.l.b16 %v7964
    %v8030 = vunpack.c.h.b16 %v7964
    %v8031 = vunpack.c.l.b16 %v7965
    %v8032 = vunpack.c.h.b16 %v7965
    %v8033 = vunpack.c.l.b16 %v7966
    %v8034 = vunpack.c.h.b16 %v7966
    %v8035 = vunpack.c.l.b16 %v7967
    %v8036 = vunpack.c.h.b16 %v7967
    %v8037 = vunpack.c.l.b16 %v7968
    %v8038 = vunpack.c.h.b16 %v7968
    %v8039 = vunpack.c.l.b16 %v7969
    %v8040 = vunpack.c.h.b16 %v7969
    %v8041 = vunpack.c.l.b16 %v7970
    %v8042 = vunpack.c.h.b16 %v7970
    %v8043 = vunpack.c.l.b16 %v7971
    %v8044 = vunpack.c.h.b16 %v7971
    %v8045 = vunpack.c.l.b16 %v7972
    %v8046 = vunpack.c.h.b16 %v7972
    %v8047 = vunpack.c.l.b16 %v7973
    %v8048 = vunpack.c.h.b16 %v7973
    %v8049 = vunpack.c.l.b16 %v7974
    %v8050 = vunpack.c.h.b16 %v7974
    %v8051 = vunpack.c.l.b16 %v7975
    %v8052 = vunpack.c.h.b16 %v7975
    %v8053 = vunpack.c.l.b16 %v7976
    %v8054 = vunpack.c.h.b16 %v7976
    %v8055 = vunpack.c.l.b16 %v7977
    %v8056 = vunpack.c.h.b16 %v7977
    %v8057 = vunpack.c.l.b16 %v7978
    %v8058 = vunpack.c.h.b16 %v7978
    %v8059 = vunpack.c.l.b16 %v7979
    %v8060 = vunpack.c.h.b16 %v7979
    %v8061 = vunpack.c.l.b16 %v7980
    %v8062 = vunpack.c.h.b16 %v7980
    %v8063 = vunpack.c.l.b16 %v7981
    %v8064 = vunpack.c.h.b16 %v7981
    %v8065 = vunpack.c.l.b16 %v7982
    %v8066 = vunpack.c.h.b16 %v7982
    %v8067 = vunpack.c.l.b16 %v7983
    %v8068 = vunpack.c.h.b16 %v7983
    %v8069 = vunpack.c.l.b16 %v7984
    %v8070 = vunpack.c.h.b16 %v7984
    %v8071 = vunpack.c.l.b16 %v7985
    %v8072 = vunpack.c.h.b16 %v7985
    %v8073 = vunpack.c.l.b16 %v7986
    %v8074 = vunpack.c.h.b16 %v7986
    %v8075 = vunpack.c.l.b16 %v7987
    %v8076 = vunpack.c.h.b16 %v7987
    %v8077 = vunpack.c.l.b16 %v7988
    %v8078 = vunpack.c.h.b16 %v7988
    %v8079 = vunpack.c.l.b16 %v7989
    %v8080 = vunpack.c.h.b16 %v7989
    %v8081 = vunpack.c.l.b16 %v7990
    %v8082 = vunpack.c.h.b16 %v7990
    %v8083 = vunpack.c.l.b16 %v7991
    %v8084 = vunpack.c.h.b16 %v7991
    %v8085 = vunpack.c.l.b16 %v7992
    %v8086 = vunpack.c.h.b16 %v7992
    %v8087 = vunpack.c.l.b16 %v7993
    %v8088 = vunpack.c.h.b16 %v7993
    %v8089 = vunpack.c.l.b16 %v7994
    %v8090 = vunpack.c.h.b16 %v7994
    %v8091 = vpack.c.b16 %v8031, %v8027
    %v8092 = vpack.c.b16 %v8032, %v8028
    %v8093 = vpack.c.b16 %v8033, %v8029
    %v8094 = vpack.c.b16 %v8034, %v8030
    %v8095 = vpack.c.b16 %v8039, %v8035
    %v8096 = vpack.c.b16 %v8040, %v8036
    %v8097 = vpack.c.b16 %v8041, %v8037
    %v8098 = vpack.c.b16 %v8042, %v8038
    %v8099 = vpack.c.b16 %v8047, %v8043
    %v8100 = vpack.c.b16 %v8048, %v8044
    %v8101 = vpack.c.b16 %v8049, %v8045
    %v8102 = vpack.c.b16 %v8050, %v8046
    %v8103 = vpack.c.b16 %v8055, %v8051
    %v8104 = vpack.c.b16 %v8056, %v8052
    %v8105 = vpack.c.b16 %v8057, %v8053
    %v8106 = vpack.c.b16 %v8058, %v8054
    %v8107 = vpack.c.b16 %v8063, %v8059
    %v8108 = vpack.c.b16 %v8064, %v8060
    %v8109 = vpack.c.b16 %v8065, %v8061
    %v8110 = vpack.c.b16 %v8066, %v8062
    %v8111 = vpack.c.b16 %v8071, %v8067
    %v8112 = vpack.c.b16 %v8072, %v8068
    %v8113 = vpack.c.b16 %v8073, %v8069
    %v8114 = vpack.c.b16 %v8074, %v8070
    %v8115 = vpack.c.b16 %v8079, %v8075
    %v8116 = vpack.c.b16 %v8080, %v8076
    %v8117 = vpack.c.b16 %v8081, %v8077
    %v8118 = vpack.c.b16 %v8082, %v8078
    %v8119 = vpack.c.b16 %v8087, %v8083
    %v8120 = vpack.c.b16 %v8088, %v8084
    %v8121 = vpack.c.b16 %v8089, %v8085
    %v8122 = vpack.c.b16 %v8090, %v8086
    %8155 = vmatprep.subr.bf16.mxu0 %v8120
    %8156 = vmatpush1.bf16.msra.mxu0 %v8119
    %8157 = vmatprep.subr.bf16.mxu0 %v8116
    %8158 = vmatpush1.bf16.msra.mxu0 %v8115
    %8159 = vmatprep.subr.bf16.mxu0 %v8112
    %8160 = vmatpush1.bf16.msra.mxu0 %v8111
    %8161 = vmatprep.subr.bf16.mxu0 %v8108
    %8162 = vmatpush1.bf16.msra.mxu0 %v8107
    %8163 = vmatprep.subr.bf16.mxu0 %v8104
    %8164 = vmatpush1.bf16.msra.mxu0 %v8103
    %8165 = vmatprep.subr.bf16.mxu0 %v8100
    %8166 = vmatpush1.bf16.msra.mxu0 %v8099
    %8167 = vmatprep.subr.bf16.mxu0 %v8096
    %8168 = vmatpush1.bf16.msra.mxu0 %v8095
    %8169 = vmatprep.subr.bf16.mxu0 %v8092
    %8170 = vmatpush1.bf16.msra.mxu0 %v8091
    %8171 = vmatprep.subr.bf16.mxu0 0
    %8172 = vmatpush2.bf16.msra.mxu0 0
    %8173 = vmatprep.subr.bf16.mxu0 0
    %8174 = vmatpush2.bf16.msra.mxu0 0
    %8175 = vmatprep.subr.bf16.mxu0 0
    %8176 = vmatpush2.bf16.msra.mxu0 0
    %8177 = vmatprep.subr.bf16.mxu0 0
    %8178 = vmatpush2.bf16.msra.mxu0 0
    %8179 = vmatprep.subr.bf16.mxu0 0
    %8180 = vmatpush2.bf16.msra.mxu0 0
    %8181 = vmatprep.subr.bf16.mxu0 0
    %8182 = vmatpush2.bf16.msra.mxu0 0
    %8183 = vmatprep.subr.bf16.mxu0 0
    %8184 = vmatpush2.bf16.msra.mxu0 0
    %8185 = vmatprep.subr.bf16.mxu0 0
    %8186 = vmatpush2.bf16.msra.mxu0 0
    %8187 = vmatprep.mubr.bf16.mxu0 0
    %8188 = vmatmul.mubr.bf16.gmra.mxu0 %v7953
    %v8189 = vpop.f32.mrf.mxu0
    %v8190 = vadd.f32 0.0, %v8189
    %v8191 = vpop.f32.mrf.mxu0
    %v8192 = vadd.f32 0.0, %v8191
    %v8193 = vpop.f32.mrf.mxu0
    %v8194 = vpop.f32.mrf.mxu0
    %8195 = vdwg.mxu0
    %8196 = vmatprep.subr.bf16.mxu0 %v8122
    %8197 = vmatpush1.bf16.msra.mxu0 %v8121
    %8198 = vmatprep.subr.bf16.mxu0 %v8118
    %8199 = vmatpush1.bf16.msra.mxu0 %v8117
    %8200 = vmatprep.subr.bf16.mxu0 %v8114
    %8201 = vmatpush1.bf16.msra.mxu0 %v8113
    %8202 = vmatprep.subr.bf16.mxu0 %v8110
    %8203 = vmatpush1.bf16.msra.mxu0 %v8109
    %8204 = vmatprep.subr.bf16.mxu0 %v8106
    %8205 = vmatpush1.bf16.msra.mxu0 %v8105
    %8206 = vmatprep.subr.bf16.mxu0 %v8102
    %8207 = vmatpush1.bf16.msra.mxu0 %v8101
    %8208 = vmatprep.subr.bf16.mxu0 %v8098
    %8209 = vmatpush1.bf16.msra.mxu0 %v8097
    %8210 = vmatprep.subr.bf16.mxu0 %v8094
    %8211 = vmatpush1.bf16.msra.mxu0 %v8093
    %8212 = vmatprep.subr.bf16.mxu0 0
    %8213 = vmatpush2.bf16.msra.mxu0 0
    %8214 = vmatprep.subr.bf16.mxu0 0
    %8215 = vmatpush2.bf16.msra.mxu0 0
    %8216 = vmatprep.subr.bf16.mxu0 0
    %8217 = vmatpush2.bf16.msra.mxu0 0
    %8218 = vmatprep.subr.bf16.mxu0 0
    %8219 = vmatpush2.bf16.msra.mxu0 0
    %8220 = vmatprep.subr.bf16.mxu0 0
    %8221 = vmatpush2.bf16.msra.mxu0 0
    %8222 = vmatprep.subr.bf16.mxu0 0
    %8223 = vmatpush2.bf16.msra.mxu0 0
    %8224 = vmatprep.subr.bf16.mxu0 0
    %8225 = vmatpush2.bf16.msra.mxu0 0
    %8226 = vmatprep.subr.bf16.mxu0 0
    %8227 = vmatpush2.bf16.msra.mxu0 0
    %8228 = vmatprep.mubr.bf16.mxu0 0
    %8229 = vmatmul.mubr.bf16.gmra.mxu0 %v7953
    %v8230 = vpop.f32.mrf.mxu0
    %v8231 = vadd.f32 0.0, %v8230
    %v8232 = vpop.f32.mrf.mxu0
    %v8233 = vadd.f32 0.0, %v8232
    %v8234 = vpop.f32.mrf.mxu0
    %v8235 = vpop.f32.mrf.mxu0
    %8236 = vdwg.mxu0
    %v8237 = vadd.f32 %v7959, %v8190
    %v8238 = vadd.f32 %v7960, %v8192
    %v8239 = vadd.f32 %v7961, %v8231
    %v8240 = vadd.f32 %v7962, %v8233
    %v8241 = vxor.u32 %v8237, 2147483648
    %v8242 = vmul.f32 %v8241, 1.442695
    %v8243 = vpow.pop %v8242
    %v8244 = vadd.f32 %v8243, 1.0
    %v8245 = vrcp.pop %v8244
    %v8246 = vmul.f32 1.0, %v8245
    %v8247 = vxor.u32 %v8238, 2147483648
    %v8248 = vmul.f32 %v8247, 1.442695
    %v8249 = vpow.pop %v8248
    %v8250 = vadd.f32 %v8249, 1.0
    %v8251 = vrcp.pop %v8250
    %v8252 = vmul.f32 1.0, %v8251
    %v8253 = vtanh.pop %v8239
    %v8254 = vxor.u32 %v8240, 2147483648
    %v8255 = vmul.f32 %v8254, 1.442695
    %v8256 = vpow.pop %v8255
    %v8257 = vadd.f32 %v8256, 1.0
    %v8258 = vrcp.pop %v8257
    %v8259 = vmul.f32 1.0, %v8258
    %v8260 = vmul.f32 %v8252, %v7950
    %v8261 = vmul.f32 %v8246, %v8253
    %v8262 = vadd.f32 %v8260, %v8261
    %v8263 = vtanh.pop %v8262
    %v8264 = vmul.f32 %v8259, %v8263
    %v8265 = vpack.c.bf16 %v8264, %v8264
    %s8266 = scalar_lea.vmem [#allocation3], 92
    %8267 = vst [vmem:[%s8266] sm:$0xf] %v8265
    %s8268 = smul.u32 24, 4
    %s8269 = smul.addr %s8268, 8
    %s8270 = scalar_lea.vmem [#allocation2], %s8269
    %v8271 = vld [vmem:[%s8270] sm:$0xff]
    %v8272 = vld [vmem:[%s8270 + $0x8] sm:$0xff]
    %v8273 = vld [vmem:[%s8270 + $0x10] sm:$0xff]
    %v8274 = vld [vmem:[%s8270 + $0x18] sm:$0xff]
    %v8275 = vld [vmem:[%s2] sm:$0xff]
    %v8276 = vld [vmem:[%s2 + $0x8] sm:$0xff]
    %v8277 = vld [vmem:[%s2 + $0x10] sm:$0xff]
    %v8278 = vld [vmem:[%s2 + $0x18] sm:$0xff]
    %v8279 = vld [vmem:[%s2 + $0x20] sm:$0xff]
    %v8280 = vld [vmem:[%s2 + $0x28] sm:$0xff]
    %v8281 = vld [vmem:[%s2 + $0x30] sm:$0xff]
    %v8282 = vld [vmem:[%s2 + $0x38] sm:$0xff]
    %v8283 = vld [vmem:[%s2 + $0x40] sm:$0xff]
    %v8284 = vld [vmem:[%s2 + $0x48] sm:$0xff]
    %v8285 = vld [vmem:[%s2 + $0x50] sm:$0xff]
    %v8286 = vld [vmem:[%s2 + $0x58] sm:$0xff]
    %v8287 = vld [vmem:[%s2 + $0x60] sm:$0xff]
    %v8288 = vld [vmem:[%s2 + $0x68] sm:$0xff]
    %v8289 = vld [vmem:[%s2 + $0x70] sm:$0xff]
    %v8290 = vld [vmem:[%s2 + $0x78] sm:$0xff]
    %v8291 = vld [vmem:[%s2 + $0x80] sm:$0xff]
    %v8292 = vld [vmem:[%s2 + $0x88] sm:$0xff]
    %v8293 = vld [vmem:[%s2 + $0x90] sm:$0xff]
    %v8294 = vld [vmem:[%s2 + $0x98] sm:$0xff]
    %v8295 = vld [vmem:[%s2 + $0xa0] sm:$0xff]
    %v8296 = vld [vmem:[%s2 + $0xa8] sm:$0xff]
    %v8297 = vld [vmem:[%s2 + $0xb0] sm:$0xff]
    %v8298 = vld [vmem:[%s2 + $0xb8] sm:$0xff]
    %v8299 = vld [vmem:[%s2 + $0xc0] sm:$0xff]
    %v8300 = vld [vmem:[%s2 + $0xc8] sm:$0xff]
    %v8301 = vld [vmem:[%s2 + $0xd0] sm:$0xff]
    %v8302 = vld [vmem:[%s2 + $0xd8] sm:$0xff]
    %v8303 = vld [vmem:[%s2 + $0xe0] sm:$0xff]
    %v8304 = vld [vmem:[%s2 + $0xe8] sm:$0xff]
    %v8305 = vld [vmem:[%s2 + $0xf0] sm:$0xff]
    %v8306 = vld [vmem:[%s2 + $0xf8] sm:$0xff]
    %v8339 = vunpack.c.l.b16 %v8275
    %v8340 = vunpack.c.h.b16 %v8275
    %v8341 = vunpack.c.l.b16 %v8276
    %v8342 = vunpack.c.h.b16 %v8276
    %v8343 = vunpack.c.l.b16 %v8277
    %v8344 = vunpack.c.h.b16 %v8277
    %v8345 = vunpack.c.l.b16 %v8278
    %v8346 = vunpack.c.h.b16 %v8278
    %v8347 = vunpack.c.l.b16 %v8279
    %v8348 = vunpack.c.h.b16 %v8279
    %v8349 = vunpack.c.l.b16 %v8280
    %v8350 = vunpack.c.h.b16 %v8280
    %v8351 = vunpack.c.l.b16 %v8281
    %v8352 = vunpack.c.h.b16 %v8281
    %v8353 = vunpack.c.l.b16 %v8282
    %v8354 = vunpack.c.h.b16 %v8282
    %v8355 = vunpack.c.l.b16 %v8283
    %v8356 = vunpack.c.h.b16 %v8283
    %v8357 = vunpack.c.l.b16 %v8284
    %v8358 = vunpack.c.h.b16 %v8284
    %v8359 = vunpack.c.l.b16 %v8285
    %v8360 = vunpack.c.h.b16 %v8285
    %v8361 = vunpack.c.l.b16 %v8286
    %v8362 = vunpack.c.h.b16 %v8286
    %v8363 = vunpack.c.l.b16 %v8287
    %v8364 = vunpack.c.h.b16 %v8287
    %v8365 = vunpack.c.l.b16 %v8288
    %v8366 = vunpack.c.h.b16 %v8288
    %v8367 = vunpack.c.l.b16 %v8289
    %v8368 = vunpack.c.h.b16 %v8289
    %v8369 = vunpack.c.l.b16 %v8290
    %v8370 = vunpack.c.h.b16 %v8290
    %v8371 = vunpack.c.l.b16 %v8291
    %v8372 = vunpack.c.h.b16 %v8291
    %v8373 = vunpack.c.l.b16 %v8292
    %v8374 = vunpack.c.h.b16 %v8292
    %v8375 = vunpack.c.l.b16 %v8293
    %v8376 = vunpack.c.h.b16 %v8293
    %v8377 = vunpack.c.l.b16 %v8294
    %v8378 = vunpack.c.h.b16 %v8294
    %v8379 = vunpack.c.l.b16 %v8295
    %v8380 = vunpack.c.h.b16 %v8295
    %v8381 = vunpack.c.l.b16 %v8296
    %v8382 = vunpack.c.h.b16 %v8296
    %v8383 = vunpack.c.l.b16 %v8297
    %v8384 = vunpack.c.h.b16 %v8297
    %v8385 = vunpack.c.l.b16 %v8298
    %v8386 = vunpack.c.h.b16 %v8298
    %v8387 = vunpack.c.l.b16 %v8299
    %v8388 = vunpack.c.h.b16 %v8299
    %v8389 = vunpack.c.l.b16 %v8300
    %v8390 = vunpack.c.h.b16 %v8300
    %v8391 = vunpack.c.l.b16 %v8301
    %v8392 = vunpack.c.h.b16 %v8301
    %v8393 = vunpack.c.l.b16 %v8302
    %v8394 = vunpack.c.h.b16 %v8302
    %v8395 = vunpack.c.l.b16 %v8303
    %v8396 = vunpack.c.h.b16 %v8303
    %v8397 = vunpack.c.l.b16 %v8304
    %v8398 = vunpack.c.h.b16 %v8304
    %v8399 = vunpack.c.l.b16 %v8305
    %v8400 = vunpack.c.h.b16 %v8305
    %v8401 = vunpack.c.l.b16 %v8306
    %v8402 = vunpack.c.h.b16 %v8306
    %v8403 = vpack.c.b16 %v8343, %v8339
    %v8404 = vpack.c.b16 %v8344, %v8340
    %v8405 = vpack.c.b16 %v8345, %v8341
    %v8406 = vpack.c.b16 %v8346, %v8342
    %v8407 = vpack.c.b16 %v8351, %v8347
    %v8408 = vpack.c.b16 %v8352, %v8348
    %v8409 = vpack.c.b16 %v8353, %v8349
    %v8410 = vpack.c.b16 %v8354, %v8350
    %v8411 = vpack.c.b16 %v8359, %v8355
    %v8412 = vpack.c.b16 %v8360, %v8356
    %v8413 = vpack.c.b16 %v8361, %v8357
    %v8414 = vpack.c.b16 %v8362, %v8358
    %v8415 = vpack.c.b16 %v8367, %v8363
    %v8416 = vpack.c.b16 %v8368, %v8364
    %v8417 = vpack.c.b16 %v8369, %v8365
    %v8418 = vpack.c.b16 %v8370, %v8366
    %v8419 = vpack.c.b16 %v8375, %v8371
    %v8420 = vpack.c.b16 %v8376, %v8372
    %v8421 = vpack.c.b16 %v8377, %v8373
    %v8422 = vpack.c.b16 %v8378, %v8374
    %v8423 = vpack.c.b16 %v8383, %v8379
    %v8424 = vpack.c.b16 %v8384, %v8380
    %v8425 = vpack.c.b16 %v8385, %v8381
    %v8426 = vpack.c.b16 %v8386, %v8382
    %v8427 = vpack.c.b16 %v8391, %v8387
    %v8428 = vpack.c.b16 %v8392, %v8388
    %v8429 = vpack.c.b16 %v8393, %v8389
    %v8430 = vpack.c.b16 %v8394, %v8390
    %v8431 = vpack.c.b16 %v8399, %v8395
    %v8432 = vpack.c.b16 %v8400, %v8396
    %v8433 = vpack.c.b16 %v8401, %v8397
    %v8434 = vpack.c.b16 %v8402, %v8398
    %8467 = vmatprep.subr.bf16.mxu0 %v8432
    %8468 = vmatpush1.bf16.msra.mxu0 %v8431
    %8469 = vmatprep.subr.bf16.mxu0 %v8428
    %8470 = vmatpush1.bf16.msra.mxu0 %v8427
    %8471 = vmatprep.subr.bf16.mxu0 %v8424
    %8472 = vmatpush1.bf16.msra.mxu0 %v8423
    %8473 = vmatprep.subr.bf16.mxu0 %v8420
    %8474 = vmatpush1.bf16.msra.mxu0 %v8419
    %8475 = vmatprep.subr.bf16.mxu0 %v8416
    %8476 = vmatpush1.bf16.msra.mxu0 %v8415
    %8477 = vmatprep.subr.bf16.mxu0 %v8412
    %8478 = vmatpush1.bf16.msra.mxu0 %v8411
    %8479 = vmatprep.subr.bf16.mxu0 %v8408
    %8480 = vmatpush1.bf16.msra.mxu0 %v8407
    %8481 = vmatprep.subr.bf16.mxu0 %v8404
    %8482 = vmatpush1.bf16.msra.mxu0 %v8403
    %8483 = vmatprep.subr.bf16.mxu0 0
    %8484 = vmatpush2.bf16.msra.mxu0 0
    %8485 = vmatprep.subr.bf16.mxu0 0
    %8486 = vmatpush2.bf16.msra.mxu0 0
    %8487 = vmatprep.subr.bf16.mxu0 0
    %8488 = vmatpush2.bf16.msra.mxu0 0
    %8489 = vmatprep.subr.bf16.mxu0 0
    %8490 = vmatpush2.bf16.msra.mxu0 0
    %8491 = vmatprep.subr.bf16.mxu0 0
    %8492 = vmatpush2.bf16.msra.mxu0 0
    %8493 = vmatprep.subr.bf16.mxu0 0
    %8494 = vmatpush2.bf16.msra.mxu0 0
    %8495 = vmatprep.subr.bf16.mxu0 0
    %8496 = vmatpush2.bf16.msra.mxu0 0
    %8497 = vmatprep.subr.bf16.mxu0 0
    %8498 = vmatpush2.bf16.msra.mxu0 0
    %8499 = vmatprep.mubr.bf16.mxu0 0
    %8500 = vmatmul.mubr.bf16.gmra.mxu0 %v8265
    %v8501 = vpop.f32.mrf.mxu0
    %v8502 = vadd.f32 0.0, %v8501
    %v8503 = vpop.f32.mrf.mxu0
    %v8504 = vadd.f32 0.0, %v8503
    %v8505 = vpop.f32.mrf.mxu0
    %v8506 = vpop.f32.mrf.mxu0
    %8507 = vdwg.mxu0
    %8508 = vmatprep.subr.bf16.mxu0 %v8434
    %8509 = vmatpush1.bf16.msra.mxu0 %v8433
    %8510 = vmatprep.subr.bf16.mxu0 %v8430
    %8511 = vmatpush1.bf16.msra.mxu0 %v8429
    %8512 = vmatprep.subr.bf16.mxu0 %v8426
    %8513 = vmatpush1.bf16.msra.mxu0 %v8425
    %8514 = vmatprep.subr.bf16.mxu0 %v8422
    %8515 = vmatpush1.bf16.msra.mxu0 %v8421
    %8516 = vmatprep.subr.bf16.mxu0 %v8418
    %8517 = vmatpush1.bf16.msra.mxu0 %v8417
    %8518 = vmatprep.subr.bf16.mxu0 %v8414
    %8519 = vmatpush1.bf16.msra.mxu0 %v8413
    %8520 = vmatprep.subr.bf16.mxu0 %v8410
    %8521 = vmatpush1.bf16.msra.mxu0 %v8409
    %8522 = vmatprep.subr.bf16.mxu0 %v8406
    %8523 = vmatpush1.bf16.msra.mxu0 %v8405
    %8524 = vmatprep.subr.bf16.mxu0 0
    %8525 = vmatpush2.bf16.msra.mxu0 0
    %8526 = vmatprep.subr.bf16.mxu0 0
    %8527 = vmatpush2.bf16.msra.mxu0 0
    %8528 = vmatprep.subr.bf16.mxu0 0
    %8529 = vmatpush2.bf16.msra.mxu0 0
    %8530 = vmatprep.subr.bf16.mxu0 0
    %8531 = vmatpush2.bf16.msra.mxu0 0
    %8532 = vmatprep.subr.bf16.mxu0 0
    %8533 = vmatpush2.bf16.msra.mxu0 0
    %8534 = vmatprep.subr.bf16.mxu0 0
    %8535 = vmatpush2.bf16.msra.mxu0 0
    %8536 = vmatprep.subr.bf16.mxu0 0
    %8537 = vmatpush2.bf16.msra.mxu0 0
    %8538 = vmatprep.subr.bf16.mxu0 0
    %8539 = vmatpush2.bf16.msra.mxu0 0
    %8540 = vmatprep.mubr.bf16.mxu0 0
    %8541 = vmatmul.mubr.bf16.gmra.mxu0 %v8265
    %v8542 = vpop.f32.mrf.mxu0
    %v8543 = vadd.f32 0.0, %v8542
    %v8544 = vpop.f32.mrf.mxu0
    %v8545 = vadd.f32 0.0, %v8544
    %v8546 = vpop.f32.mrf.mxu0
    %v8547 = vpop.f32.mrf.mxu0
    %8548 = vdwg.mxu0
    %v8549 = vadd.f32 %v8271, %v8502
    %v8550 = vadd.f32 %v8272, %v8504
    %v8551 = vadd.f32 %v8273, %v8543
    %v8552 = vadd.f32 %v8274, %v8545
    %v8553 = vxor.u32 %v8549, 2147483648
    %v8554 = vmul.f32 %v8553, 1.442695
    %v8555 = vpow.pop %v8554
    %v8556 = vadd.f32 %v8555, 1.0
    %v8557 = vrcp.pop %v8556
    %v8558 = vmul.f32 1.0, %v8557
    %v8559 = vxor.u32 %v8550, 2147483648
    %v8560 = vmul.f32 %v8559, 1.442695
    %v8561 = vpow.pop %v8560
    %v8562 = vadd.f32 %v8561, 1.0
    %v8563 = vrcp.pop %v8562
    %v8564 = vmul.f32 1.0, %v8563
    %v8565 = vtanh.pop %v8551
    %v8566 = vxor.u32 %v8552, 2147483648
    %v8567 = vmul.f32 %v8566, 1.442695
    %v8568 = vpow.pop %v8567
    %v8569 = vadd.f32 %v8568, 1.0
    %v8570 = vrcp.pop %v8569
    %v8571 = vmul.f32 1.0, %v8570
    %v8572 = vmul.f32 %v8564, %v8262
    %v8573 = vmul.f32 %v8558, %v8565
    %v8574 = vadd.f32 %v8572, %v8573
    %v8575 = vtanh.pop %v8574
    %v8576 = vmul.f32 %v8571, %v8575
    %v8577 = vpack.c.bf16 %v8576, %v8576
    %s8578 = scalar_lea.vmem [#allocation3], 96
    %8579 = vst [vmem:[%s8578] sm:$0xf] %v8577
    %v8580 = vld [vmem:[#allocation3] sm:$0xff]
    %v8581 = vld [vmem:[#allocation3 + $0x8] sm:$0xff]
    %v8582 = vld [vmem:[#allocation3 + $0x10] sm:$0xff]
    %v8583 = vld [vmem:[#allocation3 + $0x18] sm:$0xff]
    %v8584 = vld [vmem:[#allocation3 + $0x20] sm:$0xff]
    %v8585 = vld [vmem:[#allocation3 + $0x28] sm:$0xff]
    %v8586 = vld [vmem:[#allocation3 + $0x30] sm:$0xff]
    %v8587 = vld [vmem:[#allocation3 + $0x38] sm:$0xff]
    %v8588 = vld [vmem:[#allocation3 + $0x40] sm:$0xff]
    %v8589 = vld [vmem:[#allocation3 + $0x48] sm:$0xff]
    %v8590 = vld [vmem:[#allocation3 + $0x50] sm:$0xff]
    %v8591 = vld [vmem:[#allocation3 + $0x58] sm:$0xff]
    %v8592 = vld [vmem:[#allocation3 + $0x60] sm:$0xf]
    %v8593 = vld [vmem:[#allocation4] sm:$0xf]
    %v8594 = vld [vmem:[#allocation4 + $0x4] sm:$0xf]
    %v8595 = vld [vmem:[#allocation4 + $0x8] sm:$0xf]
    %v8596 = vld [vmem:[#allocation4 + $0xc] sm:$0xf]
    %v8597 = vld [vmem:[#allocation4 + $0x10] sm:$0xf]
    %v8598 = vld [vmem:[#allocation4 + $0x14] sm:$0xf]
    %v8599 = vld [vmem:[#allocation4 + $0x18] sm:$0xf]
    %v8600 = vld [vmem:[#allocation4 + $0x1c] sm:$0xf]
    %v8601 = vld [vmem:[#allocation4 + $0x20] sm:$0xf]
    %v8602 = vld [vmem:[#allocation4 + $0x24] sm:$0xf]
    %v8603 = vld [vmem:[#allocation4 + $0x28] sm:$0xf]
    %v8604 = vld [vmem:[#allocation4 + $0x2c] sm:$0xf]
    %v8605 = vld [vmem:[#allocation4 + $0x30] sm:$0xf]
    %v8606 = vld [vmem:[#allocation4 + $0x34] sm:$0xf]
    %v8607 = vld [vmem:[#allocation4 + $0x38] sm:$0xf]
    %v8608 = vld [vmem:[#allocation4 + $0x3c] sm:$0xf]
    %v8609 = vld [vmem:[#allocation4 + $0x40] sm:$0xf]
    %v8610 = vld [vmem:[#allocation4 + $0x44] sm:$0xf]
    %v8611 = vld [vmem:[#allocation4 + $0x48] sm:$0xf]
    %v8612 = vld [vmem:[#allocation4 + $0x4c] sm:$0xf]
    %v8613 = vld [vmem:[#allocation4 + $0x50] sm:$0xf]
    %v8614 = vld [vmem:[#allocation4 + $0x54] sm:$0xf]
    %v8615 = vld [vmem:[#allocation4 + $0x58] sm:$0xf]
    %v8616 = vld [vmem:[#allocation4 + $0x5c] sm:$0xf]
    %v8617 = vld [vmem:[#allocation4 + $0x60] sm:$0xf]
    %v8618 = vld [vmem:[#allocation4 + $0x64] sm:$0xf]
    %v8619 = vld [vmem:[#allocation4 + $0x68] sm:$0xf]
    %v8620 = vld [vmem:[#allocation4 + $0x6c] sm:$0xf]
    %v8621 = vld [vmem:[#allocation4 + $0x70] sm:$0xf]
    %v8622 = vld [vmem:[#allocation4 + $0x74] sm:$0xf]
    %v8623 = vld [vmem:[#allocation4 + $0x78] sm:$0xf]
    %v8624 = vld [vmem:[#allocation4 + $0x7c] sm:$0xf]
    %v8625 = vld [vmem:[#allocation4 + $0x80] sm:$0xf]
    %v8626 = vld [vmem:[#allocation4 + $0x84] sm:$0xf]
    %v8627 = vld [vmem:[#allocation4 + $0x88] sm:$0xf]
    %v8628 = vld [vmem:[#allocation4 + $0x8c] sm:$0xf]
    %v8629 = vld [vmem:[#allocation4 + $0x90] sm:$0xf]
    %v8630 = vld [vmem:[#allocation4 + $0x94] sm:$0xf]
    %v8631 = vld [vmem:[#allocation4 + $0x98] sm:$0xf]
    %v8632 = vld [vmem:[#allocation4 + $0x9c] sm:$0xf]
    %v8633 = vld [vmem:[#allocation4 + $0xa0] sm:$0xf]
    %v8634 = vld [vmem:[#allocation4 + $0xa4] sm:$0xf]
    %v8635 = vld [vmem:[#allocation4 + $0xa8] sm:$0xf]
    %v8636 = vld [vmem:[#allocation4 + $0xac] sm:$0xf]
    %v8637 = vld [vmem:[#allocation4 + $0xb0] sm:$0xf]
    %v8638 = vld [vmem:[#allocation4 + $0xb4] sm:$0xf]
    %v8639 = vld [vmem:[#allocation4 + $0xb8] sm:$0xf]
    %v8640 = vld [vmem:[#allocation4 + $0xbc] sm:$0xf]
    %v8641 = vld [vmem:[#allocation4 + $0xc0] sm:$0xf]
    %v8642 = vld [vmem:[#allocation4 + $0xc4] sm:$0xf]
    %v8643 = vld [vmem:[#allocation4 + $0xc8] sm:$0xf]
    %v8644 = vld [vmem:[#allocation4 + $0xcc] sm:$0xf]
    %v8645 = vld [vmem:[#allocation4 + $0xd0] sm:$0xf]
    %v8646 = vld [vmem:[#allocation4 + $0xd4] sm:$0xf]
    %v8647 = vld [vmem:[#allocation4 + $0xd8] sm:$0xf]
    %v8648 = vld [vmem:[#allocation4 + $0xdc] sm:$0xf]
    %v8649 = vld [vmem:[#allocation4 + $0xe0] sm:$0xf]
    %v8650 = vld [vmem:[#allocation4 + $0xe4] sm:$0xf]
    %v8651 = vld [vmem:[#allocation4 + $0xe8] sm:$0xf]
    %v8652 = vld [vmem:[#allocation4 + $0xec] sm:$0xf]
    %v8653 = vld [vmem:[#allocation4 + $0xf0] sm:$0xf]
    %v8654 = vld [vmem:[#allocation4 + $0xf4] sm:$0xf]
    %v8655 = vld [vmem:[#allocation4 + $0xf8] sm:$0xf]
    %v8656 = vld [vmem:[#allocation4 + $0xfc] sm:$0xf]
    %v8657 = vld [vmem:[#allocation4 + $0x100] sm:$0xf]
    %v8658 = vld [vmem:[#allocation4 + $0x104] sm:$0xf]
    %v8659 = vld [vmem:[#allocation4 + $0x108] sm:$0xf]
    %v8660 = vld [vmem:[#allocation4 + $0x10c] sm:$0xf]
    %v8661 = vld [vmem:[#allocation4 + $0x110] sm:$0xf]
    %v8662 = vld [vmem:[#allocation4 + $0x114] sm:$0xf]
    %v8663 = vld [vmem:[#allocation4 + $0x118] sm:$0xf]
    %v8664 = vld [vmem:[#allocation4 + $0x11c] sm:$0xf]
    %v8665 = vld [vmem:[#allocation4 + $0x120] sm:$0xf]
    %v8666 = vld [vmem:[#allocation4 + $0x124] sm:$0xf]
    %v8667 = vld [vmem:[#allocation4 + $0x128] sm:$0xf]
    %v8668 = vld [vmem:[#allocation4 + $0x12c] sm:$0xf]
    %v8669 = vld [vmem:[#allocation4 + $0x130] sm:$0xf]
    %v8670 = vld [vmem:[#allocation4 + $0x134] sm:$0xf]
    %v8671 = vld [vmem:[#allocation4 + $0x138] sm:$0xf]
    %v8672 = vld [vmem:[#allocation4 + $0x13c] sm:$0xf]
    %v8673 = vld [vmem:[#allocation4 + $0x140] sm:$0xf]
    %v8674 = vld [vmem:[#allocation4 + $0x144] sm:$0xf]
    %v8675 = vld [vmem:[#allocation4 + $0x148] sm:$0xf]
    %v8676 = vld [vmem:[#allocation4 + $0x14c] sm:$0xf]
    %v8677 = vld [vmem:[#allocation4 + $0x150] sm:$0xf]
    %v8678 = vld [vmem:[#allocation4 + $0x154] sm:$0xf]
    %v8679 = vld [vmem:[#allocation4 + $0x158] sm:$0xf]
    %v8680 = vld [vmem:[#allocation4 + $0x15c] sm:$0xf]
    %v8681 = vld [vmem:[#allocation4 + $0x160] sm:$0xf]
    %v8682 = vld [vmem:[#allocation4 + $0x164] sm:$0xf]
    %v8683 = vld [vmem:[#allocation4 + $0x168] sm:$0xf]
    %v8684 = vld [vmem:[#allocation4 + $0x16c] sm:$0xf]
    %v8685 = vld [vmem:[#allocation4 + $0x170] sm:$0xf]
    %v8686 = vld [vmem:[#allocation4 + $0x174] sm:$0xf]
    %v8687 = vld [vmem:[#allocation4 + $0x178] sm:$0xf]
    %v8688 = vld [vmem:[#allocation4 + $0x17c] sm:$0xf]
    %v8689 = vld [vmem:[#allocation4 + $0x180] sm:$0xf]
    %v8690 = vld [vmem:[#allocation4 + $0x184] sm:$0xf]
    %v8691 = vld [vmem:[#allocation4 + $0x188] sm:$0xf]
    %v8692 = vld [vmem:[#allocation4 + $0x18c] sm:$0xf]
    %v8693 = vld [vmem:[#allocation4 + $0x190] sm:$0xf]
    %v8694 = vld [vmem:[#allocation4 + $0x194] sm:$0xf]
    %v8695 = vld [vmem:[#allocation4 + $0x198] sm:$0xf]
    %v8696 = vld [vmem:[#allocation4 + $0x19c] sm:$0xf]
    %v8697 = vld [vmem:[#allocation4 + $0x1a0] sm:$0xf]
    %v8698 = vld [vmem:[#allocation4 + $0x1a4] sm:$0xf]
    %v8699 = vld [vmem:[#allocation4 + $0x1a8] sm:$0xf]
    %v8700 = vld [vmem:[#allocation4 + $0x1ac] sm:$0xf]
    %v8701 = vld [vmem:[#allocation4 + $0x1b0] sm:$0xf]
    %v8702 = vld [vmem:[#allocation4 + $0x1b4] sm:$0xf]
    %v8703 = vld [vmem:[#allocation4 + $0x1b8] sm:$0xf]
    %v8704 = vld [vmem:[#allocation4 + $0x1bc] sm:$0xf]
    %v8705 = vld [vmem:[#allocation4 + $0x1c0] sm:$0xf]
    %v8706 = vld [vmem:[#allocation4 + $0x1c4] sm:$0xf]
    %v8707 = vld [vmem:[#allocation4 + $0x1c8] sm:$0xf]
    %v8708 = vld [vmem:[#allocation4 + $0x1cc] sm:$0xf]
    %v8709 = vld [vmem:[#allocation4 + $0x1d0] sm:$0xf]
    %v8710 = vld [vmem:[#allocation4 + $0x1d4] sm:$0xf]
    %v8711 = vld [vmem:[#allocation4 + $0x1d8] sm:$0xf]
    %v8712 = vld [vmem:[#allocation4 + $0x1dc] sm:$0xf]
    %v8713 = vld [vmem:[#allocation4 + $0x1e0] sm:$0xf]
    %v8714 = vld [vmem:[#allocation4 + $0x1e4] sm:$0xf]
    %v8715 = vld [vmem:[#allocation4 + $0x1e8] sm:$0xf]
    %v8716 = vld [vmem:[#allocation4 + $0x1ec] sm:$0xf]
    %v8717 = vld [vmem:[#allocation4 + $0x1f0] sm:$0xf]
    %v8718 = vld [vmem:[#allocation4 + $0x1f4] sm:$0xf]
    %v8719 = vld [vmem:[#allocation4 + $0x1f8] sm:$0xf]
    %v8720 = vld [vmem:[#allocation4 + $0x1fc] sm:$0xf]
    %v8721 = vld [vmem:[#allocation4 + $0x200] sm:$0xf]
    %v8722 = vld [vmem:[#allocation4 + $0x204] sm:$0xf]
    %v8723 = vld [vmem:[#allocation4 + $0x208] sm:$0xf]
    %v8724 = vld [vmem:[#allocation4 + $0x20c] sm:$0xf]
    %v8725 = vld [vmem:[#allocation4 + $0x210] sm:$0xf]
    %v8726 = vld [vmem:[#allocation4 + $0x214] sm:$0xf]
    %v8727 = vld [vmem:[#allocation4 + $0x218] sm:$0xf]
    %v8728 = vld [vmem:[#allocation4 + $0x21c] sm:$0xf]
    %v8729 = vld [vmem:[#allocation4 + $0x220] sm:$0xf]
    %v8730 = vld [vmem:[#allocation4 + $0x224] sm:$0xf]
    %v8731 = vld [vmem:[#allocation4 + $0x228] sm:$0xf]
    %v8732 = vld [vmem:[#allocation4 + $0x22c] sm:$0xf]
    %v8733 = vld [vmem:[#allocation4 + $0x230] sm:$0xf]
    %v8734 = vld [vmem:[#allocation4 + $0x234] sm:$0xf]
    %v8735 = vld [vmem:[#allocation4 + $0x238] sm:$0xf]
    %v8736 = vld [vmem:[#allocation4 + $0x23c] sm:$0xf]
    %v8737 = vld [vmem:[#allocation4 + $0x240] sm:$0xf]
    %v8738 = vld [vmem:[#allocation4 + $0x244] sm:$0xf]
    %v8739 = vld [vmem:[#allocation4 + $0x248] sm:$0xf]
    %v8740 = vld [vmem:[#allocation4 + $0x24c] sm:$0xf]
    %v8741 = vld [vmem:[#allocation4 + $0x250] sm:$0xf]
    %v8742 = vld [vmem:[#allocation4 + $0x254] sm:$0xf]
    %v8743 = vld [vmem:[#allocation4 + $0x258] sm:$0xf]
    %v8744 = vld [vmem:[#allocation4 + $0x25c] sm:$0xf]
    %v8745 = vld [vmem:[#allocation4 + $0x260] sm:$0xf]
    %v8746 = vld [vmem:[#allocation4 + $0x264] sm:$0xf]
    %v8747 = vld [vmem:[#allocation4 + $0x268] sm:$0xf]
    %v8748 = vld [vmem:[#allocation4 + $0x26c] sm:$0xf]
    %v8749 = vld [vmem:[#allocation4 + $0x270] sm:$0xf]
    %v8750 = vld [vmem:[#allocation4 + $0x274] sm:$0xf]
    %v8751 = vld [vmem:[#allocation4 + $0x278] sm:$0xf]
    %v8752 = vld [vmem:[#allocation4 + $0x27c] sm:$0xf]
    %v8753 = vld [vmem:[#allocation4 + $0x280] sm:$0xf]
    %v8754 = vld [vmem:[#allocation4 + $0x284] sm:$0xf]
    %v8755 = vld [vmem:[#allocation4 + $0x288] sm:$0xf]
    %v8756 = vld [vmem:[#allocation4 + $0x28c] sm:$0xf]
    %v8757 = vld [vmem:[#allocation4 + $0x290] sm:$0xf]
    %v8758 = vld [vmem:[#allocation4 + $0x294] sm:$0xf]
    %v8759 = vld [vmem:[#allocation4 + $0x298] sm:$0xf]
    %v8760 = vld [vmem:[#allocation4 + $0x29c] sm:$0xf]
    %v8761 = vld [vmem:[#allocation4 + $0x2a0] sm:$0xf]
    %v8762 = vld [vmem:[#allocation4 + $0x2a4] sm:$0xf]
    %v8763 = vld [vmem:[#allocation4 + $0x2a8] sm:$0xf]
    %v8764 = vld [vmem:[#allocation4 + $0x2ac] sm:$0xf]
    %v8765 = vld [vmem:[#allocation4 + $0x2b0] sm:$0xf]
    %v8766 = vld [vmem:[#allocation4 + $0x2b4] sm:$0xf]
    %v8767 = vld [vmem:[#allocation4 + $0x2b8] sm:$0xf]
    %v8768 = vld [vmem:[#allocation4 + $0x2bc] sm:$0xf]
    %v8769 = vld [vmem:[#allocation4 + $0x2c0] sm:$0xf]
    %v8770 = vld [vmem:[#allocation4 + $0x2c4] sm:$0xf]
    %v8771 = vld [vmem:[#allocation4 + $0x2c8] sm:$0xf]
    %v8772 = vld [vmem:[#allocation4 + $0x2cc] sm:$0xf]
    %v8773 = vld [vmem:[#allocation4 + $0x2d0] sm:$0xf]
    %v8774 = vld [vmem:[#allocation4 + $0x2d4] sm:$0xf]
    %v8775 = vld [vmem:[#allocation4 + $0x2d8] sm:$0xf]
    %v8776 = vld [vmem:[#allocation4 + $0x2dc] sm:$0xf]
    %v8777 = vld [vmem:[#allocation4 + $0x2e0] sm:$0xf]
    %v8778 = vld [vmem:[#allocation4 + $0x2e4] sm:$0xf]
    %v8779 = vld [vmem:[#allocation4 + $0x2e8] sm:$0xf]
    %v8780 = vld [vmem:[#allocation4 + $0x2ec] sm:$0xf]
    %v8781 = vld [vmem:[#allocation4 + $0x2f0] sm:$0xf]
    %v8782 = vld [vmem:[#allocation4 + $0x2f4] sm:$0xf]
    %v8783 = vld [vmem:[#allocation4 + $0x2f8] sm:$0xf]
    %v8784 = vld [vmem:[#allocation4 + $0x2fc] sm:$0xf]
    %v8785 = vld [vmem:[#allocation4 + $0x300] sm:$0xf]
    %v8786 = vld [vmem:[#allocation4 + $0x304] sm:$0xf]
    %v8787 = vld [vmem:[#allocation4 + $0x308] sm:$0xf]
    %v8788 = vld [vmem:[#allocation4 + $0x30c] sm:$0xf]
    %v8789 = vld [vmem:[#allocation4 + $0x310] sm:$0xf]
    %v8790 = vld [vmem:[#allocation4 + $0x314] sm:$0xf]
    %v8791 = vld [vmem:[#allocation4 + $0x318] sm:$0xf]
    %v8792 = vld [vmem:[#allocation4 + $0x31c] sm:$0xf]
    %v8793 = vld [vmem:[#allocation4 + $0x320] sm:$0xf]
    %v8794 = vld [vmem:[#allocation4 + $0x324] sm:$0xf]
    %v8795 = vld [vmem:[#allocation4 + $0x328] sm:$0xf]
    %v8796 = vld [vmem:[#allocation4 + $0x32c] sm:$0xf]
    %v8797 = vld [vmem:[#allocation4 + $0x330] sm:$0xf]
    %v8798 = vld [vmem:[#allocation4 + $0x334] sm:$0xf]
    %v8799 = vld [vmem:[#allocation4 + $0x338] sm:$0xf]
    %v8800 = vld [vmem:[#allocation4 + $0x33c] sm:$0xf]
    %v8801 = vld [vmem:[#allocation4 + $0x340] sm:$0xf]
    %v8802 = vld [vmem:[#allocation4 + $0x344] sm:$0xf]
    %v8803 = vld [vmem:[#allocation4 + $0x348] sm:$0xf]
    %v8804 = vld [vmem:[#allocation4 + $0x34c] sm:$0xf]
    %v8805 = vld [vmem:[#allocation4 + $0x350] sm:$0xf]
    %v8806 = vld [vmem:[#allocation4 + $0x354] sm:$0xf]
    %v8807 = vld [vmem:[#allocation4 + $0x358] sm:$0xf]
    %v8808 = vld [vmem:[#allocation4 + $0x35c] sm:$0xf]
    %v8809 = vld [vmem:[#allocation4 + $0x360] sm:$0xf]
    %v8810 = vld [vmem:[#allocation4 + $0x364] sm:$0xf]
    %v8811 = vld [vmem:[#allocation4 + $0x368] sm:$0xf]
    %v8812 = vld [vmem:[#allocation4 + $0x36c] sm:$0xf]
    %v8813 = vld [vmem:[#allocation4 + $0x370] sm:$0xf]
    %v8814 = vld [vmem:[#allocation4 + $0x374] sm:$0xf]
    %v8815 = vld [vmem:[#allocation4 + $0x378] sm:$0xf]
    %v8816 = vld [vmem:[#allocation4 + $0x37c] sm:$0xf]
    %v8817 = vld [vmem:[#allocation4 + $0x380] sm:$0xf]
    %v8818 = vld [vmem:[#allocation4 + $0x384] sm:$0xf]
    %v8819 = vld [vmem:[#allocation4 + $0x388] sm:$0xf]
    %v8820 = vld [vmem:[#allocation4 + $0x38c] sm:$0xf]
    %v8821 = vld [vmem:[#allocation4 + $0x390] sm:$0xf]
    %v8822 = vld [vmem:[#allocation4 + $0x394] sm:$0xf]
    %v8823 = vld [vmem:[#allocation4 + $0x398] sm:$0xf]
    %v8824 = vld [vmem:[#allocation4 + $0x39c] sm:$0xf]
    %v8825 = vld [vmem:[#allocation4 + $0x3a0] sm:$0xf]
    %v8826 = vld [vmem:[#allocation4 + $0x3a4] sm:$0xf]
    %v8827 = vld [vmem:[#allocation4 + $0x3a8] sm:$0xf]
    %v8828 = vld [vmem:[#allocation4 + $0x3ac] sm:$0xf]
    %v8829 = vld [vmem:[#allocation4 + $0x3b0] sm:$0xf]
    %v8830 = vld [vmem:[#allocation4 + $0x3b4] sm:$0xf]
    %v8831 = vld [vmem:[#allocation4 + $0x3b8] sm:$0xf]
    %v8832 = vld [vmem:[#allocation4 + $0x3bc] sm:$0xf]
    %v8833 = vld [vmem:[#allocation4 + $0x3c0] sm:$0xf]
    %v8834 = vld [vmem:[#allocation4 + $0x3c4] sm:$0xf]
    %v8835 = vld [vmem:[#allocation4 + $0x3c8] sm:$0xf]
    %v8836 = vld [vmem:[#allocation4 + $0x3cc] sm:$0xf]
    %v8837 = vld [vmem:[#allocation4 + $0x3d0] sm:$0xf]
    %v8838 = vld [vmem:[#allocation4 + $0x3d4] sm:$0xf]
    %v8839 = vld [vmem:[#allocation4 + $0x3d8] sm:$0xf]
    %v8840 = vld [vmem:[#allocation4 + $0x3dc] sm:$0xf]
    %v8841 = vld [vmem:[#allocation4 + $0x3e0] sm:$0xf]
    %v8842 = vld [vmem:[#allocation4 + $0x3e4] sm:$0xf]
    %v8843 = vld [vmem:[#allocation4 + $0x3e8] sm:$0xf]
    %v8844 = vld [vmem:[#allocation4 + $0x3ec] sm:$0xf]
    %v8845 = vld [vmem:[#allocation4 + $0x3f0] sm:$0xf]
    %v8846 = vld [vmem:[#allocation4 + $0x3f4] sm:$0xf]
    %v8847 = vld [vmem:[#allocation4 + $0x3f8] sm:$0xf]
    %v8848 = vld [vmem:[#allocation4 + $0x3fc] sm:$0xf]
    %v8849 = vld [vmem:[#allocation4 + $0x400] sm:$0xf]
    %v8850 = vld [vmem:[#allocation4 + $0x404] sm:$0xf]
    %v8851 = vld [vmem:[#allocation4 + $0x408] sm:$0xf]
    %v8852 = vld [vmem:[#allocation4 + $0x40c] sm:$0xf]
    %v8853 = vld [vmem:[#allocation4 + $0x410] sm:$0xf]
    %v8854 = vld [vmem:[#allocation4 + $0x414] sm:$0xf]
    %v8855 = vld [vmem:[#allocation4 + $0x418] sm:$0xf]
    %v8856 = vld [vmem:[#allocation4 + $0x41c] sm:$0xf]
    %v8857 = vld [vmem:[#allocation4 + $0x420] sm:$0xf]
    %v8858 = vld [vmem:[#allocation4 + $0x424] sm:$0xf]
    %v8859 = vld [vmem:[#allocation4 + $0x428] sm:$0xf]
    %v8860 = vld [vmem:[#allocation4 + $0x42c] sm:$0xf]
    %v8861 = vld [vmem:[#allocation4 + $0x430] sm:$0xf]
    %v8862 = vld [vmem:[#allocation4 + $0x434] sm:$0xf]
    %v8863 = vld [vmem:[#allocation4 + $0x438] sm:$0xf]
    %v8864 = vld [vmem:[#allocation4 + $0x43c] sm:$0xf]
    %v8865 = vld [vmem:[#allocation4 + $0x440] sm:$0xf]
    %v8866 = vld [vmem:[#allocation4 + $0x444] sm:$0xf]
    %v8867 = vld [vmem:[#allocation4 + $0x448] sm:$0xf]
    %v8868 = vld [vmem:[#allocation4 + $0x44c] sm:$0xf]
    %v8869 = vld [vmem:[#allocation4 + $0x450] sm:$0xf]
    %v8870 = vld [vmem:[#allocation4 + $0x454] sm:$0xf]
    %v8871 = vld [vmem:[#allocation4 + $0x458] sm:$0xf]
    %v8872 = vld [vmem:[#allocation4 + $0x45c] sm:$0xf]
    %v8873 = vld [vmem:[#allocation4 + $0x460] sm:$0xf]
    %v8874 = vld [vmem:[#allocation4 + $0x464] sm:$0xf]
    %v8875 = vld [vmem:[#allocation4 + $0x468] sm:$0xf]
    %v8876 = vld [vmem:[#allocation4 + $0x46c] sm:$0xf]
    %v8877 = vld [vmem:[#allocation4 + $0x470] sm:$0xf]
    %v8878 = vld [vmem:[#allocation4 + $0x474] sm:$0xf]
    %v8879 = vld [vmem:[#allocation4 + $0x478] sm:$0xf]
    %v8880 = vld [vmem:[#allocation4 + $0x47c] sm:$0xf]
    %v8881 = vld [vmem:[#allocation4 + $0x480] sm:$0xf]
    %v8882 = vld [vmem:[#allocation4 + $0x484] sm:$0xf]
    %v8883 = vld [vmem:[#allocation4 + $0x488] sm:$0xf]
    %v8884 = vld [vmem:[#allocation4 + $0x48c] sm:$0xf]
    %v8885 = vld [vmem:[#allocation4 + $0x490] sm:$0xf]
    %v8886 = vld [vmem:[#allocation4 + $0x494] sm:$0xf]
    %v8887 = vld [vmem:[#allocation4 + $0x498] sm:$0xf]
    %v8888 = vld [vmem:[#allocation4 + $0x49c] sm:$0xf]
    %v8889 = vld [vmem:[#allocation4 + $0x4a0] sm:$0xf]
    %v8890 = vld [vmem:[#allocation4 + $0x4a4] sm:$0xf]
    %v8891 = vld [vmem:[#allocation4 + $0x4a8] sm:$0xf]
    %v8892 = vld [vmem:[#allocation4 + $0x4ac] sm:$0xf]
    %v8893 = vld [vmem:[#allocation4 + $0x4b0] sm:$0xf]
    %v8894 = vld [vmem:[#allocation4 + $0x4b4] sm:$0xf]
    %v8895 = vld [vmem:[#allocation4 + $0x4b8] sm:$0xf]
    %v8896 = vld [vmem:[#allocation4 + $0x4bc] sm:$0xf]
    %v8897 = vld [vmem:[#allocation4 + $0x4c0] sm:$0xf]
    %v8898 = vld [vmem:[#allocation4 + $0x4c4] sm:$0xf]
    %v8899 = vld [vmem:[#allocation4 + $0x4c8] sm:$0xf]
    %v8900 = vld [vmem:[#allocation4 + $0x4cc] sm:$0xf]
    %v8901 = vld [vmem:[#allocation4 + $0x4d0] sm:$0xf]
    %v8902 = vld [vmem:[#allocation4 + $0x4d4] sm:$0xf]
    %v8903 = vld [vmem:[#allocation4 + $0x4d8] sm:$0xf]
    %v8904 = vld [vmem:[#allocation4 + $0x4dc] sm:$0xf]
    %v8905 = vld [vmem:[#allocation4 + $0x4e0] sm:$0xf]
    %v8906 = vld [vmem:[#allocation4 + $0x4e4] sm:$0xf]
    %v8907 = vld [vmem:[#allocation4 + $0x4e8] sm:$0xf]
    %v8908 = vld [vmem:[#allocation4 + $0x4ec] sm:$0xf]
    %v8909 = vld [vmem:[#allocation4 + $0x4f0] sm:$0xf]
    %v8910 = vld [vmem:[#allocation4 + $0x4f4] sm:$0xf]
    %v8911 = vld [vmem:[#allocation4 + $0x4f8] sm:$0xf]
    %v8912 = vld [vmem:[#allocation4 + $0x4fc] sm:$0xf]
    %v8913 = vld [vmem:[#allocation4 + $0x500] sm:$0xf]
    %v8914 = vld [vmem:[#allocation4 + $0x504] sm:$0xf]
    %v8915 = vld [vmem:[#allocation4 + $0x508] sm:$0xf]
    %v8916 = vld [vmem:[#allocation4 + $0x50c] sm:$0xf]
    %v8917 = vld [vmem:[#allocation4 + $0x510] sm:$0xf]
    %v8918 = vld [vmem:[#allocation4 + $0x514] sm:$0xf]
    %v8919 = vld [vmem:[#allocation4 + $0x518] sm:$0xf]
    %v8920 = vld [vmem:[#allocation4 + $0x51c] sm:$0xf]
    %v8921 = vld [vmem:[#allocation4 + $0x520] sm:$0xf]
    %v8922 = vld [vmem:[#allocation4 + $0x524] sm:$0xf]
    %v8923 = vld [vmem:[#allocation4 + $0x528] sm:$0xf]
    %v8924 = vld [vmem:[#allocation4 + $0x52c] sm:$0xf]
    %v8925 = vld [vmem:[#allocation4 + $0x530] sm:$0xf]
    %v8926 = vld [vmem:[#allocation4 + $0x534] sm:$0xf]
    %v8927 = vld [vmem:[#allocation4 + $0x538] sm:$0xf]
    %v8928 = vld [vmem:[#allocation4 + $0x53c] sm:$0xf]
    %v8929 = vld [vmem:[#allocation4 + $0x540] sm:$0xf]
    %v8930 = vld [vmem:[#allocation4 + $0x544] sm:$0xf]
    %v8931 = vld [vmem:[#allocation4 + $0x548] sm:$0xf]
    %v8932 = vld [vmem:[#allocation4 + $0x54c] sm:$0xf]
    %v8933 = vld [vmem:[#allocation4 + $0x550] sm:$0xf]
    %v8934 = vld [vmem:[#allocation4 + $0x554] sm:$0xf]
    %v8935 = vld [vmem:[#allocation4 + $0x558] sm:$0xf]
    %v8936 = vld [vmem:[#allocation4 + $0x55c] sm:$0xf]
    %v8937 = vld [vmem:[#allocation4 + $0x560] sm:$0xf]
    %v8938 = vld [vmem:[#allocation4 + $0x564] sm:$0xf]
    %v8939 = vld [vmem:[#allocation4 + $0x568] sm:$0xf]
    %v8940 = vld [vmem:[#allocation4 + $0x56c] sm:$0xf]
    %v8941 = vld [vmem:[#allocation4 + $0x570] sm:$0xf]
    %v8942 = vld [vmem:[#allocation4 + $0x574] sm:$0xf]
    %v8943 = vld [vmem:[#allocation4 + $0x578] sm:$0xf]
    %v8944 = vld [vmem:[#allocation4 + $0x57c] sm:$0xf]
    %v8945 = vld [vmem:[#allocation4 + $0x580] sm:$0xf]
    %v8946 = vld [vmem:[#allocation4 + $0x584] sm:$0xf]
    %v8947 = vld [vmem:[#allocation4 + $0x588] sm:$0xf]
    %v8948 = vld [vmem:[#allocation4 + $0x58c] sm:$0xf]
    %v8949 = vld [vmem:[#allocation4 + $0x590] sm:$0xf]
    %v8950 = vld [vmem:[#allocation4 + $0x594] sm:$0xf]
    %v8951 = vld [vmem:[#allocation4 + $0x598] sm:$0xf]
    %v8952 = vld [vmem:[#allocation4 + $0x59c] sm:$0xf]
    %v8953 = vld [vmem:[#allocation4 + $0x5a0] sm:$0xf]
    %v8954 = vld [vmem:[#allocation4 + $0x5a4] sm:$0xf]
    %v8955 = vld [vmem:[#allocation4 + $0x5a8] sm:$0xf]
    %v8956 = vld [vmem:[#allocation4 + $0x5ac] sm:$0xf]
    %v8957 = vld [vmem:[#allocation4 + $0x5b0] sm:$0xf]
    %v8958 = vld [vmem:[#allocation4 + $0x5b4] sm:$0xf]
    %v8959 = vld [vmem:[#allocation4 + $0x5b8] sm:$0xf]
    %v8960 = vld [vmem:[#allocation4 + $0x5bc] sm:$0xf]
    %v8961 = vld [vmem:[#allocation4 + $0x5c0] sm:$0xf]
    %v8962 = vld [vmem:[#allocation4 + $0x5c4] sm:$0xf]
    %v8963 = vld [vmem:[#allocation4 + $0x5c8] sm:$0xf]
    %v8964 = vld [vmem:[#allocation4 + $0x5cc] sm:$0xf]
    %v8965 = vld [vmem:[#allocation4 + $0x5d0] sm:$0xf]
    %v8966 = vld [vmem:[#allocation4 + $0x5d4] sm:$0xf]
    %v8967 = vld [vmem:[#allocation4 + $0x5d8] sm:$0xf]
    %v8968 = vld [vmem:[#allocation4 + $0x5dc] sm:$0xf]
    %v8969 = vld [vmem:[#allocation4 + $0x5e0] sm:$0xf]
    %v8970 = vld [vmem:[#allocation4 + $0x5e4] sm:$0xf]
    %v8971 = vld [vmem:[#allocation4 + $0x5e8] sm:$0xf]
    %v8972 = vld [vmem:[#allocation4 + $0x5ec] sm:$0xf]
    %v8973 = vld [vmem:[#allocation4 + $0x5f0] sm:$0xf]
    %v8974 = vld [vmem:[#allocation4 + $0x5f4] sm:$0xf]
    %v8975 = vld [vmem:[#allocation4 + $0x5f8] sm:$0xf]
    %v8976 = vld [vmem:[#allocation4 + $0x5fc] sm:$0xf]
    %v8977 = vld [vmem:[#allocation4 + $0x600] sm:$0xf]
    %v8978 = vld [vmem:[#allocation4 + $0x604] sm:$0xf]
    %v8979 = vld [vmem:[#allocation4 + $0x608] sm:$0xf]
    %v8980 = vld [vmem:[#allocation4 + $0x60c] sm:$0xf]
    %v8981 = vld [vmem:[#allocation4 + $0x610] sm:$0xf]
    %v8982 = vld [vmem:[#allocation4 + $0x614] sm:$0xf]
    %v8983 = vld [vmem:[#allocation4 + $0x618] sm:$0xf]
    %v8984 = vld [vmem:[#allocation4 + $0x61c] sm:$0xf]
    %v8985 = vld [vmem:[#allocation4 + $0x620] sm:$0xf]
    %v8986 = vld [vmem:[#allocation4 + $0x624] sm:$0xf]
    %v8987 = vld [vmem:[#allocation4 + $0x628] sm:$0xf]
    %v8988 = vld [vmem:[#allocation4 + $0x62c] sm:$0xf]
    %v8989 = vld [vmem:[#allocation4 + $0x630] sm:$0xf]
    %v8990 = vld [vmem:[#allocation4 + $0x634] sm:$0xf]
    %v8991 = vld [vmem:[#allocation4 + $0x638] sm:$0xf]
    %v8992 = vld [vmem:[#allocation4 + $0x63c] sm:$0xf]
    %v8993 = vld [vmem:[%s5] sm:$0x1]
    %v8995 = vlaneseq
    %v8996 = vshrl.u32 %v8995, 7
    %v8997 = vsub.s32 0, %v8996
    %v8998 = vrot.slane %v8993, %v8997
    %v9013 = vunpack.c.l.b16 %v8580
    %v9014 = vunpack.c.h.b16 %v8580
    %v9015 = vunpack.c.l.b16 %v8581
    %v9016 = vunpack.c.h.b16 %v8581
    %v9017 = vunpack.c.l.b16 %v8582
    %v9018 = vunpack.c.h.b16 %v8582
    %v9019 = vunpack.c.l.b16 %v8583
    %v9020 = vunpack.c.h.b16 %v8583
    %v9021 = vunpack.c.l.b16 %v8584
    %v9022 = vunpack.c.h.b16 %v8584
    %v9023 = vunpack.c.l.b16 %v8585
    %v9024 = vunpack.c.h.b16 %v8585
    %v9025 = vunpack.c.l.b16 %v8586
    %v9026 = vunpack.c.h.b16 %v8586
    %v9027 = vunpack.c.l.b16 %v8587
    %v9028 = vunpack.c.h.b16 %v8587
    %v9029 = vunpack.c.l.b16 %v8588
    %v9030 = vunpack.c.h.b16 %v8588
    %v9031 = vunpack.c.l.b16 %v8589
    %v9032 = vunpack.c.h.b16 %v8589
    %v9033 = vunpack.c.l.b16 %v8590
    %v9034 = vunpack.c.h.b16 %v8590
    %v9035 = vunpack.c.l.b16 %v8591
    %v9036 = vunpack.c.h.b16 %v8591
    %v9037 = vunpack.c.l.b16 %v8592
    %v9038 = vpack.c.b16 %v9013, %v9013
    %v9039 = vpack.c.b16 %v9014, %v9014
    %v9040 = vpack.c.b16 %v9015, %v9015
    %v9041 = vpack.c.b16 %v9016, %v9016
    %v9042 = vpack.c.b16 %v9017, %v9017
    %v9043 = vpack.c.b16 %v9018, %v9018
    %v9044 = vpack.c.b16 %v9019, %v9019
    %v9045 = vpack.c.b16 %v9020, %v9020
    %v9046 = vpack.c.b16 %v9021, %v9021
    %v9047 = vpack.c.b16 %v9022, %v9022
    %v9048 = vpack.c.b16 %v9023, %v9023
    %v9049 = vpack.c.b16 %v9024, %v9024
    %v9050 = vpack.c.b16 %v9025, %v9025
    %v9051 = vpack.c.b16 %v9026, %v9026
    %v9052 = vpack.c.b16 %v9027, %v9027
    %v9053 = vpack.c.b16 %v9028, %v9028
    %v9054 = vpack.c.b16 %v9029, %v9029
    %v9055 = vpack.c.b16 %v9030, %v9030
    %v9056 = vpack.c.b16 %v9031, %v9031
    %v9057 = vpack.c.b16 %v9032, %v9032
    %v9058 = vpack.c.b16 %v9033, %v9033
    %v9059 = vpack.c.b16 %v9034, %v9034
    %v9060 = vpack.c.b16 %v9035, %v9035
    %v9061 = vpack.c.b16 %v9036, %v9036
    %v9062 = vpack.c.b16 %v9037, %v9037
    %v9488 = vunpack.c.l.b16 %v8593
    %v9489 = vunpack.c.l.b16 %v8594
    %v9490 = vunpack.c.l.b16 %v8595
    %v9491 = vunpack.c.l.b16 %v8596
    %v9492 = vunpack.c.l.b16 %v8597
    %v9493 = vunpack.c.l.b16 %v8598
    %v9494 = vunpack.c.l.b16 %v8599
    %v9495 = vunpack.c.l.b16 %v8600
    %v9496 = vunpack.c.l.b16 %v8601
    %v9497 = vunpack.c.l.b16 %v8602
    %v9498 = vunpack.c.l.b16 %v8603
    %v9499 = vunpack.c.l.b16 %v8604
    %v9500 = vunpack.c.l.b16 %v8605
    %v9501 = vunpack.c.l.b16 %v8606
    %v9502 = vunpack.c.l.b16 %v8607
    %v9503 = vunpack.c.l.b16 %v8608
    %v9504 = vunpack.c.l.b16 %v8609
    %v9505 = vunpack.c.l.b16 %v8610
    %v9506 = vunpack.c.l.b16 %v8611
    %v9507 = vunpack.c.l.b16 %v8612
    %v9508 = vunpack.c.l.b16 %v8613
    %v9509 = vunpack.c.l.b16 %v8614
    %v9510 = vunpack.c.l.b16 %v8615
    %v9511 = vunpack.c.l.b16 %v8616
    %v9512 = vunpack.c.l.b16 %v8617
    %v9513 = vunpack.c.l.b16 %v8618
    %v9514 = vunpack.c.l.b16 %v8619
    %v9515 = vunpack.c.l.b16 %v8620
    %v9516 = vunpack.c.l.b16 %v8621
    %v9517 = vunpack.c.l.b16 %v8622
    %v9518 = vunpack.c.l.b16 %v8623
    %v9519 = vunpack.c.l.b16 %v8624
    %v9520 = vunpack.c.l.b16 %v8625
    %v9521 = vunpack.c.l.b16 %v8626
    %v9522 = vunpack.c.l.b16 %v8627
    %v9523 = vunpack.c.l.b16 %v8628
    %v9524 = vunpack.c.l.b16 %v8629
    %v9525 = vunpack.c.l.b16 %v8630
    %v9526 = vunpack.c.l.b16 %v8631
    %v9527 = vunpack.c.l.b16 %v8632
    %v9528 = vunpack.c.l.b16 %v8633
    %v9529 = vunpack.c.l.b16 %v8634
    %v9530 = vunpack.c.l.b16 %v8635
    %v9531 = vunpack.c.l.b16 %v8636
    %v9532 = vunpack.c.l.b16 %v8637
    %v9533 = vunpack.c.l.b16 %v8638
    %v9534 = vunpack.c.l.b16 %v8639
    %v9535 = vunpack.c.l.b16 %v8640
    %v9536 = vunpack.c.l.b16 %v8641
    %v9537 = vunpack.c.l.b16 %v8642
    %v9538 = vunpack.c.l.b16 %v8643
    %v9539 = vunpack.c.l.b16 %v8644
    %v9540 = vunpack.c.l.b16 %v8645
    %v9541 = vunpack.c.l.b16 %v8646
    %v9542 = vunpack.c.l.b16 %v8647
    %v9543 = vunpack.c.l.b16 %v8648
    %v9544 = vunpack.c.l.b16 %v8649
    %v9545 = vunpack.c.l.b16 %v8650
    %v9546 = vunpack.c.l.b16 %v8651
    %v9547 = vunpack.c.l.b16 %v8652
    %v9548 = vunpack.c.l.b16 %v8653
    %v9549 = vunpack.c.l.b16 %v8654
    %v9550 = vunpack.c.l.b16 %v8655
    %v9551 = vunpack.c.l.b16 %v8656
    %v9552 = vunpack.c.l.b16 %v8657
    %v9553 = vunpack.c.l.b16 %v8658
    %v9554 = vunpack.c.l.b16 %v8659
    %v9555 = vunpack.c.l.b16 %v8660
    %v9556 = vunpack.c.l.b16 %v8661
    %v9557 = vunpack.c.l.b16 %v8662
    %v9558 = vunpack.c.l.b16 %v8663
    %v9559 = vunpack.c.l.b16 %v8664
    %v9560 = vunpack.c.l.b16 %v8665
    %v9561 = vunpack.c.l.b16 %v8666
    %v9562 = vunpack.c.l.b16 %v8667
    %v9563 = vunpack.c.l.b16 %v8668
    %v9564 = vunpack.c.l.b16 %v8669
    %v9565 = vunpack.c.l.b16 %v8670
    %v9566 = vunpack.c.l.b16 %v8671
    %v9567 = vunpack.c.l.b16 %v8672
    %v9568 = vunpack.c.l.b16 %v8673
    %v9569 = vunpack.c.l.b16 %v8674
    %v9570 = vunpack.c.l.b16 %v8675
    %v9571 = vunpack.c.l.b16 %v8676
    %v9572 = vunpack.c.l.b16 %v8677
    %v9573 = vunpack.c.l.b16 %v8678
    %v9574 = vunpack.c.l.b16 %v8679
    %v9575 = vunpack.c.l.b16 %v8680
    %v9576 = vunpack.c.l.b16 %v8681
    %v9577 = vunpack.c.l.b16 %v8682
    %v9578 = vunpack.c.l.b16 %v8683
    %v9579 = vunpack.c.l.b16 %v8684
    %v9580 = vunpack.c.l.b16 %v8685
    %v9581 = vunpack.c.l.b16 %v8686
    %v9582 = vunpack.c.l.b16 %v8687
    %v9583 = vunpack.c.l.b16 %v8688
    %v9584 = vunpack.c.l.b16 %v8689
    %v9585 = vunpack.c.l.b16 %v8690
    %v9586 = vunpack.c.l.b16 %v8691
    %v9587 = vunpack.c.l.b16 %v8692
    %v9588 = vunpack.c.l.b16 %v8693
    %v9589 = vunpack.c.l.b16 %v8694
    %v9590 = vunpack.c.l.b16 %v8695
    %v9591 = vunpack.c.l.b16 %v8696
    %v9592 = vunpack.c.l.b16 %v8697
    %v9593 = vunpack.c.l.b16 %v8698
    %v9594 = vunpack.c.l.b16 %v8699
    %v9595 = vunpack.c.l.b16 %v8700
    %v9596 = vunpack.c.l.b16 %v8701
    %v9597 = vunpack.c.l.b16 %v8702
    %v9598 = vunpack.c.l.b16 %v8703
    %v9599 = vunpack.c.l.b16 %v8704
    %v9600 = vunpack.c.l.b16 %v8705
    %v9601 = vunpack.c.l.b16 %v8706
    %v9602 = vunpack.c.l.b16 %v8707
    %v9603 = vunpack.c.l.b16 %v8708
    %v9604 = vunpack.c.l.b16 %v8709
    %v9605 = vunpack.c.l.b16 %v8710
    %v9606 = vunpack.c.l.b16 %v8711
    %v9607 = vunpack.c.l.b16 %v8712
    %v9608 = vunpack.c.l.b16 %v8713
    %v9609 = vunpack.c.l.b16 %v8714
    %v9610 = vunpack.c.l.b16 %v8715
    %v9611 = vunpack.c.l.b16 %v8716
    %v9612 = vunpack.c.l.b16 %v8717
    %v9613 = vunpack.c.l.b16 %v8718
    %v9614 = vunpack.c.l.b16 %v8719
    %v9615 = vunpack.c.l.b16 %v8720
    %v9616 = vunpack.c.l.b16 %v8721
    %v9617 = vunpack.c.l.b16 %v8722
    %v9618 = vunpack.c.l.b16 %v8723
    %v9619 = vunpack.c.l.b16 %v8724
    %v9620 = vunpack.c.l.b16 %v8725
    %v9621 = vunpack.c.l.b16 %v8726
    %v9622 = vunpack.c.l.b16 %v8727
    %v9623 = vunpack.c.l.b16 %v8728
    %v9624 = vunpack.c.l.b16 %v8729
    %v9625 = vunpack.c.l.b16 %v8730
    %v9626 = vunpack.c.l.b16 %v8731
    %v9627 = vunpack.c.l.b16 %v8732
    %v9628 = vunpack.c.l.b16 %v8733
    %v9629 = vunpack.c.l.b16 %v8734
    %v9630 = vunpack.c.l.b16 %v8735
    %v9631 = vunpack.c.l.b16 %v8736
    %v9632 = vunpack.c.l.b16 %v8737
    %v9633 = vunpack.c.l.b16 %v8738
    %v9634 = vunpack.c.l.b16 %v8739
    %v9635 = vunpack.c.l.b16 %v8740
    %v9636 = vunpack.c.l.b16 %v8741
    %v9637 = vunpack.c.l.b16 %v8742
    %v9638 = vunpack.c.l.b16 %v8743
    %v9639 = vunpack.c.l.b16 %v8744
    %v9640 = vunpack.c.l.b16 %v8745
    %v9641 = vunpack.c.l.b16 %v8746
    %v9642 = vunpack.c.l.b16 %v8747
    %v9643 = vunpack.c.l.b16 %v8748
    %v9644 = vunpack.c.l.b16 %v8749
    %v9645 = vunpack.c.l.b16 %v8750
    %v9646 = vunpack.c.l.b16 %v8751
    %v9647 = vunpack.c.l.b16 %v8752
    %v9648 = vunpack.c.l.b16 %v8753
    %v9649 = vunpack.c.l.b16 %v8754
    %v9650 = vunpack.c.l.b16 %v8755
    %v9651 = vunpack.c.l.b16 %v8756
    %v9652 = vunpack.c.l.b16 %v8757
    %v9653 = vunpack.c.l.b16 %v8758
    %v9654 = vunpack.c.l.b16 %v8759
    %v9655 = vunpack.c.l.b16 %v8760
    %v9656 = vunpack.c.l.b16 %v8761
    %v9657 = vunpack.c.l.b16 %v8762
    %v9658 = vunpack.c.l.b16 %v8763
    %v9659 = vunpack.c.l.b16 %v8764
    %v9660 = vunpack.c.l.b16 %v8765
    %v9661 = vunpack.c.l.b16 %v8766
    %v9662 = vunpack.c.l.b16 %v8767
    %v9663 = vunpack.c.l.b16 %v8768
    %v9664 = vunpack.c.l.b16 %v8769
    %v9665 = vunpack.c.l.b16 %v8770
    %v9666 = vunpack.c.l.b16 %v8771
    %v9667 = vunpack.c.l.b16 %v8772
    %v9668 = vunpack.c.l.b16 %v8773
    %v9669 = vunpack.c.l.b16 %v8774
    %v9670 = vunpack.c.l.b16 %v8775
    %v9671 = vunpack.c.l.b16 %v8776
    %v9672 = vunpack.c.l.b16 %v8777
    %v9673 = vunpack.c.l.b16 %v8778
    %v9674 = vunpack.c.l.b16 %v8779
    %v9675 = vunpack.c.l.b16 %v8780
    %v9676 = vunpack.c.l.b16 %v8781
    %v9677 = vunpack.c.l.b16 %v8782
    %v9678 = vunpack.c.l.b16 %v8783
    %v9679 = vunpack.c.l.b16 %v8784
    %v9680 = vunpack.c.l.b16 %v8785
    %v9681 = vunpack.c.l.b16 %v8786
    %v9682 = vunpack.c.l.b16 %v8787
    %v9683 = vunpack.c.l.b16 %v8788
    %v9684 = vunpack.c.l.b16 %v8789
    %v9685 = vunpack.c.l.b16 %v8790
    %v9686 = vunpack.c.l.b16 %v8791
    %v9687 = vunpack.c.l.b16 %v8792
    %v9688 = vunpack.c.l.b16 %v8793
    %v9689 = vunpack.c.l.b16 %v8794
    %v9690 = vunpack.c.l.b16 %v8795
    %v9691 = vunpack.c.l.b16 %v8796
    %v9692 = vunpack.c.l.b16 %v8797
    %v9693 = vunpack.c.l.b16 %v8798
    %v9694 = vunpack.c.l.b16 %v8799
    %v9695 = vunpack.c.l.b16 %v8800
    %v9696 = vunpack.c.l.b16 %v8801
    %v9697 = vunpack.c.l.b16 %v8802
    %v9698 = vunpack.c.l.b16 %v8803
    %v9699 = vunpack.c.l.b16 %v8804
    %v9700 = vunpack.c.l.b16 %v8805
    %v9701 = vunpack.c.l.b16 %v8806
    %v9702 = vunpack.c.l.b16 %v8807
    %v9703 = vunpack.c.l.b16 %v8808
    %v9704 = vunpack.c.l.b16 %v8809
    %v9705 = vunpack.c.l.b16 %v8810
    %v9706 = vunpack.c.l.b16 %v8811
    %v9707 = vunpack.c.l.b16 %v8812
    %v9708 = vunpack.c.l.b16 %v8813
    %v9709 = vunpack.c.l.b16 %v8814
    %v9710 = vunpack.c.l.b16 %v8815
    %v9711 = vunpack.c.l.b16 %v8816
    %v9712 = vunpack.c.l.b16 %v8817
    %v9713 = vunpack.c.l.b16 %v8818
    %v9714 = vunpack.c.l.b16 %v8819
    %v9715 = vunpack.c.l.b16 %v8820
    %v9716 = vunpack.c.l.b16 %v8821
    %v9717 = vunpack.c.l.b16 %v8822
    %v9718 = vunpack.c.l.b16 %v8823
    %v9719 = vunpack.c.l.b16 %v8824
    %v9720 = vunpack.c.l.b16 %v8825
    %v9721 = vunpack.c.l.b16 %v8826
    %v9722 = vunpack.c.l.b16 %v8827
    %v9723 = vunpack.c.l.b16 %v8828
    %v9724 = vunpack.c.l.b16 %v8829
    %v9725 = vunpack.c.l.b16 %v8830
    %v9726 = vunpack.c.l.b16 %v8831
    %v9727 = vunpack.c.l.b16 %v8832
    %v9728 = vunpack.c.l.b16 %v8833
    %v9729 = vunpack.c.l.b16 %v8834
    %v9730 = vunpack.c.l.b16 %v8835
    %v9731 = vunpack.c.l.b16 %v8836
    %v9732 = vunpack.c.l.b16 %v8837
    %v9733 = vunpack.c.l.b16 %v8838
    %v9734 = vunpack.c.l.b16 %v8839
    %v9735 = vunpack.c.l.b16 %v8840
    %v9736 = vunpack.c.l.b16 %v8841
    %v9737 = vunpack.c.l.b16 %v8842
    %v9738 = vunpack.c.l.b16 %v8843
    %v9739 = vunpack.c.l.b16 %v8844
    %v9740 = vunpack.c.l.b16 %v8845
    %v9741 = vunpack.c.l.b16 %v8846
    %v9742 = vunpack.c.l.b16 %v8847
    %v9743 = vunpack.c.l.b16 %v8848
    %v9744 = vunpack.c.l.b16 %v8849
    %v9745 = vunpack.c.l.b16 %v8850
    %v9746 = vunpack.c.l.b16 %v8851
    %v9747 = vunpack.c.l.b16 %v8852
    %v9748 = vunpack.c.l.b16 %v8853
    %v9749 = vunpack.c.l.b16 %v8854
    %v9750 = vunpack.c.l.b16 %v8855
    %v9751 = vunpack.c.l.b16 %v8856
    %v9752 = vunpack.c.l.b16 %v8857
    %v9753 = vunpack.c.l.b16 %v8858
    %v9754 = vunpack.c.l.b16 %v8859
    %v9755 = vunpack.c.l.b16 %v8860
    %v9756 = vunpack.c.l.b16 %v8861
    %v9757 = vunpack.c.l.b16 %v8862
    %v9758 = vunpack.c.l.b16 %v8863
    %v9759 = vunpack.c.l.b16 %v8864
    %v9760 = vunpack.c.l.b16 %v8865
    %v9761 = vunpack.c.l.b16 %v8866
    %v9762 = vunpack.c.l.b16 %v8867
    %v9763 = vunpack.c.l.b16 %v8868
    %v9764 = vunpack.c.l.b16 %v8869
    %v9765 = vunpack.c.l.b16 %v8870
    %v9766 = vunpack.c.l.b16 %v8871
    %v9767 = vunpack.c.l.b16 %v8872
    %v9768 = vunpack.c.l.b16 %v8873
    %v9769 = vunpack.c.l.b16 %v8874
    %v9770 = vunpack.c.l.b16 %v8875
    %v9771 = vunpack.c.l.b16 %v8876
    %v9772 = vunpack.c.l.b16 %v8877
    %v9773 = vunpack.c.l.b16 %v8878
    %v9774 = vunpack.c.l.b16 %v8879
    %v9775 = vunpack.c.l.b16 %v8880
    %v9776 = vunpack.c.l.b16 %v8881
    %v9777 = vunpack.c.l.b16 %v8882
    %v9778 = vunpack.c.l.b16 %v8883
    %v9779 = vunpack.c.l.b16 %v8884
    %v9780 = vunpack.c.l.b16 %v8885
    %v9781 = vunpack.c.l.b16 %v8886
    %v9782 = vunpack.c.l.b16 %v8887
    %v9783 = vunpack.c.l.b16 %v8888
    %v9784 = vunpack.c.l.b16 %v8889
    %v9785 = vunpack.c.l.b16 %v8890
    %v9786 = vunpack.c.l.b16 %v8891
    %v9787 = vunpack.c.l.b16 %v8892
    %v9788 = vunpack.c.l.b16 %v8893
    %v9789 = vunpack.c.l.b16 %v8894
    %v9790 = vunpack.c.l.b16 %v8895
    %v9791 = vunpack.c.l.b16 %v8896
    %v9792 = vunpack.c.l.b16 %v8897
    %v9793 = vunpack.c.l.b16 %v8898
    %v9794 = vunpack.c.l.b16 %v8899
    %v9795 = vunpack.c.l.b16 %v8900
    %v9796 = vunpack.c.l.b16 %v8901
    %v9797 = vunpack.c.l.b16 %v8902
    %v9798 = vunpack.c.l.b16 %v8903
    %v9799 = vunpack.c.l.b16 %v8904
    %v9800 = vunpack.c.l.b16 %v8905
    %v9801 = vunpack.c.l.b16 %v8906
    %v9802 = vunpack.c.l.b16 %v8907
    %v9803 = vunpack.c.l.b16 %v8908
    %v9804 = vunpack.c.l.b16 %v8909
    %v9805 = vunpack.c.l.b16 %v8910
    %v9806 = vunpack.c.l.b16 %v8911
    %v9807 = vunpack.c.l.b16 %v8912
    %v9808 = vunpack.c.l.b16 %v8913
    %v9809 = vunpack.c.l.b16 %v8914
    %v9810 = vunpack.c.l.b16 %v8915
    %v9811 = vunpack.c.l.b16 %v8916
    %v9812 = vunpack.c.l.b16 %v8917
    %v9813 = vunpack.c.l.b16 %v8918
    %v9814 = vunpack.c.l.b16 %v8919
    %v9815 = vunpack.c.l.b16 %v8920
    %v9816 = vunpack.c.l.b16 %v8921
    %v9817 = vunpack.c.l.b16 %v8922
    %v9818 = vunpack.c.l.b16 %v8923
    %v9819 = vunpack.c.l.b16 %v8924
    %v9820 = vunpack.c.l.b16 %v8925
    %v9821 = vunpack.c.l.b16 %v8926
    %v9822 = vunpack.c.l.b16 %v8927
    %v9823 = vunpack.c.l.b16 %v8928
    %v9824 = vunpack.c.l.b16 %v8929
    %v9825 = vunpack.c.l.b16 %v8930
    %v9826 = vunpack.c.l.b16 %v8931
    %v9827 = vunpack.c.l.b16 %v8932
    %v9828 = vunpack.c.l.b16 %v8933
    %v9829 = vunpack.c.l.b16 %v8934
    %v9830 = vunpack.c.l.b16 %v8935
    %v9831 = vunpack.c.l.b16 %v8936
    %v9832 = vunpack.c.l.b16 %v8937
    %v9833 = vunpack.c.l.b16 %v8938
    %v9834 = vunpack.c.l.b16 %v8939
    %v9835 = vunpack.c.l.b16 %v8940
    %v9836 = vunpack.c.l.b16 %v8941
    %v9837 = vunpack.c.l.b16 %v8942
    %v9838 = vunpack.c.l.b16 %v8943
    %v9839 = vunpack.c.l.b16 %v8944
    %v9840 = vunpack.c.l.b16 %v8945
    %v9841 = vunpack.c.l.b16 %v8946
    %v9842 = vunpack.c.l.b16 %v8947
    %v9843 = vunpack.c.l.b16 %v8948
    %v9844 = vunpack.c.l.b16 %v8949
    %v9845 = vunpack.c.l.b16 %v8950
    %v9846 = vunpack.c.l.b16 %v8951
    %v9847 = vunpack.c.l.b16 %v8952
    %v9848 = vunpack.c.l.b16 %v8953
    %v9849 = vunpack.c.l.b16 %v8954
    %v9850 = vunpack.c.l.b16 %v8955
    %v9851 = vunpack.c.l.b16 %v8956
    %v9852 = vunpack.c.l.b16 %v8957
    %v9853 = vunpack.c.l.b16 %v8958
    %v9854 = vunpack.c.l.b16 %v8959
    %v9855 = vunpack.c.l.b16 %v8960
    %v9856 = vunpack.c.l.b16 %v8961
    %v9857 = vunpack.c.l.b16 %v8962
    %v9858 = vunpack.c.l.b16 %v8963
    %v9859 = vunpack.c.l.b16 %v8964
    %v9860 = vunpack.c.l.b16 %v8965
    %v9861 = vunpack.c.l.b16 %v8966
    %v9862 = vunpack.c.l.b16 %v8967
    %v9863 = vunpack.c.l.b16 %v8968
    %v9864 = vunpack.c.l.b16 %v8969
    %v9865 = vunpack.c.l.b16 %v8970
    %v9866 = vunpack.c.l.b16 %v8971
    %v9867 = vunpack.c.l.b16 %v8972
    %v9868 = vunpack.c.l.b16 %v8973
    %v9869 = vunpack.c.l.b16 %v8974
    %v9870 = vunpack.c.l.b16 %v8975
    %v9871 = vunpack.c.l.b16 %v8976
    %v9872 = vunpack.c.l.b16 %v8977
    %v9873 = vunpack.c.l.b16 %v8978
    %v9874 = vunpack.c.l.b16 %v8979
    %v9875 = vunpack.c.l.b16 %v8980
    %v9876 = vunpack.c.l.b16 %v8981
    %v9877 = vunpack.c.l.b16 %v8982
    %v9878 = vunpack.c.l.b16 %v8983
    %v9879 = vunpack.c.l.b16 %v8984
    %v9880 = vunpack.c.l.b16 %v8985
    %v9881 = vunpack.c.l.b16 %v8986
    %v9882 = vunpack.c.l.b16 %v8987
    %v9883 = vunpack.c.l.b16 %v8988
    %v9884 = vunpack.c.l.b16 %v8989
    %v9885 = vunpack.c.l.b16 %v8990
    %v9886 = vunpack.c.l.b16 %v8991
    %v9887 = vunpack.c.l.b16 %v8992
    %v9888 = vpack.c.b16 %v9489, %v9488
    %v9889 = vpack.c.b16 %v9491, %v9490
    %v9890 = vpack.c.b16 %v9493, %v9492
    %v9891 = vpack.c.b16 %v9495, %v9494
    %v9892 = vpack.c.b16 %v9497, %v9496
    %v9893 = vpack.c.b16 %v9499, %v9498
    %v9894 = vpack.c.b16 %v9501, %v9500
    %v9895 = vpack.c.b16 %v9503, %v9502
    %v9896 = vpack.c.b16 %v9505, %v9504
    %v9897 = vpack.c.b16 %v9507, %v9506
    %v9898 = vpack.c.b16 %v9509, %v9508
    %v9899 = vpack.c.b16 %v9511, %v9510
    %v9900 = vpack.c.b16 %v9513, %v9512
    %v9901 = vpack.c.b16 %v9515, %v9514
    %v9902 = vpack.c.b16 %v9517, %v9516
    %v9903 = vpack.c.b16 %v9519, %v9518
    %v9904 = vpack.c.b16 %v9521, %v9520
    %v9905 = vpack.c.b16 %v9523, %v9522
    %v9906 = vpack.c.b16 %v9525, %v9524
    %v9907 = vpack.c.b16 %v9527, %v9526
    %v9908 = vpack.c.b16 %v9529, %v9528
    %v9909 = vpack.c.b16 %v9531, %v9530
    %v9910 = vpack.c.b16 %v9533, %v9532
    %v9911 = vpack.c.b16 %v9535, %v9534
    %v9912 = vpack.c.b16 %v9537, %v9536
    %v9913 = vpack.c.b16 %v9539, %v9538
    %v9914 = vpack.c.b16 %v9541, %v9540
    %v9915 = vpack.c.b16 %v9543, %v9542
    %v9916 = vpack.c.b16 %v9545, %v9544
    %v9917 = vpack.c.b16 %v9547, %v9546
    %v9918 = vpack.c.b16 %v9549, %v9548
    %v9919 = vpack.c.b16 %v9551, %v9550
    %v9920 = vpack.c.b16 %v9553, %v9552
    %v9921 = vpack.c.b16 %v9555, %v9554
    %v9922 = vpack.c.b16 %v9557, %v9556
    %v9923 = vpack.c.b16 %v9559, %v9558
    %v9924 = vpack.c.b16 %v9561, %v9560
    %v9925 = vpack.c.b16 %v9563, %v9562
    %v9926 = vpack.c.b16 %v9565, %v9564
    %v9927 = vpack.c.b16 %v9567, %v9566
    %v9928 = vpack.c.b16 %v9569, %v9568
    %v9929 = vpack.c.b16 %v9571, %v9570
    %v9930 = vpack.c.b16 %v9573, %v9572
    %v9931 = vpack.c.b16 %v9575, %v9574
    %v9932 = vpack.c.b16 %v9577, %v9576
    %v9933 = vpack.c.b16 %v9579, %v9578
    %v9934 = vpack.c.b16 %v9581, %v9580
    %v9935 = vpack.c.b16 %v9583, %v9582
    %v9936 = vpack.c.b16 %v9585, %v9584
    %v9937 = vpack.c.b16 %v9587, %v9586
    %v9938 = vpack.c.b16 %v9589, %v9588
    %v9939 = vpack.c.b16 %v9591, %v9590
    %v9940 = vpack.c.b16 %v9593, %v9592
    %v9941 = vpack.c.b16 %v9595, %v9594
    %v9942 = vpack.c.b16 %v9597, %v9596
    %v9943 = vpack.c.b16 %v9599, %v9598
    %v9944 = vpack.c.b16 %v9601, %v9600
    %v9945 = vpack.c.b16 %v9603, %v9602
    %v9946 = vpack.c.b16 %v9605, %v9604
    %v9947 = vpack.c.b16 %v9607, %v9606
    %v9948 = vpack.c.b16 %v9609, %v9608
    %v9949 = vpack.c.b16 %v9611, %v9610
    %v9950 = vpack.c.b16 %v9613, %v9612
    %v9951 = vpack.c.b16 %v9615, %v9614
    %v9952 = vpack.c.b16 %v9617, %v9616
    %v9953 = vpack.c.b16 %v9619, %v9618
    %v9954 = vpack.c.b16 %v9621, %v9620
    %v9955 = vpack.c.b16 %v9623, %v9622
    %v9956 = vpack.c.b16 %v9625, %v9624
    %v9957 = vpack.c.b16 %v9627, %v9626
    %v9958 = vpack.c.b16 %v9629, %v9628
    %v9959 = vpack.c.b16 %v9631, %v9630
    %v9960 = vpack.c.b16 %v9633, %v9632
    %v9961 = vpack.c.b16 %v9635, %v9634
    %v9962 = vpack.c.b16 %v9637, %v9636
    %v9963 = vpack.c.b16 %v9639, %v9638
    %v9964 = vpack.c.b16 %v9641, %v9640
    %v9965 = vpack.c.b16 %v9643, %v9642
    %v9966 = vpack.c.b16 %v9645, %v9644
    %v9967 = vpack.c.b16 %v9647, %v9646
    %v9968 = vpack.c.b16 %v9649, %v9648
    %v9969 = vpack.c.b16 %v9651, %v9650
    %v9970 = vpack.c.b16 %v9653, %v9652
    %v9971 = vpack.c.b16 %v9655, %v9654
    %v9972 = vpack.c.b16 %v9657, %v9656
    %v9973 = vpack.c.b16 %v9659, %v9658
    %v9974 = vpack.c.b16 %v9661, %v9660
    %v9975 = vpack.c.b16 %v9663, %v9662
    %v9976 = vpack.c.b16 %v9665, %v9664
    %v9977 = vpack.c.b16 %v9667, %v9666
    %v9978 = vpack.c.b16 %v9669, %v9668
    %v9979 = vpack.c.b16 %v9671, %v9670
    %v9980 = vpack.c.b16 %v9673, %v9672
    %v9981 = vpack.c.b16 %v9675, %v9674
    %v9982 = vpack.c.b16 %v9677, %v9676
    %v9983 = vpack.c.b16 %v9679, %v9678
    %v9984 = vpack.c.b16 %v9681, %v9680
    %v9985 = vpack.c.b16 %v9683, %v9682
    %v9986 = vpack.c.b16 %v9685, %v9684
    %v9987 = vpack.c.b16 %v9687, %v9686
    %v9988 = vpack.c.b16 %v9689, %v9688
    %v9989 = vpack.c.b16 %v9691, %v9690
    %v9990 = vpack.c.b16 %v9693, %v9692
    %v9991 = vpack.c.b16 %v9695, %v9694
    %v9992 = vpack.c.b16 %v9697, %v9696
    %v9993 = vpack.c.b16 %v9699, %v9698
    %v9994 = vpack.c.b16 %v9701, %v9700
    %v9995 = vpack.c.b16 %v9703, %v9702
    %v9996 = vpack.c.b16 %v9705, %v9704
    %v9997 = vpack.c.b16 %v9707, %v9706
    %v9998 = vpack.c.b16 %v9709, %v9708
    %v9999 = vpack.c.b16 %v9711, %v9710
    %v10000 = vpack.c.b16 %v9713, %v9712
    %v10001 = vpack.c.b16 %v9715, %v9714
    %v10002 = vpack.c.b16 %v9717, %v9716
    %v10003 = vpack.c.b16 %v9719, %v9718
    %v10004 = vpack.c.b16 %v9721, %v9720
    %v10005 = vpack.c.b16 %v9723, %v9722
    %v10006 = vpack.c.b16 %v9725, %v9724
    %v10007 = vpack.c.b16 %v9727, %v9726
    %v10008 = vpack.c.b16 %v9729, %v9728
    %v10009 = vpack.c.b16 %v9731, %v9730
    %v10010 = vpack.c.b16 %v9733, %v9732
    %v10011 = vpack.c.b16 %v9735, %v9734
    %v10012 = vpack.c.b16 %v9737, %v9736
    %v10013 = vpack.c.b16 %v9739, %v9738
    %v10014 = vpack.c.b16 %v9741, %v9740
    %v10015 = vpack.c.b16 %v9743, %v9742
    %v10016 = vpack.c.b16 %v9745, %v9744
    %v10017 = vpack.c.b16 %v9747, %v9746
    %v10018 = vpack.c.b16 %v9749, %v9748
    %v10019 = vpack.c.b16 %v9751, %v9750
    %v10020 = vpack.c.b16 %v9753, %v9752
    %v10021 = vpack.c.b16 %v9755, %v9754
    %v10022 = vpack.c.b16 %v9757, %v9756
    %v10023 = vpack.c.b16 %v9759, %v9758
    %v10024 = vpack.c.b16 %v9761, %v9760
    %v10025 = vpack.c.b16 %v9763, %v9762
    %v10026 = vpack.c.b16 %v9765, %v9764
    %v10027 = vpack.c.b16 %v9767, %v9766
    %v10028 = vpack.c.b16 %v9769, %v9768
    %v10029 = vpack.c.b16 %v9771, %v9770
    %v10030 = vpack.c.b16 %v9773, %v9772
    %v10031 = vpack.c.b16 %v9775, %v9774
    %v10032 = vpack.c.b16 %v9777, %v9776
    %v10033 = vpack.c.b16 %v9779, %v9778
    %v10034 = vpack.c.b16 %v9781, %v9780
    %v10035 = vpack.c.b16 %v9783, %v9782
    %v10036 = vpack.c.b16 %v9785, %v9784
    %v10037 = vpack.c.b16 %v9787, %v9786
    %v10038 = vpack.c.b16 %v9789, %v9788
    %v10039 = vpack.c.b16 %v9791, %v9790
    %v10040 = vpack.c.b16 %v9793, %v9792
    %v10041 = vpack.c.b16 %v9795, %v9794
    %v10042 = vpack.c.b16 %v9797, %v9796
    %v10043 = vpack.c.b16 %v9799, %v9798
    %v10044 = vpack.c.b16 %v9801, %v9800
    %v10045 = vpack.c.b16 %v9803, %v9802
    %v10046 = vpack.c.b16 %v9805, %v9804
    %v10047 = vpack.c.b16 %v9807, %v9806
    %v10048 = vpack.c.b16 %v9809, %v9808
    %v10049 = vpack.c.b16 %v9811, %v9810
    %v10050 = vpack.c.b16 %v9813, %v9812
    %v10051 = vpack.c.b16 %v9815, %v9814
    %v10052 = vpack.c.b16 %v9817, %v9816
    %v10053 = vpack.c.b16 %v9819, %v9818
    %v10054 = vpack.c.b16 %v9821, %v9820
    %v10055 = vpack.c.b16 %v9823, %v9822
    %v10056 = vpack.c.b16 %v9825, %v9824
    %v10057 = vpack.c.b16 %v9827, %v9826
    %v10058 = vpack.c.b16 %v9829, %v9828
    %v10059 = vpack.c.b16 %v9831, %v9830
    %v10060 = vpack.c.b16 %v9833, %v9832
    %v10061 = vpack.c.b16 %v9835, %v9834
    %v10062 = vpack.c.b16 %v9837, %v9836
    %v10063 = vpack.c.b16 %v9839, %v9838
    %v10064 = vpack.c.b16 %v9841, %v9840
    %v10065 = vpack.c.b16 %v9843, %v9842
    %v10066 = vpack.c.b16 %v9845, %v9844
    %v10067 = vpack.c.b16 %v9847, %v9846
    %v10068 = vpack.c.b16 %v9849, %v9848
    %v10069 = vpack.c.b16 %v9851, %v9850
    %v10070 = vpack.c.b16 %v9853, %v9852
    %v10071 = vpack.c.b16 %v9855, %v9854
    %v10072 = vpack.c.b16 %v9857, %v9856
    %v10073 = vpack.c.b16 %v9859, %v9858
    %v10074 = vpack.c.b16 %v9861, %v9860
    %v10075 = vpack.c.b16 %v9863, %v9862
    %v10076 = vpack.c.b16 %v9865, %v9864
    %v10077 = vpack.c.b16 %v9867, %v9866
    %v10078 = vpack.c.b16 %v9869, %v9868
    %v10079 = vpack.c.b16 %v9871, %v9870
    %v10080 = vpack.c.b16 %v9873, %v9872
    %v10081 = vpack.c.b16 %v9875, %v9874
    %v10082 = vpack.c.b16 %v9877, %v9876
    %v10083 = vpack.c.b16 %v9879, %v9878
    %v10084 = vpack.c.b16 %v9881, %v9880
    %v10085 = vpack.c.b16 %v9883, %v9882
    %v10086 = vpack.c.b16 %v9885, %v9884
    %v10087 = vpack.c.b16 %v9887, %v9886
    %10288 = vmatprep.subr.bf16.mxu0 0
    %10289 = vmatpush1.bf16.msra.mxu0 %v9895
    %10290 = vmatprep.subr.bf16.mxu0 0
    %10291 = vmatpush1.bf16.msra.mxu0 %v9894
    %10292 = vmatprep.subr.bf16.mxu0 0
    %10293 = vmatpush1.bf16.msra.mxu0 %v9893
    %10294 = vmatprep.subr.bf16.mxu0 0
    %10295 = vmatpush1.bf16.msra.mxu0 %v9892
    %10296 = vmatprep.subr.bf16.mxu0 0
    %10297 = vmatpush1.bf16.msra.mxu0 %v9891
    %10298 = vmatprep.subr.bf16.mxu0 0
    %10299 = vmatpush1.bf16.msra.mxu0 %v9890
    %10300 = vmatprep.subr.bf16.mxu0 0
    %10301 = vmatpush1.bf16.msra.mxu0 %v9889
    %10302 = vmatprep.subr.bf16.mxu0 0
    %10303 = vmatpush1.bf16.msra.mxu0 %v9888
    %10304 = vmatprep.subr.bf16.mxu0 0
    %10305 = vmatpush2.bf16.msra.mxu0 %v9903
    %10306 = vmatprep.subr.bf16.mxu0 0
    %10307 = vmatpush2.bf16.msra.mxu0 %v9902
    %10308 = vmatprep.subr.bf16.mxu0 0
    %10309 = vmatpush2.bf16.msra.mxu0 %v9901
    %10310 = vmatprep.subr.bf16.mxu0 0
    %10311 = vmatpush2.bf16.msra.mxu0 %v9900
    %10312 = vmatprep.subr.bf16.mxu0 0
    %10313 = vmatpush2.bf16.msra.mxu0 %v9899
    %10314 = vmatprep.subr.bf16.mxu0 0
    %10315 = vmatpush2.bf16.msra.mxu0 %v9898
    %10316 = vmatprep.subr.bf16.mxu0 0
    %10317 = vmatpush2.bf16.msra.mxu0 %v9897
    %10318 = vmatprep.subr.bf16.mxu0 0
    %10319 = vmatpush2.bf16.msra.mxu0 %v9896
    %10320 = vmatprep.mubr.bf16.mxu0 %v9039
    %10321 = vmatmul.mubr.bf16.gmra.mxu0 %v9038
    %v10322 = vpop.f32.mrf.mxu0
    %v10323 = vadd.f32 %v8998, %v10322
    %v10324 = vpop.f32.mrf.mxu0
    %v10325 = vpop.f32.mrf.mxu0
    %v10326 = vpop.f32.mrf.mxu0
    %10327 = vdwg.mxu0
    %10328 = vmatprep.subr.bf16.mxu0 0
    %10329 = vmatpush1.bf16.msra.mxu0 %v9911
    %10330 = vmatprep.subr.bf16.mxu0 0
    %10331 = vmatpush1.bf16.msra.mxu0 %v9910
    %10332 = vmatprep.subr.bf16.mxu0 0
    %10333 = vmatpush1.bf16.msra.mxu0 %v9909
    %10334 = vmatprep.subr.bf16.mxu0 0
    %10335 = vmatpush1.bf16.msra.mxu0 %v9908
    %10336 = vmatprep.subr.bf16.mxu0 0
    %10337 = vmatpush1.bf16.msra.mxu0 %v9907
    %10338 = vmatprep.subr.bf16.mxu0 0
    %10339 = vmatpush1.bf16.msra.mxu0 %v9906
    %10340 = vmatprep.subr.bf16.mxu0 0
    %10341 = vmatpush1.bf16.msra.mxu0 %v9905
    %10342 = vmatprep.subr.bf16.mxu0 0
    %10343 = vmatpush1.bf16.msra.mxu0 %v9904
    %10344 = vmatprep.subr.bf16.mxu0 0
    %10345 = vmatpush2.bf16.msra.mxu0 %v9919
    %10346 = vmatprep.subr.bf16.mxu0 0
    %10347 = vmatpush2.bf16.msra.mxu0 %v9918
    %10348 = vmatprep.subr.bf16.mxu0 0
    %10349 = vmatpush2.bf16.msra.mxu0 %v9917
    %10350 = vmatprep.subr.bf16.mxu0 0
    %10351 = vmatpush2.bf16.msra.mxu0 %v9916
    %10352 = vmatprep.subr.bf16.mxu0 0
    %10353 = vmatpush2.bf16.msra.mxu0 %v9915
    %10354 = vmatprep.subr.bf16.mxu0 0
    %10355 = vmatpush2.bf16.msra.mxu0 %v9914
    %10356 = vmatprep.subr.bf16.mxu0 0
    %10357 = vmatpush2.bf16.msra.mxu0 %v9913
    %10358 = vmatprep.subr.bf16.mxu0 0
    %10359 = vmatpush2.bf16.msra.mxu0 %v9912
    %10360 = vmatprep.mubr.bf16.mxu0 %v9041
    %10361 = vmatmul.mubr.bf16.gmra.mxu0 %v9040
    %v10362 = vpop.f32.mrf.mxu0
    %v10363 = vadd.f32 %v10323, %v10362
    %v10364 = vpop.f32.mrf.mxu0
    %v10365 = vpop.f32.mrf.mxu0
    %v10366 = vpop.f32.mrf.mxu0
    %10367 = vdwg.mxu0
    %10368 = vmatprep.subr.bf16.mxu0 0
    %10369 = vmatpush1.bf16.msra.mxu0 %v9927
    %10370 = vmatprep.subr.bf16.mxu0 0
    %10371 = vmatpush1.bf16.msra.mxu0 %v9926
    %10372 = vmatprep.subr.bf16.mxu0 0
    %10373 = vmatpush1.bf16.msra.mxu0 %v9925
    %10374 = vmatprep.subr.bf16.mxu0 0
    %10375 = vmatpush1.bf16.msra.mxu0 %v9924
    %10376 = vmatprep.subr.bf16.mxu0 0
    %10377 = vmatpush1.bf16.msra.mxu0 %v9923
    %10378 = vmatprep.subr.bf16.mxu0 0
    %10379 = vmatpush1.bf16.msra.mxu0 %v9922
    %10380 = vmatprep.subr.bf16.mxu0 0
    %10381 = vmatpush1.bf16.msra.mxu0 %v9921
    %10382 = vmatprep.subr.bf16.mxu0 0
    %10383 = vmatpush1.bf16.msra.mxu0 %v9920
    %10384 = vmatprep.subr.bf16.mxu0 0
    %10385 = vmatpush2.bf16.msra.mxu0 %v9935
    %10386 = vmatprep.subr.bf16.mxu0 0
    %10387 = vmatpush2.bf16.msra.mxu0 %v9934
    %10388 = vmatprep.subr.bf16.mxu0 0
    %10389 = vmatpush2.bf16.msra.mxu0 %v9933
    %10390 = vmatprep.subr.bf16.mxu0 0
    %10391 = vmatpush2.bf16.msra.mxu0 %v9932
    %10392 = vmatprep.subr.bf16.mxu0 0
    %10393 = vmatpush2.bf16.msra.mxu0 %v9931
    %10394 = vmatprep.subr.bf16.mxu0 0
    %10395 = vmatpush2.bf16.msra.mxu0 %v9930
    %10396 = vmatprep.subr.bf16.mxu0 0
    %10397 = vmatpush2.bf16.msra.mxu0 %v9929
    %10398 = vmatprep.subr.bf16.mxu0 0
    %10399 = vmatpush2.bf16.msra.mxu0 %v9928
    %10400 = vmatprep.mubr.bf16.mxu0 %v9043
    %10401 = vmatmul.mubr.bf16.gmra.mxu0 %v9042
    %v10402 = vpop.f32.mrf.mxu0
    %v10403 = vadd.f32 %v10363, %v10402
    %v10404 = vpop.f32.mrf.mxu0
    %v10405 = vpop.f32.mrf.mxu0
    %v10406 = vpop.f32.mrf.mxu0
    %10407 = vdwg.mxu0
    %10408 = vmatprep.subr.bf16.mxu0 0
    %10409 = vmatpush1.bf16.msra.mxu0 %v9943
    %10410 = vmatprep.subr.bf16.mxu0 0
    %10411 = vmatpush1.bf16.msra.mxu0 %v9942
    %10412 = vmatprep.subr.bf16.mxu0 0
    %10413 = vmatpush1.bf16.msra.mxu0 %v9941
    %10414 = vmatprep.subr.bf16.mxu0 0
    %10415 = vmatpush1.bf16.msra.mxu0 %v9940
    %10416 = vmatprep.subr.bf16.mxu0 0
    %10417 = vmatpush1.bf16.msra.mxu0 %v9939
    %10418 = vmatprep.subr.bf16.mxu0 0
    %10419 = vmatpush1.bf16.msra.mxu0 %v9938
    %10420 = vmatprep.subr.bf16.mxu0 0
    %10421 = vmatpush1.bf16.msra.mxu0 %v9937
    %10422 = vmatprep.subr.bf16.mxu0 0
    %10423 = vmatpush1.bf16.msra.mxu0 %v9936
    %10424 = vmatprep.subr.bf16.mxu0 0
    %10425 = vmatpush2.bf16.msra.mxu0 %v9951
    %10426 = vmatprep.subr.bf16.mxu0 0
    %10427 = vmatpush2.bf16.msra.mxu0 %v9950
    %10428 = vmatprep.subr.bf16.mxu0 0
    %10429 = vmatpush2.bf16.msra.mxu0 %v9949
    %10430 = vmatprep.subr.bf16.mxu0 0
    %10431 = vmatpush2.bf16.msra.mxu0 %v9948
    %10432 = vmatprep.subr.bf16.mxu0 0
    %10433 = vmatpush2.bf16.msra.mxu0 %v9947
    %10434 = vmatprep.subr.bf16.mxu0 0
    %10435 = vmatpush2.bf16.msra.mxu0 %v9946
    %10436 = vmatprep.subr.bf16.mxu0 0
    %10437 = vmatpush2.bf16.msra.mxu0 %v9945
    %10438 = vmatprep.subr.bf16.mxu0 0
    %10439 = vmatpush2.bf16.msra.mxu0 %v9944
    %10440 = vmatprep.mubr.bf16.mxu0 %v9045
    %10441 = vmatmul.mubr.bf16.gmra.mxu0 %v9044
    %v10442 = vpop.f32.mrf.mxu0
    %v10443 = vadd.f32 %v10403, %v10442
    %v10444 = vpop.f32.mrf.mxu0
    %v10445 = vpop.f32.mrf.mxu0
    %v10446 = vpop.f32.mrf.mxu0
    %10447 = vdwg.mxu0
    %10448 = vmatprep.subr.bf16.mxu0 0
    %10449 = vmatpush1.bf16.msra.mxu0 %v9959
    %10450 = vmatprep.subr.bf16.mxu0 0
    %10451 = vmatpush1.bf16.msra.mxu0 %v9958
    %10452 = vmatprep.subr.bf16.mxu0 0
    %10453 = vmatpush1.bf16.msra.mxu0 %v9957
    %10454 = vmatprep.subr.bf16.mxu0 0
    %10455 = vmatpush1.bf16.msra.mxu0 %v9956
    %10456 = vmatprep.subr.bf16.mxu0 0
    %10457 = vmatpush1.bf16.msra.mxu0 %v9955
    %10458 = vmatprep.subr.bf16.mxu0 0
    %10459 = vmatpush1.bf16.msra.mxu0 %v9954
    %10460 = vmatprep.subr.bf16.mxu0 0
    %10461 = vmatpush1.bf16.msra.mxu0 %v9953
    %10462 = vmatprep.subr.bf16.mxu0 0
    %10463 = vmatpush1.bf16.msra.mxu0 %v9952
    %10464 = vmatprep.subr.bf16.mxu0 0
    %10465 = vmatpush2.bf16.msra.mxu0 %v9967
    %10466 = vmatprep.subr.bf16.mxu0 0
    %10467 = vmatpush2.bf16.msra.mxu0 %v9966
    %10468 = vmatprep.subr.bf16.mxu0 0
    %10469 = vmatpush2.bf16.msra.mxu0 %v9965
    %10470 = vmatprep.subr.bf16.mxu0 0
    %10471 = vmatpush2.bf16.msra.mxu0 %v9964
    %10472 = vmatprep.subr.bf16.mxu0 0
    %10473 = vmatpush2.bf16.msra.mxu0 %v9963
    %10474 = vmatprep.subr.bf16.mxu0 0
    %10475 = vmatpush2.bf16.msra.mxu0 %v9962
    %10476 = vmatprep.subr.bf16.mxu0 0
    %10477 = vmatpush2.bf16.msra.mxu0 %v9961
    %10478 = vmatprep.subr.bf16.mxu0 0
    %10479 = vmatpush2.bf16.msra.mxu0 %v9960
    %10480 = vmatprep.mubr.bf16.mxu0 %v9047
    %10481 = vmatmul.mubr.bf16.gmra.mxu0 %v9046
    %v10482 = vpop.f32.mrf.mxu0
    %v10483 = vadd.f32 %v10443, %v10482
    %v10484 = vpop.f32.mrf.mxu0
    %v10485 = vpop.f32.mrf.mxu0
    %v10486 = vpop.f32.mrf.mxu0
    %10487 = vdwg.mxu0
    %10488 = vmatprep.subr.bf16.mxu0 0
    %10489 = vmatpush1.bf16.msra.mxu0 %v9975
    %10490 = vmatprep.subr.bf16.mxu0 0
    %10491 = vmatpush1.bf16.msra.mxu0 %v9974
    %10492 = vmatprep.subr.bf16.mxu0 0
    %10493 = vmatpush1.bf16.msra.mxu0 %v9973
    %10494 = vmatprep.subr.bf16.mxu0 0
    %10495 = vmatpush1.bf16.msra.mxu0 %v9972
    %10496 = vmatprep.subr.bf16.mxu0 0
    %10497 = vmatpush1.bf16.msra.mxu0 %v9971
    %10498 = vmatprep.subr.bf16.mxu0 0
    %10499 = vmatpush1.bf16.msra.mxu0 %v9970
    %10500 = vmatprep.subr.bf16.mxu0 0
    %10501 = vmatpush1.bf16.msra.mxu0 %v9969
    %10502 = vmatprep.subr.bf16.mxu0 0
    %10503 = vmatpush1.bf16.msra.mxu0 %v9968
    %10504 = vmatprep.subr.bf16.mxu0 0
    %10505 = vmatpush2.bf16.msra.mxu0 %v9983
    %10506 = vmatprep.subr.bf16.mxu0 0
    %10507 = vmatpush2.bf16.msra.mxu0 %v9982
    %10508 = vmatprep.subr.bf16.mxu0 0
    %10509 = vmatpush2.bf16.msra.mxu0 %v9981
    %10510 = vmatprep.subr.bf16.mxu0 0
    %10511 = vmatpush2.bf16.msra.mxu0 %v9980
    %10512 = vmatprep.subr.bf16.mxu0 0
    %10513 = vmatpush2.bf16.msra.mxu0 %v9979
    %10514 = vmatprep.subr.bf16.mxu0 0
    %10515 = vmatpush2.bf16.msra.mxu0 %v9978
    %10516 = vmatprep.subr.bf16.mxu0 0
    %10517 = vmatpush2.bf16.msra.mxu0 %v9977
    %10518 = vmatprep.subr.bf16.mxu0 0
    %10519 = vmatpush2.bf16.msra.mxu0 %v9976
    %10520 = vmatprep.mubr.bf16.mxu0 %v9049
    %10521 = vmatmul.mubr.bf16.gmra.mxu0 %v9048
    %v10522 = vpop.f32.mrf.mxu0
    %v10523 = vadd.f32 %v10483, %v10522
    %v10524 = vpop.f32.mrf.mxu0
    %v10525 = vpop.f32.mrf.mxu0
    %v10526 = vpop.f32.mrf.mxu0
    %10527 = vdwg.mxu0
    %10528 = vmatprep.subr.bf16.mxu0 0
    %10529 = vmatpush1.bf16.msra.mxu0 %v9991
    %10530 = vmatprep.subr.bf16.mxu0 0
    %10531 = vmatpush1.bf16.msra.mxu0 %v9990
    %10532 = vmatprep.subr.bf16.mxu0 0
    %10533 = vmatpush1.bf16.msra.mxu0 %v9989
    %10534 = vmatprep.subr.bf16.mxu0 0
    %10535 = vmatpush1.bf16.msra.mxu0 %v9988
    %10536 = vmatprep.subr.bf16.mxu0 0
    %10537 = vmatpush1.bf16.msra.mxu0 %v9987
    %10538 = vmatprep.subr.bf16.mxu0 0
    %10539 = vmatpush1.bf16.msra.mxu0 %v9986
    %10540 = vmatprep.subr.bf16.mxu0 0
    %10541 = vmatpush1.bf16.msra.mxu0 %v9985
    %10542 = vmatprep.subr.bf16.mxu0 0
    %10543 = vmatpush1.bf16.msra.mxu0 %v9984
    %10544 = vmatprep.subr.bf16.mxu0 0
    %10545 = vmatpush2.bf16.msra.mxu0 %v9999
    %10546 = vmatprep.subr.bf16.mxu0 0
    %10547 = vmatpush2.bf16.msra.mxu0 %v9998
    %10548 = vmatprep.subr.bf16.mxu0 0
    %10549 = vmatpush2.bf16.msra.mxu0 %v9997
    %10550 = vmatprep.subr.bf16.mxu0 0
    %10551 = vmatpush2.bf16.msra.mxu0 %v9996
    %10552 = vmatprep.subr.bf16.mxu0 0
    %10553 = vmatpush2.bf16.msra.mxu0 %v9995
    %10554 = vmatprep.subr.bf16.mxu0 0
    %10555 = vmatpush2.bf16.msra.mxu0 %v9994
    %10556 = vmatprep.subr.bf16.mxu0 0
    %10557 = vmatpush2.bf16.msra.mxu0 %v9993
    %10558 = vmatprep.subr.bf16.mxu0 0
    %10559 = vmatpush2.bf16.msra.mxu0 %v9992
    %10560 = vmatprep.mubr.bf16.mxu0 %v9051
    %10561 = vmatmul.mubr.bf16.gmra.mxu0 %v9050
    %v10562 = vpop.f32.mrf.mxu0
    %v10563 = vadd.f32 %v10523, %v10562
    %v10564 = vpop.f32.mrf.mxu0
    %v10565 = vpop.f32.mrf.mxu0
    %v10566 = vpop.f32.mrf.mxu0
    %10567 = vdwg.mxu0
    %10568 = vmatprep.subr.bf16.mxu0 0
    %10569 = vmatpush1.bf16.msra.mxu0 %v10007
    %10570 = vmatprep.subr.bf16.mxu0 0
    %10571 = vmatpush1.bf16.msra.mxu0 %v10006
    %10572 = vmatprep.subr.bf16.mxu0 0
    %10573 = vmatpush1.bf16.msra.mxu0 %v10005
    %10574 = vmatprep.subr.bf16.mxu0 0
    %10575 = vmatpush1.bf16.msra.mxu0 %v10004
    %10576 = vmatprep.subr.bf16.mxu0 0
    %10577 = vmatpush1.bf16.msra.mxu0 %v10003
    %10578 = vmatprep.subr.bf16.mxu0 0
    %10579 = vmatpush1.bf16.msra.mxu0 %v10002
    %10580 = vmatprep.subr.bf16.mxu0 0
    %10581 = vmatpush1.bf16.msra.mxu0 %v10001
    %10582 = vmatprep.subr.bf16.mxu0 0
    %10583 = vmatpush1.bf16.msra.mxu0 %v10000
    %10584 = vmatprep.subr.bf16.mxu0 0
    %10585 = vmatpush2.bf16.msra.mxu0 %v10015
    %10586 = vmatprep.subr.bf16.mxu0 0
    %10587 = vmatpush2.bf16.msra.mxu0 %v10014
    %10588 = vmatprep.subr.bf16.mxu0 0
    %10589 = vmatpush2.bf16.msra.mxu0 %v10013
    %10590 = vmatprep.subr.bf16.mxu0 0
    %10591 = vmatpush2.bf16.msra.mxu0 %v10012
    %10592 = vmatprep.subr.bf16.mxu0 0
    %10593 = vmatpush2.bf16.msra.mxu0 %v10011
    %10594 = vmatprep.subr.bf16.mxu0 0
    %10595 = vmatpush2.bf16.msra.mxu0 %v10010
    %10596 = vmatprep.subr.bf16.mxu0 0
    %10597 = vmatpush2.bf16.msra.mxu0 %v10009
    %10598 = vmatprep.subr.bf16.mxu0 0
    %10599 = vmatpush2.bf16.msra.mxu0 %v10008
    %10600 = vmatprep.mubr.bf16.mxu0 %v9053
    %10601 = vmatmul.mubr.bf16.gmra.mxu0 %v9052
    %v10602 = vpop.f32.mrf.mxu0
    %v10603 = vadd.f32 %v10563, %v10602
    %v10604 = vpop.f32.mrf.mxu0
    %v10605 = vpop.f32.mrf.mxu0
    %v10606 = vpop.f32.mrf.mxu0
    %10607 = vdwg.mxu0
    %10608 = vmatprep.subr.bf16.mxu0 0
    %10609 = vmatpush1.bf16.msra.mxu0 %v10023
    %10610 = vmatprep.subr.bf16.mxu0 0
    %10611 = vmatpush1.bf16.msra.mxu0 %v10022
    %10612 = vmatprep.subr.bf16.mxu0 0
    %10613 = vmatpush1.bf16.msra.mxu0 %v10021
    %10614 = vmatprep.subr.bf16.mxu0 0
    %10615 = vmatpush1.bf16.msra.mxu0 %v10020
    %10616 = vmatprep.subr.bf16.mxu0 0
    %10617 = vmatpush1.bf16.msra.mxu0 %v10019
    %10618 = vmatprep.subr.bf16.mxu0 0
    %10619 = vmatpush1.bf16.msra.mxu0 %v10018
    %10620 = vmatprep.subr.bf16.mxu0 0
    %10621 = vmatpush1.bf16.msra.mxu0 %v10017
    %10622 = vmatprep.subr.bf16.mxu0 0
    %10623 = vmatpush1.bf16.msra.mxu0 %v10016
    %10624 = vmatprep.subr.bf16.mxu0 0
    %10625 = vmatpush2.bf16.msra.mxu0 %v10031
    %10626 = vmatprep.subr.bf16.mxu0 0
    %10627 = vmatpush2.bf16.msra.mxu0 %v10030
    %10628 = vmatprep.subr.bf16.mxu0 0
    %10629 = vmatpush2.bf16.msra.mxu0 %v10029
    %10630 = vmatprep.subr.bf16.mxu0 0
    %10631 = vmatpush2.bf16.msra.mxu0 %v10028
    %10632 = vmatprep.subr.bf16.mxu0 0
    %10633 = vmatpush2.bf16.msra.mxu0 %v10027
    %10634 = vmatprep.subr.bf16.mxu0 0
    %10635 = vmatpush2.bf16.msra.mxu0 %v10026
    %10636 = vmatprep.subr.bf16.mxu0 0
    %10637 = vmatpush2.bf16.msra.mxu0 %v10025
    %10638 = vmatprep.subr.bf16.mxu0 0
    %10639 = vmatpush2.bf16.msra.mxu0 %v10024
    %10640 = vmatprep.mubr.bf16.mxu0 %v9055
    %10641 = vmatmul.mubr.bf16.gmra.mxu0 %v9054
    %v10642 = vpop.f32.mrf.mxu0
    %v10643 = vadd.f32 %v10603, %v10642
    %v10644 = vpop.f32.mrf.mxu0
    %v10645 = vpop.f32.mrf.mxu0
    %v10646 = vpop.f32.mrf.mxu0
    %10647 = vdwg.mxu0
    %10648 = vmatprep.subr.bf16.mxu0 0
    %10649 = vmatpush1.bf16.msra.mxu0 %v10039
    %10650 = vmatprep.subr.bf16.mxu0 0
    %10651 = vmatpush1.bf16.msra.mxu0 %v10038
    %10652 = vmatprep.subr.bf16.mxu0 0
    %10653 = vmatpush1.bf16.msra.mxu0 %v10037
    %10654 = vmatprep.subr.bf16.mxu0 0
    %10655 = vmatpush1.bf16.msra.mxu0 %v10036
    %10656 = vmatprep.subr.bf16.mxu0 0
    %10657 = vmatpush1.bf16.msra.mxu0 %v10035
    %10658 = vmatprep.subr.bf16.mxu0 0
    %10659 = vmatpush1.bf16.msra.mxu0 %v10034
    %10660 = vmatprep.subr.bf16.mxu0 0
    %10661 = vmatpush1.bf16.msra.mxu0 %v10033
    %10662 = vmatprep.subr.bf16.mxu0 0
    %10663 = vmatpush1.bf16.msra.mxu0 %v10032
    %10664 = vmatprep.subr.bf16.mxu0 0
    %10665 = vmatpush2.bf16.msra.mxu0 %v10047
    %10666 = vmatprep.subr.bf16.mxu0 0
    %10667 = vmatpush2.bf16.msra.mxu0 %v10046
    %10668 = vmatprep.subr.bf16.mxu0 0
    %10669 = vmatpush2.bf16.msra.mxu0 %v10045
    %10670 = vmatprep.subr.bf16.mxu0 0
    %10671 = vmatpush2.bf16.msra.mxu0 %v10044
    %10672 = vmatprep.subr.bf16.mxu0 0
    %10673 = vmatpush2.bf16.msra.mxu0 %v10043
    %10674 = vmatprep.subr.bf16.mxu0 0
    %10675 = vmatpush2.bf16.msra.mxu0 %v10042
    %10676 = vmatprep.subr.bf16.mxu0 0
    %10677 = vmatpush2.bf16.msra.mxu0 %v10041
    %10678 = vmatprep.subr.bf16.mxu0 0
    %10679 = vmatpush2.bf16.msra.mxu0 %v10040
    %10680 = vmatprep.mubr.bf16.mxu0 %v9057
    %10681 = vmatmul.mubr.bf16.gmra.mxu0 %v9056
    %v10682 = vpop.f32.mrf.mxu0
    %v10683 = vadd.f32 %v10643, %v10682
    %v10684 = vpop.f32.mrf.mxu0
    %v10685 = vpop.f32.mrf.mxu0
    %v10686 = vpop.f32.mrf.mxu0
    %10687 = vdwg.mxu0
    %10688 = vmatprep.subr.bf16.mxu0 0
    %10689 = vmatpush1.bf16.msra.mxu0 %v10055
    %10690 = vmatprep.subr.bf16.mxu0 0
    %10691 = vmatpush1.bf16.msra.mxu0 %v10054
    %10692 = vmatprep.subr.bf16.mxu0 0
    %10693 = vmatpush1.bf16.msra.mxu0 %v10053
    %10694 = vmatprep.subr.bf16.mxu0 0
    %10695 = vmatpush1.bf16.msra.mxu0 %v10052
    %10696 = vmatprep.subr.bf16.mxu0 0
    %10697 = vmatpush1.bf16.msra.mxu0 %v10051
    %10698 = vmatprep.subr.bf16.mxu0 0
    %10699 = vmatpush1.bf16.msra.mxu0 %v10050
    %10700 = vmatprep.subr.bf16.mxu0 0
    %10701 = vmatpush1.bf16.msra.mxu0 %v10049
    %10702 = vmatprep.subr.bf16.mxu0 0
    %10703 = vmatpush1.bf16.msra.mxu0 %v10048
    %10704 = vmatprep.subr.bf16.mxu0 0
    %10705 = vmatpush2.bf16.msra.mxu0 %v10063
    %10706 = vmatprep.subr.bf16.mxu0 0
    %10707 = vmatpush2.bf16.msra.mxu0 %v10062
    %10708 = vmatprep.subr.bf16.mxu0 0
    %10709 = vmatpush2.bf16.msra.mxu0 %v10061
    %10710 = vmatprep.subr.bf16.mxu0 0
    %10711 = vmatpush2.bf16.msra.mxu0 %v10060
    %10712 = vmatprep.subr.bf16.mxu0 0
    %10713 = vmatpush2.bf16.msra.mxu0 %v10059
    %10714 = vmatprep.subr.bf16.mxu0 0
    %10715 = vmatpush2.bf16.msra.mxu0 %v10058
    %10716 = vmatprep.subr.bf16.mxu0 0
    %10717 = vmatpush2.bf16.msra.mxu0 %v10057
    %10718 = vmatprep.subr.bf16.mxu0 0
    %10719 = vmatpush2.bf16.msra.mxu0 %v10056
    %10720 = vmatprep.mubr.bf16.mxu0 %v9059
    %10721 = vmatmul.mubr.bf16.gmra.mxu0 %v9058
    %v10722 = vpop.f32.mrf.mxu0
    %v10723 = vadd.f32 %v10683, %v10722
    %v10724 = vpop.f32.mrf.mxu0
    %v10725 = vpop.f32.mrf.mxu0
    %v10726 = vpop.f32.mrf.mxu0
    %10727 = vdwg.mxu0
    %10728 = vmatprep.subr.bf16.mxu0 0
    %10729 = vmatpush1.bf16.msra.mxu0 %v10071
    %10730 = vmatprep.subr.bf16.mxu0 0
    %10731 = vmatpush1.bf16.msra.mxu0 %v10070
    %10732 = vmatprep.subr.bf16.mxu0 0
    %10733 = vmatpush1.bf16.msra.mxu0 %v10069
    %10734 = vmatprep.subr.bf16.mxu0 0
    %10735 = vmatpush1.bf16.msra.mxu0 %v10068
    %10736 = vmatprep.subr.bf16.mxu0 0
    %10737 = vmatpush1.bf16.msra.mxu0 %v10067
    %10738 = vmatprep.subr.bf16.mxu0 0
    %10739 = vmatpush1.bf16.msra.mxu0 %v10066
    %10740 = vmatprep.subr.bf16.mxu0 0
    %10741 = vmatpush1.bf16.msra.mxu0 %v10065
    %10742 = vmatprep.subr.bf16.mxu0 0
    %10743 = vmatpush1.bf16.msra.mxu0 %v10064
    %10744 = vmatprep.subr.bf16.mxu0 0
    %10745 = vmatpush2.bf16.msra.mxu0 %v10079
    %10746 = vmatprep.subr.bf16.mxu0 0
    %10747 = vmatpush2.bf16.msra.mxu0 %v10078
    %10748 = vmatprep.subr.bf16.mxu0 0
    %10749 = vmatpush2.bf16.msra.mxu0 %v10077
    %10750 = vmatprep.subr.bf16.mxu0 0
    %10751 = vmatpush2.bf16.msra.mxu0 %v10076
    %10752 = vmatprep.subr.bf16.mxu0 0
    %10753 = vmatpush2.bf16.msra.mxu0 %v10075
    %10754 = vmatprep.subr.bf16.mxu0 0
    %10755 = vmatpush2.bf16.msra.mxu0 %v10074
    %10756 = vmatprep.subr.bf16.mxu0 0
    %10757 = vmatpush2.bf16.msra.mxu0 %v10073
    %10758 = vmatprep.subr.bf16.mxu0 0
    %10759 = vmatpush2.bf16.msra.mxu0 %v10072
    %10760 = vmatprep.mubr.bf16.mxu0 %v9061
    %10761 = vmatmul.mubr.bf16.gmra.mxu0 %v9060
    %v10762 = vpop.f32.mrf.mxu0
    %v10763 = vadd.f32 %v10723, %v10762
    %v10764 = vpop.f32.mrf.mxu0
    %v10765 = vpop.f32.mrf.mxu0
    %v10766 = vpop.f32.mrf.mxu0
    %10767 = vdwg.mxu0
    %10768 = vmatprep.subr.bf16.mxu0 0
    %10769 = vmatpush1.bf16.msra.mxu0 %v10087
    %10770 = vmatprep.subr.bf16.mxu0 0
    %10771 = vmatpush1.bf16.msra.mxu0 %v10086
    %10772 = vmatprep.subr.bf16.mxu0 0
    %10773 = vmatpush1.bf16.msra.mxu0 %v10085
    %10774 = vmatprep.subr.bf16.mxu0 0
    %10775 = vmatpush1.bf16.msra.mxu0 %v10084
    %10776 = vmatprep.subr.bf16.mxu0 0
    %10777 = vmatpush1.bf16.msra.mxu0 %v10083
    %10778 = vmatprep.subr.bf16.mxu0 0
    %10779 = vmatpush1.bf16.msra.mxu0 %v10082
    %10780 = vmatprep.subr.bf16.mxu0 0
    %10781 = vmatpush1.bf16.msra.mxu0 %v10081
    %10782 = vmatprep.subr.bf16.mxu0 0
    %10783 = vmatpush1.bf16.msra.mxu0 %v10080
    %10784 = vmatprep.subr.bf16.mxu0 0
    %10785 = vmatpush2.bf16.msra.mxu0 0
    %10786 = vmatprep.subr.bf16.mxu0 0
    %10787 = vmatpush2.bf16.msra.mxu0 0
    %10788 = vmatprep.subr.bf16.mxu0 0
    %10789 = vmatpush2.bf16.msra.mxu0 0
    %10790 = vmatprep.subr.bf16.mxu0 0
    %10791 = vmatpush2.bf16.msra.mxu0 0
    %10792 = vmatprep.subr.bf16.mxu0 0
    %10793 = vmatpush2.bf16.msra.mxu0 0
    %10794 = vmatprep.subr.bf16.mxu0 0
    %10795 = vmatpush2.bf16.msra.mxu0 0
    %10796 = vmatprep.subr.bf16.mxu0 0
    %10797 = vmatpush2.bf16.msra.mxu0 0
    %10798 = vmatprep.subr.bf16.mxu0 0
    %10799 = vmatpush2.bf16.msra.mxu0 0
    %10800 = vmatprep.mubr.bf16.mxu0 0
    %10801 = vmatmul.mubr.bf16.gmra.mxu0 %v9062
    %v10802 = vpop.f32.mrf.mxu0
    %v10803 = vadd.f32 %v10763, %v10802
    %v10804 = vpop.f32.mrf.mxu0
    %v10805 = vpop.f32.mrf.mxu0
    %v10806 = vpop.f32.mrf.mxu0
    %10807 = vdwg.mxu0
    %v10808 = vmax.f32 %v10803, 0.0
    %v10809 = vpack.c.bf16 %v10808, %v10808
    %v10810 = vld [vmem:[%s6] sm:$0xf]
    %v10811 = vld [vmem:[%s6 + $0x4] sm:$0xf]
    %v10812 = vld [vmem:[%s6 + $0x8] sm:$0xf]
    %v10813 = vld [vmem:[%s6 + $0xc] sm:$0xf]
    %v10814 = vld [vmem:[%s6 + $0x10] sm:$0xf]
    %v10815 = vld [vmem:[%s6 + $0x14] sm:$0xf]
    %v10816 = vld [vmem:[%s6 + $0x18] sm:$0xf]
    %v10817 = vld [vmem:[%s6 + $0x1c] sm:$0xf]
    %v10818 = vld [vmem:[%s6 + $0x20] sm:$0xf]
    %v10819 = vld [vmem:[%s6 + $0x24] sm:$0xf]
    %v10820 = vld [vmem:[%s6 + $0x28] sm:$0xf]
    %v10821 = vld [vmem:[%s6 + $0x2c] sm:$0xf]
    %v10822 = vld [vmem:[%s6 + $0x30] sm:$0xf]
    %v10823 = vld [vmem:[%s6 + $0x34] sm:$0xf]
    %v10824 = vld [vmem:[%s6 + $0x38] sm:$0xf]
    %v10825 = vld [vmem:[%s6 + $0x3c] sm:$0xf]
    %v10826 = vld [vmem:[%s7] sm:$0x1]
    %v10828 = vlaneseq
    %v10829 = vshrl.u32 %v10828, 7
    %v10830 = vsub.s32 0, %v10829
    %v10831 = vrot.slane %v10826, %v10830
    %v10849 = vunpack.c.l.b16 %v10810
    %v10850 = vunpack.c.l.b16 %v10811
    %v10851 = vunpack.c.l.b16 %v10812
    %v10852 = vunpack.c.l.b16 %v10813
    %v10853 = vunpack.c.l.b16 %v10814
    %v10854 = vunpack.c.l.b16 %v10815
    %v10855 = vunpack.c.l.b16 %v10816
    %v10856 = vunpack.c.l.b16 %v10817
    %v10857 = vunpack.c.l.b16 %v10818
    %v10858 = vunpack.c.l.b16 %v10819
    %v10859 = vunpack.c.l.b16 %v10820
    %v10860 = vunpack.c.l.b16 %v10821
    %v10861 = vunpack.c.l.b16 %v10822
    %v10862 = vunpack.c.l.b16 %v10823
    %v10863 = vunpack.c.l.b16 %v10824
    %v10864 = vunpack.c.l.b16 %v10825
    %v10865 = vpack.c.b16 %v10850, %v10849
    %v10866 = vpack.c.b16 %v10852, %v10851
    %v10867 = vpack.c.b16 %v10854, %v10853
    %v10868 = vpack.c.b16 %v10856, %v10855
    %v10869 = vpack.c.b16 %v10858, %v10857
    %v10870 = vpack.c.b16 %v10860, %v10859
    %v10871 = vpack.c.b16 %v10862, %v10861
    %v10872 = vpack.c.b16 %v10864, %v10863
    %10881 = vmatprep.subr.bf16.mxu0 0
    %10882 = vmatpush1.bf16.msra.mxu0 %v10872
    %10883 = vmatprep.subr.bf16.mxu0 0
    %10884 = vmatpush1.bf16.msra.mxu0 %v10871
    %10885 = vmatprep.subr.bf16.mxu0 0
    %10886 = vmatpush1.bf16.msra.mxu0 %v10870
    %10887 = vmatprep.subr.bf16.mxu0 0
    %10888 = vmatpush1.bf16.msra.mxu0 %v10869
    %10889 = vmatprep.subr.bf16.mxu0 0
    %10890 = vmatpush1.bf16.msra.mxu0 %v10868
    %10891 = vmatprep.subr.bf16.mxu0 0
    %10892 = vmatpush1.bf16.msra.mxu0 %v10867
    %10893 = vmatprep.subr.bf16.mxu0 0
    %10894 = vmatpush1.bf16.msra.mxu0 %v10866
    %10895 = vmatprep.subr.bf16.mxu0 0
    %10896 = vmatpush1.bf16.msra.mxu0 %v10865
    %10897 = vmatprep.subr.bf16.mxu0 0
    %10898 = vmatpush2.bf16.msra.mxu0 0
    %10899 = vmatprep.subr.bf16.mxu0 0
    %10900 = vmatpush2.bf16.msra.mxu0 0
    %10901 = vmatprep.subr.bf16.mxu0 0
    %10902 = vmatpush2.bf16.msra.mxu0 0
    %10903 = vmatprep.subr.bf16.mxu0 0
    %10904 = vmatpush2.bf16.msra.mxu0 0
    %10905 = vmatprep.subr.bf16.mxu0 0
    %10906 = vmatpush2.bf16.msra.mxu0 0
    %10907 = vmatprep.subr.bf16.mxu0 0
    %10908 = vmatpush2.bf16.msra.mxu0 0
    %10909 = vmatprep.subr.bf16.mxu0 0
    %10910 = vmatpush2.bf16.msra.mxu0 0
    %10911 = vmatprep.subr.bf16.mxu0 0
    %10912 = vmatpush2.bf16.msra.mxu0 0
    %10913 = vmatprep.mubr.bf16.mxu0 0
    %10914 = vmatmul.mubr.bf16.gmra.mxu0 %v10809
    %v10915 = vpop.f32.mrf.mxu0
    %v10916 = vadd.f32 %v10831, %v10915
    %v10917 = vpop.f32.mrf.mxu0
    %v10918 = vpop.f32.mrf.mxu0
    %v10919 = vpop.f32.mrf.mxu0
    %10920 = vdwg.mxu0
    %10921 = vst [vmem:[%s8] sm:$0xff] %v10916
    // Predicated region
    $region38: #{model_forward.1} parent=1 // pred_check
      _
    $region39: #{model_forward.1} parent=1 // pred_check_branch
      %10923 = sbr.rel (0) target = $region41
    $region40: #{model_forward.1} parent=1 // pred_region
      _
    $region41: #{model_forward.1} parent=1 // pred_fallthru
      _
    // Predicated region
    $region42: #{model_forward.1} parent=1 // pred_check
      _
    $region43: #{model_forward.1} parent=1 // pred_check_branch
      %10925 = sbr.rel (0) target = $region45
    $region44: #{model_forward.1} parent=1 // pred_region
      _
    $region45: #{model_forward.1} parent=1 // pred_fallthru
      _
    %10926 = vsyncpa [#allocation5], 1

</llo_original>
